<compile_context>
chip_gen: v7x
topology: tpu7x:2x2x1
jax: 0.10.0
libtpu: 0.0.40
codegen_flags: <defaults>
</compile_context>

<pallas_src>
import functools

import jax
import jax.numpy as jnp
from jax.experimental import pallas as pl
from jax.experimental.pallas import tpu as pltpu

FEATURES = 128
DEPTH = 50
IMAGE_CHANNELS = 1
BN_EPS = 1e-5   # PyTorch BatchNorm2d default
GUARD = 8       # guard rows in front of the padded image inside the flat VMEM slab


def _flat_dims(H, W):
    Hp, Wp = H + 2, W + 2
    rimg = Hp * Wp                      # rows of the flat padded image
    m = H * Wp                          # computed output rows (padded rows 1..H, full width)
    rtot = GUARD + rimg + GUARD         # flat activation buffer rows (incl. guards)
    rtot = -(-rtot // 8) * 8            # round up to sublane multiple
    return Hp, Wp, rimg, m, rtot


# ------------------------------ fused kernel -------------------------------- #

def _dncnn_kernel(H, W, x_ref, w_ref, ab_ref, mask_ref, o_ref,
                  act_a, act_b, res_ref, acc_ref):
    Hp, Wp, rimg, m, rtot = _flat_dims(H, W)
    out0 = GUARD + Wp                   # first written flat row (padded row 1, col 0)
    l = pl.program_id(1)
    n_layers = pl.num_programs(1)

    @pl.when(l == 0)
    def _init():
        # Zero halos/guards once per image; layers only ever rewrite the interior slab.
        act_a[...] = jnp.zeros_like(act_a)
        act_b[...] = jnp.zeros_like(act_b)
        res_ref[...] = jnp.zeros_like(res_ref)
        act_a[pl.ds(GUARD, rimg), :] = x_ref[...]

    def layer(src, dst):
        # 3x3 "same" conv == 3 K-packed MXU matmuls over contiguous flat slices.
        for dy in range(3):
            s0 = GUARD + dy * Wp - 1          # static flat offset of the dx=0 tap
            taps = jnp.concatenate(
                [src[pl.ds(s0 + dx, m), :] for dx in range(3)], axis=-1)  # (m, 3C) bf16
            part = jnp.dot(taps, w_ref[dy], preferred_element_type=jnp.float32)
            if dy == 0:
                acc_ref[...] = part
            else:
                acc_ref[...] += part

        # per-channel affine: conv bias or eval-mode-folded BatchNorm (f32)
        lin = acc_ref[...] * ab_ref[0:1, :] + ab_ref[1:2, :]
        mask = mask_ref[...]                  # (m, 1): zeroes the halo columns

        @pl.when(l < n_layers - 1)            # head + body layers: ReLU (+ residual)
        def _body():
            h = jnp.maximum(lin, 0.0)
            add_res = jnp.logical_and(l % 3 == 0, l > 0)   # end of each 3-conv block
            h = h + add_res.astype(jnp.float32) * res_ref[...]
            h = h * mask

            @pl.when(l % 3 == 0)              # after head and after every block
            def _save():
                res_ref[...] = h              # keep the residual chain in f32

            dst[pl.ds(out0, m), :] = h.astype(dst.dtype)

        @pl.when(l == n_layers - 1)           # tail conv -> Tanh -> output
        def _tail():
            o_ref[...] = (jnp.tanh(lin) * mask).astype(o_ref.dtype)

    # ping-pong between the two VMEM-resident activation slabs
    @pl.when(l % 2 == 0)
    def _even():
        layer(act_a, act_b)

    @pl.when(l % 2 == 1)
    def _odd():
        layer(act_b, act_a)


# ----------------------------- forward wrapper ------------------------------ #

def dncnn_forward(params, x_nchw):
    N, c, H, W = x_nchw.shape
    Hp, Wp, rimg, m, rtot = _flat_dims(H, W)
    CP = FEATURES
    w_all, ab_all = params["w"], params["ab"]
    L = w_all.shape[0]

    # NCHW -> flat padded NHWC.  A single pad of the tiny network input; every later
    # layer stays in the padded flat layout inside VMEM.
    x = jnp.transpose(x_nchw, (0, 2, 3, 1)).astype(jnp.float32)
    x = jnp.pad(x, ((0, 0), (1, 1), (1, 1), (0, CP - c)))
    x_flat = x.reshape(N, rimg, CP).astype(jnp.bfloat16)

    # mask of valid (interior) columns within the computed (m, C) slab
    col = jnp.arange(m, dtype=jnp.int32) % Wp
    mask = ((col >= 1) & (col <= W)).astype(jnp.float32).reshape(m, 1)

    kernel = functools.partial(_dncnn_kernel, H, W)
    out_flat = pl.pallas_call(
        kernel,
        out_shape=jax.ShapeDtypeStruct((N, m, CP), jnp.float32),
        grid=(N, L),
        in_specs=[
            pl.BlockSpec((None, rimg, CP), lambda n, l: (n, 0, 0)),          # image (per n)
            pl.BlockSpec((None, 3, 3 * CP, CP), lambda n, l: (l, 0, 0, 0)),  # weights (stream per layer)
            pl.BlockSpec((None, 2, CP), lambda n, l: (l, 0, 0)),             # scale/bias (per layer)
            pl.BlockSpec((m, 1), lambda n, l: (0, 0)),                       # halo-column mask
        ],
        out_specs=pl.BlockSpec((None, m, CP), lambda n, l: (n, 0, 0)),
        scratch_shapes=[
            pltpu.VMEM((rtot, CP), jnp.bfloat16),   # activation slab A
            pltpu.VMEM((rtot, CP), jnp.bfloat16),   # activation slab B
            pltpu.VMEM((m, CP), jnp.float32),       # residual (f32 chain)
            pltpu.VMEM((m, CP), jnp.float32),       # conv accumulator
        ],
        compiler_params=pltpu.CompilerParams(
            dimension_semantics=("parallel", "arbitrary")),
    )(x_flat, w_all, ab_all, mask)

    # drop halo columns and the zero-padded output channels, back to NCHW
    out = out_flat.reshape(N, H, Wp, CP)[:, :, 1:W + 1, :c]
    return jnp.transpose(out, (0, 3, 1, 2))


# --------------------------------- params ----------------------------------- #

def init_params(key, depth=DEPTH, image_channels=IMAGE_CHANNELS, features=FEATURES):
    n_blocks = (depth - 2) // 3          # 16 blocks of 3 convs each
    n_layers = 2 + 3 * n_blocks          # head + body + tail = 50
    keys = iter(jax.random.split(key, 4 + n_blocks * 3 * 5))

    w_list, s_list, b_list = [], [], []

    # head: Conv2d(image_channels -> 128, bias=True) (+ ReLU in the kernel).
    # Cin is zero-padded to 128 so the fused kernel uses one uniform weight stack
    # (the extra contraction work is 1/50 of the network).
    hw = jax.random.normal(next(keys), (3, 3, image_channels, features), jnp.float32) * 0.1
    hb = jax.random.normal(next(keys), (features,), jnp.float32) * 0.01
    w = jnp.zeros((3, 3, features, features), jnp.float32)
    w = w.at[:, :, :image_channels, :].set(hw)
    w_list.append(w)
    s_list.append(jnp.ones((features,), jnp.float32))
    b_list.append(hb)

    # body: 16 x 3 x [Conv(bias=False) -> BatchNorm2d -> ReLU]; residual added after
    # each 3-conv block in the kernel.
    # TODO(synk): training-mode BatchNorm (batch statistics) is not reproduced; the
    # eval-mode running-stats BN is folded into a per-channel scale/bias.
    std = (2.0 / (9 * features)) ** 0.5
    for _ in range(n_blocks):
        for _ in range(3):
            w = jax.random.normal(next(keys), (3, 3, features, features), jnp.float32) * std
            gamma = jax.random.uniform(next(keys), (features,), jnp.float32, 0.8, 1.2)
            beta = jax.random.normal(next(keys), (features,), jnp.float32) * 0.05
            mean = jax.random.normal(next(keys), (features,), jnp.float32) * 0.05
            var = jax.random.uniform(next(keys), (features,), jnp.float32, 0.8, 1.2)
            scale = gamma / jnp.sqrt(var + BN_EPS)
            w_list.append(w)
            s_list.append(scale)
            b_list.append(beta - mean * scale)

    # tail: Conv2d(128 -> image_channels, bias=True), Tanh applied in the kernel.
    # Cout is zero-padded to 128; real channels are sliced out in the wrapper.
    tw = jax.random.normal(next(keys), (3, 3, features, image_channels), jnp.float32) * 0.05
    tb = jax.random.normal(next(keys), (image_channels,), jnp.float32) * 0.01
    w = jnp.zeros((3, 3, features, features), jnp.float32)
    w = w.at[:, :, :, :image_channels].set(tw)
    w_list.append(w)
    s_list.append(jnp.ones((features,), jnp.float32))
    b_list.append(jnp.zeros((features,), jnp.float32).at[:image_channels].set(tb))

    assert len(w_list) == n_layers
    # Pack taps along K: (L, 3, 3*C, C) bf16 weight stack; (L, 2, C) f32 affine stack.
    w_all = jnp.stack([w.reshape(3, 3 * features, features) for w in w_list])
    ab_all = jnp.stack([jnp.stack([s, b]) for s, b in zip(s_list, b_list)])
    return {"w": w_all.astype(jnp.bfloat16), "ab": ab_all.astype(jnp.float32)}


# ----------------------------------- main ------------------------------------ #

if __name__ == "__main__":
    key = jax.random.PRNGKey(0)
    pkey, xkey = jax.random.split(key)
    params = init_params(pkey)
    x = jax.random.normal(xkey, (2, IMAGE_CHANNELS, 16, 16), jnp.float32)

    fwd = jax.jit(dncnn_forward)
    y = jax.block_until_ready(fwd(params, x))

    assert y.shape == (2, IMAGE_CHANNELS, 16, 16), y.shape
    assert bool(jnp.all(jnp.isfinite(y)))
    assert bool(jnp.all(jnp.abs(y) <= 1.0))   # tanh-bounded output
    print("KERNEL_OK")
</pallas_src>

<mosaic_0001>
module attributes {stable_mosaic.version = 11 : i64} {
  func.func @_dncnn_kernel(%arg0: i32, %arg1: i32, %arg2: memref<1x324x128xbf16, #tpu.memory_space<vmem>>, %arg3: memref<1x3x384x128xbf16, #tpu.memory_space<vmem>>, %arg4: memref<1x2x128xf32, #tpu.memory_space<vmem>>, %arg5: memref<288x1xf32, #tpu.memory_space<vmem>>, %arg6: memref<1x288x128xf32, #tpu.memory_space<vmem>>, %arg7: memref<344x128xbf16, #tpu.memory_space<vmem>>, %arg8: memref<344x128xbf16, #tpu.memory_space<vmem>>, %arg9: memref<288x128xf32, #tpu.memory_space<vmem>>, %arg10: memref<288x128xf32, #tpu.memory_space<vmem>>) attributes {dimension_semantics = [#tpu.dimension_semantics<parallel>, #tpu.dimension_semantics<arbitrary>], iteration_bounds = array<i64: 2, 50>, scalar_prefetch = 0 : i64, scratch_operands = 4 : i64, tpu.core_type = #tpu.core_type<tc>, window_params = [{transform_indices = @transform_0, window_bounds = array<i64: 1, 324, 128>}, {transform_indices = @transform_1, window_bounds = array<i64: 1, 3, 384, 128>}, {transform_indices = @transform_2, window_bounds = array<i64: 1, 2, 128>}, {pipeline_mode = #tpu.pipeline_mode<synchronous>, transform_indices = @transform_3, window_bounds = array<i64: 288, 1>}, {transform_indices = @transform_4, window_bounds = array<i64: 1, 288, 128>}]} {
    %c0_i32 = arith.constant 0 : i32
    %0 = arith.cmpi eq, %arg1, %c0_i32 : i32
    %1 = arith.extui %0 : i1 to i32
    %c0_i32_0 = arith.constant 0 : i32
    %2 = arith.cmpi ne, %1, %c0_i32_0 : i32
    scf.if %2 {
      %cst = arith.constant 0.000000e+00 : bf16
      %29 = vector.broadcast %cst : bf16 to vector<344x128xbf16>
      %c0 = arith.constant 0 : index
      %c0_15 = arith.constant 0 : index
      %30 = vector.load %arg7[%c0, %c0_15] : memref<344x128xbf16, #tpu.memory_space<vmem>>, vector<344x128xbf16>
      tpu.vector_store %arg7[%c0, %c0_15], %29 {strides = array<i32>} : memref<344x128xbf16, #tpu.memory_space<vmem>>, vector<344x128xbf16>,
      %cst_16 = arith.constant 0.000000e+00 : bf16
      %31 = vector.broadcast %cst_16 : bf16 to vector<344x128xbf16>
      %c0_17 = arith.constant 0 : index
      %c0_18 = arith.constant 0 : index
      %32 = vector.load %arg8[%c0_17, %c0_18] : memref<344x128xbf16, #tpu.memory_space<vmem>>, vector<344x128xbf16>
      tpu.vector_store %arg8[%c0_17, %c0_18], %31 {strides = array<i32>} : memref<344x128xbf16, #tpu.memory_space<vmem>>, vector<344x128xbf16>,
      %cst_19 = arith.constant 0.000000e+00 : f32
      %33 = vector.broadcast %cst_19 : f32 to vector<288x128xf32>
      %c0_20 = arith.constant 0 : index
      %c0_21 = arith.constant 0 : index
      %34 = vector.load %arg9[%c0_20, %c0_21] : memref<288x128xf32, #tpu.memory_space<vmem>>, vector<288x128xf32>
      tpu.vector_store %arg9[%c0_20, %c0_21], %33 {strides = array<i32>} : memref<288x128xf32, #tpu.memory_space<vmem>>, vector<288x128xf32>,
      %c0_22 = arith.constant 0 : index
      %c0_23 = arith.constant 0 : index
      %c0_24 = arith.constant 0 : index
      %35 = vector.load %arg2[%c0_22, %c0_23, %c0_24] : memref<1x324x128xbf16, #tpu.memory_space<vmem>>, vector<1x324x128xbf16>
      %36 = vector.shape_cast %35 : vector<1x324x128xbf16> to vector<324x128xbf16>
      %c8 = arith.constant 8 : index
      %c0_25 = arith.constant 0 : index
      %37 = vector.load %arg7[%c8, %c0_25] : memref<344x128xbf16, #tpu.memory_space<vmem>>, vector<324x128xbf16>
      tpu.vector_store %arg7[%c8, %c0_25], %36 {strides = array<i32>} : memref<344x128xbf16, #tpu.memory_space<vmem>>, vector<324x128xbf16>,
    } else {
    }
    %c2_i32 = arith.constant 2 : i32
    %c0_i32_1 = arith.constant 0 : i32
    %3 = arith.cmpi eq, %c2_i32, %c0_i32_1 : i32
    %c1_i32 = arith.constant 1 : i32
    %4 = arith.select %3, %c1_i32, %c2_i32 : i32
    %5 = arith.remsi %arg1, %4 : i32
    %c0_i32_2 = arith.constant 0 : i32
    %6 = arith.cmpi ne, %5, %c0_i32_2 : i32
    %c0_i32_3 = arith.constant 0 : i32
    %7 = arith.cmpi slt, %5, %c0_i32_3 : i32
    %c0_i32_4 = arith.constant 0 : i32
    %8 = arith.cmpi slt, %4, %c0_i32_4 : i32
    %9 = arith.xori %7, %8 : i1
    %10 = arith.andi %9, %6 : i1
    %11 = arith.addi %5, %4 : i32
    %12 = arith.select %10, %11, %5 : i32
    %c0_i32_5 = arith.constant 0 : i32
    %13 = arith.cmpi eq, %12, %c0_i32_5 : i32
    %14 = arith.extui %13 : i1 to i32
    %c0_i32_6 = arith.constant 0 : i32
    %15 = arith.cmpi ne, %14, %c0_i32_6 : i32
    scf.if %15 {
      %c7 = arith.constant 7 : index
      %c0 = arith.constant 0 : index
      %29 = vector.load %arg7[%c7, %c0] : memref<344x128xbf16, #tpu.memory_space<vmem>>, vector<288x128xbf16>
      %c8 = arith.constant 8 : index
      %c0_15 = arith.constant 0 : index
      %30 = vector.load %arg7[%c8, %c0_15] : memref<344x128xbf16, #tpu.memory_space<vmem>>, vector<288x128xbf16>
      %c9 = arith.constant 9 : index
      %c0_16 = arith.constant 0 : index
      %31 = vector.load %arg7[%c9, %c0_16] : memref<344x128xbf16, #tpu.memory_space<vmem>>, vector<288x128xbf16>
      %32 = tpu.concatenate %29, %30, %31 in 1 : vector<288x128xbf16>, vector<288x128xbf16>, vector<288x128xbf16> -> vector<288x384xbf16>
      %c0_17 = arith.constant 0 : index
      %c0_18 = arith.constant 0 : index
      %c0_19 = arith.constant 0 : index
      %c0_20 = arith.constant 0 : index
      %33 = vector.load %arg3[%c0_17, %c0_18, %c0_19, %c0_20] : memref<1x3x384x128xbf16, #tpu.memory_space<vmem>>, vector<1x1x384x128xbf16>
      %34 = vector.shape_cast %33 : vector<1x1x384x128xbf16> to vector<384x128xbf16>
      %cst = arith.constant dense<0.000000e+00> : vector<288x128xf32>
      %35 = tpu.matmul %32, %34, %cst {dimension_numbers = #tpu.dot_dimension_numbers<[1], [0], [0], [1], [0, 0, 1, 1], [], []>} : vector<288x384xbf16>, vector<384x128xbf16>, vector<288x128xf32> -> vector<288x128xf32>
      %c0_21 = arith.constant 0 : index
      %c0_22 = arith.constant 0 : index
      %36 = vector.load %arg10[%c0_21, %c0_22] : memref<288x128xf32, #tpu.memory_space<vmem>>, vector<288x128xf32>
      tpu.vector_store %arg10[%c0_21, %c0_22], %35 {strides = array<i32>} : memref<288x128xf32, #tpu.memory_space<vmem>>, vector<288x128xf32>,
      %c25 = arith.constant 25 : index
      %c0_23 = arith.constant 0 : index
      %37 = vector.load %arg7[%c25, %c0_23] : memref<344x128xbf16, #tpu.memory_space<vmem>>, vector<288x128xbf16>
      %c26 = arith.constant 26 : index
      %c0_24 = arith.constant 0 : index
      %38 = vector.load %arg7[%c26, %c0_24] : memref<344x128xbf16, #tpu.memory_space<vmem>>, vector<288x128xbf16>
      %c27 = arith.constant 27 : index
      %c0_25 = arith.constant 0 : index
      %39 = vector.load %arg7[%c27, %c0_25] : memref<344x128xbf16, #tpu.memory_space<vmem>>, vector<288x128xbf16>
      %40 = tpu.concatenate %37, %38, %39 in 1 : vector<288x128xbf16>, vector<288x128xbf16>, vector<288x128xbf16> -> vector<288x384xbf16>
      %c0_26 = arith.constant 0 : index
      %c1 = arith.constant 1 : index
      %c0_27 = arith.constant 0 : index
      %c0_28 = arith.constant 0 : index
      %41 = vector.load %arg3[%c0_26, %c1, %c0_27, %c0_28] : memref<1x3x384x128xbf16, #tpu.memory_space<vmem>>, vector<1x1x384x128xbf16>
      %42 = vector.shape_cast %41 : vector<1x1x384x128xbf16> to vector<384x128xbf16>
      %cst_29 = arith.constant dense<0.000000e+00> : vector<288x128xf32>
      %43 = tpu.matmul %40, %42, %cst_29 {dimension_numbers = #tpu.dot_dimension_numbers<[1], [0], [0], [1], [0, 0, 1, 1], [], []>} : vector<288x384xbf16>, vector<384x128xbf16>, vector<288x128xf32> -> vector<288x128xf32>
      %c0_30 = arith.constant 0 : index
      %c0_31 = arith.constant 0 : index
      %44 = vector.load %arg10[%c0_30, %c0_31] : memref<288x128xf32, #tpu.memory_space<vmem>>, vector<288x128xf32>
      %45 = arith.addf %44, %43 : vector<288x128xf32>
      %c0_32 = arith.constant 0 : index
      %c0_33 = arith.constant 0 : index
      %46 = vector.load %arg10[%c0_32, %c0_33] : memref<288x128xf32, #tpu.memory_space<vmem>>, vector<288x128xf32>
      tpu.vector_store %arg10[%c0_32, %c0_33], %45 {strides = array<i32>} : memref<288x128xf32, #tpu.memory_space<vmem>>, vector<288x128xf32>,
      %c43 = arith.constant 43 : index
      %c0_34 = arith.constant 0 : index
      %47 = vector.load %arg7[%c43, %c0_34] : memref<344x128xbf16, #tpu.memory_space<vmem>>, vector<288x128xbf16>
      %c44 = arith.constant 44 : index
      %c0_35 = arith.constant 0 : index
      %48 = vector.load %arg7[%c44, %c0_35] : memref<344x128xbf16, #tpu.memory_space<vmem>>, vector<288x128xbf16>
      %c45 = arith.constant 45 : index
      %c0_36 = arith.constant 0 : index
      %49 = vector.load %arg7[%c45, %c0_36] : memref<344x128xbf16, #tpu.memory_space<vmem>>, vector<288x128xbf16>
      %50 = tpu.concatenate %47, %48, %49 in 1 : vector<288x128xbf16>, vector<288x128xbf16>, vector<288x128xbf16> -> vector<288x384xbf16>
      %c0_37 = arith.constant 0 : index
      %c2 = arith.constant 2 : index
      %c0_38 = arith.constant 0 : index
      %c0_39 = arith.constant 0 : index
      %51 = vector.load %arg3[%c0_37, %c2, %c0_38, %c0_39] : memref<1x3x384x128xbf16, #tpu.memory_space<vmem>>, vector<1x1x384x128xbf16>
      %52 = vector.shape_cast %51 : vector<1x1x384x128xbf16> to vector<384x128xbf16>
      %cst_40 = arith.constant dense<0.000000e+00> : vector<288x128xf32>
      %53 = tpu.matmul %50, %52, %cst_40 {dimension_numbers = #tpu.dot_dimension_numbers<[1], [0], [0], [1], [0, 0, 1, 1], [], []>} : vector<288x384xbf16>, vector<384x128xbf16>, vector<288x128xf32> -> vector<288x128xf32>
      %c0_41 = arith.constant 0 : index
      %c0_42 = arith.constant 0 : index
      %54 = vector.load %arg10[%c0_41, %c0_42] : memref<288x128xf32, #tpu.memory_space<vmem>>, vector<288x128xf32>
      %55 = arith.addf %54, %53 : vector<288x128xf32>
      %c0_43 = arith.constant 0 : index
      %c0_44 = arith.constant 0 : index
      %56 = vector.load %arg10[%c0_43, %c0_44] : memref<288x128xf32, #tpu.memory_space<vmem>>, vector<288x128xf32>
      tpu.vector_store %arg10[%c0_43, %c0_44], %55 {strides = array<i32>} : memref<288x128xf32, #tpu.memory_space<vmem>>, vector<288x128xf32>,
      %c0_45 = arith.constant 0 : index
      %c0_46 = arith.constant 0 : index
      %57 = vector.load %arg10[%c0_45, %c0_46] : memref<288x128xf32, #tpu.memory_space<vmem>>, vector<288x128xf32>
      %c0_47 = arith.constant 0 : index
      %c0_48 = arith.constant 0 : index
      %c0_49 = arith.constant 0 : index
      %58 = vector.load %arg4[%c0_47, %c0_48, %c0_49] : memref<1x2x128xf32, #tpu.memory_space<vmem>>, vector<1x1x128xf32>
      %59 = vector.shape_cast %58 : vector<1x1x128xf32> to vector<1x128xf32>
      %60 = vector.broadcast %59 : vector<1x128xf32> to vector<288x128xf32>
      %61 = arith.mulf %57, %60 : vector<288x128xf32>
      %c0_50 = arith.constant 0 : index
      %c1_51 = arith.constant 1 : index
      %c0_52 = arith.constant 0 : index
      %62 = vector.load %arg4[%c0_50, %c1_51, %c0_52] : memref<1x2x128xf32, #tpu.memory_space<vmem>>, vector<1x1x128xf32>
      %63 = vector.shape_cast %62 : vector<1x1x128xf32> to vector<1x128xf32>
      %64 = vector.broadcast %63 : vector<1x128xf32> to vector<288x128xf32>
      %65 = arith.addf %61, %64 : vector<288x128xf32>
      %c0_53 = arith.constant 0 : index
      %c0_54 = arith.constant 0 : index
      %66 = vector.load %arg5[%c0_53, %c0_54] : memref<288x1xf32, #tpu.memory_space<vmem>>, vector<288x1xf32>
      %c49_i32 = arith.constant 49 : i32
      %67 = arith.cmpi slt, %arg1, %c49_i32 : i32
      %68 = arith.extui %67 : i1 to i32
      %c0_i32_55 = arith.constant 0 : i32
      %69 = arith.cmpi ne, %68, %c0_i32_55 : i32
      scf.if %69 {
        %cst_58 = arith.constant 0.000000e+00 : f32
        %73 = vector.broadcast %cst_58 : f32 to vector<288x128xf32>
        %74 = arith.maximumf %65, %73 : vector<288x128xf32>
        %c3_i32 = arith.constant 3 : i32
        %c0_i32_59 = arith.constant 0 : i32
        %75 = arith.cmpi eq, %c3_i32, %c0_i32_59 : i32
        %c1_i32_60 = arith.constant 1 : i32
        %76 = arith.select %75, %c1_i32_60, %c3_i32 : i32
        %77 = arith.remsi %arg1, %76 : i32
        %c0_i32_61 = arith.constant 0 : i32
        %78 = arith.cmpi ne, %77, %c0_i32_61 : i32
        %c0_i32_62 = arith.constant 0 : i32
        %79 = arith.cmpi slt, %77, %c0_i32_62 : i32
        %c0_i32_63 = arith.constant 0 : i32
        %80 = arith.cmpi slt, %76, %c0_i32_63 : i32
        %81 = arith.xori %79, %80 : i1
        %82 = arith.andi %81, %78 : i1
        %83 = arith.addi %77, %76 : i32
        %84 = arith.select %82, %83, %77 : i32
        %c0_i32_64 = arith.constant 0 : i32
        %85 = arith.cmpi eq, %84, %c0_i32_64 : i32
        %c0_i32_65 = arith.constant 0 : i32
        %86 = arith.cmpi sgt, %arg1, %c0_i32_65 : i32
        %87 = arith.andi %85, %86 : i1
        %88 = arith.extui %87 : i1 to i32
        %89 = arith.sitofp %88 : i32 to f32
        %c0_66 = arith.constant 0 : index
        %c0_67 = arith.constant 0 : index
        %90 = vector.load %arg9[%c0_66, %c0_67] : memref<288x128xf32, #tpu.memory_space<vmem>>, vector<288x128xf32>
        %91 = vector.broadcast %89 : f32 to vector<288x128xf32>
        %92 = arith.mulf %91, %90 : vector<288x128xf32>
        %93 = arith.addf %74, %92 : vector<288x128xf32>
        %94 = vector.broadcast %66 : vector<288x1xf32> to vector<288x128xf32>
        %95 = arith.mulf %93, %94 : vector<288x128xf32>
        %c3_i32_68 = arith.constant 3 : i32
        %c0_i32_69 = arith.constant 0 : i32
        %96 = arith.cmpi eq, %c3_i32_68, %c0_i32_69 : i32
        %c1_i32_70 = arith.constant 1 : i32
        %97 = arith.select %96, %c1_i32_70, %c3_i32_68 : i32
        %98 = arith.remsi %arg1, %97 : i32
        %c0_i32_71 = arith.constant 0 : i32
        %99 = arith.cmpi ne, %98, %c0_i32_71 : i32
        %c0_i32_72 = arith.constant 0 : i32
        %100 = arith.cmpi slt, %98, %c0_i32_72 : i32
        %c0_i32_73 = arith.constant 0 : i32
        %101 = arith.cmpi slt, %97, %c0_i32_73 : i32
        %102 = arith.xori %100, %101 : i1
        %103 = arith.andi %102, %99 : i1
        %104 = arith.addi %98, %97 : i32
        %105 = arith.select %103, %104, %98 : i32
        %c0_i32_74 = arith.constant 0 : i32
        %106 = arith.cmpi eq, %105, %c0_i32_74 : i32
        %107 = arith.extui %106 : i1 to i32
        %c0_i32_75 = arith.constant 0 : i32
        %108 = arith.cmpi ne, %107, %c0_i32_75 : i32
        scf.if %108 {
          %c0_78 = arith.constant 0 : index
          %c0_79 = arith.constant 0 : index
          %111 = vector.load %arg9[%c0_78, %c0_79] : memref<288x128xf32, #tpu.memory_space<vmem>>, vector<288x128xf32>
          tpu.vector_store %arg9[%c0_78, %c0_79], %95 {strides = array<i32>} : memref<288x128xf32, #tpu.memory_space<vmem>>, vector<288x128xf32>,
        } else {
        }
        %109 = arith.truncf %95 : vector<288x128xf32> to vector<288x128xbf16>
        %c26_76 = arith.constant 26 : index
        %c0_77 = arith.constant 0 : index
        %110 = vector.load %arg8[%c26_76, %c0_77] : memref<344x128xbf16, #tpu.memory_space<vmem>>, vector<288x128xbf16>
        tpu.vector_store %arg8[%c26_76, %c0_77], %109 {strides = array<i32>} : memref<344x128xbf16, #tpu.memory_space<vmem>>, vector<288x128xbf16>,
      } else {
      }
      %c49_i32_56 = arith.constant 49 : i32
      %70 = arith.cmpi eq, %arg1, %c49_i32_56 : i32
      %71 = arith.extui %70 : i1 to i32
      %c0_i32_57 = arith.constant 0 : i32
      %72 = arith.cmpi ne, %71, %c0_i32_57 : i32
      scf.if %72 {
        %73 = math.tanh %65 : vector<288x128xf32>
        %74 = vector.broadcast %66 : vector<288x1xf32> to vector<288x128xf32>
        %75 = arith.mulf %73, %74 : vector<288x128xf32>
        %c0_58 = arith.constant 0 : index
        %c0_59 = arith.constant 0 : index
        %c0_60 = arith.constant 0 : index
        %76 = vector.load %arg6[%c0_58, %c0_59, %c0_60] : memref<1x288x128xf32, #tpu.memory_space<vmem>>, vector<1x288x128xf32>
        %77 = vector.shape_cast %76 : vector<1x288x128xf32> to vector<288x128xf32>
        %78 = vector.shape_cast %75 : vector<288x128xf32> to vector<1x288x128xf32>
        tpu.vector_store %arg6[%c0_58, %c0_59, %c0_60], %78 {strides = array<i32>} : memref<1x288x128xf32, #tpu.memory_space<vmem>>, vector<1x288x128xf32>,
      } else {
      }
    } else {
    }
    %c2_i32_7 = arith.constant 2 : i32
    %c0_i32_8 = arith.constant 0 : i32
    %16 = arith.cmpi eq, %c2_i32_7, %c0_i32_8 : i32
    %c1_i32_9 = arith.constant 1 : i32
    %17 = arith.select %16, %c1_i32_9, %c2_i32_7 : i32
    %18 = arith.remsi %arg1, %17 : i32
    %c0_i32_10 = arith.constant 0 : i32
    %19 = arith.cmpi ne, %18, %c0_i32_10 : i32
    %c0_i32_11 = arith.constant 0 : i32
    %20 = arith.cmpi slt, %18, %c0_i32_11 : i32
    %c0_i32_12 = arith.constant 0 : i32
    %21 = arith.cmpi slt, %17, %c0_i32_12 : i32
    %22 = arith.xori %20, %21 : i1
    %23 = arith.andi %22, %19 : i1
    %24 = arith.addi %18, %17 : i32
    %25 = arith.select %23, %24, %18 : i32
    %c1_i32_13 = arith.constant 1 : i32
    %26 = arith.cmpi eq, %25, %c1_i32_13 : i32
    %27 = arith.extui %26 : i1 to i32
    %c0_i32_14 = arith.constant 0 : i32
    %28 = arith.cmpi ne, %27, %c0_i32_14 : i32
    scf.if %28 {
      %c7 = arith.constant 7 : index
      %c0 = arith.constant 0 : index
      %29 = vector.load %arg8[%c7, %c0] : memref<344x128xbf16, #tpu.memory_space<vmem>>, vector<288x128xbf16>
      %c8 = arith.constant 8 : index
      %c0_15 = arith.constant 0 : index
      %30 = vector.load %arg8[%c8, %c0_15] : memref<344x128xbf16, #tpu.memory_space<vmem>>, vector<288x128xbf16>
      %c9 = arith.constant 9 : index
      %c0_16 = arith.constant 0 : index
      %31 = vector.load %arg8[%c9, %c0_16] : memref<344x128xbf16, #tpu.memory_space<vmem>>, vector<288x128xbf16>
      %32 = tpu.concatenate %29, %30, %31 in 1 : vector<288x128xbf16>, vector<288x128xbf16>, vector<288x128xbf16> -> vector<288x384xbf16>
      %c0_17 = arith.constant 0 : index
      %c0_18 = arith.constant 0 : index
      %c0_19 = arith.constant 0 : index
      %c0_20 = arith.constant 0 : index
      %33 = vector.load %arg3[%c0_17, %c0_18, %c0_19, %c0_20] : memref<1x3x384x128xbf16, #tpu.memory_space<vmem>>, vector<1x1x384x128xbf16>
      %34 = vector.shape_cast %33 : vector<1x1x384x128xbf16> to vector<384x128xbf16>
      %cst = arith.constant dense<0.000000e+00> : vector<288x128xf32>
      %35 = tpu.matmul %32, %34, %cst {dimension_numbers = #tpu.dot_dimension_numbers<[1], [0], [0], [1], [0, 0, 1, 1], [], []>} : vector<288x384xbf16>, vector<384x128xbf16>, vector<288x128xf32> -> vector<288x128xf32>
      %c0_21 = arith.constant 0 : index
      %c0_22 = arith.constant 0 : index
      %36 = vector.load %arg10[%c0_21, %c0_22] : memref<288x128xf32, #tpu.memory_space<vmem>>, vector<288x128xf32>
      tpu.vector_store %arg10[%c0_21, %c0_22], %35 {strides = array<i32>} : memref<288x128xf32, #tpu.memory_space<vmem>>, vector<288x128xf32>,
      %c25 = arith.constant 25 : index
      %c0_23 = arith.constant 0 : index
      %37 = vector.load %arg8[%c25, %c0_23] : memref<344x128xbf16, #tpu.memory_space<vmem>>, vector<288x128xbf16>
      %c26 = arith.constant 26 : index
      %c0_24 = arith.constant 0 : index
      %38 = vector.load %arg8[%c26, %c0_24] : memref<344x128xbf16, #tpu.memory_space<vmem>>, vector<288x128xbf16>
      %c27 = arith.constant 27 : index
      %c0_25 = arith.constant 0 : index
      %39 = vector.load %arg8[%c27, %c0_25] : memref<344x128xbf16, #tpu.memory_space<vmem>>, vector<288x128xbf16>
      %40 = tpu.concatenate %37, %38, %39 in 1 : vector<288x128xbf16>, vector<288x128xbf16>, vector<288x128xbf16> -> vector<288x384xbf16>
      %c0_26 = arith.constant 0 : index
      %c1 = arith.constant 1 : index
      %c0_27 = arith.constant 0 : index
      %c0_28 = arith.constant 0 : index
      %41 = vector.load %arg3[%c0_26, %c1, %c0_27, %c0_28] : memref<1x3x384x128xbf16, #tpu.memory_space<vmem>>, vector<1x1x384x128xbf16>
      %42 = vector.shape_cast %41 : vector<1x1x384x128xbf16> to vector<384x128xbf16>
      %cst_29 = arith.constant dense<0.000000e+00> : vector<288x128xf32>
      %43 = tpu.matmul %40, %42, %cst_29 {dimension_numbers = #tpu.dot_dimension_numbers<[1], [0], [0], [1], [0, 0, 1, 1], [], []>} : vector<288x384xbf16>, vector<384x128xbf16>, vector<288x128xf32> -> vector<288x128xf32>
      %c0_30 = arith.constant 0 : index
      %c0_31 = arith.constant 0 : index
      %44 = vector.load %arg10[%c0_30, %c0_31] : memref<288x128xf32, #tpu.memory_space<vmem>>, vector<288x128xf32>
      %45 = arith.addf %44, %43 : vector<288x128xf32>
      %c0_32 = arith.constant 0 : index
      %c0_33 = arith.constant 0 : index
      %46 = vector.load %arg10[%c0_32, %c0_33] : memref<288x128xf32, #tpu.memory_space<vmem>>, vector<288x128xf32>
      tpu.vector_store %arg10[%c0_32, %c0_33], %45 {strides = array<i32>} : memref<288x128xf32, #tpu.memory_space<vmem>>, vector<288x128xf32>,
      %c43 = arith.constant 43 : index
      %c0_34 = arith.constant 0 : index
      %47 = vector.load %arg8[%c43, %c0_34] : memref<344x128xbf16, #tpu.memory_space<vmem>>, vector<288x128xbf16>
      %c44 = arith.constant 44 : index
      %c0_35 = arith.constant 0 : index
      %48 = vector.load %arg8[%c44, %c0_35] : memref<344x128xbf16, #tpu.memory_space<vmem>>, vector<288x128xbf16>
      %c45 = arith.constant 45 : index
      %c0_36 = arith.constant 0 : index
      %49 = vector.load %arg8[%c45, %c0_36] : memref<344x128xbf16, #tpu.memory_space<vmem>>, vector<288x128xbf16>
      %50 = tpu.concatenate %47, %48, %49 in 1 : vector<288x128xbf16>, vector<288x128xbf16>, vector<288x128xbf16> -> vector<288x384xbf16>
      %c0_37 = arith.constant 0 : index
      %c2 = arith.constant 2 : index
      %c0_38 = arith.constant 0 : index
      %c0_39 = arith.constant 0 : index
      %51 = vector.load %arg3[%c0_37, %c2, %c0_38, %c0_39] : memref<1x3x384x128xbf16, #tpu.memory_space<vmem>>, vector<1x1x384x128xbf16>
      %52 = vector.shape_cast %51 : vector<1x1x384x128xbf16> to vector<384x128xbf16>
      %cst_40 = arith.constant dense<0.000000e+00> : vector<288x128xf32>
      %53 = tpu.matmul %50, %52, %cst_40 {dimension_numbers = #tpu.dot_dimension_numbers<[1], [0], [0], [1], [0, 0, 1, 1], [], []>} : vector<288x384xbf16>, vector<384x128xbf16>, vector<288x128xf32> -> vector<288x128xf32>
      %c0_41 = arith.constant 0 : index
      %c0_42 = arith.constant 0 : index
      %54 = vector.load %arg10[%c0_41, %c0_42] : memref<288x128xf32, #tpu.memory_space<vmem>>, vector<288x128xf32>
      %55 = arith.addf %54, %53 : vector<288x128xf32>
      %c0_43 = arith.constant 0 : index
      %c0_44 = arith.constant 0 : index
      %56 = vector.load %arg10[%c0_43, %c0_44] : memref<288x128xf32, #tpu.memory_space<vmem>>, vector<288x128xf32>
      tpu.vector_store %arg10[%c0_43, %c0_44], %55 {strides = array<i32>} : memref<288x128xf32, #tpu.memory_space<vmem>>, vector<288x128xf32>,
      %c0_45 = arith.constant 0 : index
      %c0_46 = arith.constant 0 : index
      %57 = vector.load %arg10[%c0_45, %c0_46] : memref<288x128xf32, #tpu.memory_space<vmem>>, vector<288x128xf32>
      %c0_47 = arith.constant 0 : index
      %c0_48 = arith.constant 0 : index
      %c0_49 = arith.constant 0 : index
      %58 = vector.load %arg4[%c0_47, %c0_48, %c0_49] : memref<1x2x128xf32, #tpu.memory_space<vmem>>, vector<1x1x128xf32>
      %59 = vector.shape_cast %58 : vector<1x1x128xf32> to vector<1x128xf32>
      %60 = vector.broadcast %59 : vector<1x128xf32> to vector<288x128xf32>
      %61 = arith.mulf %57, %60 : vector<288x128xf32>
      %c0_50 = arith.constant 0 : index
      %c1_51 = arith.constant 1 : index
      %c0_52 = arith.constant 0 : index
      %62 = vector.load %arg4[%c0_50, %c1_51, %c0_52] : memref<1x2x128xf32, #tpu.memory_space<vmem>>, vector<1x1x128xf32>
      %63 = vector.shape_cast %62 : vector<1x1x128xf32> to vector<1x128xf32>
      %64 = vector.broadcast %63 : vector<1x128xf32> to vector<288x128xf32>
      %65 = arith.addf %61, %64 : vector<288x128xf32>
      %c0_53 = arith.constant 0 : index
      %c0_54 = arith.constant 0 : index
      %66 = vector.load %arg5[%c0_53, %c0_54] : memref<288x1xf32, #tpu.memory_space<vmem>>, vector<288x1xf32>
      %c49_i32 = arith.constant 49 : i32
      %67 = arith.cmpi slt, %arg1, %c49_i32 : i32
      %68 = arith.extui %67 : i1 to i32
      %c0_i32_55 = arith.constant 0 : i32
      %69 = arith.cmpi ne, %68, %c0_i32_55 : i32
      scf.if %69 {
        %cst_58 = arith.constant 0.000000e+00 : f32
        %73 = vector.broadcast %cst_58 : f32 to vector<288x128xf32>
        %74 = arith.maximumf %65, %73 : vector<288x128xf32>
        %c3_i32 = arith.constant 3 : i32
        %c0_i32_59 = arith.constant 0 : i32
        %75 = arith.cmpi eq, %c3_i32, %c0_i32_59 : i32
        %c1_i32_60 = arith.constant 1 : i32
        %76 = arith.select %75, %c1_i32_60, %c3_i32 : i32
        %77 = arith.remsi %arg1, %76 : i32
        %c0_i32_61 = arith.constant 0 : i32
        %78 = arith.cmpi ne, %77, %c0_i32_61 : i32
        %c0_i32_62 = arith.constant 0 : i32
        %79 = arith.cmpi slt, %77, %c0_i32_62 : i32
        %c0_i32_63 = arith.constant 0 : i32
        %80 = arith.cmpi slt, %76, %c0_i32_63 : i32
        %81 = arith.xori %79, %80 : i1
        %82 = arith.andi %81, %78 : i1
        %83 = arith.addi %77, %76 : i32
        %84 = arith.select %82, %83, %77 : i32
        %c0_i32_64 = arith.constant 0 : i32
        %85 = arith.cmpi eq, %84, %c0_i32_64 : i32
        %c0_i32_65 = arith.constant 0 : i32
        %86 = arith.cmpi sgt, %arg1, %c0_i32_65 : i32
        %87 = arith.andi %85, %86 : i1
        %88 = arith.extui %87 : i1 to i32
        %89 = arith.sitofp %88 : i32 to f32
        %c0_66 = arith.constant 0 : index
        %c0_67 = arith.constant 0 : index
        %90 = vector.load %arg9[%c0_66, %c0_67] : memref<288x128xf32, #tpu.memory_space<vmem>>, vector<288x128xf32>
        %91 = vector.broadcast %89 : f32 to vector<288x128xf32>
        %92 = arith.mulf %91, %90 : vector<288x128xf32>
        %93 = arith.addf %74, %92 : vector<288x128xf32>
        %94 = vector.broadcast %66 : vector<288x1xf32> to vector<288x128xf32>
        %95 = arith.mulf %93, %94 : vector<288x128xf32>
        %c3_i32_68 = arith.constant 3 : i32
        %c0_i32_69 = arith.constant 0 : i32
        %96 = arith.cmpi eq, %c3_i32_68, %c0_i32_69 : i32
        %c1_i32_70 = arith.constant 1 : i32
        %97 = arith.select %96, %c1_i32_70, %c3_i32_68 : i32
        %98 = arith.remsi %arg1, %97 : i32
        %c0_i32_71 = arith.constant 0 : i32
        %99 = arith.cmpi ne, %98, %c0_i32_71 : i32
        %c0_i32_72 = arith.constant 0 : i32
        %100 = arith.cmpi slt, %98, %c0_i32_72 : i32
        %c0_i32_73 = arith.constant 0 : i32
        %101 = arith.cmpi slt, %97, %c0_i32_73 : i32
        %102 = arith.xori %100, %101 : i1
        %103 = arith.andi %102, %99 : i1
        %104 = arith.addi %98, %97 : i32
        %105 = arith.select %103, %104, %98 : i32
        %c0_i32_74 = arith.constant 0 : i32
        %106 = arith.cmpi eq, %105, %c0_i32_74 : i32
        %107 = arith.extui %106 : i1 to i32
        %c0_i32_75 = arith.constant 0 : i32
        %108 = arith.cmpi ne, %107, %c0_i32_75 : i32
        scf.if %108 {
          %c0_78 = arith.constant 0 : index
          %c0_79 = arith.constant 0 : index
          %111 = vector.load %arg9[%c0_78, %c0_79] : memref<288x128xf32, #tpu.memory_space<vmem>>, vector<288x128xf32>
          tpu.vector_store %arg9[%c0_78, %c0_79], %95 {strides = array<i32>} : memref<288x128xf32, #tpu.memory_space<vmem>>, vector<288x128xf32>,
        } else {
        }
        %109 = arith.truncf %95 : vector<288x128xf32> to vector<288x128xbf16>
        %c26_76 = arith.constant 26 : index
        %c0_77 = arith.constant 0 : index
        %110 = vector.load %arg7[%c26_76, %c0_77] : memref<344x128xbf16, #tpu.memory_space<vmem>>, vector<288x128xbf16>
        tpu.vector_store %arg7[%c26_76, %c0_77], %109 {strides = array<i32>} : memref<344x128xbf16, #tpu.memory_space<vmem>>, vector<288x128xbf16>,
      } else {
      }
      %c49_i32_56 = arith.constant 49 : i32
      %70 = arith.cmpi eq, %arg1, %c49_i32_56 : i32
      %71 = arith.extui %70 : i1 to i32
      %c0_i32_57 = arith.constant 0 : i32
      %72 = arith.cmpi ne, %71, %c0_i32_57 : i32
      scf.if %72 {
        %73 = math.tanh %65 : vector<288x128xf32>
        %74 = vector.broadcast %66 : vector<288x1xf32> to vector<288x128xf32>
        %75 = arith.mulf %73, %74 : vector<288x128xf32>
        %c0_58 = arith.constant 0 : index
        %c0_59 = arith.constant 0 : index
        %c0_60 = arith.constant 0 : index
        %76 = vector.load %arg6[%c0_58, %c0_59, %c0_60] : memref<1x288x128xf32, #tpu.memory_space<vmem>>, vector<1x288x128xf32>
        %77 = vector.shape_cast %76 : vector<1x288x128xf32> to vector<288x128xf32>
        %78 = vector.shape_cast %75 : vector<288x128xf32> to vector<1x288x128xf32>
        tpu.vector_store %arg6[%c0_58, %c0_59, %c0_60], %78 {strides = array<i32>} : memref<1x288x128xf32, #tpu.memory_space<vmem>>, vector<1x288x128xf32>,
      } else {
      }
    } else {
    }
    return
  }
  func.func @transform_0(%arg0: i32, %arg1: i32) -> (i32, i32, i32) {
    %c0_i32 = arith.constant 0 : i32
    %c0_i32_0 = arith.constant 0 : i32
    %c0_i32_1 = arith.constant 0 : i32
    return %arg0, %c0_i32, %c0_i32_0 : i32, i32, i32
  }
  func.func @transform_1(%arg0: i32, %arg1: i32) -> (i32, i32, i32, i32) {
    %c0_i32 = arith.constant 0 : i32
    %c0_i32_0 = arith.constant 0 : i32
    %c0_i32_1 = arith.constant 0 : i32
    %c0_i32_2 = arith.constant 0 : i32
    return %arg1, %c0_i32, %c0_i32_0, %c0_i32_1 : i32, i32, i32, i32
  }
  func.func @transform_2(%arg0: i32, %arg1: i32) -> (i32, i32, i32) {
    %c0_i32 = arith.constant 0 : i32
    %c0_i32_0 = arith.constant 0 : i32
    %c0_i32_1 = arith.constant 0 : i32
    return %arg1, %c0_i32, %c0_i32_0 : i32, i32, i32
  }
  func.func @transform_3(%arg0: i32, %arg1: i32) -> (i32, i32) {
    %c0_i32 = arith.constant 0 : i32
    %c0_i32_0 = arith.constant 0 : i32
    %c0_i32_1 = arith.constant 0 : i32
    return %c0_i32, %c0_i32_0 : i32, i32
  }
  func.func @transform_4(%arg0: i32, %arg1: i32) -> (i32, i32, i32) {
    %c0_i32 = arith.constant 0 : i32
    %c0_i32_0 = arith.constant 0 : i32
    %c0_i32_1 = arith.constant 0 : i32
    return %arg0, %c0_i32, %c0_i32_0 : i32, i32, i32
  }
}

</mosaic_0001>

<llo_original>
// kernel: dncnn_forward.1
$region0: #{dncnn_forward.1}
  #allocation0 [shape = 'u32[]', space=smem, size = 0x4, offset = 0x4, fixed_abs, tag = 'smem constant byte address 0x4 - core index']
  #allocation1 [shape = 'u32[144,128]{1,0:T(1,128)}', space=vmem, size = 0x12000, scoped, tag = 'internal scratch']
  #allocation2 [shape = 'bf16[344,128]{1,0:T(8,128)(2,1)}', space=vmem, size = 0x15800, scoped, tag = 'scratch operand']
  #allocation3 [shape = 'bf16[344,128]{1,0:T(8,128)(2,1)}', space=vmem, size = 0x15800, scoped, tag = 'scratch operand']
  #allocation4 [shape = 'f32[288,128]{1,0:T(8,128)}', space=vmem, size = 0x24000, scoped, tag = 'scratch operand']
  #allocation5 [shape = 'f32[288,128]{1,0:T(8,128)}', space=vmem, size = 0x24000, scoped, tag = 'scratch operand']
  %s0 = inlined_call_operand.vmem [shape: bf16[2,324,128], index: 0, kind: input, shape index: {}]
  %s1 = inlined_call_operand.hbm [shape: bf16[50,3,384,128], index: 1, kind: input, shape index: {}]
  %s2 = inlined_call_operand.hbm [shape: f32[50,2,128], index: 2, kind: input, shape index: {}]
  %s3 = inlined_call_operand.vmem [shape: f32[288,1], index: 3, kind: input, shape index: {}]
  %s4 = inlined_call_operand.vmem [shape: f32[2,288,128], index: 4, kind: output, shape index: {}]
  %s5 = sld [smem:[#allocation0]]
  $region93: #{dncnn_forward.1} parent=0
    _
  %s7 = ssub.s32 1, %s5
  %s8 = scalar_select 0, %s7, %s5
  $region1: #{dncnn_forward.1} parent=0
    #allocation6 [shape = 'u8[589824]{0}', space=vmem, size = 0x90000, scoped, tag = 'input window, operand 1']
    #allocation7 [shape = 's32[2]{0}', space=sflag, size = 0x8, scoped, tag = 'scoped memory for dncnn_forward.1']
    #allocation8 [shape = 'u8[2048]{0}', space=vmem, size = 0x800, scoped, tag = 'input window, operand 2']
    #allocation9 [shape = 's32[2]{0}', space=sflag, size = 0x8, scoped, tag = 'scoped memory for dncnn_forward.1']
    %9 = vsyncpa [#allocation7], 0
    %s10 = scalar_lea.sflag [#allocation7], 1
    %11 = vsyncpa %s10, 0
    %12 = vsyncpa [#allocation9], 0
    %s13 = scalar_lea.sflag [#allocation9], 1
    %14 = vsyncpa %s13, 0
    loop: start=0, step=1, limit=102
    $region2: #{dncnn_forward.1} parent=1 // loop_pre_header
      _
    $region3: #{dncnn_forward.1} parent=1 // loop_header
      %s16 = sphi 0, %s20
      %p17 = scmp.ge.s32.totalorder %s16, 102
      %s23 = sphi 0, %s35
      %s24 = sphi 0, %s31
      %s25 = sphi 0, %s23
      %s26 = sphi 0, %s24
      %s27 = sphi 0, %s25
      %s28 = sphi 0, %s26
      %s38 = sphi 0, %s40
      %s41 = sphi 0, %s38
      %s42 = sphi 0, %s41
      %s58 = sphi 0, %s42
      %s64 = sphi 0, %s66
      %s67 = sphi 0, %s64
      %s68 = sphi 0, %s67
      %s84 = sphi 0, %s68
      %s90 = sphi 0, %s92
      %s93 = sphi 0, %s90
      %s94 = sphi 0, %s93
      %s110 = sphi 0, %s94
      %s114 = sphi 0, %s114
      %s116 = sphi 0, %s114
      %s117 = sphi 0, %s116
      %s131 = sphi 0, %s117
      %s137 = sphi 0, %s139
      %s140 = sphi 0, %s137
      %s141 = sphi 0, %s140
      %s157 = sphi 0, %s141
    $region4: #{dncnn_forward.1} parent=1 // loop_header_branch
      %19 = sbr.rel (%p17) target = $region8
    $region5: #{dncnn_forward.1} parent=1 // loop_body
      %s21 = ssub.s32 %s16, 1
      %s22 = ssub.s32 %s16, 2
      %s29 = sadd.s32 1, %s24
      %p30 = scmp.ge.s32.totalorder %s29, 50
      %s31 = scalar_select %p30, 0, %s29
      %s32 = sadd.s32 1, %s23
      %s33 = scalar_select %p30, %s32, %s23
      %p34 = scmp.ge.s32.totalorder %s33, 2
      %s35 = scalar_select %p34, 0, %s33
      %s36 = ssub.s32 %s23, %s35
      %p37 = scmp.eq.s32.totalorder %s36, 0
      %s39 = sadd.s32 %s38, 1
      %s40 = scalar_select %p37, %s38, %s39
      %p43 = pneg %p37
      %p44 = scmp.eq.s32.totalorder %s16, 99
      %p45 = por %p43, %p44
      %p46 = scmp.ne.s32.totalorder %s38, %s41
      %p47 = scmp.eq.s32.totalorder %s16, 0
      %p48 = por %p46, %p47
      %p49 = scmp.ne.s32.totalorder %s38, %s41
      %p50 = scmp.eq.s32.totalorder %s21, 99
      %p51 = por %p49, %p50
      %p52 = scmp.ne.s32.totalorder %s41, %s42
      %p53 = scmp.eq.s32.totalorder %s21, 0
      %p54 = por %p52, %p53
      %p55 = scmp.ne.s32.totalorder %s41, %s42
      %p56 = scmp.eq.s32.totalorder %s22, 99
      %p57 = por %p55, %p56
      %p59 = scmp.ne.s32.totalorder %s42, %s58
      %p60 = scmp.eq.s32.totalorder %s22, 0
      %p61 = por %p59, %p60
      %s62 = ssub.s32 %s24, %s31
      %p63 = scmp.eq.s32.totalorder %s62, 0
      %s65 = sadd.s32 %s64, 1
      %s66 = scalar_select %p63, %s64, %s65
      %p69 = pneg %p63
      %p70 = scmp.eq.s32.totalorder %s16, 99
      %p71 = por %p69, %p70
      %p72 = scmp.ne.s32.totalorder %s64, %s67
      %p73 = scmp.eq.s32.totalorder %s16, 0
      %p74 = por %p72, %p73
      %p75 = scmp.ne.s32.totalorder %s64, %s67
      %p76 = scmp.eq.s32.totalorder %s21, 99
      %p77 = por %p75, %p76
      %p78 = scmp.ne.s32.totalorder %s67, %s68
      %p79 = scmp.eq.s32.totalorder %s21, 0
      %p80 = por %p78, %p79
      %p81 = scmp.ne.s32.totalorder %s67, %s68
      %p82 = scmp.eq.s32.totalorder %s22, 99
      %p83 = por %p81, %p82
      %p85 = scmp.ne.s32.totalorder %s68, %s84
      %p86 = scmp.eq.s32.totalorder %s22, 0
      %p87 = por %p85, %p86
      %s88 = ssub.s32 %s24, %s31
      %p89 = scmp.eq.s32.totalorder %s88, 0
      %s91 = sadd.s32 %s90, 1
      %s92 = scalar_select %p89, %s90, %s91
      %p95 = pneg %p89
      %p96 = scmp.eq.s32.totalorder %s16, 99
      %p97 = por %p95, %p96
      %p98 = scmp.ne.s32.totalorder %s90, %s93
      %p99 = scmp.eq.s32.totalorder %s16, 0
      %p100 = por %p98, %p99
      %p101 = scmp.ne.s32.totalorder %s90, %s93
      %p102 = scmp.eq.s32.totalorder %s21, 99
      %p103 = por %p101, %p102
      %p104 = scmp.ne.s32.totalorder %s93, %s94
      %p105 = scmp.eq.s32.totalorder %s21, 0
      %p106 = por %p104, %p105
      %p107 = scmp.ne.s32.totalorder %s93, %s94
      %p108 = scmp.eq.s32.totalorder %s22, 99
      %p109 = por %p107, %p108
      %p111 = scmp.ne.s32.totalorder %s94, %s110
      %p112 = scmp.eq.s32.totalorder %s22, 0
      %p113 = por %p111, %p112
      %s115 = sadd.s32 %s114, 1
      %p118 = scmp.eq.s32.totalorder %s16, 99
      %p119 = scmp.ne.s32.totalorder %s114, %s116
      %p120 = scmp.eq.s32.totalorder %s16, 0
      %p121 = por %p119, %p120
      %p122 = scmp.ne.s32.totalorder %s114, %s116
      %p123 = scmp.eq.s32.totalorder %s21, 99
      %p124 = por %p122, %p123
      %p125 = scmp.ne.s32.totalorder %s116, %s117
      %p126 = scmp.eq.s32.totalorder %s21, 0
      %p127 = por %p125, %p126
      %p128 = scmp.ne.s32.totalorder %s116, %s117
      %p129 = scmp.eq.s32.totalorder %s22, 99
      %p130 = por %p128, %p129
      %p132 = scmp.ne.s32.totalorder %s117, %s131
      %p133 = scmp.eq.s32.totalorder %s22, 0
      %p134 = por %p132, %p133
      %s135 = ssub.s32 %s23, %s35
      %p136 = scmp.eq.s32.totalorder %s135, 0
      %s138 = sadd.s32 %s137, 1
      %s139 = scalar_select %p136, %s137, %s138
      %p142 = pneg %p136
      %p143 = scmp.eq.s32.totalorder %s16, 99
      %p144 = por %p142, %p143
      %p145 = scmp.ne.s32.totalorder %s137, %s140
      %p146 = scmp.eq.s32.totalorder %s16, 0
      %p147 = por %p145, %p146
      %p148 = scmp.ne.s32.totalorder %s137, %s140
      %p149 = scmp.eq.s32.totalorder %s21, 99
      %p150 = por %p148, %p149
      %p151 = scmp.ne.s32.totalorder %s140, %s141
      %p152 = scmp.eq.s32.totalorder %s21, 0
      %p153 = por %p151, %p152
      %p154 = scmp.ne.s32.totalorder %s140, %s141
      %p155 = scmp.eq.s32.totalorder %s22, 99
      %p156 = por %p154, %p155
      %p158 = scmp.ne.s32.totalorder %s141, %s157
      %p159 = scmp.eq.s32.totalorder %s22, 0
      %p160 = por %p158, %p159
      %p161 = scmp.le.s32.totalorder 1, %s16
      %p162 = scmp.lt.s32.totalorder %s16, 101
      %p163 = pnand %p161, %p162
      %p164 = pneg %p163
      // Predicated region
      $region9: #{dncnn_forward.1} parent=5 // pred_check
        _
      $region10: #{dncnn_forward.1} parent=5 // pred_check_branch
        %166 = sbr.rel (%p163) target = $region12
      $region11: #{dncnn_forward.1} parent=5 // pred_region
        %s167 = ssub.s32 %s16, 1
        // Predicated region
        $region13: #{dncnn_forward.1} parent=11 // pred_check
          %p168 = pneg %p127
        $region14: #{dncnn_forward.1} parent=11 // pred_check_branch
          %170 = sbr.rel (%p168) target = $region16
        $region15: #{dncnn_forward.1} parent=11 // pred_region
          _
        $region16: #{dncnn_forward.1} parent=11 // pred_fallthru
          _
      $region12: #{dncnn_forward.1} parent=5 // pred_fallthru
        _
      %p171 = scmp.lt.s32.totalorder %s16, 100
      // Predicated region
      $region17: #{dncnn_forward.1} parent=5 // pred_check
        %p172 = pneg %p171
      $region18: #{dncnn_forward.1} parent=5 // pred_check_branch
        %174 = sbr.rel (%p172) target = $region20
      $region19: #{dncnn_forward.1} parent=5 // pred_region
        // Predicated region
        $region21: #{dncnn_forward.1} parent=19 // pred_check
          %p175 = pneg %p48
        $region22: #{dncnn_forward.1} parent=19 // pred_check_branch
          %177 = sbr.rel (%p175) target = $region24
        $region23: #{dncnn_forward.1} parent=19 // pred_region
          %p178 = scmp.lt.s32.totalorder %s23, 1
          %s179 = scalar_select %p178, %s23, 1
          %s180 = smul.addr %s179, 41
          %s181 = smul.addr %s180, 4
          %s182 = scalar_lea.vmem %s0, %s181
        $region24: #{dncnn_forward.1} parent=19 // pred_fallthru
          _
        // Predicated region
        $region25: #{dncnn_forward.1} parent=19 // pred_check
          %p183 = pneg %p74
        $region26: #{dncnn_forward.1} parent=19 // pred_check_branch
          %185 = sbr.rel (%p183) target = $region28
        $region27: #{dncnn_forward.1} parent=19 // pred_region
          %s186 = sand.u32 %s64, 1
          %s187 = scalar_lea.sflag [#allocation7], %s186
          %s188 = sand.u32 %s64, 1
          %s189 = smul.addr %s188, 576
          %s190 = scalar_lea.vmem [#allocation6], %s189
          %s192 = ssub.s32 9216, 9216
          %193 = vsyncadd %s187, %s192
          %s194 = smul.addr %s24, 144
          %s195 = smul.addr %s194, 64
          %s196 = scalar_lea.hbm %s1, %s195
          %s197 = sshll.u32 %s190, 4
          %s198 = int_to_ptr.vmem [resolvable:$true] %s197
          %203 = dma.hbm_to_vmem [thread:$0]  %s196, 9216, %s198, %s187, 64, 64, 4
        $region28: #{dncnn_forward.1} parent=19 // pred_fallthru
          _
        // Predicated region
        $region29: #{dncnn_forward.1} parent=19 // pred_check
          %p204 = pneg %p100
        $region30: #{dncnn_forward.1} parent=19 // pred_check_branch
          %206 = sbr.rel (%p204) target = $region32
        $region31: #{dncnn_forward.1} parent=19 // pred_region
          %s207 = sand.u32 %s90, 1
          %s208 = scalar_lea.sflag [#allocation9], %s207
          %s209 = sand.u32 %s90, 1
          %s210 = smul.addr %s209, 2
          %s211 = scalar_lea.vmem [#allocation8], %s210
          %s213 = ssub.s32 32, 32
          %214 = vsyncadd %s208, %s213
          %s215 = smul.addr %s24, 32
          %s216 = scalar_lea.hbm %s2, %s215
          %s218 = sshll.u32 %s211, 4
          %s219 = int_to_ptr.vmem [resolvable:$true] %s218
          %221 = dma.hbm_to_vmem [thread:$0]  %s216, 32, %s219, %s208
        $region32: #{dncnn_forward.1} parent=19 // pred_fallthru
          _
      $region20: #{dncnn_forward.1} parent=5 // pred_fallthru
        _
      %p222 = scmp.le.s32.totalorder 1, %s16
      %p223 = scmp.lt.s32.totalorder %s16, 101
      %p224 = pnand %p222, %p223
      %p225 = pneg %p224
      // Predicated region
      $region33: #{dncnn_forward.1} parent=5 // pred_check
        _
      $region34: #{dncnn_forward.1} parent=5 // pred_check_branch
        %227 = sbr.rel (%p224) target = $region36
      $region35: #{dncnn_forward.1} parent=5 // pred_region
        %s228 = ssub.s32 %s16, 1
        %s229 = sand.u32 %s67, 1
        %s230 = scalar_lea.sflag [#allocation7], %s229
        %s231 = sand.u32 %s67, 1
        %s232 = smul.addr %s231, 576
        %s233 = scalar_lea.vmem [#allocation6], %s232
        // Predicated region
        $region37: #{dncnn_forward.1} parent=35 // pred_check
          %p234 = pneg %p80
        $region38: #{dncnn_forward.1} parent=35 // pred_check_branch
          %236 = sbr.rel (%p234) target = $region40
        $region39: #{dncnn_forward.1} parent=35 // pred_region
          %237 = dma.done %s230, 9216
        $region40: #{dncnn_forward.1} parent=35 // pred_fallthru
          _
        %s238 = sand.u32 %s93, 1
        %s239 = scalar_lea.sflag [#allocation9], %s238
        %s240 = sand.u32 %s93, 1
        %s241 = smul.addr %s240, 2
        %s242 = scalar_lea.vmem [#allocation8], %s241
        // Predicated region
        $region41: #{dncnn_forward.1} parent=35 // pred_check
          %p243 = pneg %p106
        $region42: #{dncnn_forward.1} parent=35 // pred_check_branch
          %245 = sbr.rel (%p243) target = $region44
        $region43: #{dncnn_forward.1} parent=35 // pred_region
          %246 = dma.done %s239, 32
        $region44: #{dncnn_forward.1} parent=35 // pred_fallthru
          _
        %p247 = scmp.lt.s32.totalorder %s25, 1
        %s248 = scalar_select %p247, %s25, 1
        %s249 = smul.addr %s248, 41
        %s250 = smul.addr %s249, 4
        %s251 = scalar_lea.vmem %s0, %s250
        %p252 = pneg %p54
        %p253 = pneg %p51
        %s254 = sand.u32 %s67, 1
        %s255 = scalar_lea.sflag [#allocation7], %s254
        %s256 = sand.u32 %s67, 1
        %s257 = smul.addr %s256, 576
        %s258 = scalar_lea.vmem [#allocation6], %s257
        %p259 = pneg %p80
        %p260 = pneg %p77
        %s261 = sand.u32 %s93, 1
        %s262 = scalar_lea.sflag [#allocation9], %s261
        %s263 = sand.u32 %s93, 1
        %s264 = smul.addr %s263, 2
        %s265 = scalar_lea.vmem [#allocation8], %s264
        %p266 = pneg %p106
        %p267 = pneg %p103
        %p268 = pneg %p127
        %p269 = pneg %p124
        %p270 = pneg %p153
        %p271 = pneg %p150
        %p272 = scmp.lt.s32.totalorder %s25, 1
        %s273 = scalar_select %p272, %s25, 1
        %s274 = smul.addr %s273, 36
        %s275 = smul.addr %s274, 8
        %s276 = scalar_lea.vmem %s4, %s275
        %p277 = scmp.lt.s32.totalorder %s25, 1
        %s278 = scalar_select %p277, %s25, 1
        %s279 = smul.addr %s278, 41
        %s280 = smul.addr %s279, 4
        %s281 = scalar_lea.vmem %s0, %s280
        %p282 = scmp.lt.s32.totalorder %s25, 1
        %s283 = scalar_select %p282, %s25, 1
        %s284 = smul.addr %s283, 36
        %s285 = smul.addr %s284, 8
        %s286 = scalar_lea.vmem %s4, %s285
        %p288 = scmp.eq.s32.totalorder %s26, 0
        // Predicated region
        $region45: #{dncnn_forward.1} parent=35 // pred_check
          %p289 = pneg %p288
        $region46: #{dncnn_forward.1} parent=35 // pred_check_branch
          %291 = sbr.rel (%p289) target = $region48
        $region47: #{dncnn_forward.1} parent=35 // pred_region
          %292 = vst [vmem:[#allocation2] sm:$0xf] 0
          %293 = vst [vmem:[#allocation2 + $0x4] sm:$0xf] 0
          %294 = vst [vmem:[#allocation2 + $0x8] sm:$0xf] 0
          %295 = vst [vmem:[#allocation2 + $0xc] sm:$0xf] 0
          %296 = vst [vmem:[#allocation2 + $0x10] sm:$0xf] 0
          %297 = vst [vmem:[#allocation2 + $0x14] sm:$0xf] 0
          %298 = vst [vmem:[#allocation2 + $0x18] sm:$0xf] 0
          %299 = vst [vmem:[#allocation2 + $0x1c] sm:$0xf] 0
          %300 = vst [vmem:[#allocation2 + $0x20] sm:$0xf] 0
          %301 = vst [vmem:[#allocation2 + $0x24] sm:$0xf] 0
          %302 = vst [vmem:[#allocation2 + $0x28] sm:$0xf] 0
          %303 = vst [vmem:[#allocation2 + $0x2c] sm:$0xf] 0
          %304 = vst [vmem:[#allocation2 + $0x30] sm:$0xf] 0
          %305 = vst [vmem:[#allocation2 + $0x34] sm:$0xf] 0
          %306 = vst [vmem:[#allocation2 + $0x38] sm:$0xf] 0
          %307 = vst [vmem:[#allocation2 + $0x3c] sm:$0xf] 0
          %308 = vst [vmem:[#allocation2 + $0x40] sm:$0xf] 0
          %309 = vst [vmem:[#allocation2 + $0x44] sm:$0xf] 0
          %310 = vst [vmem:[#allocation2 + $0x48] sm:$0xf] 0
          %311 = vst [vmem:[#allocation2 + $0x4c] sm:$0xf] 0
          %312 = vst [vmem:[#allocation2 + $0x50] sm:$0xf] 0
          %313 = vst [vmem:[#allocation2 + $0x54] sm:$0xf] 0
          %314 = vst [vmem:[#allocation2 + $0x58] sm:$0xf] 0
          %315 = vst [vmem:[#allocation2 + $0x5c] sm:$0xf] 0
          %316 = vst [vmem:[#allocation2 + $0x60] sm:$0xf] 0
          %317 = vst [vmem:[#allocation2 + $0x64] sm:$0xf] 0
          %318 = vst [vmem:[#allocation2 + $0x68] sm:$0xf] 0
          %319 = vst [vmem:[#allocation2 + $0x6c] sm:$0xf] 0
          %320 = vst [vmem:[#allocation2 + $0x70] sm:$0xf] 0
          %321 = vst [vmem:[#allocation2 + $0x74] sm:$0xf] 0
          %322 = vst [vmem:[#allocation2 + $0x78] sm:$0xf] 0
          %323 = vst [vmem:[#allocation2 + $0x7c] sm:$0xf] 0
          %324 = vst [vmem:[#allocation2 + $0x80] sm:$0xf] 0
          %325 = vst [vmem:[#allocation2 + $0x84] sm:$0xf] 0
          %326 = vst [vmem:[#allocation2 + $0x88] sm:$0xf] 0
          %327 = vst [vmem:[#allocation2 + $0x8c] sm:$0xf] 0
          %328 = vst [vmem:[#allocation2 + $0x90] sm:$0xf] 0
          %329 = vst [vmem:[#allocation2 + $0x94] sm:$0xf] 0
          %330 = vst [vmem:[#allocation2 + $0x98] sm:$0xf] 0
          %331 = vst [vmem:[#allocation2 + $0x9c] sm:$0xf] 0
          %332 = vst [vmem:[#allocation2 + $0xa0] sm:$0xf] 0
          %333 = vst [vmem:[#allocation2 + $0xa4] sm:$0xf] 0
          %334 = vst [vmem:[#allocation2 + $0xa8] sm:$0xf] 0
          %335 = vst [vmem:[#allocation3] sm:$0xf] 0
          %336 = vst [vmem:[#allocation3 + $0x4] sm:$0xf] 0
          %337 = vst [vmem:[#allocation3 + $0x8] sm:$0xf] 0
          %338 = vst [vmem:[#allocation3 + $0xc] sm:$0xf] 0
          %339 = vst [vmem:[#allocation3 + $0x10] sm:$0xf] 0
          %340 = vst [vmem:[#allocation3 + $0x14] sm:$0xf] 0
          %341 = vst [vmem:[#allocation3 + $0x18] sm:$0xf] 0
          %342 = vst [vmem:[#allocation3 + $0x1c] sm:$0xf] 0
          %343 = vst [vmem:[#allocation3 + $0x20] sm:$0xf] 0
          %344 = vst [vmem:[#allocation3 + $0x24] sm:$0xf] 0
          %345 = vst [vmem:[#allocation3 + $0x28] sm:$0xf] 0
          %346 = vst [vmem:[#allocation3 + $0x2c] sm:$0xf] 0
          %347 = vst [vmem:[#allocation3 + $0x30] sm:$0xf] 0
          %348 = vst [vmem:[#allocation3 + $0x34] sm:$0xf] 0
          %349 = vst [vmem:[#allocation3 + $0x38] sm:$0xf] 0
          %350 = vst [vmem:[#allocation3 + $0x3c] sm:$0xf] 0
          %351 = vst [vmem:[#allocation3 + $0x40] sm:$0xf] 0
          %352 = vst [vmem:[#allocation3 + $0x44] sm:$0xf] 0
          %353 = vst [vmem:[#allocation3 + $0x48] sm:$0xf] 0
          %354 = vst [vmem:[#allocation3 + $0x4c] sm:$0xf] 0
          %355 = vst [vmem:[#allocation3 + $0x50] sm:$0xf] 0
          %356 = vst [vmem:[#allocation3 + $0x54] sm:$0xf] 0
          %357 = vst [vmem:[#allocation3 + $0x58] sm:$0xf] 0
          %358 = vst [vmem:[#allocation3 + $0x5c] sm:$0xf] 0
          %359 = vst [vmem:[#allocation3 + $0x60] sm:$0xf] 0
          %360 = vst [vmem:[#allocation3 + $0x64] sm:$0xf] 0
          %361 = vst [vmem:[#allocation3 + $0x68] sm:$0xf] 0
          %362 = vst [vmem:[#allocation3 + $0x6c] sm:$0xf] 0
          %363 = vst [vmem:[#allocation3 + $0x70] sm:$0xf] 0
          %364 = vst [vmem:[#allocation3 + $0x74] sm:$0xf] 0
          %365 = vst [vmem:[#allocation3 + $0x78] sm:$0xf] 0
          %366 = vst [vmem:[#allocation3 + $0x7c] sm:$0xf] 0
          %367 = vst [vmem:[#allocation3 + $0x80] sm:$0xf] 0
          %368 = vst [vmem:[#allocation3 + $0x84] sm:$0xf] 0
          %369 = vst [vmem:[#allocation3 + $0x88] sm:$0xf] 0
          %370 = vst [vmem:[#allocation3 + $0x8c] sm:$0xf] 0
          %371 = vst [vmem:[#allocation3 + $0x90] sm:$0xf] 0
          %372 = vst [vmem:[#allocation3 + $0x94] sm:$0xf] 0
          %373 = vst [vmem:[#allocation3 + $0x98] sm:$0xf] 0
          %374 = vst [vmem:[#allocation3 + $0x9c] sm:$0xf] 0
          %375 = vst [vmem:[#allocation3 + $0xa0] sm:$0xf] 0
          %376 = vst [vmem:[#allocation3 + $0xa4] sm:$0xf] 0
          %377 = vst [vmem:[#allocation3 + $0xa8] sm:$0xf] 0
          %378 = vst [vmem:[#allocation4] sm:$0xff] 0.0
          %379 = vst [vmem:[#allocation4 + $0x8] sm:$0xff] 0.0
          %380 = vst [vmem:[#allocation4 + $0x10] sm:$0xff] 0.0
          %381 = vst [vmem:[#allocation4 + $0x18] sm:$0xff] 0.0
          %382 = vst [vmem:[#allocation4 + $0x20] sm:$0xff] 0.0
          %383 = vst [vmem:[#allocation4 + $0x28] sm:$0xff] 0.0
          %384 = vst [vmem:[#allocation4 + $0x30] sm:$0xff] 0.0
          %385 = vst [vmem:[#allocation4 + $0x38] sm:$0xff] 0.0
          %386 = vst [vmem:[#allocation4 + $0x40] sm:$0xff] 0.0
          %387 = vst [vmem:[#allocation4 + $0x48] sm:$0xff] 0.0
          %388 = vst [vmem:[#allocation4 + $0x50] sm:$0xff] 0.0
          %389 = vst [vmem:[#allocation4 + $0x58] sm:$0xff] 0.0
          %390 = vst [vmem:[#allocation4 + $0x60] sm:$0xff] 0.0
          %391 = vst [vmem:[#allocation4 + $0x68] sm:$0xff] 0.0
          %392 = vst [vmem:[#allocation4 + $0x70] sm:$0xff] 0.0
          %393 = vst [vmem:[#allocation4 + $0x78] sm:$0xff] 0.0
          %394 = vst [vmem:[#allocation4 + $0x80] sm:$0xff] 0.0
          %395 = vst [vmem:[#allocation4 + $0x88] sm:$0xff] 0.0
          %396 = vst [vmem:[#allocation4 + $0x90] sm:$0xff] 0.0
          %397 = vst [vmem:[#allocation4 + $0x98] sm:$0xff] 0.0
          %398 = vst [vmem:[#allocation4 + $0xa0] sm:$0xff] 0.0
          %399 = vst [vmem:[#allocation4 + $0xa8] sm:$0xff] 0.0
          %400 = vst [vmem:[#allocation4 + $0xb0] sm:$0xff] 0.0
          %401 = vst [vmem:[#allocation4 + $0xb8] sm:$0xff] 0.0
          %402 = vst [vmem:[#allocation4 + $0xc0] sm:$0xff] 0.0
          %403 = vst [vmem:[#allocation4 + $0xc8] sm:$0xff] 0.0
          %404 = vst [vmem:[#allocation4 + $0xd0] sm:$0xff] 0.0
          %405 = vst [vmem:[#allocation4 + $0xd8] sm:$0xff] 0.0
          %406 = vst [vmem:[#allocation4 + $0xe0] sm:$0xff] 0.0
          %407 = vst [vmem:[#allocation4 + $0xe8] sm:$0xff] 0.0
          %408 = vst [vmem:[#allocation4 + $0xf0] sm:$0xff] 0.0
          %409 = vst [vmem:[#allocation4 + $0xf8] sm:$0xff] 0.0
          %410 = vst [vmem:[#allocation4 + $0x100] sm:$0xff] 0.0
          %411 = vst [vmem:[#allocation4 + $0x108] sm:$0xff] 0.0
          %412 = vst [vmem:[#allocation4 + $0x110] sm:$0xff] 0.0
          %413 = vst [vmem:[#allocation4 + $0x118] sm:$0xff] 0.0
          %v414 = vld [vmem:[%s281] sm:$0xf]
          %v415 = vld [vmem:[%s281 + $0x4] sm:$0xf]
          %v416 = vld [vmem:[%s281 + $0x8] sm:$0xf]
          %v417 = vld [vmem:[%s281 + $0xc] sm:$0xf]
          %v418 = vld [vmem:[%s281 + $0x10] sm:$0xf]
          %v419 = vld [vmem:[%s281 + $0x14] sm:$0xf]
          %v420 = vld [vmem:[%s281 + $0x18] sm:$0xf]
          %v421 = vld [vmem:[%s281 + $0x1c] sm:$0xf]
          %v422 = vld [vmem:[%s281 + $0x20] sm:$0xf]
          %v423 = vld [vmem:[%s281 + $0x24] sm:$0xf]
          %v424 = vld [vmem:[%s281 + $0x28] sm:$0xf]
          %v425 = vld [vmem:[%s281 + $0x2c] sm:$0xf]
          %v426 = vld [vmem:[%s281 + $0x30] sm:$0xf]
          %v427 = vld [vmem:[%s281 + $0x34] sm:$0xf]
          %v428 = vld [vmem:[%s281 + $0x38] sm:$0xf]
          %v429 = vld [vmem:[%s281 + $0x3c] sm:$0xf]
          %v430 = vld [vmem:[%s281 + $0x40] sm:$0xf]
          %v431 = vld [vmem:[%s281 + $0x44] sm:$0xf]
          %v432 = vld [vmem:[%s281 + $0x48] sm:$0xf]
          %v433 = vld [vmem:[%s281 + $0x4c] sm:$0xf]
          %v434 = vld [vmem:[%s281 + $0x50] sm:$0xf]
          %v435 = vld [vmem:[%s281 + $0x54] sm:$0xf]
          %v436 = vld [vmem:[%s281 + $0x58] sm:$0xf]
          %v437 = vld [vmem:[%s281 + $0x5c] sm:$0xf]
          %v438 = vld [vmem:[%s281 + $0x60] sm:$0xf]
          %v439 = vld [vmem:[%s281 + $0x64] sm:$0xf]
          %v440 = vld [vmem:[%s281 + $0x68] sm:$0xf]
          %v441 = vld [vmem:[%s281 + $0x6c] sm:$0xf]
          %v442 = vld [vmem:[%s281 + $0x70] sm:$0xf]
          %v443 = vld [vmem:[%s281 + $0x74] sm:$0xf]
          %v444 = vld [vmem:[%s281 + $0x78] sm:$0xf]
          %v445 = vld [vmem:[%s281 + $0x7c] sm:$0xf]
          %v446 = vld [vmem:[%s281 + $0x80] sm:$0xf]
          %v447 = vld [vmem:[%s281 + $0x84] sm:$0xf]
          %v448 = vld [vmem:[%s281 + $0x88] sm:$0xf]
          %v449 = vld [vmem:[%s281 + $0x8c] sm:$0xf]
          %v450 = vld [vmem:[%s281 + $0x90] sm:$0xf]
          %v451 = vld [vmem:[%s281 + $0x94] sm:$0xf]
          %v452 = vld [vmem:[%s281 + $0x98] sm:$0xf]
          %v453 = vld [vmem:[%s281 + $0x9c] sm:$0xf]
          %v454 = vld [vmem:[%s281 + $0xa0] sm:$0x3]
          %455 = vst [vmem:[#allocation2 + $0x4] sm:$0xf] %v414
          %456 = vst [vmem:[#allocation2 + $0x8] sm:$0xf] %v415
          %457 = vst [vmem:[#allocation2 + $0xc] sm:$0xf] %v416
          %458 = vst [vmem:[#allocation2 + $0x10] sm:$0xf] %v417
          %459 = vst [vmem:[#allocation2 + $0x14] sm:$0xf] %v418
          %460 = vst [vmem:[#allocation2 + $0x18] sm:$0xf] %v419
          %461 = vst [vmem:[#allocation2 + $0x1c] sm:$0xf] %v420
          %462 = vst [vmem:[#allocation2 + $0x20] sm:$0xf] %v421
          %463 = vst [vmem:[#allocation2 + $0x24] sm:$0xf] %v422
          %464 = vst [vmem:[#allocation2 + $0x28] sm:$0xf] %v423
          %465 = vst [vmem:[#allocation2 + $0x2c] sm:$0xf] %v424
          %466 = vst [vmem:[#allocation2 + $0x30] sm:$0xf] %v425
          %467 = vst [vmem:[#allocation2 + $0x34] sm:$0xf] %v426
          %468 = vst [vmem:[#allocation2 + $0x38] sm:$0xf] %v427
          %469 = vst [vmem:[#allocation2 + $0x3c] sm:$0xf] %v428
          %470 = vst [vmem:[#allocation2 + $0x40] sm:$0xf] %v429
          %471 = vst [vmem:[#allocation2 + $0x44] sm:$0xf] %v430
          %472 = vst [vmem:[#allocation2 + $0x48] sm:$0xf] %v431
          %473 = vst [vmem:[#allocation2 + $0x4c] sm:$0xf] %v432
          %474 = vst [vmem:[#allocation2 + $0x50] sm:$0xf] %v433
          %475 = vst [vmem:[#allocation2 + $0x54] sm:$0xf] %v434
          %476 = vst [vmem:[#allocation2 + $0x58] sm:$0xf] %v435
          %477 = vst [vmem:[#allocation2 + $0x5c] sm:$0xf] %v436
          %478 = vst [vmem:[#allocation2 + $0x60] sm:$0xf] %v437
          %479 = vst [vmem:[#allocation2 + $0x64] sm:$0xf] %v438
          %480 = vst [vmem:[#allocation2 + $0x68] sm:$0xf] %v439
          %481 = vst [vmem:[#allocation2 + $0x6c] sm:$0xf] %v440
          %482 = vst [vmem:[#allocation2 + $0x70] sm:$0xf] %v441
          %483 = vst [vmem:[#allocation2 + $0x74] sm:$0xf] %v442
          %484 = vst [vmem:[#allocation2 + $0x78] sm:$0xf] %v443
          %485 = vst [vmem:[#allocation2 + $0x7c] sm:$0xf] %v444
          %486 = vst [vmem:[#allocation2 + $0x80] sm:$0xf] %v445
          %487 = vst [vmem:[#allocation2 + $0x84] sm:$0xf] %v446
          %488 = vst [vmem:[#allocation2 + $0x88] sm:$0xf] %v447
          %489 = vst [vmem:[#allocation2 + $0x8c] sm:$0xf] %v448
          %490 = vst [vmem:[#allocation2 + $0x90] sm:$0xf] %v449
          %491 = vst [vmem:[#allocation2 + $0x94] sm:$0xf] %v450
          %492 = vst [vmem:[#allocation2 + $0x98] sm:$0xf] %v451
          %493 = vst [vmem:[#allocation2 + $0x9c] sm:$0xf] %v452
          %494 = vst [vmem:[#allocation2 + $0xa0] sm:$0xf] %v453
          %495 = vst [vmem:[#allocation2 + $0xa4] sm:$0x3] %v454
        $region48: #{dncnn_forward.1} parent=35 // pred_fallthru
          _
        %p496 = scmp.lt.s32.totalorder %s26, 0
        %s497 = ssub.s32 0, %s26
        %s498 = scalar_select %p496, %s497, %s26
        %s499 = sand.u32 %s498, 1
        %s500 = ssub.s32 0, %s499
        %s501 = scalar_select %p496, %s500, %s499
        %p502 = scmp.ne.s32.totalorder %s501, 0
        %p503 = scmp.lt.s32.totalorder %s501, 0
        %p504 = pnand %p503, %p502
        %p505 = pneg %p504
        %s506 = sadd.s32 %s501, 2
        %s507 = scalar_select %p505, %s506, %s501
        %p508 = scmp.eq.s32.totalorder %s507, 0
        // Predicated region
        $region49: #{dncnn_forward.1} parent=35 // pred_check
          %p509 = pneg %p508
        $region50: #{dncnn_forward.1} parent=35 // pred_check_branch
          %511 = sbr.rel (%p509) target = $region52
        $region51: #{dncnn_forward.1} parent=35 // pred_region
          %v512 = vld [vmem:[#allocation2] sm:$0x8]
          %v513 = vld [vmem:[#allocation2 + $0x4] sm:$0xf]
          %v514 = vld [vmem:[#allocation2 + $0x8] sm:$0xf]
          %v515 = vld [vmem:[#allocation2 + $0xc] sm:$0xf]
          %v516 = vld [vmem:[#allocation2 + $0x10] sm:$0xf]
          %v517 = vld [vmem:[#allocation2 + $0x14] sm:$0xf]
          %v518 = vld [vmem:[#allocation2 + $0x18] sm:$0xf]
          %v519 = vld [vmem:[#allocation2 + $0x1c] sm:$0xf]
          %v520 = vld [vmem:[#allocation2 + $0x20] sm:$0xf]
          %v521 = vld [vmem:[#allocation2 + $0x24] sm:$0xf]
          %v522 = vld [vmem:[#allocation2 + $0x28] sm:$0xf]
          %v523 = vld [vmem:[#allocation2 + $0x2c] sm:$0xf]
          %v524 = vld [vmem:[#allocation2 + $0x30] sm:$0xf]
          %v525 = vld [vmem:[#allocation2 + $0x34] sm:$0xf]
          %v526 = vld [vmem:[#allocation2 + $0x38] sm:$0xf]
          %v527 = vld [vmem:[#allocation2 + $0x3c] sm:$0xf]
          %v528 = vld [vmem:[#allocation2 + $0x40] sm:$0xf]
          %v529 = vld [vmem:[#allocation2 + $0x44] sm:$0xf]
          %v530 = vld [vmem:[#allocation2 + $0x48] sm:$0xf]
          %v531 = vld [vmem:[#allocation2 + $0x4c] sm:$0xf]
          %v532 = vld [vmem:[#allocation2 + $0x50] sm:$0xf]
          %v533 = vld [vmem:[#allocation2 + $0x54] sm:$0xf]
          %v534 = vld [vmem:[#allocation2 + $0x58] sm:$0xf]
          %v535 = vld [vmem:[#allocation2 + $0x5c] sm:$0xf]
          %v536 = vld [vmem:[#allocation2 + $0x60] sm:$0xf]
          %v537 = vld [vmem:[#allocation2 + $0x64] sm:$0xf]
          %v538 = vld [vmem:[#allocation2 + $0x68] sm:$0xf]
          %v539 = vld [vmem:[#allocation2 + $0x6c] sm:$0xf]
          %v540 = vld [vmem:[#allocation2 + $0x70] sm:$0xf]
          %v541 = vld [vmem:[#allocation2 + $0x74] sm:$0xf]
          %v542 = vld [vmem:[#allocation2 + $0x78] sm:$0xf]
          %v543 = vld [vmem:[#allocation2 + $0x7c] sm:$0xf]
          %v544 = vld [vmem:[#allocation2 + $0x80] sm:$0xf]
          %v545 = vld [vmem:[#allocation2 + $0x84] sm:$0xf]
          %v546 = vld [vmem:[#allocation2 + $0x88] sm:$0xf]
          %v547 = vld [vmem:[#allocation2 + $0x8c] sm:$0xf]
          %v548 = vld [vmem:[#allocation2 + $0x90] sm:$0xf]
          %v549 = vld [vmem:[#allocation2 + $0x94] sm:$0x1]
          %v587 = vunpack.c.l.b16 %v512
          %v588 = vunpack.c.l.b16 %v513
          %v589 = vunpack.c.l.b16 %v514
          %v590 = vunpack.c.l.b16 %v515
          %v591 = vunpack.c.l.b16 %v516
          %v592 = vunpack.c.l.b16 %v517
          %v593 = vunpack.c.l.b16 %v518
          %v594 = vunpack.c.l.b16 %v519
          %v595 = vunpack.c.l.b16 %v520
          %v596 = vunpack.c.l.b16 %v521
          %v597 = vunpack.c.l.b16 %v522
          %v598 = vunpack.c.l.b16 %v523
          %v599 = vunpack.c.l.b16 %v524
          %v600 = vunpack.c.l.b16 %v525
          %v601 = vunpack.c.l.b16 %v526
          %v602 = vunpack.c.l.b16 %v527
          %v603 = vunpack.c.l.b16 %v528
          %v604 = vunpack.c.l.b16 %v529
          %v605 = vunpack.c.l.b16 %v530
          %v606 = vunpack.c.l.b16 %v531
          %v607 = vunpack.c.l.b16 %v532
          %v608 = vunpack.c.l.b16 %v533
          %v609 = vunpack.c.l.b16 %v534
          %v610 = vunpack.c.l.b16 %v535
          %v611 = vunpack.c.l.b16 %v536
          %v612 = vunpack.c.l.b16 %v537
          %v613 = vunpack.c.l.b16 %v538
          %v614 = vunpack.c.l.b16 %v539
          %v615 = vunpack.c.l.b16 %v540
          %v616 = vunpack.c.l.b16 %v541
          %v617 = vunpack.c.l.b16 %v542
          %v618 = vunpack.c.l.b16 %v543
          %v619 = vunpack.c.l.b16 %v544
          %v620 = vunpack.c.l.b16 %v545
          %v621 = vunpack.c.l.b16 %v546
          %v622 = vunpack.c.l.b16 %v547
          %v623 = vunpack.c.l.b16 %v548
          %v624 = vpack.c.b16 %v588, %v587
          %v625 = vpack.c.b16 %v590, %v589
          %v626 = vpack.c.b16 %v592, %v591
          %v627 = vpack.c.b16 %v594, %v593
          %v628 = vpack.c.b16 %v596, %v595
          %v629 = vpack.c.b16 %v598, %v597
          %v630 = vpack.c.b16 %v600, %v599
          %v631 = vpack.c.b16 %v602, %v601
          %v632 = vpack.c.b16 %v604, %v603
          %v633 = vpack.c.b16 %v606, %v605
          %v634 = vpack.c.b16 %v608, %v607
          %v635 = vpack.c.b16 %v610, %v609
          %v636 = vpack.c.b16 %v612, %v611
          %v637 = vpack.c.b16 %v614, %v613
          %v638 = vpack.c.b16 %v616, %v615
          %v639 = vpack.c.b16 %v618, %v617
          %v640 = vpack.c.b16 %v620, %v619
          %v641 = vpack.c.b16 %v622, %v621
          %v642 = vpack.c.b16 %v623, %v623
          %v643 = vpack.c.b16 %v589, %v588
          %v644 = vpack.c.b16 %v591, %v590
          %v645 = vpack.c.b16 %v593, %v592
          %v646 = vpack.c.b16 %v595, %v594
          %v647 = vpack.c.b16 %v597, %v596
          %v648 = vpack.c.b16 %v599, %v598
          %v649 = vpack.c.b16 %v601, %v600
          %v650 = vpack.c.b16 %v603, %v602
          %v651 = vpack.c.b16 %v605, %v604
          %v652 = vpack.c.b16 %v607, %v606
          %v653 = vpack.c.b16 %v609, %v608
          %v654 = vpack.c.b16 %v611, %v610
          %v655 = vpack.c.b16 %v613, %v612
          %v656 = vpack.c.b16 %v615, %v614
          %v657 = vpack.c.b16 %v617, %v616
          %v658 = vpack.c.b16 %v619, %v618
          %v659 = vpack.c.b16 %v621, %v620
          %v660 = vpack.c.b16 %v623, %v622
          %vm661 = vsmask.f32 3328
          %v663 = vshrl.u32 %v643, 16
          %v665 = vrot.slane %v663, 4
          %v666 = vshll.u32 %v643, 16
          %v668 = vrot.slane %v666, 5
          %v669 = vor.u32 %v665, %v668
          %v671 = vshrl.u32 %v644, 16
          %v673 = vrot.slane %v671, 4
          %v674 = vshll.u32 %v644, 16
          %v676 = vrot.slane %v674, 5
          %v677 = vor.u32 %v673, %v676
          %v678 = vsel %vm661, %v669, %v677
          %v680 = vshrl.u32 %v645, 16
          %v682 = vrot.slane %v680, 4
          %v683 = vshll.u32 %v645, 16
          %v685 = vrot.slane %v683, 5
          %v686 = vor.u32 %v682, %v685
          %v687 = vsel %vm661, %v677, %v686
          %v689 = vshrl.u32 %v646, 16
          %v691 = vrot.slane %v689, 4
          %v692 = vshll.u32 %v646, 16
          %v694 = vrot.slane %v692, 5
          %v695 = vor.u32 %v691, %v694
          %v696 = vsel %vm661, %v686, %v695
          %v698 = vshrl.u32 %v647, 16
          %v700 = vrot.slane %v698, 4
          %v701 = vshll.u32 %v647, 16
          %v703 = vrot.slane %v701, 5
          %v704 = vor.u32 %v700, %v703
          %v705 = vsel %vm661, %v695, %v704
          %v707 = vshrl.u32 %v648, 16
          %v709 = vrot.slane %v707, 4
          %v710 = vshll.u32 %v648, 16
          %v712 = vrot.slane %v710, 5
          %v713 = vor.u32 %v709, %v712
          %v714 = vsel %vm661, %v704, %v713
          %v716 = vshrl.u32 %v649, 16
          %v718 = vrot.slane %v716, 4
          %v719 = vshll.u32 %v649, 16
          %v721 = vrot.slane %v719, 5
          %v722 = vor.u32 %v718, %v721
          %v723 = vsel %vm661, %v713, %v722
          %v725 = vshrl.u32 %v650, 16
          %v727 = vrot.slane %v725, 4
          %v728 = vshll.u32 %v650, 16
          %v730 = vrot.slane %v728, 5
          %v731 = vor.u32 %v727, %v730
          %v732 = vsel %vm661, %v722, %v731
          %v734 = vshrl.u32 %v651, 16
          %v736 = vrot.slane %v734, 4
          %v737 = vshll.u32 %v651, 16
          %v739 = vrot.slane %v737, 5
          %v740 = vor.u32 %v736, %v739
          %v741 = vsel %vm661, %v731, %v740
          %v743 = vshrl.u32 %v652, 16
          %v745 = vrot.slane %v743, 4
          %v746 = vshll.u32 %v652, 16
          %v748 = vrot.slane %v746, 5
          %v749 = vor.u32 %v745, %v748
          %v750 = vsel %vm661, %v740, %v749
          %v752 = vshrl.u32 %v653, 16
          %v754 = vrot.slane %v752, 4
          %v755 = vshll.u32 %v653, 16
          %v757 = vrot.slane %v755, 5
          %v758 = vor.u32 %v754, %v757
          %v759 = vsel %vm661, %v749, %v758
          %v761 = vshrl.u32 %v654, 16
          %v763 = vrot.slane %v761, 4
          %v764 = vshll.u32 %v654, 16
          %v766 = vrot.slane %v764, 5
          %v767 = vor.u32 %v763, %v766
          %v768 = vsel %vm661, %v758, %v767
          %v770 = vshrl.u32 %v655, 16
          %v772 = vrot.slane %v770, 4
          %v773 = vshll.u32 %v655, 16
          %v775 = vrot.slane %v773, 5
          %v776 = vor.u32 %v772, %v775
          %v777 = vsel %vm661, %v767, %v776
          %v779 = vshrl.u32 %v656, 16
          %v781 = vrot.slane %v779, 4
          %v782 = vshll.u32 %v656, 16
          %v784 = vrot.slane %v782, 5
          %v785 = vor.u32 %v781, %v784
          %v786 = vsel %vm661, %v776, %v785
          %v788 = vshrl.u32 %v657, 16
          %v790 = vrot.slane %v788, 4
          %v791 = vshll.u32 %v657, 16
          %v793 = vrot.slane %v791, 5
          %v794 = vor.u32 %v790, %v793
          %v795 = vsel %vm661, %v785, %v794
          %v797 = vshrl.u32 %v658, 16
          %v799 = vrot.slane %v797, 4
          %v800 = vshll.u32 %v658, 16
          %v802 = vrot.slane %v800, 5
          %v803 = vor.u32 %v799, %v802
          %v804 = vsel %vm661, %v794, %v803
          %v806 = vshrl.u32 %v659, 16
          %v808 = vrot.slane %v806, 4
          %v809 = vshll.u32 %v659, 16
          %v811 = vrot.slane %v809, 5
          %v812 = vor.u32 %v808, %v811
          %v813 = vsel %vm661, %v803, %v812
          %v815 = vshrl.u32 %v660, 16
          %v817 = vrot.slane %v815, 4
          %v818 = vshll.u32 %v660, 16
          %v820 = vrot.slane %v818, 5
          %v821 = vor.u32 %v817, %v820
          %v822 = vsel %vm661, %v812, %v821
          %v824 = vunpack.c.l.b16 %v549
          %v825 = vpack.c.b16 %v824, %v824
          %vm826 = vcmask 1042432
          %v827 = vrot.slane %v643, 5
          %v828 = vrot.slane %v644, 5
          %v829 = vsel %vm826, %v827, %v828
          %v830 = vrot.slane %v645, 5
          %v831 = vsel %vm826, %v828, %v830
          %v832 = vrot.slane %v646, 5
          %v833 = vsel %vm826, %v830, %v832
          %v834 = vrot.slane %v647, 5
          %v835 = vsel %vm826, %v832, %v834
          %v836 = vrot.slane %v648, 5
          %v837 = vsel %vm826, %v834, %v836
          %v838 = vrot.slane %v649, 5
          %v839 = vsel %vm826, %v836, %v838
          %v840 = vrot.slane %v650, 5
          %v841 = vsel %vm826, %v838, %v840
          %v842 = vrot.slane %v651, 5
          %v843 = vsel %vm826, %v840, %v842
          %v844 = vrot.slane %v652, 5
          %v845 = vsel %vm826, %v842, %v844
          %v846 = vrot.slane %v653, 5
          %v847 = vsel %vm826, %v844, %v846
          %v848 = vrot.slane %v654, 5
          %v849 = vsel %vm826, %v846, %v848
          %v850 = vrot.slane %v655, 5
          %v851 = vsel %vm826, %v848, %v850
          %v852 = vrot.slane %v656, 5
          %v853 = vsel %vm826, %v850, %v852
          %v854 = vrot.slane %v657, 5
          %v855 = vsel %vm826, %v852, %v854
          %v856 = vrot.slane %v658, 5
          %v857 = vsel %vm826, %v854, %v856
          %v858 = vrot.slane %v659, 5
          %v859 = vsel %vm826, %v856, %v858
          %v860 = vrot.slane %v660, 5
          %v861 = vsel %vm826, %v858, %v860
          %v862 = vrot.slane %v825, 5
          %v863 = vsel %vm826, %v860, %v862
          %v864 = vld [vmem:[%s233] sm:$0xf]
          %v865 = vld [vmem:[%s233 + $0x4] sm:$0xf]
          %v866 = vld [vmem:[%s233 + $0x8] sm:$0xf]
          %v867 = vld [vmem:[%s233 + $0xc] sm:$0xf]
          %v868 = vld [vmem:[%s233 + $0x10] sm:$0xf]
          %v869 = vld [vmem:[%s233 + $0x14] sm:$0xf]
          %v870 = vld [vmem:[%s233 + $0x18] sm:$0xf]
          %v871 = vld [vmem:[%s233 + $0x1c] sm:$0xf]
          %v872 = vld [vmem:[%s233 + $0x20] sm:$0xf]
          %v873 = vld [vmem:[%s233 + $0x24] sm:$0xf]
          %v874 = vld [vmem:[%s233 + $0x28] sm:$0xf]
          %v875 = vld [vmem:[%s233 + $0x2c] sm:$0xf]
          %v876 = vld [vmem:[%s233 + $0x30] sm:$0xf]
          %v877 = vld [vmem:[%s233 + $0x34] sm:$0xf]
          %v878 = vld [vmem:[%s233 + $0x38] sm:$0xf]
          %v879 = vld [vmem:[%s233 + $0x3c] sm:$0xf]
          %v880 = vld [vmem:[%s233 + $0x40] sm:$0xf]
          %v881 = vld [vmem:[%s233 + $0x44] sm:$0xf]
          %v882 = vld [vmem:[%s233 + $0x48] sm:$0xf]
          %v883 = vld [vmem:[%s233 + $0x4c] sm:$0xf]
          %v884 = vld [vmem:[%s233 + $0x50] sm:$0xf]
          %v885 = vld [vmem:[%s233 + $0x54] sm:$0xf]
          %v886 = vld [vmem:[%s233 + $0x58] sm:$0xf]
          %v887 = vld [vmem:[%s233 + $0x5c] sm:$0xf]
          %v888 = vld [vmem:[%s233 + $0x60] sm:$0xf]
          %v889 = vld [vmem:[%s233 + $0x64] sm:$0xf]
          %v890 = vld [vmem:[%s233 + $0x68] sm:$0xf]
          %v891 = vld [vmem:[%s233 + $0x6c] sm:$0xf]
          %v892 = vld [vmem:[%s233 + $0x70] sm:$0xf]
          %v893 = vld [vmem:[%s233 + $0x74] sm:$0xf]
          %v894 = vld [vmem:[%s233 + $0x78] sm:$0xf]
          %v895 = vld [vmem:[%s233 + $0x7c] sm:$0xf]
          %v896 = vld [vmem:[%s233 + $0x80] sm:$0xf]
          %v897 = vld [vmem:[%s233 + $0x84] sm:$0xf]
          %v898 = vld [vmem:[%s233 + $0x88] sm:$0xf]
          %v899 = vld [vmem:[%s233 + $0x8c] sm:$0xf]
          %v900 = vld [vmem:[%s233 + $0x90] sm:$0xf]
          %v901 = vld [vmem:[%s233 + $0x94] sm:$0xf]
          %v902 = vld [vmem:[%s233 + $0x98] sm:$0xf]
          %v903 = vld [vmem:[%s233 + $0x9c] sm:$0xf]
          %v904 = vld [vmem:[%s233 + $0xa0] sm:$0xf]
          %v905 = vld [vmem:[%s233 + $0xa4] sm:$0xf]
          %v906 = vld [vmem:[%s233 + $0xa8] sm:$0xf]
          %v907 = vld [vmem:[%s233 + $0xac] sm:$0xf]
          %v908 = vld [vmem:[%s233 + $0xb0] sm:$0xf]
          %v909 = vld [vmem:[%s233 + $0xb4] sm:$0xf]
          %v910 = vld [vmem:[%s233 + $0xb8] sm:$0xf]
          %v911 = vld [vmem:[%s233 + $0xbc] sm:$0xf]
          %vm912 = vsmask.f32 4352
          %v914 = vshrl.u32 %v624, 16
          %v916 = vrot.slane %v914, 3
          %v917 = vshll.u32 %v624, 16
          %v919 = vrot.slane %v917, 4
          %v920 = vor.u32 %v916, %v919
          %v922 = vshrl.u32 %v625, 16
          %v924 = vrot.slane %v922, 3
          %v925 = vshll.u32 %v625, 16
          %v927 = vrot.slane %v925, 4
          %v928 = vor.u32 %v924, %v927
          %v929 = vsel %vm912, %v920, %v928
          %v931 = vshrl.u32 %v669, 16
          %v933 = vrot.slane %v931, 3
          %v934 = vshll.u32 %v669, 16
          %v936 = vrot.slane %v934, 4
          %v937 = vor.u32 %v933, %v936
          %v939 = vshrl.u32 %v678, 16
          %v941 = vrot.slane %v939, 3
          %v942 = vshll.u32 %v678, 16
          %v944 = vrot.slane %v942, 4
          %v945 = vor.u32 %v941, %v944
          %v946 = vsel %vm912, %v937, %v945
          %v948 = vshrl.u32 %v827, 16
          %v950 = vrot.slane %v948, 3
          %v951 = vshll.u32 %v827, 16
          %v953 = vrot.slane %v951, 4
          %v954 = vor.u32 %v950, %v953
          %v956 = vshrl.u32 %v829, 16
          %v958 = vrot.slane %v956, 3
          %v959 = vshll.u32 %v829, 16
          %v961 = vrot.slane %v959, 4
          %v962 = vor.u32 %v958, %v961
          %v963 = vsel %vm912, %v954, %v962
          %v965 = vshrl.u32 %v626, 16
          %v967 = vrot.slane %v965, 3
          %v968 = vshll.u32 %v626, 16
          %v970 = vrot.slane %v968, 4
          %v971 = vor.u32 %v967, %v970
          %v972 = vsel %vm912, %v928, %v971
          %v974 = vshrl.u32 %v687, 16
          %v976 = vrot.slane %v974, 3
          %v977 = vshll.u32 %v687, 16
          %v979 = vrot.slane %v977, 4
          %v980 = vor.u32 %v976, %v979
          %v981 = vsel %vm912, %v945, %v980
          %v983 = vshrl.u32 %v831, 16
          %v985 = vrot.slane %v983, 3
          %v986 = vshll.u32 %v831, 16
          %v988 = vrot.slane %v986, 4
          %v989 = vor.u32 %v985, %v988
          %v990 = vsel %vm912, %v962, %v989
          %v992 = vshrl.u32 %v627, 16
          %v994 = vrot.slane %v992, 3
          %v995 = vshll.u32 %v627, 16
          %v997 = vrot.slane %v995, 4
          %v998 = vor.u32 %v994, %v997
          %v999 = vsel %vm912, %v971, %v998
          %v1001 = vshrl.u32 %v696, 16
          %v1003 = vrot.slane %v1001, 3
          %v1004 = vshll.u32 %v696, 16
          %v1006 = vrot.slane %v1004, 4
          %v1007 = vor.u32 %v1003, %v1006
          %v1008 = vsel %vm912, %v980, %v1007
          %v1010 = vshrl.u32 %v833, 16
          %v1012 = vrot.slane %v1010, 3
          %v1013 = vshll.u32 %v833, 16
          %v1015 = vrot.slane %v1013, 4
          %v1016 = vor.u32 %v1012, %v1015
          %v1017 = vsel %vm912, %v989, %v1016
          %v1019 = vshrl.u32 %v628, 16
          %v1021 = vrot.slane %v1019, 3
          %v1022 = vshll.u32 %v628, 16
          %v1024 = vrot.slane %v1022, 4
          %v1025 = vor.u32 %v1021, %v1024
          %v1026 = vsel %vm912, %v998, %v1025
          %v1028 = vshrl.u32 %v705, 16
          %v1030 = vrot.slane %v1028, 3
          %v1031 = vshll.u32 %v705, 16
          %v1033 = vrot.slane %v1031, 4
          %v1034 = vor.u32 %v1030, %v1033
          %v1035 = vsel %vm912, %v1007, %v1034
          %v1037 = vshrl.u32 %v835, 16
          %v1039 = vrot.slane %v1037, 3
          %v1040 = vshll.u32 %v835, 16
          %v1042 = vrot.slane %v1040, 4
          %v1043 = vor.u32 %v1039, %v1042
          %v1044 = vsel %vm912, %v1016, %v1043
          %v1046 = vshrl.u32 %v629, 16
          %v1048 = vrot.slane %v1046, 3
          %v1049 = vshll.u32 %v629, 16
          %v1051 = vrot.slane %v1049, 4
          %v1052 = vor.u32 %v1048, %v1051
          %v1053 = vsel %vm912, %v1025, %v1052
          %v1055 = vshrl.u32 %v714, 16
          %v1057 = vrot.slane %v1055, 3
          %v1058 = vshll.u32 %v714, 16
          %v1060 = vrot.slane %v1058, 4
          %v1061 = vor.u32 %v1057, %v1060
          %v1062 = vsel %vm912, %v1034, %v1061
          %v1064 = vshrl.u32 %v837, 16
          %v1066 = vrot.slane %v1064, 3
          %v1067 = vshll.u32 %v837, 16
          %v1069 = vrot.slane %v1067, 4
          %v1070 = vor.u32 %v1066, %v1069
          %v1071 = vsel %vm912, %v1043, %v1070
          %v1073 = vshrl.u32 %v630, 16
          %v1075 = vrot.slane %v1073, 3
          %v1076 = vshll.u32 %v630, 16
          %v1078 = vrot.slane %v1076, 4
          %v1079 = vor.u32 %v1075, %v1078
          %v1080 = vsel %vm912, %v1052, %v1079
          %v1082 = vshrl.u32 %v723, 16
          %v1084 = vrot.slane %v1082, 3
          %v1085 = vshll.u32 %v723, 16
          %v1087 = vrot.slane %v1085, 4
          %v1088 = vor.u32 %v1084, %v1087
          %v1089 = vsel %vm912, %v1061, %v1088
          %v1091 = vshrl.u32 %v839, 16
          %v1093 = vrot.slane %v1091, 3
          %v1094 = vshll.u32 %v839, 16
          %v1096 = vrot.slane %v1094, 4
          %v1097 = vor.u32 %v1093, %v1096
          %v1098 = vsel %vm912, %v1070, %v1097
          %v1100 = vshrl.u32 %v631, 16
          %v1102 = vrot.slane %v1100, 3
          %v1103 = vshll.u32 %v631, 16
          %v1105 = vrot.slane %v1103, 4
          %v1106 = vor.u32 %v1102, %v1105
          %v1107 = vsel %vm912, %v1079, %v1106
          %v1109 = vshrl.u32 %v732, 16
          %v1111 = vrot.slane %v1109, 3
          %v1112 = vshll.u32 %v732, 16
          %v1114 = vrot.slane %v1112, 4
          %v1115 = vor.u32 %v1111, %v1114
          %v1116 = vsel %vm912, %v1088, %v1115
          %v1118 = vshrl.u32 %v841, 16
          %v1120 = vrot.slane %v1118, 3
          %v1121 = vshll.u32 %v841, 16
          %v1123 = vrot.slane %v1121, 4
          %v1124 = vor.u32 %v1120, %v1123
          %v1125 = vsel %vm912, %v1097, %v1124
          %v1127 = vshrl.u32 %v632, 16
          %v1129 = vrot.slane %v1127, 3
          %v1130 = vshll.u32 %v632, 16
          %v1132 = vrot.slane %v1130, 4
          %v1133 = vor.u32 %v1129, %v1132
          %v1134 = vsel %vm912, %v1106, %v1133
          %v1136 = vshrl.u32 %v741, 16
          %v1138 = vrot.slane %v1136, 3
          %v1139 = vshll.u32 %v741, 16
          %v1141 = vrot.slane %v1139, 4
          %v1142 = vor.u32 %v1138, %v1141
          %v1143 = vsel %vm912, %v1115, %v1142
          %v1145 = vshrl.u32 %v843, 16
          %v1147 = vrot.slane %v1145, 3
          %v1148 = vshll.u32 %v843, 16
          %v1150 = vrot.slane %v1148, 4
          %v1151 = vor.u32 %v1147, %v1150
          %v1152 = vsel %vm912, %v1124, %v1151
          %v1154 = vshrl.u32 %v633, 16
          %v1156 = vrot.slane %v1154, 3
          %v1157 = vshll.u32 %v633, 16
          %v1159 = vrot.slane %v1157, 4
          %v1160 = vor.u32 %v1156, %v1159
          %v1161 = vsel %vm912, %v1133, %v1160
          %v1163 = vshrl.u32 %v750, 16
          %v1165 = vrot.slane %v1163, 3
          %v1166 = vshll.u32 %v750, 16
          %v1168 = vrot.slane %v1166, 4
          %v1169 = vor.u32 %v1165, %v1168
          %v1170 = vsel %vm912, %v1142, %v1169
          %v1172 = vshrl.u32 %v845, 16
          %v1174 = vrot.slane %v1172, 3
          %v1175 = vshll.u32 %v845, 16
          %v1177 = vrot.slane %v1175, 4
          %v1178 = vor.u32 %v1174, %v1177
          %v1179 = vsel %vm912, %v1151, %v1178
          %v1181 = vshrl.u32 %v634, 16
          %v1183 = vrot.slane %v1181, 3
          %v1184 = vshll.u32 %v634, 16
          %v1186 = vrot.slane %v1184, 4
          %v1187 = vor.u32 %v1183, %v1186
          %v1188 = vsel %vm912, %v1160, %v1187
          %v1190 = vshrl.u32 %v759, 16
          %v1192 = vrot.slane %v1190, 3
          %v1193 = vshll.u32 %v759, 16
          %v1195 = vrot.slane %v1193, 4
          %v1196 = vor.u32 %v1192, %v1195
          %v1197 = vsel %vm912, %v1169, %v1196
          %v1199 = vshrl.u32 %v847, 16
          %v1201 = vrot.slane %v1199, 3
          %v1202 = vshll.u32 %v847, 16
          %v1204 = vrot.slane %v1202, 4
          %v1205 = vor.u32 %v1201, %v1204
          %v1206 = vsel %vm912, %v1178, %v1205
          %v1208 = vshrl.u32 %v635, 16
          %v1210 = vrot.slane %v1208, 3
          %v1211 = vshll.u32 %v635, 16
          %v1213 = vrot.slane %v1211, 4
          %v1214 = vor.u32 %v1210, %v1213
          %v1215 = vsel %vm912, %v1187, %v1214
          %v1217 = vshrl.u32 %v768, 16
          %v1219 = vrot.slane %v1217, 3
          %v1220 = vshll.u32 %v768, 16
          %v1222 = vrot.slane %v1220, 4
          %v1223 = vor.u32 %v1219, %v1222
          %v1224 = vsel %vm912, %v1196, %v1223
          %v1226 = vshrl.u32 %v849, 16
          %v1228 = vrot.slane %v1226, 3
          %v1229 = vshll.u32 %v849, 16
          %v1231 = vrot.slane %v1229, 4
          %v1232 = vor.u32 %v1228, %v1231
          %v1233 = vsel %vm912, %v1205, %v1232
          %v1235 = vshrl.u32 %v636, 16
          %v1237 = vrot.slane %v1235, 3
          %v1238 = vshll.u32 %v636, 16
          %v1240 = vrot.slane %v1238, 4
          %v1241 = vor.u32 %v1237, %v1240
          %v1242 = vsel %vm912, %v1214, %v1241
          %v1244 = vshrl.u32 %v777, 16
          %v1246 = vrot.slane %v1244, 3
          %v1247 = vshll.u32 %v777, 16
          %v1249 = vrot.slane %v1247, 4
          %v1250 = vor.u32 %v1246, %v1249
          %v1251 = vsel %vm912, %v1223, %v1250
          %v1253 = vshrl.u32 %v851, 16
          %v1255 = vrot.slane %v1253, 3
          %v1256 = vshll.u32 %v851, 16
          %v1258 = vrot.slane %v1256, 4
          %v1259 = vor.u32 %v1255, %v1258
          %v1260 = vsel %vm912, %v1232, %v1259
          %v1262 = vshrl.u32 %v637, 16
          %v1264 = vrot.slane %v1262, 3
          %v1265 = vshll.u32 %v637, 16
          %v1267 = vrot.slane %v1265, 4
          %v1268 = vor.u32 %v1264, %v1267
          %v1269 = vsel %vm912, %v1241, %v1268
          %v1271 = vshrl.u32 %v786, 16
          %v1273 = vrot.slane %v1271, 3
          %v1274 = vshll.u32 %v786, 16
          %v1276 = vrot.slane %v1274, 4
          %v1277 = vor.u32 %v1273, %v1276
          %v1278 = vsel %vm912, %v1250, %v1277
          %v1280 = vshrl.u32 %v853, 16
          %v1282 = vrot.slane %v1280, 3
          %v1283 = vshll.u32 %v853, 16
          %v1285 = vrot.slane %v1283, 4
          %v1286 = vor.u32 %v1282, %v1285
          %v1287 = vsel %vm912, %v1259, %v1286
          %v1289 = vshrl.u32 %v638, 16
          %v1291 = vrot.slane %v1289, 3
          %v1292 = vshll.u32 %v638, 16
          %v1294 = vrot.slane %v1292, 4
          %v1295 = vor.u32 %v1291, %v1294
          %v1296 = vsel %vm912, %v1268, %v1295
          %v1298 = vshrl.u32 %v795, 16
          %v1300 = vrot.slane %v1298, 3
          %v1301 = vshll.u32 %v795, 16
          %v1303 = vrot.slane %v1301, 4
          %v1304 = vor.u32 %v1300, %v1303
          %v1305 = vsel %vm912, %v1277, %v1304
          %v1307 = vshrl.u32 %v855, 16
          %v1309 = vrot.slane %v1307, 3
          %v1310 = vshll.u32 %v855, 16
          %v1312 = vrot.slane %v1310, 4
          %v1313 = vor.u32 %v1309, %v1312
          %v1314 = vsel %vm912, %v1286, %v1313
          %v1316 = vshrl.u32 %v639, 16
          %v1318 = vrot.slane %v1316, 3
          %v1319 = vshll.u32 %v639, 16
          %v1321 = vrot.slane %v1319, 4
          %v1322 = vor.u32 %v1318, %v1321
          %v1323 = vsel %vm912, %v1295, %v1322
          %v1325 = vshrl.u32 %v804, 16
          %v1327 = vrot.slane %v1325, 3
          %v1328 = vshll.u32 %v804, 16
          %v1330 = vrot.slane %v1328, 4
          %v1331 = vor.u32 %v1327, %v1330
          %v1332 = vsel %vm912, %v1304, %v1331
          %v1334 = vshrl.u32 %v857, 16
          %v1336 = vrot.slane %v1334, 3
          %v1337 = vshll.u32 %v857, 16
          %v1339 = vrot.slane %v1337, 4
          %v1340 = vor.u32 %v1336, %v1339
          %v1341 = vsel %vm912, %v1313, %v1340
          %v1343 = vshrl.u32 %v640, 16
          %v1345 = vrot.slane %v1343, 3
          %v1346 = vshll.u32 %v640, 16
          %v1348 = vrot.slane %v1346, 4
          %v1349 = vor.u32 %v1345, %v1348
          %v1350 = vsel %vm912, %v1322, %v1349
          %v1352 = vshrl.u32 %v813, 16
          %v1354 = vrot.slane %v1352, 3
          %v1355 = vshll.u32 %v813, 16
          %v1357 = vrot.slane %v1355, 4
          %v1358 = vor.u32 %v1354, %v1357
          %v1359 = vsel %vm912, %v1331, %v1358
          %v1361 = vshrl.u32 %v859, 16
          %v1363 = vrot.slane %v1361, 3
          %v1364 = vshll.u32 %v859, 16
          %v1366 = vrot.slane %v1364, 4
          %v1367 = vor.u32 %v1363, %v1366
          %v1368 = vsel %vm912, %v1340, %v1367
          %v1370 = vshrl.u32 %v641, 16
          %v1372 = vrot.slane %v1370, 3
          %v1373 = vshll.u32 %v641, 16
          %v1375 = vrot.slane %v1373, 4
          %v1376 = vor.u32 %v1372, %v1375
          %v1377 = vsel %vm912, %v1349, %v1376
          %v1379 = vshrl.u32 %v822, 16
          %v1381 = vrot.slane %v1379, 3
          %v1382 = vshll.u32 %v822, 16
          %v1384 = vrot.slane %v1382, 4
          %v1385 = vor.u32 %v1381, %v1384
          %v1386 = vsel %vm912, %v1358, %v1385
          %v1388 = vshrl.u32 %v861, 16
          %v1390 = vrot.slane %v1388, 3
          %v1391 = vshll.u32 %v861, 16
          %v1393 = vrot.slane %v1391, 4
          %v1394 = vor.u32 %v1390, %v1393
          %v1395 = vsel %vm912, %v1367, %v1394
          %v1397 = vshrl.u32 %v642, 16
          %v1399 = vrot.slane %v1397, 3
          %v1400 = vshll.u32 %v642, 16
          %v1402 = vrot.slane %v1400, 4
          %v1403 = vor.u32 %v1399, %v1402
          %v1404 = vsel %vm912, %v1376, %v1403
          %v1406 = vshrl.u32 %v821, 16
          %v1408 = vrot.slane %v1406, 3
          %v1409 = vshll.u32 %v821, 16
          %v1411 = vrot.slane %v1409, 4
          %v1412 = vor.u32 %v1408, %v1411
          %v1413 = vsel %vm912, %v1385, %v1412
          %v1415 = vshrl.u32 %v863, 16
          %v1417 = vrot.slane %v1415, 3
          %v1418 = vshll.u32 %v863, 16
          %v1420 = vrot.slane %v1418, 4
          %v1421 = vor.u32 %v1417, %v1420
          %v1422 = vsel %vm912, %v1394, %v1421
          %v1525 = vunpack.c.l.b16 %v864
          %v1526 = vunpack.c.l.b16 %v865
          %v1527 = vunpack.c.l.b16 %v866
          %v1528 = vunpack.c.l.b16 %v867
          %v1529 = vunpack.c.l.b16 %v868
          %v1530 = vunpack.c.l.b16 %v869
          %v1531 = vunpack.c.l.b16 %v870
          %v1532 = vunpack.c.l.b16 %v871
          %v1533 = vunpack.c.l.b16 %v872
          %v1534 = vunpack.c.l.b16 %v873
          %v1535 = vunpack.c.l.b16 %v874
          %v1536 = vunpack.c.l.b16 %v875
          %v1537 = vunpack.c.l.b16 %v876
          %v1538 = vunpack.c.l.b16 %v877
          %v1539 = vunpack.c.l.b16 %v878
          %v1540 = vunpack.c.l.b16 %v879
          %v1541 = vunpack.c.l.b16 %v880
          %v1542 = vunpack.c.l.b16 %v881
          %v1543 = vunpack.c.l.b16 %v882
          %v1544 = vunpack.c.l.b16 %v883
          %v1545 = vunpack.c.l.b16 %v884
          %v1546 = vunpack.c.l.b16 %v885
          %v1547 = vunpack.c.l.b16 %v886
          %v1548 = vunpack.c.l.b16 %v887
          %v1549 = vunpack.c.l.b16 %v888
          %v1550 = vunpack.c.l.b16 %v889
          %v1551 = vunpack.c.l.b16 %v890
          %v1552 = vunpack.c.l.b16 %v891
          %v1553 = vunpack.c.l.b16 %v892
          %v1554 = vunpack.c.l.b16 %v893
          %v1555 = vunpack.c.l.b16 %v894
          %v1556 = vunpack.c.l.b16 %v895
          %v1557 = vunpack.c.l.b16 %v896
          %v1558 = vunpack.c.l.b16 %v897
          %v1559 = vunpack.c.l.b16 %v898
          %v1560 = vunpack.c.l.b16 %v899
          %v1561 = vunpack.c.l.b16 %v900
          %v1562 = vunpack.c.l.b16 %v901
          %v1563 = vunpack.c.l.b16 %v902
          %v1564 = vunpack.c.l.b16 %v903
          %v1565 = vunpack.c.l.b16 %v904
          %v1566 = vunpack.c.l.b16 %v905
          %v1567 = vunpack.c.l.b16 %v906
          %v1568 = vunpack.c.l.b16 %v907
          %v1569 = vunpack.c.l.b16 %v908
          %v1570 = vunpack.c.l.b16 %v909
          %v1571 = vunpack.c.l.b16 %v910
          %v1572 = vunpack.c.l.b16 %v911
          %v1573 = vpack.c.b16 %v1526, %v1525
          %v1574 = vpack.c.b16 %v1528, %v1527
          %v1575 = vpack.c.b16 %v1530, %v1529
          %v1576 = vpack.c.b16 %v1532, %v1531
          %v1577 = vpack.c.b16 %v1534, %v1533
          %v1578 = vpack.c.b16 %v1536, %v1535
          %v1579 = vpack.c.b16 %v1538, %v1537
          %v1580 = vpack.c.b16 %v1540, %v1539
          %v1581 = vpack.c.b16 %v1542, %v1541
          %v1582 = vpack.c.b16 %v1544, %v1543
          %v1583 = vpack.c.b16 %v1546, %v1545
          %v1584 = vpack.c.b16 %v1548, %v1547
          %v1585 = vpack.c.b16 %v1550, %v1549
          %v1586 = vpack.c.b16 %v1552, %v1551
          %v1587 = vpack.c.b16 %v1554, %v1553
          %v1588 = vpack.c.b16 %v1556, %v1555
          %v1589 = vpack.c.b16 %v1558, %v1557
          %v1590 = vpack.c.b16 %v1560, %v1559
          %v1591 = vpack.c.b16 %v1562, %v1561
          %v1592 = vpack.c.b16 %v1564, %v1563
          %v1593 = vpack.c.b16 %v1566, %v1565
          %v1594 = vpack.c.b16 %v1568, %v1567
          %v1595 = vpack.c.b16 %v1570, %v1569
          %v1596 = vpack.c.b16 %v1572, %v1571
          %1621 = vmatprep.subr.bf16.mxu0 0
          %1622 = vmatpush1.bf16.msra.mxu0 %v1573
          %1623 = vmatprep.subr.bf16.mxu0 0
          %1624 = vmatpush1.bf16.msra.mxu0 %v1574
          %1625 = vmatprep.subr.bf16.mxu0 0
          %1626 = vmatpush1.bf16.msra.mxu0 %v1575
          %1627 = vmatprep.subr.bf16.mxu0 0
          %1628 = vmatpush1.bf16.msra.mxu0 %v1576
          %1629 = vmatprep.subr.bf16.mxu0 0
          %1630 = vmatpush1.bf16.msra.mxu0 %v1577
          %1631 = vmatprep.subr.bf16.mxu0 0
          %1632 = vmatpush1.bf16.msra.mxu0 %v1578
          %1633 = vmatprep.subr.bf16.mxu0 0
          %1634 = vmatpush1.bf16.msra.mxu0 %v1579
          %1635 = vmatprep.subr.bf16.mxu0 0
          %1636 = vmatpush1.bf16.msra.mxu0 %v1580
          %1637 = vmatprep.subr.bf16.mxu0 0
          %1638 = vmatpush1.bf16.msra.mxu0 %v1581
          %1639 = vmatprep.subr.bf16.mxu0 0
          %1640 = vmatpush1.bf16.msra.mxu0 %v1582
          %1641 = vmatprep.subr.bf16.mxu0 0
          %1642 = vmatpush1.bf16.msra.mxu0 %v1583
          %1643 = vmatprep.subr.bf16.mxu0 0
          %1644 = vmatpush1.bf16.msra.mxu0 %v1584
          %1645 = vmatprep.subr.bf16.mxu0 0
          %1646 = vmatpush1.bf16.msra.mxu0 %v1585
          %1647 = vmatprep.subr.bf16.mxu0 0
          %1648 = vmatpush1.bf16.msra.mxu0 %v1586
          %1649 = vmatprep.subr.bf16.mxu0 0
          %1650 = vmatpush1.bf16.msra.mxu0 %v1587
          %1651 = vmatprep.subr.bf16.mxu0 0
          %1652 = vmatpush1.bf16.msra.mxu0 %v1588
          %1653 = vmatprep.mubr.bf16.mxu0 %v946
          %1654 = vmatmul.mubr.bf16.gmra.mrb[0].mxu0 %v929
          %v1655 = vpop.f32.mrb[0].mxu0
          %v1656 = vadd.f32 0.0, %v1655
          %v1657 = vpop.f32.mrb[0].mxu0
          %v1658 = vpop.f32.mrb[0].mxu0
          %v1659 = vadd.f32 0.0, %v1658
          %v1660 = vpop.f32.mrb[0].mxu0
          %1661 = vmatprep.mubr.bf16.mxu0 %v981
          %1662 = vmatmul.mubr.bf16.gmra.mrb[0].mxu0 %v972
          %v1663 = vpop.f32.mrb[0].mxu0
          %v1664 = vadd.f32 0.0, %v1663
          %v1665 = vpop.f32.mrb[0].mxu0
          %v1666 = vpop.f32.mrb[0].mxu0
          %v1667 = vadd.f32 0.0, %v1666
          %v1668 = vpop.f32.mrb[0].mxu0
          %1669 = vmatprep.mubr.bf16.mxu0 %v1008
          %1670 = vmatmul.mubr.bf16.gmra.mrb[0].mxu0 %v999
          %v1671 = vpop.f32.mrb[0].mxu0
          %v1672 = vadd.f32 0.0, %v1671
          %v1673 = vpop.f32.mrb[0].mxu0
          %v1674 = vpop.f32.mrb[0].mxu0
          %v1675 = vadd.f32 0.0, %v1674
          %v1676 = vpop.f32.mrb[0].mxu0
          %1677 = vmatprep.mubr.bf16.mxu0 %v1035
          %1678 = vmatmul.mubr.bf16.gmra.mrb[0].mxu0 %v1026
          %v1679 = vpop.f32.mrb[0].mxu0
          %v1680 = vadd.f32 0.0, %v1679
          %v1681 = vpop.f32.mrb[0].mxu0
          %v1682 = vpop.f32.mrb[0].mxu0
          %v1683 = vadd.f32 0.0, %v1682
          %v1684 = vpop.f32.mrb[0].mxu0
          %1685 = vmatprep.mubr.bf16.mxu0 %v1062
          %1686 = vmatmul.mubr.bf16.gmra.mrb[0].mxu0 %v1053
          %v1687 = vpop.f32.mrb[0].mxu0
          %v1688 = vadd.f32 0.0, %v1687
          %v1689 = vpop.f32.mrb[0].mxu0
          %v1690 = vpop.f32.mrb[0].mxu0
          %v1691 = vadd.f32 0.0, %v1690
          %v1692 = vpop.f32.mrb[0].mxu0
          %1693 = vmatprep.mubr.bf16.mxu0 %v1089
          %1694 = vmatmul.mubr.bf16.gmra.mrb[0].mxu0 %v1080
          %v1695 = vpop.f32.mrb[0].mxu0
          %v1696 = vadd.f32 0.0, %v1695
          %v1697 = vpop.f32.mrb[0].mxu0
          %v1698 = vpop.f32.mrb[0].mxu0
          %v1699 = vadd.f32 0.0, %v1698
          %v1700 = vpop.f32.mrb[0].mxu0
          %1701 = vmatprep.mubr.bf16.mxu0 %v1116
          %1702 = vmatmul.mubr.bf16.gmra.mrb[0].mxu0 %v1107
          %v1703 = vpop.f32.mrb[0].mxu0
          %v1704 = vadd.f32 0.0, %v1703
          %v1705 = vpop.f32.mrb[0].mxu0
          %v1706 = vpop.f32.mrb[0].mxu0
          %v1707 = vadd.f32 0.0, %v1706
          %v1708 = vpop.f32.mrb[0].mxu0
          %1709 = vmatprep.mubr.bf16.mxu0 %v1143
          %1710 = vmatmul.mubr.bf16.gmra.mrb[0].mxu0 %v1134
          %v1711 = vpop.f32.mrb[0].mxu0
          %v1712 = vadd.f32 0.0, %v1711
          %v1713 = vpop.f32.mrb[0].mxu0
          %v1714 = vpop.f32.mrb[0].mxu0
          %v1715 = vadd.f32 0.0, %v1714
          %v1716 = vpop.f32.mrb[0].mxu0
          %1717 = vmatprep.mubr.bf16.mxu0 %v1170
          %1718 = vmatmul.mubr.bf16.gmra.mrb[0].mxu0 %v1161
          %v1719 = vpop.f32.mrb[0].mxu0
          %v1720 = vadd.f32 0.0, %v1719
          %v1721 = vpop.f32.mrb[0].mxu0
          %v1722 = vpop.f32.mrb[0].mxu0
          %v1723 = vadd.f32 0.0, %v1722
          %v1724 = vpop.f32.mrb[0].mxu0
          %1725 = vmatprep.mubr.bf16.mxu0 %v1197
          %1726 = vmatmul.mubr.bf16.gmra.mrb[0].mxu0 %v1188
          %v1727 = vpop.f32.mrb[0].mxu0
          %v1728 = vadd.f32 0.0, %v1727
          %v1729 = vpop.f32.mrb[0].mxu0
          %v1730 = vpop.f32.mrb[0].mxu0
          %v1731 = vadd.f32 0.0, %v1730
          %v1732 = vpop.f32.mrb[0].mxu0
          %1733 = vmatprep.mubr.bf16.mxu0 %v1224
          %1734 = vmatmul.mubr.bf16.gmra.mrb[0].mxu0 %v1215
          %v1735 = vpop.f32.mrb[0].mxu0
          %v1736 = vadd.f32 0.0, %v1735
          %v1737 = vpop.f32.mrb[0].mxu0
          %v1738 = vpop.f32.mrb[0].mxu0
          %v1739 = vadd.f32 0.0, %v1738
          %v1740 = vpop.f32.mrb[0].mxu0
          %1741 = vmatprep.mubr.bf16.mxu0 %v1251
          %1742 = vmatmul.mubr.bf16.gmra.mrb[0].mxu0 %v1242
          %v1743 = vpop.f32.mrb[0].mxu0
          %v1744 = vadd.f32 0.0, %v1743
          %v1745 = vpop.f32.mrb[0].mxu0
          %v1746 = vpop.f32.mrb[0].mxu0
          %v1747 = vadd.f32 0.0, %v1746
          %v1748 = vpop.f32.mrb[0].mxu0
          %1749 = vmatprep.mubr.bf16.mxu0 %v1278
          %1750 = vmatmul.mubr.bf16.gmra.mrb[0].mxu0 %v1269
          %v1751 = vpop.f32.mrb[0].mxu0
          %v1752 = vadd.f32 0.0, %v1751
          %v1753 = vpop.f32.mrb[0].mxu0
          %v1754 = vpop.f32.mrb[0].mxu0
          %v1755 = vadd.f32 0.0, %v1754
          %v1756 = vpop.f32.mrb[0].mxu0
          %1757 = vmatprep.mubr.bf16.mxu0 %v1305
          %1758 = vmatmul.mubr.bf16.gmra.mrb[0].mxu0 %v1296
          %v1759 = vpop.f32.mrb[0].mxu0
          %v1760 = vadd.f32 0.0, %v1759
          %v1761 = vpop.f32.mrb[0].mxu0
          %v1762 = vpop.f32.mrb[0].mxu0
          %v1763 = vadd.f32 0.0, %v1762
          %v1764 = vpop.f32.mrb[0].mxu0
          %1765 = vmatprep.mubr.bf16.mxu0 %v1332
          %1766 = vmatmul.mubr.bf16.gmra.mrb[0].mxu0 %v1323
          %v1767 = vpop.f32.mrb[0].mxu0
          %v1768 = vadd.f32 0.0, %v1767
          %v1769 = vpop.f32.mrb[0].mxu0
          %v1770 = vpop.f32.mrb[0].mxu0
          %v1771 = vadd.f32 0.0, %v1770
          %v1772 = vpop.f32.mrb[0].mxu0
          %1773 = vmatprep.mubr.bf16.mxu0 %v1359
          %1774 = vmatmul.mubr.bf16.gmra.mrb[0].mxu0 %v1350
          %v1775 = vpop.f32.mrb[0].mxu0
          %v1776 = vadd.f32 0.0, %v1775
          %v1777 = vpop.f32.mrb[0].mxu0
          %v1778 = vpop.f32.mrb[0].mxu0
          %v1779 = vadd.f32 0.0, %v1778
          %v1780 = vpop.f32.mrb[0].mxu0
          %1781 = vmatprep.mubr.bf16.mxu0 %v1386
          %1782 = vmatmul.mubr.bf16.gmra.mrb[0].mxu0 %v1377
          %v1783 = vpop.f32.mrb[0].mxu0
          %v1784 = vadd.f32 0.0, %v1783
          %v1785 = vpop.f32.mrb[0].mxu0
          %v1786 = vpop.f32.mrb[0].mxu0
          %v1787 = vadd.f32 0.0, %v1786
          %v1788 = vpop.f32.mrb[0].mxu0
          %1789 = vmatprep.mubr.bf16.mxu0 %v1413
          %1790 = vmatmul.mubr.bf16.gmra.mrb[0].mxu0 %v1404
          %v1791 = vpop.f32.mrb[0].mxu0
          %v1792 = vadd.f32 0.0, %v1791
          %v1793 = vpop.f32.mrb[0].mxu0
          %v1794 = vpop.f32.mrb[0].mxu0
          %v1795 = vadd.f32 0.0, %v1794
          %v1796 = vpop.f32.mrb[0].mxu0
          %1797 = vdwg.mxu0
          %1798 = vmatprep.subr.bf16.mxu0 0
          %1799 = vmatpush1.bf16.msra.mxu0 %v1589
          %1800 = vmatprep.subr.bf16.mxu0 0
          %1801 = vmatpush1.bf16.msra.mxu0 %v1590
          %1802 = vmatprep.subr.bf16.mxu0 0
          %1803 = vmatpush1.bf16.msra.mxu0 %v1591
          %1804 = vmatprep.subr.bf16.mxu0 0
          %1805 = vmatpush1.bf16.msra.mxu0 %v1592
          %1806 = vmatprep.subr.bf16.mxu0 0
          %1807 = vmatpush1.bf16.msra.mxu0 %v1593
          %1808 = vmatprep.subr.bf16.mxu0 0
          %1809 = vmatpush1.bf16.msra.mxu0 %v1594
          %1810 = vmatprep.subr.bf16.mxu0 0
          %1811 = vmatpush1.bf16.msra.mxu0 %v1595
          %1812 = vmatprep.subr.bf16.mxu0 0
          %1813 = vmatpush1.bf16.msra.mxu0 %v1596
          %1814 = vmatprep.subr.bf16.mxu0 0
          %1815 = vmatpush1.bf16.msra.mxu0 0
          %1816 = vmatprep.subr.bf16.mxu0 0
          %1817 = vmatpush1.bf16.msra.mxu0 0
          %1818 = vmatprep.subr.bf16.mxu0 0
          %1819 = vmatpush1.bf16.msra.mxu0 0
          %1820 = vmatprep.subr.bf16.mxu0 0
          %1821 = vmatpush1.bf16.msra.mxu0 0
          %1822 = vmatprep.subr.bf16.mxu0 0
          %1823 = vmatpush1.bf16.msra.mxu0 0
          %1824 = vmatprep.subr.bf16.mxu0 0
          %1825 = vmatpush1.bf16.msra.mxu0 0
          %1826 = vmatprep.subr.bf16.mxu0 0
          %1827 = vmatpush1.bf16.msra.mxu0 0
          %1828 = vmatprep.subr.bf16.mxu0 0
          %1829 = vmatpush1.bf16.msra.mxu0 0
          %1830 = vmatprep.mubr.bf16.mxu0 0
          %1831 = vmatmul.mubr.bf16.gmra.mrb[0].mxu0 %v963
          %v1832 = vpop.f32.mrb[0].mxu0
          %v1833 = vadd.f32 %v1656, %v1832
          %v1834 = vpop.f32.mrb[0].mxu0
          %v1835 = vpop.f32.mrb[0].mxu0
          %v1836 = vadd.f32 %v1659, %v1835
          %v1837 = vpop.f32.mrb[0].mxu0
          %1838 = vmatprep.mubr.bf16.mxu0 0
          %1839 = vmatmul.mubr.bf16.gmra.mrb[0].mxu0 %v990
          %v1840 = vpop.f32.mrb[0].mxu0
          %v1841 = vadd.f32 %v1664, %v1840
          %v1842 = vpop.f32.mrb[0].mxu0
          %v1843 = vpop.f32.mrb[0].mxu0
          %v1844 = vadd.f32 %v1667, %v1843
          %v1845 = vpop.f32.mrb[0].mxu0
          %1846 = vmatprep.mubr.bf16.mxu0 0
          %1847 = vmatmul.mubr.bf16.gmra.mrb[0].mxu0 %v1017
          %v1848 = vpop.f32.mrb[0].mxu0
          %v1849 = vadd.f32 %v1672, %v1848
          %v1850 = vpop.f32.mrb[0].mxu0
          %v1851 = vpop.f32.mrb[0].mxu0
          %v1852 = vadd.f32 %v1675, %v1851
          %v1853 = vpop.f32.mrb[0].mxu0
          %1854 = vmatprep.mubr.bf16.mxu0 0
          %1855 = vmatmul.mubr.bf16.gmra.mrb[0].mxu0 %v1044
          %v1856 = vpop.f32.mrb[0].mxu0
          %v1857 = vadd.f32 %v1680, %v1856
          %v1858 = vpop.f32.mrb[0].mxu0
          %v1859 = vpop.f32.mrb[0].mxu0
          %v1860 = vadd.f32 %v1683, %v1859
          %v1861 = vpop.f32.mrb[0].mxu0
          %1862 = vmatprep.mubr.bf16.mxu0 0
          %1863 = vmatmul.mubr.bf16.gmra.mrb[0].mxu0 %v1071
          %v1864 = vpop.f32.mrb[0].mxu0
          %v1865 = vadd.f32 %v1688, %v1864
          %v1866 = vpop.f32.mrb[0].mxu0
          %v1867 = vpop.f32.mrb[0].mxu0
          %v1868 = vadd.f32 %v1691, %v1867
          %v1869 = vpop.f32.mrb[0].mxu0
          %1870 = vmatprep.mubr.bf16.mxu0 0
          %1871 = vmatmul.mubr.bf16.gmra.mrb[0].mxu0 %v1098
          %v1872 = vpop.f32.mrb[0].mxu0
          %v1873 = vadd.f32 %v1696, %v1872
          %v1874 = vpop.f32.mrb[0].mxu0
          %v1875 = vpop.f32.mrb[0].mxu0
          %v1876 = vadd.f32 %v1699, %v1875
          %v1877 = vpop.f32.mrb[0].mxu0
          %1878 = vmatprep.mubr.bf16.mxu0 0
          %1879 = vmatmul.mubr.bf16.gmra.mrb[0].mxu0 %v1125
          %v1880 = vpop.f32.mrb[0].mxu0
          %v1881 = vadd.f32 %v1704, %v1880
          %v1882 = vpop.f32.mrb[0].mxu0
          %v1883 = vpop.f32.mrb[0].mxu0
          %v1884 = vadd.f32 %v1707, %v1883
          %v1885 = vpop.f32.mrb[0].mxu0
          %1886 = vmatprep.mubr.bf16.mxu0 0
          %1887 = vmatmul.mubr.bf16.gmra.mrb[0].mxu0 %v1152
          %v1888 = vpop.f32.mrb[0].mxu0
          %v1889 = vadd.f32 %v1712, %v1888
          %v1890 = vpop.f32.mrb[0].mxu0
          %v1891 = vpop.f32.mrb[0].mxu0
          %v1892 = vadd.f32 %v1715, %v1891
          %v1893 = vpop.f32.mrb[0].mxu0
          %1894 = vmatprep.mubr.bf16.mxu0 0
          %1895 = vmatmul.mubr.bf16.gmra.mrb[0].mxu0 %v1179
          %v1896 = vpop.f32.mrb[0].mxu0
          %v1897 = vadd.f32 %v1720, %v1896
          %v1898 = vpop.f32.mrb[0].mxu0
          %v1899 = vpop.f32.mrb[0].mxu0
          %v1900 = vadd.f32 %v1723, %v1899
          %v1901 = vpop.f32.mrb[0].mxu0
          %1902 = vmatprep.mubr.bf16.mxu0 0
          %1903 = vmatmul.mubr.bf16.gmra.mrb[0].mxu0 %v1206
          %v1904 = vpop.f32.mrb[0].mxu0
          %v1905 = vadd.f32 %v1728, %v1904
          %v1906 = vpop.f32.mrb[0].mxu0
          %v1907 = vpop.f32.mrb[0].mxu0
          %v1908 = vadd.f32 %v1731, %v1907
          %v1909 = vpop.f32.mrb[0].mxu0
          %1910 = vmatprep.mubr.bf16.mxu0 0
          %1911 = vmatmul.mubr.bf16.gmra.mrb[0].mxu0 %v1233
          %v1912 = vpop.f32.mrb[0].mxu0
          %v1913 = vadd.f32 %v1736, %v1912
          %v1914 = vpop.f32.mrb[0].mxu0
          %v1915 = vpop.f32.mrb[0].mxu0
          %v1916 = vadd.f32 %v1739, %v1915
          %v1917 = vpop.f32.mrb[0].mxu0
          %1918 = vmatprep.mubr.bf16.mxu0 0
          %1919 = vmatmul.mubr.bf16.gmra.mrb[0].mxu0 %v1260
          %v1920 = vpop.f32.mrb[0].mxu0
          %v1921 = vadd.f32 %v1744, %v1920
          %v1922 = vpop.f32.mrb[0].mxu0
          %v1923 = vpop.f32.mrb[0].mxu0
          %v1924 = vadd.f32 %v1747, %v1923
          %v1925 = vpop.f32.mrb[0].mxu0
          %1926 = vmatprep.mubr.bf16.mxu0 0
          %1927 = vmatmul.mubr.bf16.gmra.mrb[0].mxu0 %v1287
          %v1928 = vpop.f32.mrb[0].mxu0
          %v1929 = vadd.f32 %v1752, %v1928
          %v1930 = vpop.f32.mrb[0].mxu0
          %v1931 = vpop.f32.mrb[0].mxu0
          %v1932 = vadd.f32 %v1755, %v1931
          %v1933 = vpop.f32.mrb[0].mxu0
          %1934 = vmatprep.mubr.bf16.mxu0 0
          %1935 = vmatmul.mubr.bf16.gmra.mrb[0].mxu0 %v1314
          %v1936 = vpop.f32.mrb[0].mxu0
          %v1937 = vadd.f32 %v1760, %v1936
          %v1938 = vpop.f32.mrb[0].mxu0
          %v1939 = vpop.f32.mrb[0].mxu0
          %v1940 = vadd.f32 %v1763, %v1939
          %v1941 = vpop.f32.mrb[0].mxu0
          %1942 = vmatprep.mubr.bf16.mxu0 0
          %1943 = vmatmul.mubr.bf16.gmra.mrb[0].mxu0 %v1341
          %v1944 = vpop.f32.mrb[0].mxu0
          %v1945 = vadd.f32 %v1768, %v1944
          %v1946 = vpop.f32.mrb[0].mxu0
          %v1947 = vpop.f32.mrb[0].mxu0
          %v1948 = vadd.f32 %v1771, %v1947
          %v1949 = vpop.f32.mrb[0].mxu0
          %1950 = vmatprep.mubr.bf16.mxu0 0
          %1951 = vmatmul.mubr.bf16.gmra.mrb[0].mxu0 %v1368
          %v1952 = vpop.f32.mrb[0].mxu0
          %v1953 = vadd.f32 %v1776, %v1952
          %v1954 = vpop.f32.mrb[0].mxu0
          %v1955 = vpop.f32.mrb[0].mxu0
          %v1956 = vadd.f32 %v1779, %v1955
          %v1957 = vpop.f32.mrb[0].mxu0
          %1958 = vmatprep.mubr.bf16.mxu0 0
          %1959 = vmatmul.mubr.bf16.gmra.mrb[0].mxu0 %v1395
          %v1960 = vpop.f32.mrb[0].mxu0
          %v1961 = vadd.f32 %v1784, %v1960
          %v1962 = vpop.f32.mrb[0].mxu0
          %v1963 = vpop.f32.mrb[0].mxu0
          %v1964 = vadd.f32 %v1787, %v1963
          %v1965 = vpop.f32.mrb[0].mxu0
          %1966 = vmatprep.mubr.bf16.mxu0 0
          %1967 = vmatmul.mubr.bf16.gmra.mrb[0].mxu0 %v1422
          %v1968 = vpop.f32.mrb[0].mxu0
          %v1969 = vadd.f32 %v1792, %v1968
          %v1970 = vpop.f32.mrb[0].mxu0
          %v1971 = vpop.f32.mrb[0].mxu0
          %v1972 = vadd.f32 %v1795, %v1971
          %v1973 = vpop.f32.mrb[0].mxu0
          %1974 = vdwg.mxu0
          %1975 = vst [vmem:[#allocation5] sm:$0xff] %v1833
          %1976 = vst [vmem:[#allocation5 + $0x8] sm:$0xff] %v1836
          %1977 = vst [vmem:[#allocation5 + $0x10] sm:$0xff] %v1841
          %1978 = vst [vmem:[#allocation5 + $0x18] sm:$0xff] %v1844
          %1979 = vst [vmem:[#allocation5 + $0x20] sm:$0xff] %v1849
          %1980 = vst [vmem:[#allocation5 + $0x28] sm:$0xff] %v1852
          %1981 = vst [vmem:[#allocation5 + $0x30] sm:$0xff] %v1857
          %1982 = vst [vmem:[#allocation5 + $0x38] sm:$0xff] %v1860
          %1983 = vst [vmem:[#allocation5 + $0x40] sm:$0xff] %v1865
          %1984 = vst [vmem:[#allocation5 + $0x48] sm:$0xff] %v1868
          %1985 = vst [vmem:[#allocation5 + $0x50] sm:$0xff] %v1873
          %1986 = vst [vmem:[#allocation5 + $0x58] sm:$0xff] %v1876
          %1987 = vst [vmem:[#allocation5 + $0x60] sm:$0xff] %v1881
          %1988 = vst [vmem:[#allocation5 + $0x68] sm:$0xff] %v1884
          %1989 = vst [vmem:[#allocation5 + $0x70] sm:$0xff] %v1889
          %1990 = vst [vmem:[#allocation5 + $0x78] sm:$0xff] %v1892
          %1991 = vst [vmem:[#allocation5 + $0x80] sm:$0xff] %v1897
          %1992 = vst [vmem:[#allocation5 + $0x88] sm:$0xff] %v1900
          %1993 = vst [vmem:[#allocation5 + $0x90] sm:$0xff] %v1905
          %1994 = vst [vmem:[#allocation5 + $0x98] sm:$0xff] %v1908
          %1995 = vst [vmem:[#allocation5 + $0xa0] sm:$0xff] %v1913
          %1996 = vst [vmem:[#allocation5 + $0xa8] sm:$0xff] %v1916
          %1997 = vst [vmem:[#allocation5 + $0xb0] sm:$0xff] %v1921
          %1998 = vst [vmem:[#allocation5 + $0xb8] sm:$0xff] %v1924
          %1999 = vst [vmem:[#allocation5 + $0xc0] sm:$0xff] %v1929
          %2000 = vst [vmem:[#allocation5 + $0xc8] sm:$0xff] %v1932
          %2001 = vst [vmem:[#allocation5 + $0xd0] sm:$0xff] %v1937
          %2002 = vst [vmem:[#allocation5 + $0xd8] sm:$0xff] %v1940
          %2003 = vst [vmem:[#allocation5 + $0xe0] sm:$0xff] %v1945
          %2004 = vst [vmem:[#allocation5 + $0xe8] sm:$0xff] %v1948
          %2005 = vst [vmem:[#allocation5 + $0xf0] sm:$0xff] %v1953
          %2006 = vst [vmem:[#allocation5 + $0xf8] sm:$0xff] %v1956
          %2007 = vst [vmem:[#allocation5 + $0x100] sm:$0xff] %v1961
          %2008 = vst [vmem:[#allocation5 + $0x108] sm:$0xff] %v1964
          %2009 = vst [vmem:[#allocation5 + $0x110] sm:$0xff] %v1969
          %2010 = vst [vmem:[#allocation5 + $0x118] sm:$0xff] %v1972
          %v2011 = vld [vmem:[#allocation2 + $0xc] sm:$0xf]
          %v2012 = vld [vmem:[#allocation2 + $0x10] sm:$0xf]
          %v2013 = vld [vmem:[#allocation2 + $0x14] sm:$0xf]
          %v2014 = vld [vmem:[#allocation2 + $0x18] sm:$0xf]
          %v2015 = vld [vmem:[#allocation2 + $0x1c] sm:$0xf]
          %v2016 = vld [vmem:[#allocation2 + $0x20] sm:$0xf]
          %v2017 = vld [vmem:[#allocation2 + $0x24] sm:$0xf]
          %v2018 = vld [vmem:[#allocation2 + $0x28] sm:$0xf]
          %v2019 = vld [vmem:[#allocation2 + $0x2c] sm:$0xf]
          %v2020 = vld [vmem:[#allocation2 + $0x30] sm:$0xf]
          %v2021 = vld [vmem:[#allocation2 + $0x34] sm:$0xf]
          %v2022 = vld [vmem:[#allocation2 + $0x38] sm:$0xf]
          %v2023 = vld [vmem:[#allocation2 + $0x3c] sm:$0xf]
          %v2024 = vld [vmem:[#allocation2 + $0x40] sm:$0xf]
          %v2025 = vld [vmem:[#allocation2 + $0x44] sm:$0xf]
          %v2026 = vld [vmem:[#allocation2 + $0x48] sm:$0xf]
          %v2027 = vld [vmem:[#allocation2 + $0x4c] sm:$0xf]
          %v2028 = vld [vmem:[#allocation2 + $0x50] sm:$0xf]
          %v2029 = vld [vmem:[#allocation2 + $0x54] sm:$0xf]
          %v2030 = vld [vmem:[#allocation2 + $0x58] sm:$0xf]
          %v2031 = vld [vmem:[#allocation2 + $0x5c] sm:$0xf]
          %v2032 = vld [vmem:[#allocation2 + $0x60] sm:$0xf]
          %v2033 = vld [vmem:[#allocation2 + $0x64] sm:$0xf]
          %v2034 = vld [vmem:[#allocation2 + $0x68] sm:$0xf]
          %v2035 = vld [vmem:[#allocation2 + $0x6c] sm:$0xf]
          %v2036 = vld [vmem:[#allocation2 + $0x70] sm:$0xf]
          %v2037 = vld [vmem:[#allocation2 + $0x74] sm:$0xf]
          %v2038 = vld [vmem:[#allocation2 + $0x78] sm:$0xf]
          %v2039 = vld [vmem:[#allocation2 + $0x7c] sm:$0xf]
          %v2040 = vld [vmem:[#allocation2 + $0x80] sm:$0xf]
          %v2041 = vld [vmem:[#allocation2 + $0x84] sm:$0xf]
          %v2042 = vld [vmem:[#allocation2 + $0x88] sm:$0xf]
          %v2043 = vld [vmem:[#allocation2 + $0x8c] sm:$0xf]
          %v2044 = vld [vmem:[#allocation2 + $0x90] sm:$0xf]
          %v2045 = vld [vmem:[#allocation2 + $0x94] sm:$0xf]
          %v2046 = vld [vmem:[#allocation2 + $0x98] sm:$0xf]
          %v2047 = vld [vmem:[#allocation2 + $0x9c] sm:$0x1]
          %v2048 = vld [vmem:[#allocation2 + $0xc] sm:$0xe]
          %v2049 = vld [vmem:[#allocation2 + $0x9c] sm:$0x3]
          %v2087 = vunpack.c.l.b16 %v2011
          %v2088 = vunpack.c.l.b16 %v2012
          %v2089 = vunpack.c.l.b16 %v2013
          %v2090 = vunpack.c.l.b16 %v2014
          %v2091 = vunpack.c.l.b16 %v2015
          %v2092 = vunpack.c.l.b16 %v2016
          %v2093 = vunpack.c.l.b16 %v2017
          %v2094 = vunpack.c.l.b16 %v2018
          %v2095 = vunpack.c.l.b16 %v2019
          %v2096 = vunpack.c.l.b16 %v2020
          %v2097 = vunpack.c.l.b16 %v2021
          %v2098 = vunpack.c.l.b16 %v2022
          %v2099 = vunpack.c.l.b16 %v2023
          %v2100 = vunpack.c.l.b16 %v2024
          %v2101 = vunpack.c.l.b16 %v2025
          %v2102 = vunpack.c.l.b16 %v2026
          %v2103 = vunpack.c.l.b16 %v2027
          %v2104 = vunpack.c.l.b16 %v2028
          %v2105 = vunpack.c.l.b16 %v2029
          %v2106 = vunpack.c.l.b16 %v2030
          %v2107 = vunpack.c.l.b16 %v2031
          %v2108 = vunpack.c.l.b16 %v2032
          %v2109 = vunpack.c.l.b16 %v2033
          %v2110 = vunpack.c.l.b16 %v2034
          %v2111 = vunpack.c.l.b16 %v2035
          %v2112 = vunpack.c.l.b16 %v2036
          %v2113 = vunpack.c.l.b16 %v2037
          %v2114 = vunpack.c.l.b16 %v2038
          %v2115 = vunpack.c.l.b16 %v2039
          %v2116 = vunpack.c.l.b16 %v2040
          %v2117 = vunpack.c.l.b16 %v2041
          %v2118 = vunpack.c.l.b16 %v2042
          %v2119 = vunpack.c.l.b16 %v2043
          %v2120 = vunpack.c.l.b16 %v2044
          %v2121 = vunpack.c.l.b16 %v2045
          %v2122 = vunpack.c.l.b16 %v2046
          %v2123 = vunpack.c.l.b16 %v2047
          %v2124 = vpack.c.b16 %v2088, %v2087
          %v2125 = vpack.c.b16 %v2090, %v2089
          %v2126 = vpack.c.b16 %v2092, %v2091
          %v2127 = vpack.c.b16 %v2094, %v2093
          %v2128 = vpack.c.b16 %v2096, %v2095
          %v2129 = vpack.c.b16 %v2098, %v2097
          %v2130 = vpack.c.b16 %v2100, %v2099
          %v2131 = vpack.c.b16 %v2102, %v2101
          %v2132 = vpack.c.b16 %v2104, %v2103
          %v2133 = vpack.c.b16 %v2106, %v2105
          %v2134 = vpack.c.b16 %v2108, %v2107
          %v2135 = vpack.c.b16 %v2110, %v2109
          %v2136 = vpack.c.b16 %v2112, %v2111
          %v2137 = vpack.c.b16 %v2114, %v2113
          %v2138 = vpack.c.b16 %v2116, %v2115
          %v2139 = vpack.c.b16 %v2118, %v2117
          %v2140 = vpack.c.b16 %v2120, %v2119
          %v2141 = vpack.c.b16 %v2122, %v2121
          %v2142 = vpack.c.b16 %v2123, %v2123
          %v2144 = vunpack.c.l.b16 %v2048
          %v2145 = vpack.c.b16 %v2088, %v2144
          %vm2146 = vsmask.f32 7424
          %v2148 = vshrl.u32 %v2145, 16
          %v2150 = vshll.u32 %v2145, 16
          %v2152 = vrot.slane %v2150, 1
          %v2153 = vor.u32 %v2148, %v2152
          %v2155 = vshll.u32 %v2125, 16
          %v2157 = vrot.slane %v2155, 1
          %v2158 = vsel %vm2146, %v2153, %v2157
          %v2159 = vshrl.u32 %v2125, 16
          %v2161 = vor.u32 %v2159, %v2157
          %v2163 = vshll.u32 %v2126, 16
          %v2165 = vrot.slane %v2163, 1
          %v2166 = vsel %vm2146, %v2161, %v2165
          %v2167 = vshrl.u32 %v2126, 16
          %v2169 = vor.u32 %v2167, %v2165
          %v2171 = vshll.u32 %v2127, 16
          %v2173 = vrot.slane %v2171, 1
          %v2174 = vsel %vm2146, %v2169, %v2173
          %v2175 = vshrl.u32 %v2127, 16
          %v2177 = vor.u32 %v2175, %v2173
          %v2179 = vshll.u32 %v2128, 16
          %v2181 = vrot.slane %v2179, 1
          %v2182 = vsel %vm2146, %v2177, %v2181
          %v2183 = vshrl.u32 %v2128, 16
          %v2185 = vor.u32 %v2183, %v2181
          %v2187 = vshll.u32 %v2129, 16
          %v2189 = vrot.slane %v2187, 1
          %v2190 = vsel %vm2146, %v2185, %v2189
          %v2191 = vshrl.u32 %v2129, 16
          %v2193 = vor.u32 %v2191, %v2189
          %v2195 = vshll.u32 %v2130, 16
          %v2197 = vrot.slane %v2195, 1
          %v2198 = vsel %vm2146, %v2193, %v2197
          %v2199 = vshrl.u32 %v2130, 16
          %v2201 = vor.u32 %v2199, %v2197
          %v2203 = vshll.u32 %v2131, 16
          %v2205 = vrot.slane %v2203, 1
          %v2206 = vsel %vm2146, %v2201, %v2205
          %v2207 = vshrl.u32 %v2131, 16
          %v2209 = vor.u32 %v2207, %v2205
          %v2211 = vshll.u32 %v2132, 16
          %v2213 = vrot.slane %v2211, 1
          %v2214 = vsel %vm2146, %v2209, %v2213
          %v2215 = vshrl.u32 %v2132, 16
          %v2217 = vor.u32 %v2215, %v2213
          %v2219 = vshll.u32 %v2133, 16
          %v2221 = vrot.slane %v2219, 1
          %v2222 = vsel %vm2146, %v2217, %v2221
          %v2223 = vshrl.u32 %v2133, 16
          %v2225 = vor.u32 %v2223, %v2221
          %v2227 = vshll.u32 %v2134, 16
          %v2229 = vrot.slane %v2227, 1
          %v2230 = vsel %vm2146, %v2225, %v2229
          %v2231 = vshrl.u32 %v2134, 16
          %v2233 = vor.u32 %v2231, %v2229
          %v2235 = vshll.u32 %v2135, 16
          %v2237 = vrot.slane %v2235, 1
          %v2238 = vsel %vm2146, %v2233, %v2237
          %v2239 = vshrl.u32 %v2135, 16
          %v2241 = vor.u32 %v2239, %v2237
          %v2243 = vshll.u32 %v2136, 16
          %v2245 = vrot.slane %v2243, 1
          %v2246 = vsel %vm2146, %v2241, %v2245
          %v2247 = vshrl.u32 %v2136, 16
          %v2249 = vor.u32 %v2247, %v2245
          %v2251 = vshll.u32 %v2137, 16
          %v2253 = vrot.slane %v2251, 1
          %v2254 = vsel %vm2146, %v2249, %v2253
          %v2255 = vshrl.u32 %v2137, 16
          %v2257 = vor.u32 %v2255, %v2253
          %v2259 = vshll.u32 %v2138, 16
          %v2261 = vrot.slane %v2259, 1
          %v2262 = vsel %vm2146, %v2257, %v2261
          %v2263 = vshrl.u32 %v2138, 16
          %v2265 = vor.u32 %v2263, %v2261
          %v2267 = vshll.u32 %v2139, 16
          %v2269 = vrot.slane %v2267, 1
          %v2270 = vsel %vm2146, %v2265, %v2269
          %v2271 = vshrl.u32 %v2139, 16
          %v2273 = vor.u32 %v2271, %v2269
          %v2275 = vshll.u32 %v2140, 16
          %v2277 = vrot.slane %v2275, 1
          %v2278 = vsel %vm2146, %v2273, %v2277
          %v2279 = vshrl.u32 %v2140, 16
          %v2281 = vor.u32 %v2279, %v2277
          %v2283 = vshll.u32 %v2141, 16
          %v2285 = vrot.slane %v2283, 1
          %v2286 = vsel %vm2146, %v2281, %v2285
          %v2287 = vshrl.u32 %v2141, 16
          %v2289 = vor.u32 %v2287, %v2285
          %v2291 = vshll.u32 %v2142, 16
          %v2293 = vrot.slane %v2291, 1
          %v2294 = vsel %vm2146, %v2289, %v2293
          %v2295 = vshrl.u32 %v2142, 16
          %v2298 = vunpack.c.l.b16 %v2049
          %v2299 = vpack.c.b16 %v2298, %v2298
          %vm2300 = vcmask 1046528
          %v2301 = vrot.slane %v2145, 1
          %v2302 = vrot.slane %v2125, 1
          %v2303 = vsel %vm2300, %v2301, %v2302
          %v2304 = vrot.slane %v2126, 1
          %v2305 = vsel %vm2300, %v2302, %v2304
          %v2306 = vrot.slane %v2127, 1
          %v2307 = vsel %vm2300, %v2304, %v2306
          %v2308 = vrot.slane %v2128, 1
          %v2309 = vsel %vm2300, %v2306, %v2308
          %v2310 = vrot.slane %v2129, 1
          %v2311 = vsel %vm2300, %v2308, %v2310
          %v2312 = vrot.slane %v2130, 1
          %v2313 = vsel %vm2300, %v2310, %v2312
          %v2314 = vrot.slane %v2131, 1
          %v2315 = vsel %vm2300, %v2312, %v2314
          %v2316 = vrot.slane %v2132, 1
          %v2317 = vsel %vm2300, %v2314, %v2316
          %v2318 = vrot.slane %v2133, 1
          %v2319 = vsel %vm2300, %v2316, %v2318
          %v2320 = vrot.slane %v2134, 1
          %v2321 = vsel %vm2300, %v2318, %v2320
          %v2322 = vrot.slane %v2135, 1
          %v2323 = vsel %vm2300, %v2320, %v2322
          %v2324 = vrot.slane %v2136, 1
          %v2325 = vsel %vm2300, %v2322, %v2324
          %v2326 = vrot.slane %v2137, 1
          %v2327 = vsel %vm2300, %v2324, %v2326
          %v2328 = vrot.slane %v2138, 1
          %v2329 = vsel %vm2300, %v2326, %v2328
          %v2330 = vrot.slane %v2139, 1
          %v2331 = vsel %vm2300, %v2328, %v2330
          %v2332 = vrot.slane %v2140, 1
          %v2333 = vsel %vm2300, %v2330, %v2332
          %v2334 = vrot.slane %v2141, 1
          %v2335 = vsel %vm2300, %v2332, %v2334
          %v2336 = vrot.slane %v2299, 1
          %v2337 = vsel %vm2300, %v2334, %v2336
          %s2338 = scalar_lea.vmem %s233, 192 [#allocation6]
          %v2339 = vld [vmem:[%s2338] sm:$0xf]
          %v2340 = vld [vmem:[%s2338 + $0x4] sm:$0xf]
          %v2341 = vld [vmem:[%s2338 + $0x8] sm:$0xf]
          %v2342 = vld [vmem:[%s2338 + $0xc] sm:$0xf]
          %v2343 = vld [vmem:[%s2338 + $0x10] sm:$0xf]
          %v2344 = vld [vmem:[%s2338 + $0x14] sm:$0xf]
          %v2345 = vld [vmem:[%s2338 + $0x18] sm:$0xf]
          %v2346 = vld [vmem:[%s2338 + $0x1c] sm:$0xf]
          %v2347 = vld [vmem:[%s2338 + $0x20] sm:$0xf]
          %v2348 = vld [vmem:[%s2338 + $0x24] sm:$0xf]
          %v2349 = vld [vmem:[%s2338 + $0x28] sm:$0xf]
          %v2350 = vld [vmem:[%s2338 + $0x2c] sm:$0xf]
          %v2351 = vld [vmem:[%s2338 + $0x30] sm:$0xf]
          %v2352 = vld [vmem:[%s2338 + $0x34] sm:$0xf]
          %v2353 = vld [vmem:[%s2338 + $0x38] sm:$0xf]
          %v2354 = vld [vmem:[%s2338 + $0x3c] sm:$0xf]
          %v2355 = vld [vmem:[%s2338 + $0x40] sm:$0xf]
          %v2356 = vld [vmem:[%s2338 + $0x44] sm:$0xf]
          %v2357 = vld [vmem:[%s2338 + $0x48] sm:$0xf]
          %v2358 = vld [vmem:[%s2338 + $0x4c] sm:$0xf]
          %v2359 = vld [vmem:[%s2338 + $0x50] sm:$0xf]
          %v2360 = vld [vmem:[%s2338 + $0x54] sm:$0xf]
          %v2361 = vld [vmem:[%s2338 + $0x58] sm:$0xf]
          %v2362 = vld [vmem:[%s2338 + $0x5c] sm:$0xf]
          %v2363 = vld [vmem:[%s2338 + $0x60] sm:$0xf]
          %v2364 = vld [vmem:[%s2338 + $0x64] sm:$0xf]
          %v2365 = vld [vmem:[%s2338 + $0x68] sm:$0xf]
          %v2366 = vld [vmem:[%s2338 + $0x6c] sm:$0xf]
          %v2367 = vld [vmem:[%s2338 + $0x70] sm:$0xf]
          %v2368 = vld [vmem:[%s2338 + $0x74] sm:$0xf]
          %v2369 = vld [vmem:[%s2338 + $0x78] sm:$0xf]
          %v2370 = vld [vmem:[%s2338 + $0x7c] sm:$0xf]
          %v2371 = vld [vmem:[%s2338 + $0x80] sm:$0xf]
          %v2372 = vld [vmem:[%s2338 + $0x84] sm:$0xf]
          %v2373 = vld [vmem:[%s2338 + $0x88] sm:$0xf]
          %v2374 = vld [vmem:[%s2338 + $0x8c] sm:$0xf]
          %v2375 = vld [vmem:[%s2338 + $0x90] sm:$0xf]
          %v2376 = vld [vmem:[%s2338 + $0x94] sm:$0xf]
          %v2377 = vld [vmem:[%s2338 + $0x98] sm:$0xf]
          %v2378 = vld [vmem:[%s2338 + $0x9c] sm:$0xf]
          %v2379 = vld [vmem:[%s2338 + $0xa0] sm:$0xf]
          %v2380 = vld [vmem:[%s2338 + $0xa4] sm:$0xf]
          %v2381 = vld [vmem:[%s2338 + $0xa8] sm:$0xf]
          %v2382 = vld [vmem:[%s2338 + $0xac] sm:$0xf]
          %v2383 = vld [vmem:[%s2338 + $0xb0] sm:$0xf]
          %v2384 = vld [vmem:[%s2338 + $0xb4] sm:$0xf]
          %v2385 = vld [vmem:[%s2338 + $0xb8] sm:$0xf]
          %v2386 = vld [vmem:[%s2338 + $0xbc] sm:$0xf]
          %v2388 = vshrl.u32 %v2124, 16
          %v2390 = vshll.u32 %v2124, 16
          %v2392 = vrot.slane %v2390, 1
          %v2393 = vor.u32 %v2388, %v2392
          %v2394 = vsel %vm2146, %v2393, %v2157
          %v2396 = vshrl.u32 %v2158, 16
          %v2398 = vshll.u32 %v2158, 16
          %v2400 = vrot.slane %v2398, 1
          %v2401 = vor.u32 %v2396, %v2400
          %v2403 = vshll.u32 %v2166, 16
          %v2405 = vrot.slane %v2403, 1
          %v2406 = vsel %vm2146, %v2401, %v2405
          %v2408 = vshrl.u32 %v2303, 16
          %v2410 = vshll.u32 %v2303, 16
          %v2412 = vrot.slane %v2410, 1
          %v2413 = vor.u32 %v2408, %v2412
          %v2415 = vshll.u32 %v2305, 16
          %v2417 = vrot.slane %v2415, 1
          %v2418 = vsel %vm2146, %v2413, %v2417
          %v2419 = vshrl.u32 %v2166, 16
          %v2421 = vor.u32 %v2419, %v2405
          %v2423 = vshll.u32 %v2174, 16
          %v2425 = vrot.slane %v2423, 1
          %v2426 = vsel %vm2146, %v2421, %v2425
          %v2427 = vshrl.u32 %v2305, 16
          %v2429 = vor.u32 %v2427, %v2417
          %v2431 = vshll.u32 %v2307, 16
          %v2433 = vrot.slane %v2431, 1
          %v2434 = vsel %vm2146, %v2429, %v2433
          %v2435 = vshrl.u32 %v2174, 16
          %v2437 = vor.u32 %v2435, %v2425
          %v2439 = vshll.u32 %v2182, 16
          %v2441 = vrot.slane %v2439, 1
          %v2442 = vsel %vm2146, %v2437, %v2441
          %v2443 = vshrl.u32 %v2307, 16
          %v2445 = vor.u32 %v2443, %v2433
          %v2447 = vshll.u32 %v2309, 16
          %v2449 = vrot.slane %v2447, 1
          %v2450 = vsel %vm2146, %v2445, %v2449
          %v2451 = vshrl.u32 %v2182, 16
          %v2453 = vor.u32 %v2451, %v2441
          %v2455 = vshll.u32 %v2190, 16
          %v2457 = vrot.slane %v2455, 1
          %v2458 = vsel %vm2146, %v2453, %v2457
          %v2459 = vshrl.u32 %v2309, 16
          %v2461 = vor.u32 %v2459, %v2449
          %v2463 = vshll.u32 %v2311, 16
          %v2465 = vrot.slane %v2463, 1
          %v2466 = vsel %vm2146, %v2461, %v2465
          %v2467 = vshrl.u32 %v2190, 16
          %v2469 = vor.u32 %v2467, %v2457
          %v2471 = vshll.u32 %v2198, 16
          %v2473 = vrot.slane %v2471, 1
          %v2474 = vsel %vm2146, %v2469, %v2473
          %v2475 = vshrl.u32 %v2311, 16
          %v2477 = vor.u32 %v2475, %v2465
          %v2479 = vshll.u32 %v2313, 16
          %v2481 = vrot.slane %v2479, 1
          %v2482 = vsel %vm2146, %v2477, %v2481
          %v2483 = vshrl.u32 %v2198, 16
          %v2485 = vor.u32 %v2483, %v2473
          %v2487 = vshll.u32 %v2206, 16
          %v2489 = vrot.slane %v2487, 1
          %v2490 = vsel %vm2146, %v2485, %v2489
          %v2491 = vshrl.u32 %v2313, 16
          %v2493 = vor.u32 %v2491, %v2481
          %v2495 = vshll.u32 %v2315, 16
          %v2497 = vrot.slane %v2495, 1
          %v2498 = vsel %vm2146, %v2493, %v2497
          %v2499 = vshrl.u32 %v2206, 16
          %v2501 = vor.u32 %v2499, %v2489
          %v2503 = vshll.u32 %v2214, 16
          %v2505 = vrot.slane %v2503, 1
          %v2506 = vsel %vm2146, %v2501, %v2505
          %v2507 = vshrl.u32 %v2315, 16
          %v2509 = vor.u32 %v2507, %v2497
          %v2511 = vshll.u32 %v2317, 16
          %v2513 = vrot.slane %v2511, 1
          %v2514 = vsel %vm2146, %v2509, %v2513
          %v2515 = vshrl.u32 %v2214, 16
          %v2517 = vor.u32 %v2515, %v2505
          %v2519 = vshll.u32 %v2222, 16
          %v2521 = vrot.slane %v2519, 1
          %v2522 = vsel %vm2146, %v2517, %v2521
          %v2523 = vshrl.u32 %v2317, 16
          %v2525 = vor.u32 %v2523, %v2513
          %v2527 = vshll.u32 %v2319, 16
          %v2529 = vrot.slane %v2527, 1
          %v2530 = vsel %vm2146, %v2525, %v2529
          %v2531 = vshrl.u32 %v2222, 16
          %v2533 = vor.u32 %v2531, %v2521
          %v2535 = vshll.u32 %v2230, 16
          %v2537 = vrot.slane %v2535, 1
          %v2538 = vsel %vm2146, %v2533, %v2537
          %v2539 = vshrl.u32 %v2319, 16
          %v2541 = vor.u32 %v2539, %v2529
          %v2543 = vshll.u32 %v2321, 16
          %v2545 = vrot.slane %v2543, 1
          %v2546 = vsel %vm2146, %v2541, %v2545
          %v2547 = vshrl.u32 %v2230, 16
          %v2549 = vor.u32 %v2547, %v2537
          %v2551 = vshll.u32 %v2238, 16
          %v2553 = vrot.slane %v2551, 1
          %v2554 = vsel %vm2146, %v2549, %v2553
          %v2555 = vshrl.u32 %v2321, 16
          %v2557 = vor.u32 %v2555, %v2545
          %v2559 = vshll.u32 %v2323, 16
          %v2561 = vrot.slane %v2559, 1
          %v2562 = vsel %vm2146, %v2557, %v2561
          %v2563 = vshrl.u32 %v2238, 16
          %v2565 = vor.u32 %v2563, %v2553
          %v2567 = vshll.u32 %v2246, 16
          %v2569 = vrot.slane %v2567, 1
          %v2570 = vsel %vm2146, %v2565, %v2569
          %v2571 = vshrl.u32 %v2323, 16
          %v2573 = vor.u32 %v2571, %v2561
          %v2575 = vshll.u32 %v2325, 16
          %v2577 = vrot.slane %v2575, 1
          %v2578 = vsel %vm2146, %v2573, %v2577
          %v2579 = vshrl.u32 %v2246, 16
          %v2581 = vor.u32 %v2579, %v2569
          %v2583 = vshll.u32 %v2254, 16
          %v2585 = vrot.slane %v2583, 1
          %v2586 = vsel %vm2146, %v2581, %v2585
          %v2587 = vshrl.u32 %v2325, 16
          %v2589 = vor.u32 %v2587, %v2577
          %v2591 = vshll.u32 %v2327, 16
          %v2593 = vrot.slane %v2591, 1
          %v2594 = vsel %vm2146, %v2589, %v2593
          %v2595 = vshrl.u32 %v2254, 16
          %v2597 = vor.u32 %v2595, %v2585
          %v2599 = vshll.u32 %v2262, 16
          %v2601 = vrot.slane %v2599, 1
          %v2602 = vsel %vm2146, %v2597, %v2601
          %v2603 = vshrl.u32 %v2327, 16
          %v2605 = vor.u32 %v2603, %v2593
          %v2607 = vshll.u32 %v2329, 16
          %v2609 = vrot.slane %v2607, 1
          %v2610 = vsel %vm2146, %v2605, %v2609
          %v2611 = vshrl.u32 %v2262, 16
          %v2613 = vor.u32 %v2611, %v2601
          %v2615 = vshll.u32 %v2270, 16
          %v2617 = vrot.slane %v2615, 1
          %v2618 = vsel %vm2146, %v2613, %v2617
          %v2619 = vshrl.u32 %v2329, 16
          %v2621 = vor.u32 %v2619, %v2609
          %v2623 = vshll.u32 %v2331, 16
          %v2625 = vrot.slane %v2623, 1
          %v2626 = vsel %vm2146, %v2621, %v2625
          %v2627 = vshrl.u32 %v2270, 16
          %v2629 = vor.u32 %v2627, %v2617
          %v2631 = vshll.u32 %v2278, 16
          %v2633 = vrot.slane %v2631, 1
          %v2634 = vsel %vm2146, %v2629, %v2633
          %v2635 = vshrl.u32 %v2331, 16
          %v2637 = vor.u32 %v2635, %v2625
          %v2639 = vshll.u32 %v2333, 16
          %v2641 = vrot.slane %v2639, 1
          %v2642 = vsel %vm2146, %v2637, %v2641
          %v2643 = vshrl.u32 %v2278, 16
          %v2645 = vor.u32 %v2643, %v2633
          %v2647 = vshll.u32 %v2286, 16
          %v2649 = vrot.slane %v2647, 1
          %v2650 = vsel %vm2146, %v2645, %v2649
          %v2651 = vshrl.u32 %v2333, 16
          %v2653 = vor.u32 %v2651, %v2641
          %v2655 = vshll.u32 %v2335, 16
          %v2657 = vrot.slane %v2655, 1
          %v2658 = vsel %vm2146, %v2653, %v2657
          %v2659 = vshrl.u32 %v2286, 16
          %v2661 = vor.u32 %v2659, %v2649
          %v2663 = vshll.u32 %v2294, 16
          %v2665 = vrot.slane %v2663, 1
          %v2666 = vsel %vm2146, %v2661, %v2665
          %v2667 = vshrl.u32 %v2335, 16
          %v2669 = vor.u32 %v2667, %v2657
          %v2671 = vshll.u32 %v2337, 16
          %v2673 = vrot.slane %v2671, 1
          %v2674 = vsel %vm2146, %v2669, %v2673
          %v2675 = vshrl.u32 %v2294, 16
          %v2677 = vor.u32 %v2675, %v2665
          %v2679 = vshll.u32 %v2295, 16
          %v2681 = vrot.slane %v2679, 1
          %v2682 = vsel %vm2146, %v2677, %v2681
          %v2683 = vshrl.u32 %v2337, 16
          %v2685 = vor.u32 %v2683, %v2673
          %v2687 = vshll.u32 %v2336, 16
          %v2689 = vrot.slane %v2687, 1
          %v2690 = vsel %vm2146, %v2685, %v2689
          %v2793 = vunpack.c.l.b16 %v2339
          %v2794 = vunpack.c.l.b16 %v2340
          %v2795 = vunpack.c.l.b16 %v2341
          %v2796 = vunpack.c.l.b16 %v2342
          %v2797 = vunpack.c.l.b16 %v2343
          %v2798 = vunpack.c.l.b16 %v2344
          %v2799 = vunpack.c.l.b16 %v2345
          %v2800 = vunpack.c.l.b16 %v2346
          %v2801 = vunpack.c.l.b16 %v2347
          %v2802 = vunpack.c.l.b16 %v2348
          %v2803 = vunpack.c.l.b16 %v2349
          %v2804 = vunpack.c.l.b16 %v2350
          %v2805 = vunpack.c.l.b16 %v2351
          %v2806 = vunpack.c.l.b16 %v2352
          %v2807 = vunpack.c.l.b16 %v2353
          %v2808 = vunpack.c.l.b16 %v2354
          %v2809 = vunpack.c.l.b16 %v2355
          %v2810 = vunpack.c.l.b16 %v2356
          %v2811 = vunpack.c.l.b16 %v2357
          %v2812 = vunpack.c.l.b16 %v2358
          %v2813 = vunpack.c.l.b16 %v2359
          %v2814 = vunpack.c.l.b16 %v2360
          %v2815 = vunpack.c.l.b16 %v2361
          %v2816 = vunpack.c.l.b16 %v2362
          %v2817 = vunpack.c.l.b16 %v2363
          %v2818 = vunpack.c.l.b16 %v2364
          %v2819 = vunpack.c.l.b16 %v2365
          %v2820 = vunpack.c.l.b16 %v2366
          %v2821 = vunpack.c.l.b16 %v2367
          %v2822 = vunpack.c.l.b16 %v2368
          %v2823 = vunpack.c.l.b16 %v2369
          %v2824 = vunpack.c.l.b16 %v2370
          %v2825 = vunpack.c.l.b16 %v2371
          %v2826 = vunpack.c.l.b16 %v2372
          %v2827 = vunpack.c.l.b16 %v2373
          %v2828 = vunpack.c.l.b16 %v2374
          %v2829 = vunpack.c.l.b16 %v2375
          %v2830 = vunpack.c.l.b16 %v2376
          %v2831 = vunpack.c.l.b16 %v2377
          %v2832 = vunpack.c.l.b16 %v2378
          %v2833 = vunpack.c.l.b16 %v2379
          %v2834 = vunpack.c.l.b16 %v2380
          %v2835 = vunpack.c.l.b16 %v2381
          %v2836 = vunpack.c.l.b16 %v2382
          %v2837 = vunpack.c.l.b16 %v2383
          %v2838 = vunpack.c.l.b16 %v2384
          %v2839 = vunpack.c.l.b16 %v2385
          %v2840 = vunpack.c.l.b16 %v2386
          %v2841 = vpack.c.b16 %v2794, %v2793
          %v2842 = vpack.c.b16 %v2796, %v2795
          %v2843 = vpack.c.b16 %v2798, %v2797
          %v2844 = vpack.c.b16 %v2800, %v2799
          %v2845 = vpack.c.b16 %v2802, %v2801
          %v2846 = vpack.c.b16 %v2804, %v2803
          %v2847 = vpack.c.b16 %v2806, %v2805
          %v2848 = vpack.c.b16 %v2808, %v2807
          %v2849 = vpack.c.b16 %v2810, %v2809
          %v2850 = vpack.c.b16 %v2812, %v2811
          %v2851 = vpack.c.b16 %v2814, %v2813
          %v2852 = vpack.c.b16 %v2816, %v2815
          %v2853 = vpack.c.b16 %v2818, %v2817
          %v2854 = vpack.c.b16 %v2820, %v2819
          %v2855 = vpack.c.b16 %v2822, %v2821
          %v2856 = vpack.c.b16 %v2824, %v2823
          %v2857 = vpack.c.b16 %v2826, %v2825
          %v2858 = vpack.c.b16 %v2828, %v2827
          %v2859 = vpack.c.b16 %v2830, %v2829
          %v2860 = vpack.c.b16 %v2832, %v2831
          %v2861 = vpack.c.b16 %v2834, %v2833
          %v2862 = vpack.c.b16 %v2836, %v2835
          %v2863 = vpack.c.b16 %v2838, %v2837
          %v2864 = vpack.c.b16 %v2840, %v2839
          %2889 = vmatprep.subr.bf16.mxu0 0
          %2890 = vmatpush1.bf16.msra.mxu0 %v2841
          %2891 = vmatprep.subr.bf16.mxu0 0
          %2892 = vmatpush1.bf16.msra.mxu0 %v2842
          %2893 = vmatprep.subr.bf16.mxu0 0
          %2894 = vmatpush1.bf16.msra.mxu0 %v2843
          %2895 = vmatprep.subr.bf16.mxu0 0
          %2896 = vmatpush1.bf16.msra.mxu0 %v2844
          %2897 = vmatprep.subr.bf16.mxu0 0
          %2898 = vmatpush1.bf16.msra.mxu0 %v2845
          %2899 = vmatprep.subr.bf16.mxu0 0
          %2900 = vmatpush1.bf16.msra.mxu0 %v2846
          %2901 = vmatprep.subr.bf16.mxu0 0
          %2902 = vmatpush1.bf16.msra.mxu0 %v2847
          %2903 = vmatprep.subr.bf16.mxu0 0
          %2904 = vmatpush1.bf16.msra.mxu0 %v2848
          %2905 = vmatprep.subr.bf16.mxu0 0
          %2906 = vmatpush1.bf16.msra.mxu0 %v2849
          %2907 = vmatprep.subr.bf16.mxu0 0
          %2908 = vmatpush1.bf16.msra.mxu0 %v2850
          %2909 = vmatprep.subr.bf16.mxu0 0
          %2910 = vmatpush1.bf16.msra.mxu0 %v2851
          %2911 = vmatprep.subr.bf16.mxu0 0
          %2912 = vmatpush1.bf16.msra.mxu0 %v2852
          %2913 = vmatprep.subr.bf16.mxu0 0
          %2914 = vmatpush1.bf16.msra.mxu0 %v2853
          %2915 = vmatprep.subr.bf16.mxu0 0
          %2916 = vmatpush1.bf16.msra.mxu0 %v2854
          %2917 = vmatprep.subr.bf16.mxu0 0
          %2918 = vmatpush1.bf16.msra.mxu0 %v2855
          %2919 = vmatprep.subr.bf16.mxu0 0
          %2920 = vmatpush1.bf16.msra.mxu0 %v2856
          %2921 = vmatprep.mubr.bf16.mxu0 %v2406
          %2922 = vmatmul.mubr.bf16.gmra.mrb[0].mxu0 %v2394
          %v2923 = vpop.f32.mrb[0].mxu0
          %v2924 = vadd.f32 0.0, %v2923
          %v2925 = vpop.f32.mrb[0].mxu0
          %v2926 = vpop.f32.mrb[0].mxu0
          %v2927 = vadd.f32 0.0, %v2926
          %v2928 = vpop.f32.mrb[0].mxu0
          %2929 = vmatprep.mubr.bf16.mxu0 %v2426
          %2930 = vmatmul.mubr.bf16.gmra.mrb[0].mxu0 %v2166
          %v2931 = vpop.f32.mrb[0].mxu0
          %v2932 = vadd.f32 0.0, %v2931
          %v2933 = vpop.f32.mrb[0].mxu0
          %v2934 = vpop.f32.mrb[0].mxu0
          %v2935 = vadd.f32 0.0, %v2934
          %v2936 = vpop.f32.mrb[0].mxu0
          %2937 = vmatprep.mubr.bf16.mxu0 %v2442
          %2938 = vmatmul.mubr.bf16.gmra.mrb[0].mxu0 %v2174
          %v2939 = vpop.f32.mrb[0].mxu0
          %v2940 = vadd.f32 0.0, %v2939
          %v2941 = vpop.f32.mrb[0].mxu0
          %v2942 = vpop.f32.mrb[0].mxu0
          %v2943 = vadd.f32 0.0, %v2942
          %v2944 = vpop.f32.mrb[0].mxu0
          %2945 = vmatprep.mubr.bf16.mxu0 %v2458
          %2946 = vmatmul.mubr.bf16.gmra.mrb[0].mxu0 %v2182
          %v2947 = vpop.f32.mrb[0].mxu0
          %v2948 = vadd.f32 0.0, %v2947
          %v2949 = vpop.f32.mrb[0].mxu0
          %v2950 = vpop.f32.mrb[0].mxu0
          %v2951 = vadd.f32 0.0, %v2950
          %v2952 = vpop.f32.mrb[0].mxu0
          %2953 = vmatprep.mubr.bf16.mxu0 %v2474
          %2954 = vmatmul.mubr.bf16.gmra.mrb[0].mxu0 %v2190
          %v2955 = vpop.f32.mrb[0].mxu0
          %v2956 = vadd.f32 0.0, %v2955
          %v2957 = vpop.f32.mrb[0].mxu0
          %v2958 = vpop.f32.mrb[0].mxu0
          %v2959 = vadd.f32 0.0, %v2958
          %v2960 = vpop.f32.mrb[0].mxu0
          %2961 = vmatprep.mubr.bf16.mxu0 %v2490
          %2962 = vmatmul.mubr.bf16.gmra.mrb[0].mxu0 %v2198
          %v2963 = vpop.f32.mrb[0].mxu0
          %v2964 = vadd.f32 0.0, %v2963
          %v2965 = vpop.f32.mrb[0].mxu0
          %v2966 = vpop.f32.mrb[0].mxu0
          %v2967 = vadd.f32 0.0, %v2966
          %v2968 = vpop.f32.mrb[0].mxu0
          %2969 = vmatprep.mubr.bf16.mxu0 %v2506
          %2970 = vmatmul.mubr.bf16.gmra.mrb[0].mxu0 %v2206
          %v2971 = vpop.f32.mrb[0].mxu0
          %v2972 = vadd.f32 0.0, %v2971
          %v2973 = vpop.f32.mrb[0].mxu0
          %v2974 = vpop.f32.mrb[0].mxu0
          %v2975 = vadd.f32 0.0, %v2974
          %v2976 = vpop.f32.mrb[0].mxu0
          %2977 = vmatprep.mubr.bf16.mxu0 %v2522
          %2978 = vmatmul.mubr.bf16.gmra.mrb[0].mxu0 %v2214
          %v2979 = vpop.f32.mrb[0].mxu0
          %v2980 = vadd.f32 0.0, %v2979
          %v2981 = vpop.f32.mrb[0].mxu0
          %v2982 = vpop.f32.mrb[0].mxu0
          %v2983 = vadd.f32 0.0, %v2982
          %v2984 = vpop.f32.mrb[0].mxu0
          %2985 = vmatprep.mubr.bf16.mxu0 %v2538
          %2986 = vmatmul.mubr.bf16.gmra.mrb[0].mxu0 %v2222
          %v2987 = vpop.f32.mrb[0].mxu0
          %v2988 = vadd.f32 0.0, %v2987
          %v2989 = vpop.f32.mrb[0].mxu0
          %v2990 = vpop.f32.mrb[0].mxu0
          %v2991 = vadd.f32 0.0, %v2990
          %v2992 = vpop.f32.mrb[0].mxu0
          %2993 = vmatprep.mubr.bf16.mxu0 %v2554
          %2994 = vmatmul.mubr.bf16.gmra.mrb[0].mxu0 %v2230
          %v2995 = vpop.f32.mrb[0].mxu0
          %v2996 = vadd.f32 0.0, %v2995
          %v2997 = vpop.f32.mrb[0].mxu0
          %v2998 = vpop.f32.mrb[0].mxu0
          %v2999 = vadd.f32 0.0, %v2998
          %v3000 = vpop.f32.mrb[0].mxu0
          %3001 = vmatprep.mubr.bf16.mxu0 %v2570
          %3002 = vmatmul.mubr.bf16.gmra.mrb[0].mxu0 %v2238
          %v3003 = vpop.f32.mrb[0].mxu0
          %v3004 = vadd.f32 0.0, %v3003
          %v3005 = vpop.f32.mrb[0].mxu0
          %v3006 = vpop.f32.mrb[0].mxu0
          %v3007 = vadd.f32 0.0, %v3006
          %v3008 = vpop.f32.mrb[0].mxu0
          %3009 = vmatprep.mubr.bf16.mxu0 %v2586
          %3010 = vmatmul.mubr.bf16.gmra.mrb[0].mxu0 %v2246
          %v3011 = vpop.f32.mrb[0].mxu0
          %v3012 = vadd.f32 0.0, %v3011
          %v3013 = vpop.f32.mrb[0].mxu0
          %v3014 = vpop.f32.mrb[0].mxu0
          %v3015 = vadd.f32 0.0, %v3014
          %v3016 = vpop.f32.mrb[0].mxu0
          %3017 = vmatprep.mubr.bf16.mxu0 %v2602
          %3018 = vmatmul.mubr.bf16.gmra.mrb[0].mxu0 %v2254
          %v3019 = vpop.f32.mrb[0].mxu0
          %v3020 = vadd.f32 0.0, %v3019
          %v3021 = vpop.f32.mrb[0].mxu0
          %v3022 = vpop.f32.mrb[0].mxu0
          %v3023 = vadd.f32 0.0, %v3022
          %v3024 = vpop.f32.mrb[0].mxu0
          %3025 = vmatprep.mubr.bf16.mxu0 %v2618
          %3026 = vmatmul.mubr.bf16.gmra.mrb[0].mxu0 %v2262
          %v3027 = vpop.f32.mrb[0].mxu0
          %v3028 = vadd.f32 0.0, %v3027
          %v3029 = vpop.f32.mrb[0].mxu0
          %v3030 = vpop.f32.mrb[0].mxu0
          %v3031 = vadd.f32 0.0, %v3030
          %v3032 = vpop.f32.mrb[0].mxu0
          %3033 = vmatprep.mubr.bf16.mxu0 %v2634
          %3034 = vmatmul.mubr.bf16.gmra.mrb[0].mxu0 %v2270
          %v3035 = vpop.f32.mrb[0].mxu0
          %v3036 = vadd.f32 0.0, %v3035
          %v3037 = vpop.f32.mrb[0].mxu0
          %v3038 = vpop.f32.mrb[0].mxu0
          %v3039 = vadd.f32 0.0, %v3038
          %v3040 = vpop.f32.mrb[0].mxu0
          %3041 = vmatprep.mubr.bf16.mxu0 %v2650
          %3042 = vmatmul.mubr.bf16.gmra.mrb[0].mxu0 %v2278
          %v3043 = vpop.f32.mrb[0].mxu0
          %v3044 = vadd.f32 0.0, %v3043
          %v3045 = vpop.f32.mrb[0].mxu0
          %v3046 = vpop.f32.mrb[0].mxu0
          %v3047 = vadd.f32 0.0, %v3046
          %v3048 = vpop.f32.mrb[0].mxu0
          %3049 = vmatprep.mubr.bf16.mxu0 %v2666
          %3050 = vmatmul.mubr.bf16.gmra.mrb[0].mxu0 %v2286
          %v3051 = vpop.f32.mrb[0].mxu0
          %v3052 = vadd.f32 0.0, %v3051
          %v3053 = vpop.f32.mrb[0].mxu0
          %v3054 = vpop.f32.mrb[0].mxu0
          %v3055 = vadd.f32 0.0, %v3054
          %v3056 = vpop.f32.mrb[0].mxu0
          %3057 = vmatprep.mubr.bf16.mxu0 %v2682
          %3058 = vmatmul.mubr.bf16.gmra.mrb[0].mxu0 %v2294
          %v3059 = vpop.f32.mrb[0].mxu0
          %v3060 = vadd.f32 0.0, %v3059
          %v3061 = vpop.f32.mrb[0].mxu0
          %v3062 = vpop.f32.mrb[0].mxu0
          %v3063 = vadd.f32 0.0, %v3062
          %v3064 = vpop.f32.mrb[0].mxu0
          %3065 = vdwg.mxu0
          %3066 = vmatprep.subr.bf16.mxu0 0
          %3067 = vmatpush1.bf16.msra.mxu0 %v2857
          %3068 = vmatprep.subr.bf16.mxu0 0
          %3069 = vmatpush1.bf16.msra.mxu0 %v2858
          %3070 = vmatprep.subr.bf16.mxu0 0
          %3071 = vmatpush1.bf16.msra.mxu0 %v2859
          %3072 = vmatprep.subr.bf16.mxu0 0
          %3073 = vmatpush1.bf16.msra.mxu0 %v2860
          %3074 = vmatprep.subr.bf16.mxu0 0
          %3075 = vmatpush1.bf16.msra.mxu0 %v2861
          %3076 = vmatprep.subr.bf16.mxu0 0
          %3077 = vmatpush1.bf16.msra.mxu0 %v2862
          %3078 = vmatprep.subr.bf16.mxu0 0
          %3079 = vmatpush1.bf16.msra.mxu0 %v2863
          %3080 = vmatprep.subr.bf16.mxu0 0
          %3081 = vmatpush1.bf16.msra.mxu0 %v2864
          %3082 = vmatprep.subr.bf16.mxu0 0
          %3083 = vmatpush1.bf16.msra.mxu0 0
          %3084 = vmatprep.subr.bf16.mxu0 0
          %3085 = vmatpush1.bf16.msra.mxu0 0
          %3086 = vmatprep.subr.bf16.mxu0 0
          %3087 = vmatpush1.bf16.msra.mxu0 0
          %3088 = vmatprep.subr.bf16.mxu0 0
          %3089 = vmatpush1.bf16.msra.mxu0 0
          %3090 = vmatprep.subr.bf16.mxu0 0
          %3091 = vmatpush1.bf16.msra.mxu0 0
          %3092 = vmatprep.subr.bf16.mxu0 0
          %3093 = vmatpush1.bf16.msra.mxu0 0
          %3094 = vmatprep.subr.bf16.mxu0 0
          %3095 = vmatpush1.bf16.msra.mxu0 0
          %3096 = vmatprep.subr.bf16.mxu0 0
          %3097 = vmatpush1.bf16.msra.mxu0 0
          %3098 = vmatprep.mubr.bf16.mxu0 0
          %3099 = vmatmul.mubr.bf16.gmra.mrb[0].mxu0 %v2418
          %v3100 = vpop.f32.mrb[0].mxu0
          %v3101 = vadd.f32 %v2924, %v3100
          %v3102 = vpop.f32.mrb[0].mxu0
          %v3103 = vpop.f32.mrb[0].mxu0
          %v3104 = vadd.f32 %v2927, %v3103
          %v3105 = vpop.f32.mrb[0].mxu0
          %3106 = vmatprep.mubr.bf16.mxu0 0
          %3107 = vmatmul.mubr.bf16.gmra.mrb[0].mxu0 %v2434
          %v3108 = vpop.f32.mrb[0].mxu0
          %v3109 = vadd.f32 %v2932, %v3108
          %v3110 = vpop.f32.mrb[0].mxu0
          %v3111 = vpop.f32.mrb[0].mxu0
          %v3112 = vadd.f32 %v2935, %v3111
          %v3113 = vpop.f32.mrb[0].mxu0
          %3114 = vmatprep.mubr.bf16.mxu0 0
          %3115 = vmatmul.mubr.bf16.gmra.mrb[0].mxu0 %v2450
          %v3116 = vpop.f32.mrb[0].mxu0
          %v3117 = vadd.f32 %v2940, %v3116
          %v3118 = vpop.f32.mrb[0].mxu0
          %v3119 = vpop.f32.mrb[0].mxu0
          %v3120 = vadd.f32 %v2943, %v3119
          %v3121 = vpop.f32.mrb[0].mxu0
          %3122 = vmatprep.mubr.bf16.mxu0 0
          %3123 = vmatmul.mubr.bf16.gmra.mrb[0].mxu0 %v2466
          %v3124 = vpop.f32.mrb[0].mxu0
          %v3125 = vadd.f32 %v2948, %v3124
          %v3126 = vpop.f32.mrb[0].mxu0
          %v3127 = vpop.f32.mrb[0].mxu0
          %v3128 = vadd.f32 %v2951, %v3127
          %v3129 = vpop.f32.mrb[0].mxu0
          %3130 = vmatprep.mubr.bf16.mxu0 0
          %3131 = vmatmul.mubr.bf16.gmra.mrb[0].mxu0 %v2482
          %v3132 = vpop.f32.mrb[0].mxu0
          %v3133 = vadd.f32 %v2956, %v3132
          %v3134 = vpop.f32.mrb[0].mxu0
          %v3135 = vpop.f32.mrb[0].mxu0
          %v3136 = vadd.f32 %v2959, %v3135
          %v3137 = vpop.f32.mrb[0].mxu0
          %3138 = vmatprep.mubr.bf16.mxu0 0
          %3139 = vmatmul.mubr.bf16.gmra.mrb[0].mxu0 %v2498
          %v3140 = vpop.f32.mrb[0].mxu0
          %v3141 = vadd.f32 %v2964, %v3140
          %v3142 = vpop.f32.mrb[0].mxu0
          %v3143 = vpop.f32.mrb[0].mxu0
          %v3144 = vadd.f32 %v2967, %v3143
          %v3145 = vpop.f32.mrb[0].mxu0
          %3146 = vmatprep.mubr.bf16.mxu0 0
          %3147 = vmatmul.mubr.bf16.gmra.mrb[0].mxu0 %v2514
          %v3148 = vpop.f32.mrb[0].mxu0
          %v3149 = vadd.f32 %v2972, %v3148
          %v3150 = vpop.f32.mrb[0].mxu0
          %v3151 = vpop.f32.mrb[0].mxu0
          %v3152 = vadd.f32 %v2975, %v3151
          %v3153 = vpop.f32.mrb[0].mxu0
          %3154 = vmatprep.mubr.bf16.mxu0 0
          %3155 = vmatmul.mubr.bf16.gmra.mrb[0].mxu0 %v2530
          %v3156 = vpop.f32.mrb[0].mxu0
          %v3157 = vadd.f32 %v2980, %v3156
          %v3158 = vpop.f32.mrb[0].mxu0
          %v3159 = vpop.f32.mrb[0].mxu0
          %v3160 = vadd.f32 %v2983, %v3159
          %v3161 = vpop.f32.mrb[0].mxu0
          %3162 = vmatprep.mubr.bf16.mxu0 0
          %3163 = vmatmul.mubr.bf16.gmra.mrb[0].mxu0 %v2546
          %v3164 = vpop.f32.mrb[0].mxu0
          %v3165 = vadd.f32 %v2988, %v3164
          %v3166 = vpop.f32.mrb[0].mxu0
          %v3167 = vpop.f32.mrb[0].mxu0
          %v3168 = vadd.f32 %v2991, %v3167
          %v3169 = vpop.f32.mrb[0].mxu0
          %3170 = vmatprep.mubr.bf16.mxu0 0
          %3171 = vmatmul.mubr.bf16.gmra.mrb[0].mxu0 %v2562
          %v3172 = vpop.f32.mrb[0].mxu0
          %v3173 = vadd.f32 %v2996, %v3172
          %v3174 = vpop.f32.mrb[0].mxu0
          %v3175 = vpop.f32.mrb[0].mxu0
          %v3176 = vadd.f32 %v2999, %v3175
          %v3177 = vpop.f32.mrb[0].mxu0
          %3178 = vmatprep.mubr.bf16.mxu0 0
          %3179 = vmatmul.mubr.bf16.gmra.mrb[0].mxu0 %v2578
          %v3180 = vpop.f32.mrb[0].mxu0
          %v3181 = vadd.f32 %v3004, %v3180
          %v3182 = vpop.f32.mrb[0].mxu0
          %v3183 = vpop.f32.mrb[0].mxu0
          %v3184 = vadd.f32 %v3007, %v3183
          %v3185 = vpop.f32.mrb[0].mxu0
          %3186 = vmatprep.mubr.bf16.mxu0 0
          %3187 = vmatmul.mubr.bf16.gmra.mrb[0].mxu0 %v2594
          %v3188 = vpop.f32.mrb[0].mxu0
          %v3189 = vadd.f32 %v3012, %v3188
          %v3190 = vpop.f32.mrb[0].mxu0
          %v3191 = vpop.f32.mrb[0].mxu0
          %v3192 = vadd.f32 %v3015, %v3191
          %v3193 = vpop.f32.mrb[0].mxu0
          %3194 = vmatprep.mubr.bf16.mxu0 0
          %3195 = vmatmul.mubr.bf16.gmra.mrb[0].mxu0 %v2610
          %v3196 = vpop.f32.mrb[0].mxu0
          %v3197 = vadd.f32 %v3020, %v3196
          %v3198 = vpop.f32.mrb[0].mxu0
          %v3199 = vpop.f32.mrb[0].mxu0
          %v3200 = vadd.f32 %v3023, %v3199
          %v3201 = vpop.f32.mrb[0].mxu0
          %3202 = vmatprep.mubr.bf16.mxu0 0
          %3203 = vmatmul.mubr.bf16.gmra.mrb[0].mxu0 %v2626
          %v3204 = vpop.f32.mrb[0].mxu0
          %v3205 = vadd.f32 %v3028, %v3204
          %v3206 = vpop.f32.mrb[0].mxu0
          %v3207 = vpop.f32.mrb[0].mxu0
          %v3208 = vadd.f32 %v3031, %v3207
          %v3209 = vpop.f32.mrb[0].mxu0
          %3210 = vmatprep.mubr.bf16.mxu0 0
          %3211 = vmatmul.mubr.bf16.gmra.mrb[0].mxu0 %v2642
          %v3212 = vpop.f32.mrb[0].mxu0
          %v3213 = vadd.f32 %v3036, %v3212
          %v3214 = vpop.f32.mrb[0].mxu0
          %v3215 = vpop.f32.mrb[0].mxu0
          %v3216 = vadd.f32 %v3039, %v3215
          %v3217 = vpop.f32.mrb[0].mxu0
          %3218 = vmatprep.mubr.bf16.mxu0 0
          %3219 = vmatmul.mubr.bf16.gmra.mrb[0].mxu0 %v2658
          %v3220 = vpop.f32.mrb[0].mxu0
          %v3221 = vadd.f32 %v3044, %v3220
          %v3222 = vpop.f32.mrb[0].mxu0
          %v3223 = vpop.f32.mrb[0].mxu0
          %v3224 = vadd.f32 %v3047, %v3223
          %v3225 = vpop.f32.mrb[0].mxu0
          %3226 = vmatprep.mubr.bf16.mxu0 0
          %3227 = vmatmul.mubr.bf16.gmra.mrb[0].mxu0 %v2674
          %v3228 = vpop.f32.mrb[0].mxu0
          %v3229 = vadd.f32 %v3052, %v3228
          %v3230 = vpop.f32.mrb[0].mxu0
          %v3231 = vpop.f32.mrb[0].mxu0
          %v3232 = vadd.f32 %v3055, %v3231
          %v3233 = vpop.f32.mrb[0].mxu0
          %3234 = vmatprep.mubr.bf16.mxu0 0
          %3235 = vmatmul.mubr.bf16.gmra.mrb[0].mxu0 %v2690
          %v3236 = vpop.f32.mrb[0].mxu0
          %v3237 = vadd.f32 %v3060, %v3236
          %v3238 = vpop.f32.mrb[0].mxu0
          %v3239 = vpop.f32.mrb[0].mxu0
          %v3240 = vadd.f32 %v3063, %v3239
          %v3241 = vpop.f32.mrb[0].mxu0
          %3242 = vdwg.mxu0
          %v3243 = vld [vmem:[#allocation5] sm:$0xff]
          %v3244 = vld [vmem:[#allocation5 + $0x8] sm:$0xff]
          %v3245 = vld [vmem:[#allocation5 + $0x10] sm:$0xff]
          %v3246 = vld [vmem:[#allocation5 + $0x18] sm:$0xff]
          %v3247 = vld [vmem:[#allocation5 + $0x20] sm:$0xff]
          %v3248 = vld [vmem:[#allocation5 + $0x28] sm:$0xff]
          %v3249 = vld [vmem:[#allocation5 + $0x30] sm:$0xff]
          %v3250 = vld [vmem:[#allocation5 + $0x38] sm:$0xff]
          %v3251 = vld [vmem:[#allocation5 + $0x40] sm:$0xff]
          %v3252 = vld [vmem:[#allocation5 + $0x48] sm:$0xff]
          %v3253 = vld [vmem:[#allocation5 + $0x50] sm:$0xff]
          %v3254 = vld [vmem:[#allocation5 + $0x58] sm:$0xff]
          %v3255 = vld [vmem:[#allocation5 + $0x60] sm:$0xff]
          %v3256 = vld [vmem:[#allocation5 + $0x68] sm:$0xff]
          %v3257 = vld [vmem:[#allocation5 + $0x70] sm:$0xff]
          %v3258 = vld [vmem:[#allocation5 + $0x78] sm:$0xff]
          %v3259 = vld [vmem:[#allocation5 + $0x80] sm:$0xff]
          %v3260 = vld [vmem:[#allocation5 + $0x88] sm:$0xff]
          %v3261 = vld [vmem:[#allocation5 + $0x90] sm:$0xff]
          %v3262 = vld [vmem:[#allocation5 + $0x98] sm:$0xff]
          %v3263 = vld [vmem:[#allocation5 + $0xa0] sm:$0xff]
          %v3264 = vld [vmem:[#allocation5 + $0xa8] sm:$0xff]
          %v3265 = vld [vmem:[#allocation5 + $0xb0] sm:$0xff]
          %v3266 = vld [vmem:[#allocation5 + $0xb8] sm:$0xff]
          %v3267 = vld [vmem:[#allocation5 + $0xc0] sm:$0xff]
          %v3268 = vld [vmem:[#allocation5 + $0xc8] sm:$0xff]
          %v3269 = vld [vmem:[#allocation5 + $0xd0] sm:$0xff]
          %v3270 = vld [vmem:[#allocation5 + $0xd8] sm:$0xff]
          %v3271 = vld [vmem:[#allocation5 + $0xe0] sm:$0xff]
          %v3272 = vld [vmem:[#allocation5 + $0xe8] sm:$0xff]
          %v3273 = vld [vmem:[#allocation5 + $0xf0] sm:$0xff]
          %v3274 = vld [vmem:[#allocation5 + $0xf8] sm:$0xff]
          %v3275 = vld [vmem:[#allocation5 + $0x100] sm:$0xff]
          %v3276 = vld [vmem:[#allocation5 + $0x108] sm:$0xff]
          %v3277 = vld [vmem:[#allocation5 + $0x110] sm:$0xff]
          %v3278 = vld [vmem:[#allocation5 + $0x118] sm:$0xff]
          %v3279 = vadd.f32 %v3243, %v3101
          %v3280 = vadd.f32 %v3244, %v3104
          %v3281 = vadd.f32 %v3245, %v3109
          %v3282 = vadd.f32 %v3246, %v3112
          %v3283 = vadd.f32 %v3247, %v3117
          %v3284 = vadd.f32 %v3248, %v3120
          %v3285 = vadd.f32 %v3249, %v3125
          %v3286 = vadd.f32 %v3250, %v3128
          %v3287 = vadd.f32 %v3251, %v3133
          %v3288 = vadd.f32 %v3252, %v3136
          %v3289 = vadd.f32 %v3253, %v3141
          %v3290 = vadd.f32 %v3254, %v3144
          %v3291 = vadd.f32 %v3255, %v3149
          %v3292 = vadd.f32 %v3256, %v3152
          %v3293 = vadd.f32 %v3257, %v3157
          %v3294 = vadd.f32 %v3258, %v3160
          %v3295 = vadd.f32 %v3259, %v3165
          %v3296 = vadd.f32 %v3260, %v3168
          %v3297 = vadd.f32 %v3261, %v3173
          %v3298 = vadd.f32 %v3262, %v3176
          %v3299 = vadd.f32 %v3263, %v3181
          %v3300 = vadd.f32 %v3264, %v3184
          %v3301 = vadd.f32 %v3265, %v3189
          %v3302 = vadd.f32 %v3266, %v3192
          %v3303 = vadd.f32 %v3267, %v3197
          %v3304 = vadd.f32 %v3268, %v3200
          %v3305 = vadd.f32 %v3269, %v3205
          %v3306 = vadd.f32 %v3270, %v3208
          %v3307 = vadd.f32 %v3271, %v3213
          %v3308 = vadd.f32 %v3272, %v3216
          %v3309 = vadd.f32 %v3273, %v3221
          %v3310 = vadd.f32 %v3274, %v3224
          %v3311 = vadd.f32 %v3275, %v3229
          %v3312 = vadd.f32 %v3276, %v3232
          %v3313 = vadd.f32 %v3277, %v3237
          %v3314 = vadd.f32 %v3278, %v3240
          %3315 = vst [vmem:[#allocation5] sm:$0xff] %v3279
          %3316 = vst [vmem:[#allocation5 + $0x8] sm:$0xff] %v3280
          %3317 = vst [vmem:[#allocation5 + $0x10] sm:$0xff] %v3281
          %3318 = vst [vmem:[#allocation5 + $0x18] sm:$0xff] %v3282
          %3319 = vst [vmem:[#allocation5 + $0x20] sm:$0xff] %v3283
          %3320 = vst [vmem:[#allocation5 + $0x28] sm:$0xff] %v3284
          %3321 = vst [vmem:[#allocation5 + $0x30] sm:$0xff] %v3285
          %3322 = vst [vmem:[#allocation5 + $0x38] sm:$0xff] %v3286
          %3323 = vst [vmem:[#allocation5 + $0x40] sm:$0xff] %v3287
          %3324 = vst [vmem:[#allocation5 + $0x48] sm:$0xff] %v3288
          %3325 = vst [vmem:[#allocation5 + $0x50] sm:$0xff] %v3289
          %3326 = vst [vmem:[#allocation5 + $0x58] sm:$0xff] %v3290
          %3327 = vst [vmem:[#allocation5 + $0x60] sm:$0xff] %v3291
          %3328 = vst [vmem:[#allocation5 + $0x68] sm:$0xff] %v3292
          %3329 = vst [vmem:[#allocation5 + $0x70] sm:$0xff] %v3293
          %3330 = vst [vmem:[#allocation5 + $0x78] sm:$0xff] %v3294
          %3331 = vst [vmem:[#allocation5 + $0x80] sm:$0xff] %v3295
          %3332 = vst [vmem:[#allocation5 + $0x88] sm:$0xff] %v3296
          %3333 = vst [vmem:[#allocation5 + $0x90] sm:$0xff] %v3297
          %3334 = vst [vmem:[#allocation5 + $0x98] sm:$0xff] %v3298
          %3335 = vst [vmem:[#allocation5 + $0xa0] sm:$0xff] %v3299
          %3336 = vst [vmem:[#allocation5 + $0xa8] sm:$0xff] %v3300
          %3337 = vst [vmem:[#allocation5 + $0xb0] sm:$0xff] %v3301
          %3338 = vst [vmem:[#allocation5 + $0xb8] sm:$0xff] %v3302
          %3339 = vst [vmem:[#allocation5 + $0xc0] sm:$0xff] %v3303
          %3340 = vst [vmem:[#allocation5 + $0xc8] sm:$0xff] %v3304
          %3341 = vst [vmem:[#allocation5 + $0xd0] sm:$0xff] %v3305
          %3342 = vst [vmem:[#allocation5 + $0xd8] sm:$0xff] %v3306
          %3343 = vst [vmem:[#allocation5 + $0xe0] sm:$0xff] %v3307
          %3344 = vst [vmem:[#allocation5 + $0xe8] sm:$0xff] %v3308
          %3345 = vst [vmem:[#allocation5 + $0xf0] sm:$0xff] %v3309
          %3346 = vst [vmem:[#allocation5 + $0xf8] sm:$0xff] %v3310
          %3347 = vst [vmem:[#allocation5 + $0x100] sm:$0xff] %v3311
          %3348 = vst [vmem:[#allocation5 + $0x108] sm:$0xff] %v3312
          %3349 = vst [vmem:[#allocation5 + $0x110] sm:$0xff] %v3313
          %3350 = vst [vmem:[#allocation5 + $0x118] sm:$0xff] %v3314
          %v3351 = vld [vmem:[#allocation2 + $0x14] sm:$0xe]
          %v3352 = vld [vmem:[#allocation2 + $0x18] sm:$0xf]
          %v3353 = vld [vmem:[#allocation2 + $0x1c] sm:$0xf]
          %v3354 = vld [vmem:[#allocation2 + $0x20] sm:$0xf]
          %v3355 = vld [vmem:[#allocation2 + $0x24] sm:$0xf]
          %v3356 = vld [vmem:[#allocation2 + $0x28] sm:$0xf]
          %v3357 = vld [vmem:[#allocation2 + $0x2c] sm:$0xf]
          %v3358 = vld [vmem:[#allocation2 + $0x30] sm:$0xf]
          %v3359 = vld [vmem:[#allocation2 + $0x34] sm:$0xf]
          %v3360 = vld [vmem:[#allocation2 + $0x38] sm:$0xf]
          %v3361 = vld [vmem:[#allocation2 + $0x3c] sm:$0xf]
          %v3362 = vld [vmem:[#allocation2 + $0x40] sm:$0xf]
          %v3363 = vld [vmem:[#allocation2 + $0x44] sm:$0xf]
          %v3364 = vld [vmem:[#allocation2 + $0x48] sm:$0xf]
          %v3365 = vld [vmem:[#allocation2 + $0x4c] sm:$0xf]
          %v3366 = vld [vmem:[#allocation2 + $0x50] sm:$0xf]
          %v3367 = vld [vmem:[#allocation2 + $0x54] sm:$0xf]
          %v3368 = vld [vmem:[#allocation2 + $0x58] sm:$0xf]
          %v3369 = vld [vmem:[#allocation2 + $0x5c] sm:$0xf]
          %v3370 = vld [vmem:[#allocation2 + $0x60] sm:$0xf]
          %v3371 = vld [vmem:[#allocation2 + $0x64] sm:$0xf]
          %v3372 = vld [vmem:[#allocation2 + $0x68] sm:$0xf]
          %v3373 = vld [vmem:[#allocation2 + $0x6c] sm:$0xf]
          %v3374 = vld [vmem:[#allocation2 + $0x70] sm:$0xf]
          %v3375 = vld [vmem:[#allocation2 + $0x74] sm:$0xf]
          %v3376 = vld [vmem:[#allocation2 + $0x78] sm:$0xf]
          %v3377 = vld [vmem:[#allocation2 + $0x7c] sm:$0xf]
          %v3378 = vld [vmem:[#allocation2 + $0x80] sm:$0xf]
          %v3379 = vld [vmem:[#allocation2 + $0x84] sm:$0xf]
          %v3380 = vld [vmem:[#allocation2 + $0x88] sm:$0xf]
          %v3381 = vld [vmem:[#allocation2 + $0x8c] sm:$0xf]
          %v3382 = vld [vmem:[#allocation2 + $0x90] sm:$0xf]
          %v3383 = vld [vmem:[#allocation2 + $0x94] sm:$0xf]
          %v3384 = vld [vmem:[#allocation2 + $0x98] sm:$0xf]
          %v3385 = vld [vmem:[#allocation2 + $0x9c] sm:$0xf]
          %v3386 = vld [vmem:[#allocation2 + $0xa0] sm:$0xf]
          %v3387 = vld [vmem:[#allocation2 + $0xa4] sm:$0x3]
          %v3388 = vld [vmem:[#allocation2 + $0x14] sm:$0xc]
          %v3389 = vld [vmem:[#allocation2 + $0xa4] sm:$0x7]
          %v3427 = vunpack.c.l.b16 %v3351
          %v3428 = vunpack.c.l.b16 %v3352
          %v3429 = vunpack.c.l.b16 %v3353
          %v3430 = vunpack.c.l.b16 %v3354
          %v3431 = vunpack.c.l.b16 %v3355
          %v3432 = vunpack.c.l.b16 %v3356
          %v3433 = vunpack.c.l.b16 %v3357
          %v3434 = vunpack.c.l.b16 %v3358
          %v3435 = vunpack.c.l.b16 %v3359
          %v3436 = vunpack.c.l.b16 %v3360
          %v3437 = vunpack.c.l.b16 %v3361
          %v3438 = vunpack.c.l.b16 %v3362
          %v3439 = vunpack.c.l.b16 %v3363
          %v3440 = vunpack.c.l.b16 %v3364
          %v3441 = vunpack.c.l.b16 %v3365
          %v3442 = vunpack.c.l.b16 %v3366
          %v3443 = vunpack.c.l.b16 %v3367
          %v3444 = vunpack.c.l.b16 %v3368
          %v3445 = vunpack.c.l.b16 %v3369
          %v3446 = vunpack.c.l.b16 %v3370
          %v3447 = vunpack.c.l.b16 %v3371
          %v3448 = vunpack.c.l.b16 %v3372
          %v3449 = vunpack.c.l.b16 %v3373
          %v3450 = vunpack.c.l.b16 %v3374
          %v3451 = vunpack.c.l.b16 %v3375
          %v3452 = vunpack.c.l.b16 %v3376
          %v3453 = vunpack.c.l.b16 %v3377
          %v3454 = vunpack.c.l.b16 %v3378
          %v3455 = vunpack.c.l.b16 %v3379
          %v3456 = vunpack.c.l.b16 %v3380
          %v3457 = vunpack.c.l.b16 %v3381
          %v3458 = vunpack.c.l.b16 %v3382
          %v3459 = vunpack.c.l.b16 %v3383
          %v3460 = vunpack.c.l.b16 %v3384
          %v3461 = vunpack.c.l.b16 %v3385
          %v3462 = vunpack.c.l.b16 %v3386
          %v3463 = vunpack.c.l.b16 %v3387
          %v3464 = vpack.c.b16 %v3428, %v3427
          %v3465 = vpack.c.b16 %v3430, %v3429
          %v3466 = vpack.c.b16 %v3432, %v3431
          %v3467 = vpack.c.b16 %v3434, %v3433
          %v3468 = vpack.c.b16 %v3436, %v3435
          %v3469 = vpack.c.b16 %v3438, %v3437
          %v3470 = vpack.c.b16 %v3440, %v3439
          %v3471 = vpack.c.b16 %v3442, %v3441
          %v3472 = vpack.c.b16 %v3444, %v3443
          %v3473 = vpack.c.b16 %v3446, %v3445
          %v3474 = vpack.c.b16 %v3448, %v3447
          %v3475 = vpack.c.b16 %v3450, %v3449
          %v3476 = vpack.c.b16 %v3452, %v3451
          %v3477 = vpack.c.b16 %v3454, %v3453
          %v3478 = vpack.c.b16 %v3456, %v3455
          %v3479 = vpack.c.b16 %v3458, %v3457
          %v3480 = vpack.c.b16 %v3460, %v3459
          %v3481 = vpack.c.b16 %v3462, %v3461
          %v3482 = vpack.c.b16 %v3463, %v3463
          %v3484 = vunpack.c.l.b16 %v3388
          %v3485 = vpack.c.b16 %v3428, %v3484
          %v3487 = vshrl.u32 %v3485, 16
          %v3489 = vshll.u32 %v3485, 16
          %v3491 = vrot.slane %v3489, 1
          %v3492 = vor.u32 %v3487, %v3491
          %v3494 = vshll.u32 %v3465, 16
          %v3496 = vrot.slane %v3494, 1
          %v3497 = vsel %vm2146, %v3492, %v3496
          %v3498 = vshrl.u32 %v3465, 16
          %v3500 = vor.u32 %v3498, %v3496
          %v3502 = vshll.u32 %v3466, 16
          %v3504 = vrot.slane %v3502, 1
          %v3505 = vsel %vm2146, %v3500, %v3504
          %v3506 = vshrl.u32 %v3466, 16
          %v3508 = vor.u32 %v3506, %v3504
          %v3510 = vshll.u32 %v3467, 16
          %v3512 = vrot.slane %v3510, 1
          %v3513 = vsel %vm2146, %v3508, %v3512
          %v3514 = vshrl.u32 %v3467, 16
          %v3516 = vor.u32 %v3514, %v3512
          %v3518 = vshll.u32 %v3468, 16
          %v3520 = vrot.slane %v3518, 1
          %v3521 = vsel %vm2146, %v3516, %v3520
          %v3522 = vshrl.u32 %v3468, 16
          %v3524 = vor.u32 %v3522, %v3520
          %v3526 = vshll.u32 %v3469, 16
          %v3528 = vrot.slane %v3526, 1
          %v3529 = vsel %vm2146, %v3524, %v3528
          %v3530 = vshrl.u32 %v3469, 16
          %v3532 = vor.u32 %v3530, %v3528
          %v3534 = vshll.u32 %v3470, 16
          %v3536 = vrot.slane %v3534, 1
          %v3537 = vsel %vm2146, %v3532, %v3536
          %v3538 = vshrl.u32 %v3470, 16
          %v3540 = vor.u32 %v3538, %v3536
          %v3542 = vshll.u32 %v3471, 16
          %v3544 = vrot.slane %v3542, 1
          %v3545 = vsel %vm2146, %v3540, %v3544
          %v3546 = vshrl.u32 %v3471, 16
          %v3548 = vor.u32 %v3546, %v3544
          %v3550 = vshll.u32 %v3472, 16
          %v3552 = vrot.slane %v3550, 1
          %v3553 = vsel %vm2146, %v3548, %v3552
          %v3554 = vshrl.u32 %v3472, 16
          %v3556 = vor.u32 %v3554, %v3552
          %v3558 = vshll.u32 %v3473, 16
          %v3560 = vrot.slane %v3558, 1
          %v3561 = vsel %vm2146, %v3556, %v3560
          %v3562 = vshrl.u32 %v3473, 16
          %v3564 = vor.u32 %v3562, %v3560
          %v3566 = vshll.u32 %v3474, 16
          %v3568 = vrot.slane %v3566, 1
          %v3569 = vsel %vm2146, %v3564, %v3568
          %v3570 = vshrl.u32 %v3474, 16
          %v3572 = vor.u32 %v3570, %v3568
          %v3574 = vshll.u32 %v3475, 16
          %v3576 = vrot.slane %v3574, 1
          %v3577 = vsel %vm2146, %v3572, %v3576
          %v3578 = vshrl.u32 %v3475, 16
          %v3580 = vor.u32 %v3578, %v3576
          %v3582 = vshll.u32 %v3476, 16
          %v3584 = vrot.slane %v3582, 1
          %v3585 = vsel %vm2146, %v3580, %v3584
          %v3586 = vshrl.u32 %v3476, 16
          %v3588 = vor.u32 %v3586, %v3584
          %v3590 = vshll.u32 %v3477, 16
          %v3592 = vrot.slane %v3590, 1
          %v3593 = vsel %vm2146, %v3588, %v3592
          %v3594 = vshrl.u32 %v3477, 16
          %v3596 = vor.u32 %v3594, %v3592
          %v3598 = vshll.u32 %v3478, 16
          %v3600 = vrot.slane %v3598, 1
          %v3601 = vsel %vm2146, %v3596, %v3600
          %v3602 = vshrl.u32 %v3478, 16
          %v3604 = vor.u32 %v3602, %v3600
          %v3606 = vshll.u32 %v3479, 16
          %v3608 = vrot.slane %v3606, 1
          %v3609 = vsel %vm2146, %v3604, %v3608
          %v3610 = vshrl.u32 %v3479, 16
          %v3612 = vor.u32 %v3610, %v3608
          %v3614 = vshll.u32 %v3480, 16
          %v3616 = vrot.slane %v3614, 1
          %v3617 = vsel %vm2146, %v3612, %v3616
          %v3618 = vshrl.u32 %v3480, 16
          %v3620 = vor.u32 %v3618, %v3616
          %v3622 = vshll.u32 %v3481, 16
          %v3624 = vrot.slane %v3622, 1
          %v3625 = vsel %vm2146, %v3620, %v3624
          %v3626 = vshrl.u32 %v3481, 16
          %v3628 = vor.u32 %v3626, %v3624
          %v3630 = vshll.u32 %v3482, 16
          %v3632 = vrot.slane %v3630, 1
          %v3633 = vsel %vm2146, %v3628, %v3632
          %v3634 = vshrl.u32 %v3482, 16
          %v3636 = vor.u32 %v3634, %v3632
          %v3638 = vunpack.c.l.b16 %v3389
          %v3639 = vpack.c.b16 %v3638, %v3638
          %v3640 = vrot.slane %v3485, 1
          %v3641 = vrot.slane %v3465, 1
          %v3642 = vsel %vm2300, %v3640, %v3641
          %v3643 = vrot.slane %v3466, 1
          %v3644 = vsel %vm2300, %v3641, %v3643
          %v3645 = vrot.slane %v3467, 1
          %v3646 = vsel %vm2300, %v3643, %v3645
          %v3647 = vrot.slane %v3468, 1
          %v3648 = vsel %vm2300, %v3645, %v3647
          %v3649 = vrot.slane %v3469, 1
          %v3650 = vsel %vm2300, %v3647, %v3649
          %v3651 = vrot.slane %v3470, 1
          %v3652 = vsel %vm2300, %v3649, %v3651
          %v3653 = vrot.slane %v3471, 1
          %v3654 = vsel %vm2300, %v3651, %v3653
          %v3655 = vrot.slane %v3472, 1
          %v3656 = vsel %vm2300, %v3653, %v3655
          %v3657 = vrot.slane %v3473, 1
          %v3658 = vsel %vm2300, %v3655, %v3657
          %v3659 = vrot.slane %v3474, 1
          %v3660 = vsel %vm2300, %v3657, %v3659
          %v3661 = vrot.slane %v3475, 1
          %v3662 = vsel %vm2300, %v3659, %v3661
          %v3663 = vrot.slane %v3476, 1
          %v3664 = vsel %vm2300, %v3661, %v3663
          %v3665 = vrot.slane %v3477, 1
          %v3666 = vsel %vm2300, %v3663, %v3665
          %v3667 = vrot.slane %v3478, 1
          %v3668 = vsel %vm2300, %v3665, %v3667
          %v3669 = vrot.slane %v3479, 1
          %v3670 = vsel %vm2300, %v3667, %v3669
          %v3671 = vrot.slane %v3480, 1
          %v3672 = vsel %vm2300, %v3669, %v3671
          %v3673 = vrot.slane %v3481, 1
          %v3674 = vsel %vm2300, %v3671, %v3673
          %v3675 = vrot.slane %v3639, 1
          %v3676 = vsel %vm2300, %v3673, %v3675
          %s3677 = scalar_lea.vmem %s233, 384 [#allocation6]
          %v3678 = vld [vmem:[%s3677] sm:$0xf]
          %v3679 = vld [vmem:[%s3677 + $0x4] sm:$0xf]
          %v3680 = vld [vmem:[%s3677 + $0x8] sm:$0xf]
          %v3681 = vld [vmem:[%s3677 + $0xc] sm:$0xf]
          %v3682 = vld [vmem:[%s3677 + $0x10] sm:$0xf]
          %v3683 = vld [vmem:[%s3677 + $0x14] sm:$0xf]
          %v3684 = vld [vmem:[%s3677 + $0x18] sm:$0xf]
          %v3685 = vld [vmem:[%s3677 + $0x1c] sm:$0xf]
          %v3686 = vld [vmem:[%s3677 + $0x20] sm:$0xf]
          %v3687 = vld [vmem:[%s3677 + $0x24] sm:$0xf]
          %v3688 = vld [vmem:[%s3677 + $0x28] sm:$0xf]
          %v3689 = vld [vmem:[%s3677 + $0x2c] sm:$0xf]
          %v3690 = vld [vmem:[%s3677 + $0x30] sm:$0xf]
          %v3691 = vld [vmem:[%s3677 + $0x34] sm:$0xf]
          %v3692 = vld [vmem:[%s3677 + $0x38] sm:$0xf]
          %v3693 = vld [vmem:[%s3677 + $0x3c] sm:$0xf]
          %v3694 = vld [vmem:[%s3677 + $0x40] sm:$0xf]
          %v3695 = vld [vmem:[%s3677 + $0x44] sm:$0xf]
          %v3696 = vld [vmem:[%s3677 + $0x48] sm:$0xf]
          %v3697 = vld [vmem:[%s3677 + $0x4c] sm:$0xf]
          %v3698 = vld [vmem:[%s3677 + $0x50] sm:$0xf]
          %v3699 = vld [vmem:[%s3677 + $0x54] sm:$0xf]
          %v3700 = vld [vmem:[%s3677 + $0x58] sm:$0xf]
          %v3701 = vld [vmem:[%s3677 + $0x5c] sm:$0xf]
          %v3702 = vld [vmem:[%s3677 + $0x60] sm:$0xf]
          %v3703 = vld [vmem:[%s3677 + $0x64] sm:$0xf]
          %v3704 = vld [vmem:[%s3677 + $0x68] sm:$0xf]
          %v3705 = vld [vmem:[%s3677 + $0x6c] sm:$0xf]
          %v3706 = vld [vmem:[%s3677 + $0x70] sm:$0xf]
          %v3707 = vld [vmem:[%s3677 + $0x74] sm:$0xf]
          %v3708 = vld [vmem:[%s3677 + $0x78] sm:$0xf]
          %v3709 = vld [vmem:[%s3677 + $0x7c] sm:$0xf]
          %v3710 = vld [vmem:[%s3677 + $0x80] sm:$0xf]
          %v3711 = vld [vmem:[%s3677 + $0x84] sm:$0xf]
          %v3712 = vld [vmem:[%s3677 + $0x88] sm:$0xf]
          %v3713 = vld [vmem:[%s3677 + $0x8c] sm:$0xf]
          %v3714 = vld [vmem:[%s3677 + $0x90] sm:$0xf]
          %v3715 = vld [vmem:[%s3677 + $0x94] sm:$0xf]
          %v3716 = vld [vmem:[%s3677 + $0x98] sm:$0xf]
          %v3717 = vld [vmem:[%s3677 + $0x9c] sm:$0xf]
          %v3718 = vld [vmem:[%s3677 + $0xa0] sm:$0xf]
          %v3719 = vld [vmem:[%s3677 + $0xa4] sm:$0xf]
          %v3720 = vld [vmem:[%s3677 + $0xa8] sm:$0xf]
          %v3721 = vld [vmem:[%s3677 + $0xac] sm:$0xf]
          %v3722 = vld [vmem:[%s3677 + $0xb0] sm:$0xf]
          %v3723 = vld [vmem:[%s3677 + $0xb4] sm:$0xf]
          %v3724 = vld [vmem:[%s3677 + $0xb8] sm:$0xf]
          %v3725 = vld [vmem:[%s3677 + $0xbc] sm:$0xf]
          %vm3726 = vsmask.f32 6400
          %v3728 = vshrl.u32 %v3464, 16
          %v3730 = vrot.slane %v3728, 1
          %v3731 = vshll.u32 %v3464, 16
          %v3733 = vrot.slane %v3731, 2
          %v3734 = vor.u32 %v3730, %v3733
          %v3735 = vrot.slane %v3498, 1
          %v3736 = vrot.slane %v3494, 2
          %v3737 = vor.u32 %v3735, %v3736
          %v3738 = vsel %vm3726, %v3734, %v3737
          %v3740 = vshrl.u32 %v3497, 16
          %v3742 = vrot.slane %v3740, 1
          %v3743 = vshll.u32 %v3497, 16
          %v3745 = vrot.slane %v3743, 2
          %v3746 = vor.u32 %v3742, %v3745
          %v3748 = vshrl.u32 %v3505, 16
          %v3750 = vrot.slane %v3748, 1
          %v3751 = vshll.u32 %v3505, 16
          %v3753 = vrot.slane %v3751, 2
          %v3754 = vor.u32 %v3750, %v3753
          %v3755 = vsel %vm3726, %v3746, %v3754
          %v3757 = vshrl.u32 %v3642, 16
          %v3759 = vrot.slane %v3757, 1
          %v3760 = vshll.u32 %v3642, 16
          %v3762 = vrot.slane %v3760, 2
          %v3763 = vor.u32 %v3759, %v3762
          %v3765 = vshrl.u32 %v3644, 16
          %v3767 = vrot.slane %v3765, 1
          %v3768 = vshll.u32 %v3644, 16
          %v3770 = vrot.slane %v3768, 2
          %v3771 = vor.u32 %v3767, %v3770
          %v3772 = vsel %vm3726, %v3763, %v3771
          %v3773 = vrot.slane %v3506, 1
          %v3774 = vrot.slane %v3502, 2
          %v3775 = vor.u32 %v3773, %v3774
          %v3776 = vsel %vm3726, %v3737, %v3775
          %v3778 = vshrl.u32 %v3513, 16
          %v3780 = vrot.slane %v3778, 1
          %v3781 = vshll.u32 %v3513, 16
          %v3783 = vrot.slane %v3781, 2
          %v3784 = vor.u32 %v3780, %v3783
          %v3785 = vsel %vm3726, %v3754, %v3784
          %v3787 = vshrl.u32 %v3646, 16
          %v3789 = vrot.slane %v3787, 1
          %v3790 = vshll.u32 %v3646, 16
          %v3792 = vrot.slane %v3790, 2
          %v3793 = vor.u32 %v3789, %v3792
          %v3794 = vsel %vm3726, %v3771, %v3793
          %v3795 = vrot.slane %v3514, 1
          %v3796 = vrot.slane %v3510, 2
          %v3797 = vor.u32 %v3795, %v3796
          %v3798 = vsel %vm3726, %v3775, %v3797
          %v3800 = vshrl.u32 %v3521, 16
          %v3802 = vrot.slane %v3800, 1
          %v3803 = vshll.u32 %v3521, 16
          %v3805 = vrot.slane %v3803, 2
          %v3806 = vor.u32 %v3802, %v3805
          %v3807 = vsel %vm3726, %v3784, %v3806
          %v3809 = vshrl.u32 %v3648, 16
          %v3811 = vrot.slane %v3809, 1
          %v3812 = vshll.u32 %v3648, 16
          %v3814 = vrot.slane %v3812, 2
          %v3815 = vor.u32 %v3811, %v3814
          %v3816 = vsel %vm3726, %v3793, %v3815
          %v3817 = vrot.slane %v3522, 1
          %v3818 = vrot.slane %v3518, 2
          %v3819 = vor.u32 %v3817, %v3818
          %v3820 = vsel %vm3726, %v3797, %v3819
          %v3822 = vshrl.u32 %v3529, 16
          %v3824 = vrot.slane %v3822, 1
          %v3825 = vshll.u32 %v3529, 16
          %v3827 = vrot.slane %v3825, 2
          %v3828 = vor.u32 %v3824, %v3827
          %v3829 = vsel %vm3726, %v3806, %v3828
          %v3831 = vshrl.u32 %v3650, 16
          %v3833 = vrot.slane %v3831, 1
          %v3834 = vshll.u32 %v3650, 16
          %v3836 = vrot.slane %v3834, 2
          %v3837 = vor.u32 %v3833, %v3836
          %v3838 = vsel %vm3726, %v3815, %v3837
          %v3839 = vrot.slane %v3530, 1
          %v3840 = vrot.slane %v3526, 2
          %v3841 = vor.u32 %v3839, %v3840
          %v3842 = vsel %vm3726, %v3819, %v3841
          %v3844 = vshrl.u32 %v3537, 16
          %v3846 = vrot.slane %v3844, 1
          %v3847 = vshll.u32 %v3537, 16
          %v3849 = vrot.slane %v3847, 2
          %v3850 = vor.u32 %v3846, %v3849
          %v3851 = vsel %vm3726, %v3828, %v3850
          %v3853 = vshrl.u32 %v3652, 16
          %v3855 = vrot.slane %v3853, 1
          %v3856 = vshll.u32 %v3652, 16
          %v3858 = vrot.slane %v3856, 2
          %v3859 = vor.u32 %v3855, %v3858
          %v3860 = vsel %vm3726, %v3837, %v3859
          %v3861 = vrot.slane %v3538, 1
          %v3862 = vrot.slane %v3534, 2
          %v3863 = vor.u32 %v3861, %v3862
          %v3864 = vsel %vm3726, %v3841, %v3863
          %v3866 = vshrl.u32 %v3545, 16
          %v3868 = vrot.slane %v3866, 1
          %v3869 = vshll.u32 %v3545, 16
          %v3871 = vrot.slane %v3869, 2
          %v3872 = vor.u32 %v3868, %v3871
          %v3873 = vsel %vm3726, %v3850, %v3872
          %v3875 = vshrl.u32 %v3654, 16
          %v3877 = vrot.slane %v3875, 1
          %v3878 = vshll.u32 %v3654, 16
          %v3880 = vrot.slane %v3878, 2
          %v3881 = vor.u32 %v3877, %v3880
          %v3882 = vsel %vm3726, %v3859, %v3881
          %v3883 = vrot.slane %v3546, 1
          %v3884 = vrot.slane %v3542, 2
          %v3885 = vor.u32 %v3883, %v3884
          %v3886 = vsel %vm3726, %v3863, %v3885
          %v3888 = vshrl.u32 %v3553, 16
          %v3890 = vrot.slane %v3888, 1
          %v3891 = vshll.u32 %v3553, 16
          %v3893 = vrot.slane %v3891, 2
          %v3894 = vor.u32 %v3890, %v3893
          %v3895 = vsel %vm3726, %v3872, %v3894
          %v3897 = vshrl.u32 %v3656, 16
          %v3899 = vrot.slane %v3897, 1
          %v3900 = vshll.u32 %v3656, 16
          %v3902 = vrot.slane %v3900, 2
          %v3903 = vor.u32 %v3899, %v3902
          %v3904 = vsel %vm3726, %v3881, %v3903
          %v3905 = vrot.slane %v3554, 1
          %v3906 = vrot.slane %v3550, 2
          %v3907 = vor.u32 %v3905, %v3906
          %v3908 = vsel %vm3726, %v3885, %v3907
          %v3910 = vshrl.u32 %v3561, 16
          %v3912 = vrot.slane %v3910, 1
          %v3913 = vshll.u32 %v3561, 16
          %v3915 = vrot.slane %v3913, 2
          %v3916 = vor.u32 %v3912, %v3915
          %v3917 = vsel %vm3726, %v3894, %v3916
          %v3919 = vshrl.u32 %v3658, 16
          %v3921 = vrot.slane %v3919, 1
          %v3922 = vshll.u32 %v3658, 16
          %v3924 = vrot.slane %v3922, 2
          %v3925 = vor.u32 %v3921, %v3924
          %v3926 = vsel %vm3726, %v3903, %v3925
          %v3927 = vrot.slane %v3562, 1
          %v3928 = vrot.slane %v3558, 2
          %v3929 = vor.u32 %v3927, %v3928
          %v3930 = vsel %vm3726, %v3907, %v3929
          %v3932 = vshrl.u32 %v3569, 16
          %v3934 = vrot.slane %v3932, 1
          %v3935 = vshll.u32 %v3569, 16
          %v3937 = vrot.slane %v3935, 2
          %v3938 = vor.u32 %v3934, %v3937
          %v3939 = vsel %vm3726, %v3916, %v3938
          %v3941 = vshrl.u32 %v3660, 16
          %v3943 = vrot.slane %v3941, 1
          %v3944 = vshll.u32 %v3660, 16
          %v3946 = vrot.slane %v3944, 2
          %v3947 = vor.u32 %v3943, %v3946
          %v3948 = vsel %vm3726, %v3925, %v3947
          %v3949 = vrot.slane %v3570, 1
          %v3950 = vrot.slane %v3566, 2
          %v3951 = vor.u32 %v3949, %v3950
          %v3952 = vsel %vm3726, %v3929, %v3951
          %v3954 = vshrl.u32 %v3577, 16
          %v3956 = vrot.slane %v3954, 1
          %v3957 = vshll.u32 %v3577, 16
          %v3959 = vrot.slane %v3957, 2
          %v3960 = vor.u32 %v3956, %v3959
          %v3961 = vsel %vm3726, %v3938, %v3960
          %v3963 = vshrl.u32 %v3662, 16
          %v3965 = vrot.slane %v3963, 1
          %v3966 = vshll.u32 %v3662, 16
          %v3968 = vrot.slane %v3966, 2
          %v3969 = vor.u32 %v3965, %v3968
          %v3970 = vsel %vm3726, %v3947, %v3969
          %v3971 = vrot.slane %v3578, 1
          %v3972 = vrot.slane %v3574, 2
          %v3973 = vor.u32 %v3971, %v3972
          %v3974 = vsel %vm3726, %v3951, %v3973
          %v3976 = vshrl.u32 %v3585, 16
          %v3978 = vrot.slane %v3976, 1
          %v3979 = vshll.u32 %v3585, 16
          %v3981 = vrot.slane %v3979, 2
          %v3982 = vor.u32 %v3978, %v3981
          %v3983 = vsel %vm3726, %v3960, %v3982
          %v3985 = vshrl.u32 %v3664, 16
          %v3987 = vrot.slane %v3985, 1
          %v3988 = vshll.u32 %v3664, 16
          %v3990 = vrot.slane %v3988, 2
          %v3991 = vor.u32 %v3987, %v3990
          %v3992 = vsel %vm3726, %v3969, %v3991
          %v3993 = vrot.slane %v3586, 1
          %v3994 = vrot.slane %v3582, 2
          %v3995 = vor.u32 %v3993, %v3994
          %v3996 = vsel %vm3726, %v3973, %v3995
          %v3998 = vshrl.u32 %v3593, 16
          %v4000 = vrot.slane %v3998, 1
          %v4001 = vshll.u32 %v3593, 16
          %v4003 = vrot.slane %v4001, 2
          %v4004 = vor.u32 %v4000, %v4003
          %v4005 = vsel %vm3726, %v3982, %v4004
          %v4007 = vshrl.u32 %v3666, 16
          %v4009 = vrot.slane %v4007, 1
          %v4010 = vshll.u32 %v3666, 16
          %v4012 = vrot.slane %v4010, 2
          %v4013 = vor.u32 %v4009, %v4012
          %v4014 = vsel %vm3726, %v3991, %v4013
          %v4015 = vrot.slane %v3594, 1
          %v4016 = vrot.slane %v3590, 2
          %v4017 = vor.u32 %v4015, %v4016
          %v4018 = vsel %vm3726, %v3995, %v4017
          %v4020 = vshrl.u32 %v3601, 16
          %v4022 = vrot.slane %v4020, 1
          %v4023 = vshll.u32 %v3601, 16
          %v4025 = vrot.slane %v4023, 2
          %v4026 = vor.u32 %v4022, %v4025
          %v4027 = vsel %vm3726, %v4004, %v4026
          %v4029 = vshrl.u32 %v3668, 16
          %v4031 = vrot.slane %v4029, 1
          %v4032 = vshll.u32 %v3668, 16
          %v4034 = vrot.slane %v4032, 2
          %v4035 = vor.u32 %v4031, %v4034
          %v4036 = vsel %vm3726, %v4013, %v4035
          %v4037 = vrot.slane %v3602, 1
          %v4038 = vrot.slane %v3598, 2
          %v4039 = vor.u32 %v4037, %v4038
          %v4040 = vsel %vm3726, %v4017, %v4039
          %v4042 = vshrl.u32 %v3609, 16
          %v4044 = vrot.slane %v4042, 1
          %v4045 = vshll.u32 %v3609, 16
          %v4047 = vrot.slane %v4045, 2
          %v4048 = vor.u32 %v4044, %v4047
          %v4049 = vsel %vm3726, %v4026, %v4048
          %v4051 = vshrl.u32 %v3670, 16
          %v4053 = vrot.slane %v4051, 1
          %v4054 = vshll.u32 %v3670, 16
          %v4056 = vrot.slane %v4054, 2
          %v4057 = vor.u32 %v4053, %v4056
          %v4058 = vsel %vm3726, %v4035, %v4057
          %v4059 = vrot.slane %v3610, 1
          %v4060 = vrot.slane %v3606, 2
          %v4061 = vor.u32 %v4059, %v4060
          %v4062 = vsel %vm3726, %v4039, %v4061
          %v4064 = vshrl.u32 %v3617, 16
          %v4066 = vrot.slane %v4064, 1
          %v4067 = vshll.u32 %v3617, 16
          %v4069 = vrot.slane %v4067, 2
          %v4070 = vor.u32 %v4066, %v4069
          %v4071 = vsel %vm3726, %v4048, %v4070
          %v4073 = vshrl.u32 %v3672, 16
          %v4075 = vrot.slane %v4073, 1
          %v4076 = vshll.u32 %v3672, 16
          %v4078 = vrot.slane %v4076, 2
          %v4079 = vor.u32 %v4075, %v4078
          %v4080 = vsel %vm3726, %v4057, %v4079
          %v4081 = vrot.slane %v3618, 1
          %v4082 = vrot.slane %v3614, 2
          %v4083 = vor.u32 %v4081, %v4082
          %v4084 = vsel %vm3726, %v4061, %v4083
          %v4086 = vshrl.u32 %v3625, 16
          %v4088 = vrot.slane %v4086, 1
          %v4089 = vshll.u32 %v3625, 16
          %v4091 = vrot.slane %v4089, 2
          %v4092 = vor.u32 %v4088, %v4091
          %v4093 = vsel %vm3726, %v4070, %v4092
          %v4095 = vshrl.u32 %v3674, 16
          %v4097 = vrot.slane %v4095, 1
          %v4098 = vshll.u32 %v3674, 16
          %v4100 = vrot.slane %v4098, 2
          %v4101 = vor.u32 %v4097, %v4100
          %v4102 = vsel %vm3726, %v4079, %v4101
          %v4103 = vrot.slane %v3626, 1
          %v4104 = vrot.slane %v3622, 2
          %v4105 = vor.u32 %v4103, %v4104
          %v4106 = vsel %vm3726, %v4083, %v4105
          %v4108 = vshrl.u32 %v3633, 16
          %v4110 = vrot.slane %v4108, 1
          %v4111 = vshll.u32 %v3633, 16
          %v4113 = vrot.slane %v4111, 2
          %v4114 = vor.u32 %v4110, %v4113
          %v4115 = vsel %vm3726, %v4092, %v4114
          %v4117 = vshrl.u32 %v3676, 16
          %v4119 = vrot.slane %v4117, 1
          %v4120 = vshll.u32 %v3676, 16
          %v4122 = vrot.slane %v4120, 2
          %v4123 = vor.u32 %v4119, %v4122
          %v4124 = vsel %vm3726, %v4101, %v4123
          %v4125 = vrot.slane %v3634, 1
          %v4126 = vrot.slane %v3630, 2
          %v4127 = vor.u32 %v4125, %v4126
          %v4128 = vsel %vm3726, %v4105, %v4127
          %v4130 = vshrl.u32 %v3636, 16
          %v4132 = vrot.slane %v4130, 1
          %v4133 = vshll.u32 %v3636, 16
          %v4135 = vrot.slane %v4133, 2
          %v4136 = vor.u32 %v4132, %v4135
          %v4137 = vsel %vm3726, %v4114, %v4136
          %v4139 = vshrl.u32 %v3675, 16
          %v4141 = vrot.slane %v4139, 1
          %v4142 = vshll.u32 %v3675, 16
          %v4144 = vrot.slane %v4142, 2
          %v4145 = vor.u32 %v4141, %v4144
          %v4146 = vsel %vm3726, %v4123, %v4145
          %v4249 = vunpack.c.l.b16 %v3678
          %v4250 = vunpack.c.l.b16 %v3679
          %v4251 = vunpack.c.l.b16 %v3680
          %v4252 = vunpack.c.l.b16 %v3681
          %v4253 = vunpack.c.l.b16 %v3682
          %v4254 = vunpack.c.l.b16 %v3683
          %v4255 = vunpack.c.l.b16 %v3684
          %v4256 = vunpack.c.l.b16 %v3685
          %v4257 = vunpack.c.l.b16 %v3686
          %v4258 = vunpack.c.l.b16 %v3687
          %v4259 = vunpack.c.l.b16 %v3688
          %v4260 = vunpack.c.l.b16 %v3689
          %v4261 = vunpack.c.l.b16 %v3690
          %v4262 = vunpack.c.l.b16 %v3691
          %v4263 = vunpack.c.l.b16 %v3692
          %v4264 = vunpack.c.l.b16 %v3693
          %v4265 = vunpack.c.l.b16 %v3694
          %v4266 = vunpack.c.l.b16 %v3695
          %v4267 = vunpack.c.l.b16 %v3696
          %v4268 = vunpack.c.l.b16 %v3697
          %v4269 = vunpack.c.l.b16 %v3698
          %v4270 = vunpack.c.l.b16 %v3699
          %v4271 = vunpack.c.l.b16 %v3700
          %v4272 = vunpack.c.l.b16 %v3701
          %v4273 = vunpack.c.l.b16 %v3702
          %v4274 = vunpack.c.l.b16 %v3703
          %v4275 = vunpack.c.l.b16 %v3704
          %v4276 = vunpack.c.l.b16 %v3705
          %v4277 = vunpack.c.l.b16 %v3706
          %v4278 = vunpack.c.l.b16 %v3707
          %v4279 = vunpack.c.l.b16 %v3708
          %v4280 = vunpack.c.l.b16 %v3709
          %v4281 = vunpack.c.l.b16 %v3710
          %v4282 = vunpack.c.l.b16 %v3711
          %v4283 = vunpack.c.l.b16 %v3712
          %v4284 = vunpack.c.l.b16 %v3713
          %v4285 = vunpack.c.l.b16 %v3714
          %v4286 = vunpack.c.l.b16 %v3715
          %v4287 = vunpack.c.l.b16 %v3716
          %v4288 = vunpack.c.l.b16 %v3717
          %v4289 = vunpack.c.l.b16 %v3718
          %v4290 = vunpack.c.l.b16 %v3719
          %v4291 = vunpack.c.l.b16 %v3720
          %v4292 = vunpack.c.l.b16 %v3721
          %v4293 = vunpack.c.l.b16 %v3722
          %v4294 = vunpack.c.l.b16 %v3723
          %v4295 = vunpack.c.l.b16 %v3724
          %v4296 = vunpack.c.l.b16 %v3725
          %v4297 = vpack.c.b16 %v4250, %v4249
          %v4298 = vpack.c.b16 %v4252, %v4251
          %v4299 = vpack.c.b16 %v4254, %v4253
          %v4300 = vpack.c.b16 %v4256, %v4255
          %v4301 = vpack.c.b16 %v4258, %v4257
          %v4302 = vpack.c.b16 %v4260, %v4259
          %v4303 = vpack.c.b16 %v4262, %v4261
          %v4304 = vpack.c.b16 %v4264, %v4263
          %v4305 = vpack.c.b16 %v4266, %v4265
          %v4306 = vpack.c.b16 %v4268, %v4267
          %v4307 = vpack.c.b16 %v4270, %v4269
          %v4308 = vpack.c.b16 %v4272, %v4271
          %v4309 = vpack.c.b16 %v4274, %v4273
          %v4310 = vpack.c.b16 %v4276, %v4275
          %v4311 = vpack.c.b16 %v4278, %v4277
          %v4312 = vpack.c.b16 %v4280, %v4279
          %v4313 = vpack.c.b16 %v4282, %v4281
          %v4314 = vpack.c.b16 %v4284, %v4283
          %v4315 = vpack.c.b16 %v4286, %v4285
          %v4316 = vpack.c.b16 %v4288, %v4287
          %v4317 = vpack.c.b16 %v4290, %v4289
          %v4318 = vpack.c.b16 %v4292, %v4291
          %v4319 = vpack.c.b16 %v4294, %v4293
          %v4320 = vpack.c.b16 %v4296, %v4295
          %4345 = vmatprep.subr.bf16.mxu0 0
          %4346 = vmatpush1.bf16.msra.mxu0 %v4297
          %4347 = vmatprep.subr.bf16.mxu0 0
          %4348 = vmatpush1.bf16.msra.mxu0 %v4298
          %4349 = vmatprep.subr.bf16.mxu0 0
          %4350 = vmatpush1.bf16.msra.mxu0 %v4299
          %4351 = vmatprep.subr.bf16.mxu0 0
          %4352 = vmatpush1.bf16.msra.mxu0 %v4300
          %4353 = vmatprep.subr.bf16.mxu0 0
          %4354 = vmatpush1.bf16.msra.mxu0 %v4301
          %4355 = vmatprep.subr.bf16.mxu0 0
          %4356 = vmatpush1.bf16.msra.mxu0 %v4302
          %4357 = vmatprep.subr.bf16.mxu0 0
          %4358 = vmatpush1.bf16.msra.mxu0 %v4303
          %4359 = vmatprep.subr.bf16.mxu0 0
          %4360 = vmatpush1.bf16.msra.mxu0 %v4304
          %4361 = vmatprep.subr.bf16.mxu0 0
          %4362 = vmatpush1.bf16.msra.mxu0 %v4305
          %4363 = vmatprep.subr.bf16.mxu0 0
          %4364 = vmatpush1.bf16.msra.mxu0 %v4306
          %4365 = vmatprep.subr.bf16.mxu0 0
          %4366 = vmatpush1.bf16.msra.mxu0 %v4307
          %4367 = vmatprep.subr.bf16.mxu0 0
          %4368 = vmatpush1.bf16.msra.mxu0 %v4308
          %4369 = vmatprep.subr.bf16.mxu0 0
          %4370 = vmatpush1.bf16.msra.mxu0 %v4309
          %4371 = vmatprep.subr.bf16.mxu0 0
          %4372 = vmatpush1.bf16.msra.mxu0 %v4310
          %4373 = vmatprep.subr.bf16.mxu0 0
          %4374 = vmatpush1.bf16.msra.mxu0 %v4311
          %4375 = vmatprep.subr.bf16.mxu0 0
          %4376 = vmatpush1.bf16.msra.mxu0 %v4312
          %4377 = vmatprep.mubr.bf16.mxu0 %v3755
          %4378 = vmatmul.mubr.bf16.gmra.mrb[0].mxu0 %v3738
          %v4379 = vpop.f32.mrb[0].mxu0
          %v4380 = vadd.f32 0.0, %v4379
          %v4381 = vpop.f32.mrb[0].mxu0
          %v4382 = vpop.f32.mrb[0].mxu0
          %v4383 = vadd.f32 0.0, %v4382
          %v4384 = vpop.f32.mrb[0].mxu0
          %4385 = vmatprep.mubr.bf16.mxu0 %v3785
          %4386 = vmatmul.mubr.bf16.gmra.mrb[0].mxu0 %v3776
          %v4387 = vpop.f32.mrb[0].mxu0
          %v4388 = vadd.f32 0.0, %v4387
          %v4389 = vpop.f32.mrb[0].mxu0
          %v4390 = vpop.f32.mrb[0].mxu0
          %v4391 = vadd.f32 0.0, %v4390
          %v4392 = vpop.f32.mrb[0].mxu0
          %4393 = vmatprep.mubr.bf16.mxu0 %v3807
          %4394 = vmatmul.mubr.bf16.gmra.mrb[0].mxu0 %v3798
          %v4395 = vpop.f32.mrb[0].mxu0
          %v4396 = vadd.f32 0.0, %v4395
          %v4397 = vpop.f32.mrb[0].mxu0
          %v4398 = vpop.f32.mrb[0].mxu0
          %v4399 = vadd.f32 0.0, %v4398
          %v4400 = vpop.f32.mrb[0].mxu0
          %4401 = vmatprep.mubr.bf16.mxu0 %v3829
          %4402 = vmatmul.mubr.bf16.gmra.mrb[0].mxu0 %v3820
          %v4403 = vpop.f32.mrb[0].mxu0
          %v4404 = vadd.f32 0.0, %v4403
          %v4405 = vpop.f32.mrb[0].mxu0
          %v4406 = vpop.f32.mrb[0].mxu0
          %v4407 = vadd.f32 0.0, %v4406
          %v4408 = vpop.f32.mrb[0].mxu0
          %4409 = vmatprep.mubr.bf16.mxu0 %v3851
          %4410 = vmatmul.mubr.bf16.gmra.mrb[0].mxu0 %v3842
          %v4411 = vpop.f32.mrb[0].mxu0
          %v4412 = vadd.f32 0.0, %v4411
          %v4413 = vpop.f32.mrb[0].mxu0
          %v4414 = vpop.f32.mrb[0].mxu0
          %v4415 = vadd.f32 0.0, %v4414
          %v4416 = vpop.f32.mrb[0].mxu0
          %4417 = vmatprep.mubr.bf16.mxu0 %v3873
          %4418 = vmatmul.mubr.bf16.gmra.mrb[0].mxu0 %v3864
          %v4419 = vpop.f32.mrb[0].mxu0
          %v4420 = vadd.f32 0.0, %v4419
          %v4421 = vpop.f32.mrb[0].mxu0
          %v4422 = vpop.f32.mrb[0].mxu0
          %v4423 = vadd.f32 0.0, %v4422
          %v4424 = vpop.f32.mrb[0].mxu0
          %4425 = vmatprep.mubr.bf16.mxu0 %v3895
          %4426 = vmatmul.mubr.bf16.gmra.mrb[0].mxu0 %v3886
          %v4427 = vpop.f32.mrb[0].mxu0
          %v4428 = vadd.f32 0.0, %v4427
          %v4429 = vpop.f32.mrb[0].mxu0
          %v4430 = vpop.f32.mrb[0].mxu0
          %v4431 = vadd.f32 0.0, %v4430
          %v4432 = vpop.f32.mrb[0].mxu0
          %4433 = vmatprep.mubr.bf16.mxu0 %v3917
          %4434 = vmatmul.mubr.bf16.gmra.mrb[0].mxu0 %v3908
          %v4435 = vpop.f32.mrb[0].mxu0
          %v4436 = vadd.f32 0.0, %v4435
          %v4437 = vpop.f32.mrb[0].mxu0
          %v4438 = vpop.f32.mrb[0].mxu0
          %v4439 = vadd.f32 0.0, %v4438
          %v4440 = vpop.f32.mrb[0].mxu0
          %4441 = vmatprep.mubr.bf16.mxu0 %v3939
          %4442 = vmatmul.mubr.bf16.gmra.mrb[0].mxu0 %v3930
          %v4443 = vpop.f32.mrb[0].mxu0
          %v4444 = vadd.f32 0.0, %v4443
          %v4445 = vpop.f32.mrb[0].mxu0
          %v4446 = vpop.f32.mrb[0].mxu0
          %v4447 = vadd.f32 0.0, %v4446
          %v4448 = vpop.f32.mrb[0].mxu0
          %4449 = vmatprep.mubr.bf16.mxu0 %v3961
          %4450 = vmatmul.mubr.bf16.gmra.mrb[0].mxu0 %v3952
          %v4451 = vpop.f32.mrb[0].mxu0
          %v4452 = vadd.f32 0.0, %v4451
          %v4453 = vpop.f32.mrb[0].mxu0
          %v4454 = vpop.f32.mrb[0].mxu0
          %v4455 = vadd.f32 0.0, %v4454
          %v4456 = vpop.f32.mrb[0].mxu0
          %4457 = vmatprep.mubr.bf16.mxu0 %v3983
          %4458 = vmatmul.mubr.bf16.gmra.mrb[0].mxu0 %v3974
          %v4459 = vpop.f32.mrb[0].mxu0
          %v4460 = vadd.f32 0.0, %v4459
          %v4461 = vpop.f32.mrb[0].mxu0
          %v4462 = vpop.f32.mrb[0].mxu0
          %v4463 = vadd.f32 0.0, %v4462
          %v4464 = vpop.f32.mrb[0].mxu0
          %4465 = vmatprep.mubr.bf16.mxu0 %v4005
          %4466 = vmatmul.mubr.bf16.gmra.mrb[0].mxu0 %v3996
          %v4467 = vpop.f32.mrb[0].mxu0
          %v4468 = vadd.f32 0.0, %v4467
          %v4469 = vpop.f32.mrb[0].mxu0
          %v4470 = vpop.f32.mrb[0].mxu0
          %v4471 = vadd.f32 0.0, %v4470
          %v4472 = vpop.f32.mrb[0].mxu0
          %4473 = vmatprep.mubr.bf16.mxu0 %v4027
          %4474 = vmatmul.mubr.bf16.gmra.mrb[0].mxu0 %v4018
          %v4475 = vpop.f32.mrb[0].mxu0
          %v4476 = vadd.f32 0.0, %v4475
          %v4477 = vpop.f32.mrb[0].mxu0
          %v4478 = vpop.f32.mrb[0].mxu0
          %v4479 = vadd.f32 0.0, %v4478
          %v4480 = vpop.f32.mrb[0].mxu0
          %4481 = vmatprep.mubr.bf16.mxu0 %v4049
          %4482 = vmatmul.mubr.bf16.gmra.mrb[0].mxu0 %v4040
          %v4483 = vpop.f32.mrb[0].mxu0
          %v4484 = vadd.f32 0.0, %v4483
          %v4485 = vpop.f32.mrb[0].mxu0
          %v4486 = vpop.f32.mrb[0].mxu0
          %v4487 = vadd.f32 0.0, %v4486
          %v4488 = vpop.f32.mrb[0].mxu0
          %4489 = vmatprep.mubr.bf16.mxu0 %v4071
          %4490 = vmatmul.mubr.bf16.gmra.mrb[0].mxu0 %v4062
          %v4491 = vpop.f32.mrb[0].mxu0
          %v4492 = vadd.f32 0.0, %v4491
          %v4493 = vpop.f32.mrb[0].mxu0
          %v4494 = vpop.f32.mrb[0].mxu0
          %v4495 = vadd.f32 0.0, %v4494
          %v4496 = vpop.f32.mrb[0].mxu0
          %4497 = vmatprep.mubr.bf16.mxu0 %v4093
          %4498 = vmatmul.mubr.bf16.gmra.mrb[0].mxu0 %v4084
          %v4499 = vpop.f32.mrb[0].mxu0
          %v4500 = vadd.f32 0.0, %v4499
          %v4501 = vpop.f32.mrb[0].mxu0
          %v4502 = vpop.f32.mrb[0].mxu0
          %v4503 = vadd.f32 0.0, %v4502
          %v4504 = vpop.f32.mrb[0].mxu0
          %4505 = vmatprep.mubr.bf16.mxu0 %v4115
          %4506 = vmatmul.mubr.bf16.gmra.mrb[0].mxu0 %v4106
          %v4507 = vpop.f32.mrb[0].mxu0
          %v4508 = vadd.f32 0.0, %v4507
          %v4509 = vpop.f32.mrb[0].mxu0
          %v4510 = vpop.f32.mrb[0].mxu0
          %v4511 = vadd.f32 0.0, %v4510
          %v4512 = vpop.f32.mrb[0].mxu0
          %4513 = vmatprep.mubr.bf16.mxu0 %v4137
          %4514 = vmatmul.mubr.bf16.gmra.mrb[0].mxu0 %v4128
          %v4515 = vpop.f32.mrb[0].mxu0
          %v4516 = vadd.f32 0.0, %v4515
          %v4517 = vpop.f32.mrb[0].mxu0
          %v4518 = vpop.f32.mrb[0].mxu0
          %v4519 = vadd.f32 0.0, %v4518
          %v4520 = vpop.f32.mrb[0].mxu0
          %4521 = vdwg.mxu0
          %4522 = vmatprep.subr.bf16.mxu0 0
          %4523 = vmatpush1.bf16.msra.mxu0 %v4313
          %4524 = vmatprep.subr.bf16.mxu0 0
          %4525 = vmatpush1.bf16.msra.mxu0 %v4314
          %4526 = vmatprep.subr.bf16.mxu0 0
          %4527 = vmatpush1.bf16.msra.mxu0 %v4315
          %4528 = vmatprep.subr.bf16.mxu0 0
          %4529 = vmatpush1.bf16.msra.mxu0 %v4316
          %4530 = vmatprep.subr.bf16.mxu0 0
          %4531 = vmatpush1.bf16.msra.mxu0 %v4317
          %4532 = vmatprep.subr.bf16.mxu0 0
          %4533 = vmatpush1.bf16.msra.mxu0 %v4318
          %4534 = vmatprep.subr.bf16.mxu0 0
          %4535 = vmatpush1.bf16.msra.mxu0 %v4319
          %4536 = vmatprep.subr.bf16.mxu0 0
          %4537 = vmatpush1.bf16.msra.mxu0 %v4320
          %4538 = vmatprep.subr.bf16.mxu0 0
          %4539 = vmatpush1.bf16.msra.mxu0 0
          %4540 = vmatprep.subr.bf16.mxu0 0
          %4541 = vmatpush1.bf16.msra.mxu0 0
          %4542 = vmatprep.subr.bf16.mxu0 0
          %4543 = vmatpush1.bf16.msra.mxu0 0
          %4544 = vmatprep.subr.bf16.mxu0 0
          %4545 = vmatpush1.bf16.msra.mxu0 0
          %4546 = vmatprep.subr.bf16.mxu0 0
          %4547 = vmatpush1.bf16.msra.mxu0 0
          %4548 = vmatprep.subr.bf16.mxu0 0
          %4549 = vmatpush1.bf16.msra.mxu0 0
          %4550 = vmatprep.subr.bf16.mxu0 0
          %4551 = vmatpush1.bf16.msra.mxu0 0
          %4552 = vmatprep.subr.bf16.mxu0 0
          %4553 = vmatpush1.bf16.msra.mxu0 0
          %4554 = vmatprep.mubr.bf16.mxu0 0
          %4555 = vmatmul.mubr.bf16.gmra.mrb[0].mxu0 %v3772
          %v4556 = vpop.f32.mrb[0].mxu0
          %v4557 = vadd.f32 %v4380, %v4556
          %v4558 = vpop.f32.mrb[0].mxu0
          %v4559 = vpop.f32.mrb[0].mxu0
          %v4560 = vadd.f32 %v4383, %v4559
          %v4561 = vpop.f32.mrb[0].mxu0
          %4562 = vmatprep.mubr.bf16.mxu0 0
          %4563 = vmatmul.mubr.bf16.gmra.mrb[0].mxu0 %v3794
          %v4564 = vpop.f32.mrb[0].mxu0
          %v4565 = vadd.f32 %v4388, %v4564
          %v4566 = vpop.f32.mrb[0].mxu0
          %v4567 = vpop.f32.mrb[0].mxu0
          %v4568 = vadd.f32 %v4391, %v4567
          %v4569 = vpop.f32.mrb[0].mxu0
          %4570 = vmatprep.mubr.bf16.mxu0 0
          %4571 = vmatmul.mubr.bf16.gmra.mrb[0].mxu0 %v3816
          %v4572 = vpop.f32.mrb[0].mxu0
          %v4573 = vadd.f32 %v4396, %v4572
          %v4574 = vpop.f32.mrb[0].mxu0
          %v4575 = vpop.f32.mrb[0].mxu0
          %v4576 = vadd.f32 %v4399, %v4575
          %v4577 = vpop.f32.mrb[0].mxu0
          %4578 = vmatprep.mubr.bf16.mxu0 0
          %4579 = vmatmul.mubr.bf16.gmra.mrb[0].mxu0 %v3838
          %v4580 = vpop.f32.mrb[0].mxu0
          %v4581 = vadd.f32 %v4404, %v4580
          %v4582 = vpop.f32.mrb[0].mxu0
          %v4583 = vpop.f32.mrb[0].mxu0
          %v4584 = vadd.f32 %v4407, %v4583
          %v4585 = vpop.f32.mrb[0].mxu0
          %4586 = vmatprep.mubr.bf16.mxu0 0
          %4587 = vmatmul.mubr.bf16.gmra.mrb[0].mxu0 %v3860
          %v4588 = vpop.f32.mrb[0].mxu0
          %v4589 = vadd.f32 %v4412, %v4588
          %v4590 = vpop.f32.mrb[0].mxu0
          %v4591 = vpop.f32.mrb[0].mxu0
          %v4592 = vadd.f32 %v4415, %v4591
          %v4593 = vpop.f32.mrb[0].mxu0
          %4594 = vmatprep.mubr.bf16.mxu0 0
          %4595 = vmatmul.mubr.bf16.gmra.mrb[0].mxu0 %v3882
          %v4596 = vpop.f32.mrb[0].mxu0
          %v4597 = vadd.f32 %v4420, %v4596
          %v4598 = vpop.f32.mrb[0].mxu0
          %v4599 = vpop.f32.mrb[0].mxu0
          %v4600 = vadd.f32 %v4423, %v4599
          %v4601 = vpop.f32.mrb[0].mxu0
          %4602 = vmatprep.mubr.bf16.mxu0 0
          %4603 = vmatmul.mubr.bf16.gmra.mrb[0].mxu0 %v3904
          %v4604 = vpop.f32.mrb[0].mxu0
          %v4605 = vadd.f32 %v4428, %v4604
          %v4606 = vpop.f32.mrb[0].mxu0
          %v4607 = vpop.f32.mrb[0].mxu0
          %v4608 = vadd.f32 %v4431, %v4607
          %v4609 = vpop.f32.mrb[0].mxu0
          %4610 = vmatprep.mubr.bf16.mxu0 0
          %4611 = vmatmul.mubr.bf16.gmra.mrb[0].mxu0 %v3926
          %v4612 = vpop.f32.mrb[0].mxu0
          %v4613 = vadd.f32 %v4436, %v4612
          %v4614 = vpop.f32.mrb[0].mxu0
          %v4615 = vpop.f32.mrb[0].mxu0
          %v4616 = vadd.f32 %v4439, %v4615
          %v4617 = vpop.f32.mrb[0].mxu0
          %4618 = vmatprep.mubr.bf16.mxu0 0
          %4619 = vmatmul.mubr.bf16.gmra.mrb[0].mxu0 %v3948
          %v4620 = vpop.f32.mrb[0].mxu0
          %v4621 = vadd.f32 %v4444, %v4620
          %v4622 = vpop.f32.mrb[0].mxu0
          %v4623 = vpop.f32.mrb[0].mxu0
          %v4624 = vadd.f32 %v4447, %v4623
          %v4625 = vpop.f32.mrb[0].mxu0
          %4626 = vmatprep.mubr.bf16.mxu0 0
          %4627 = vmatmul.mubr.bf16.gmra.mrb[0].mxu0 %v3970
          %v4628 = vpop.f32.mrb[0].mxu0
          %v4629 = vadd.f32 %v4452, %v4628
          %v4630 = vpop.f32.mrb[0].mxu0
          %v4631 = vpop.f32.mrb[0].mxu0
          %v4632 = vadd.f32 %v4455, %v4631
          %v4633 = vpop.f32.mrb[0].mxu0
          %4634 = vmatprep.mubr.bf16.mxu0 0
          %4635 = vmatmul.mubr.bf16.gmra.mrb[0].mxu0 %v3992
          %v4636 = vpop.f32.mrb[0].mxu0
          %v4637 = vadd.f32 %v4460, %v4636
          %v4638 = vpop.f32.mrb[0].mxu0
          %v4639 = vpop.f32.mrb[0].mxu0
          %v4640 = vadd.f32 %v4463, %v4639
          %v4641 = vpop.f32.mrb[0].mxu0
          %4642 = vmatprep.mubr.bf16.mxu0 0
          %4643 = vmatmul.mubr.bf16.gmra.mrb[0].mxu0 %v4014
          %v4644 = vpop.f32.mrb[0].mxu0
          %v4645 = vadd.f32 %v4468, %v4644
          %v4646 = vpop.f32.mrb[0].mxu0
          %v4647 = vpop.f32.mrb[0].mxu0
          %v4648 = vadd.f32 %v4471, %v4647
          %v4649 = vpop.f32.mrb[0].mxu0
          %4650 = vmatprep.mubr.bf16.mxu0 0
          %4651 = vmatmul.mubr.bf16.gmra.mrb[0].mxu0 %v4036
          %v4652 = vpop.f32.mrb[0].mxu0
          %v4653 = vadd.f32 %v4476, %v4652
          %v4654 = vpop.f32.mrb[0].mxu0
          %v4655 = vpop.f32.mrb[0].mxu0
          %v4656 = vadd.f32 %v4479, %v4655
          %v4657 = vpop.f32.mrb[0].mxu0
          %4658 = vmatprep.mubr.bf16.mxu0 0
          %4659 = vmatmul.mubr.bf16.gmra.mrb[0].mxu0 %v4058
          %v4660 = vpop.f32.mrb[0].mxu0
          %v4661 = vadd.f32 %v4484, %v4660
          %v4662 = vpop.f32.mrb[0].mxu0
          %v4663 = vpop.f32.mrb[0].mxu0
          %v4664 = vadd.f32 %v4487, %v4663
          %v4665 = vpop.f32.mrb[0].mxu0
          %4666 = vmatprep.mubr.bf16.mxu0 0
          %4667 = vmatmul.mubr.bf16.gmra.mrb[0].mxu0 %v4080
          %v4668 = vpop.f32.mrb[0].mxu0
          %v4669 = vadd.f32 %v4492, %v4668
          %v4670 = vpop.f32.mrb[0].mxu0
          %v4671 = vpop.f32.mrb[0].mxu0
          %v4672 = vadd.f32 %v4495, %v4671
          %v4673 = vpop.f32.mrb[0].mxu0
          %4674 = vmatprep.mubr.bf16.mxu0 0
          %4675 = vmatmul.mubr.bf16.gmra.mrb[0].mxu0 %v4102
          %v4676 = vpop.f32.mrb[0].mxu0
          %v4677 = vadd.f32 %v4500, %v4676
          %v4678 = vpop.f32.mrb[0].mxu0
          %v4679 = vpop.f32.mrb[0].mxu0
          %v4680 = vadd.f32 %v4503, %v4679
          %v4681 = vpop.f32.mrb[0].mxu0
          %4682 = vmatprep.mubr.bf16.mxu0 0
          %4683 = vmatmul.mubr.bf16.gmra.mrb[0].mxu0 %v4124
          %v4684 = vpop.f32.mrb[0].mxu0
          %v4685 = vadd.f32 %v4508, %v4684
          %v4686 = vpop.f32.mrb[0].mxu0
          %v4687 = vpop.f32.mrb[0].mxu0
          %v4688 = vadd.f32 %v4511, %v4687
          %v4689 = vpop.f32.mrb[0].mxu0
          %4690 = vmatprep.mubr.bf16.mxu0 0
          %4691 = vmatmul.mubr.bf16.gmra.mrb[0].mxu0 %v4146
          %v4692 = vpop.f32.mrb[0].mxu0
          %v4693 = vadd.f32 %v4516, %v4692
          %v4694 = vpop.f32.mrb[0].mxu0
          %v4695 = vpop.f32.mrb[0].mxu0
          %v4696 = vadd.f32 %v4519, %v4695
          %v4697 = vpop.f32.mrb[0].mxu0
          %4698 = vdwg.mxu0
          %v4699 = vld [vmem:[#allocation5] sm:$0xff]
          %v4700 = vld [vmem:[#allocation5 + $0x8] sm:$0xff]
          %v4701 = vld [vmem:[#allocation5 + $0x10] sm:$0xff]
          %v4702 = vld [vmem:[#allocation5 + $0x18] sm:$0xff]
          %v4703 = vld [vmem:[#allocation5 + $0x20] sm:$0xff]
          %v4704 = vld [vmem:[#allocation5 + $0x28] sm:$0xff]
          %v4705 = vld [vmem:[#allocation5 + $0x30] sm:$0xff]
          %v4706 = vld [vmem:[#allocation5 + $0x38] sm:$0xff]
          %v4707 = vld [vmem:[#allocation5 + $0x40] sm:$0xff]
          %v4708 = vld [vmem:[#allocation5 + $0x48] sm:$0xff]
          %v4709 = vld [vmem:[#allocation5 + $0x50] sm:$0xff]
          %v4710 = vld [vmem:[#allocation5 + $0x58] sm:$0xff]
          %v4711 = vld [vmem:[#allocation5 + $0x60] sm:$0xff]
          %v4712 = vld [vmem:[#allocation5 + $0x68] sm:$0xff]
          %v4713 = vld [vmem:[#allocation5 + $0x70] sm:$0xff]
          %v4714 = vld [vmem:[#allocation5 + $0x78] sm:$0xff]
          %v4715 = vld [vmem:[#allocation5 + $0x80] sm:$0xff]
          %v4716 = vld [vmem:[#allocation5 + $0x88] sm:$0xff]
          %v4717 = vld [vmem:[#allocation5 + $0x90] sm:$0xff]
          %v4718 = vld [vmem:[#allocation5 + $0x98] sm:$0xff]
          %v4719 = vld [vmem:[#allocation5 + $0xa0] sm:$0xff]
          %v4720 = vld [vmem:[#allocation5 + $0xa8] sm:$0xff]
          %v4721 = vld [vmem:[#allocation5 + $0xb0] sm:$0xff]
          %v4722 = vld [vmem:[#allocation5 + $0xb8] sm:$0xff]
          %v4723 = vld [vmem:[#allocation5 + $0xc0] sm:$0xff]
          %v4724 = vld [vmem:[#allocation5 + $0xc8] sm:$0xff]
          %v4725 = vld [vmem:[#allocation5 + $0xd0] sm:$0xff]
          %v4726 = vld [vmem:[#allocation5 + $0xd8] sm:$0xff]
          %v4727 = vld [vmem:[#allocation5 + $0xe0] sm:$0xff]
          %v4728 = vld [vmem:[#allocation5 + $0xe8] sm:$0xff]
          %v4729 = vld [vmem:[#allocation5 + $0xf0] sm:$0xff]
          %v4730 = vld [vmem:[#allocation5 + $0xf8] sm:$0xff]
          %v4731 = vld [vmem:[#allocation5 + $0x100] sm:$0xff]
          %v4732 = vld [vmem:[#allocation5 + $0x108] sm:$0xff]
          %v4733 = vld [vmem:[#allocation5 + $0x110] sm:$0xff]
          %v4734 = vld [vmem:[#allocation5 + $0x118] sm:$0xff]
          %v4735 = vadd.f32 %v4699, %v4557
          %v4736 = vadd.f32 %v4700, %v4560
          %v4737 = vadd.f32 %v4701, %v4565
          %v4738 = vadd.f32 %v4702, %v4568
          %v4739 = vadd.f32 %v4703, %v4573
          %v4740 = vadd.f32 %v4704, %v4576
          %v4741 = vadd.f32 %v4705, %v4581
          %v4742 = vadd.f32 %v4706, %v4584
          %v4743 = vadd.f32 %v4707, %v4589
          %v4744 = vadd.f32 %v4708, %v4592
          %v4745 = vadd.f32 %v4709, %v4597
          %v4746 = vadd.f32 %v4710, %v4600
          %v4747 = vadd.f32 %v4711, %v4605
          %v4748 = vadd.f32 %v4712, %v4608
          %v4749 = vadd.f32 %v4713, %v4613
          %v4750 = vadd.f32 %v4714, %v4616
          %v4751 = vadd.f32 %v4715, %v4621
          %v4752 = vadd.f32 %v4716, %v4624
          %v4753 = vadd.f32 %v4717, %v4629
          %v4754 = vadd.f32 %v4718, %v4632
          %v4755 = vadd.f32 %v4719, %v4637
          %v4756 = vadd.f32 %v4720, %v4640
          %v4757 = vadd.f32 %v4721, %v4645
          %v4758 = vadd.f32 %v4722, %v4648
          %v4759 = vadd.f32 %v4723, %v4653
          %v4760 = vadd.f32 %v4724, %v4656
          %v4761 = vadd.f32 %v4725, %v4661
          %v4762 = vadd.f32 %v4726, %v4664
          %v4763 = vadd.f32 %v4727, %v4669
          %v4764 = vadd.f32 %v4728, %v4672
          %v4765 = vadd.f32 %v4729, %v4677
          %v4766 = vadd.f32 %v4730, %v4680
          %v4767 = vadd.f32 %v4731, %v4685
          %v4768 = vadd.f32 %v4732, %v4688
          %v4769 = vadd.f32 %v4733, %v4693
          %v4770 = vadd.f32 %v4734, %v4696
          %4771 = vst [vmem:[#allocation5] sm:$0xff] %v4735
          %4772 = vst [vmem:[#allocation5 + $0x8] sm:$0xff] %v4736
          %4773 = vst [vmem:[#allocation5 + $0x10] sm:$0xff] %v4737
          %4774 = vst [vmem:[#allocation5 + $0x18] sm:$0xff] %v4738
          %4775 = vst [vmem:[#allocation5 + $0x20] sm:$0xff] %v4739
          %4776 = vst [vmem:[#allocation5 + $0x28] sm:$0xff] %v4740
          %4777 = vst [vmem:[#allocation5 + $0x30] sm:$0xff] %v4741
          %4778 = vst [vmem:[#allocation5 + $0x38] sm:$0xff] %v4742
          %4779 = vst [vmem:[#allocation5 + $0x40] sm:$0xff] %v4743
          %4780 = vst [vmem:[#allocation5 + $0x48] sm:$0xff] %v4744
          %4781 = vst [vmem:[#allocation5 + $0x50] sm:$0xff] %v4745
          %4782 = vst [vmem:[#allocation5 + $0x58] sm:$0xff] %v4746
          %4783 = vst [vmem:[#allocation5 + $0x60] sm:$0xff] %v4747
          %4784 = vst [vmem:[#allocation5 + $0x68] sm:$0xff] %v4748
          %4785 = vst [vmem:[#allocation5 + $0x70] sm:$0xff] %v4749
          %4786 = vst [vmem:[#allocation5 + $0x78] sm:$0xff] %v4750
          %4787 = vst [vmem:[#allocation5 + $0x80] sm:$0xff] %v4751
          %4788 = vst [vmem:[#allocation5 + $0x88] sm:$0xff] %v4752
          %4789 = vst [vmem:[#allocation5 + $0x90] sm:$0xff] %v4753
          %4790 = vst [vmem:[#allocation5 + $0x98] sm:$0xff] %v4754
          %4791 = vst [vmem:[#allocation5 + $0xa0] sm:$0xff] %v4755
          %4792 = vst [vmem:[#allocation5 + $0xa8] sm:$0xff] %v4756
          %4793 = vst [vmem:[#allocation5 + $0xb0] sm:$0xff] %v4757
          %4794 = vst [vmem:[#allocation5 + $0xb8] sm:$0xff] %v4758
          %4795 = vst [vmem:[#allocation5 + $0xc0] sm:$0xff] %v4759
          %4796 = vst [vmem:[#allocation5 + $0xc8] sm:$0xff] %v4760
          %4797 = vst [vmem:[#allocation5 + $0xd0] sm:$0xff] %v4761
          %4798 = vst [vmem:[#allocation5 + $0xd8] sm:$0xff] %v4762
          %4799 = vst [vmem:[#allocation5 + $0xe0] sm:$0xff] %v4763
          %4800 = vst [vmem:[#allocation5 + $0xe8] sm:$0xff] %v4764
          %4801 = vst [vmem:[#allocation5 + $0xf0] sm:$0xff] %v4765
          %4802 = vst [vmem:[#allocation5 + $0xf8] sm:$0xff] %v4766
          %4803 = vst [vmem:[#allocation5 + $0x100] sm:$0xff] %v4767
          %4804 = vst [vmem:[#allocation5 + $0x108] sm:$0xff] %v4768
          %4805 = vst [vmem:[#allocation5 + $0x110] sm:$0xff] %v4769
          %4806 = vst [vmem:[#allocation5 + $0x118] sm:$0xff] %v4770
          %v4807 = vld [vmem:[#allocation5] sm:$0xff]
          %v4808 = vld [vmem:[#allocation5 + $0x8] sm:$0xff]
          %v4809 = vld [vmem:[#allocation5 + $0x10] sm:$0xff]
          %v4810 = vld [vmem:[#allocation5 + $0x18] sm:$0xff]
          %v4811 = vld [vmem:[#allocation5 + $0x20] sm:$0xff]
          %v4812 = vld [vmem:[#allocation5 + $0x28] sm:$0xff]
          %v4813 = vld [vmem:[#allocation5 + $0x30] sm:$0xff]
          %v4814 = vld [vmem:[#allocation5 + $0x38] sm:$0xff]
          %v4815 = vld [vmem:[#allocation5 + $0x40] sm:$0xff]
          %v4816 = vld [vmem:[#allocation5 + $0x48] sm:$0xff]
          %v4817 = vld [vmem:[#allocation5 + $0x50] sm:$0xff]
          %v4818 = vld [vmem:[#allocation5 + $0x58] sm:$0xff]
          %v4819 = vld [vmem:[#allocation5 + $0x60] sm:$0xff]
          %v4820 = vld [vmem:[#allocation5 + $0x68] sm:$0xff]
          %v4821 = vld [vmem:[#allocation5 + $0x70] sm:$0xff]
          %v4822 = vld [vmem:[#allocation5 + $0x78] sm:$0xff]
          %v4823 = vld [vmem:[#allocation5 + $0x80] sm:$0xff]
          %v4824 = vld [vmem:[#allocation5 + $0x88] sm:$0xff]
          %v4825 = vld [vmem:[#allocation5 + $0x90] sm:$0xff]
          %v4826 = vld [vmem:[#allocation5 + $0x98] sm:$0xff]
          %v4827 = vld [vmem:[#allocation5 + $0xa0] sm:$0xff]
          %v4828 = vld [vmem:[#allocation5 + $0xa8] sm:$0xff]
          %v4829 = vld [vmem:[#allocation5 + $0xb0] sm:$0xff]
          %v4830 = vld [vmem:[#allocation5 + $0xb8] sm:$0xff]
          %v4831 = vld [vmem:[#allocation5 + $0xc0] sm:$0xff]
          %v4832 = vld [vmem:[#allocation5 + $0xc8] sm:$0xff]
          %v4833 = vld [vmem:[#allocation5 + $0xd0] sm:$0xff]
          %v4834 = vld [vmem:[#allocation5 + $0xd8] sm:$0xff]
          %v4835 = vld [vmem:[#allocation5 + $0xe0] sm:$0xff]
          %v4836 = vld [vmem:[#allocation5 + $0xe8] sm:$0xff]
          %v4837 = vld [vmem:[#allocation5 + $0xf0] sm:$0xff]
          %v4838 = vld [vmem:[#allocation5 + $0xf8] sm:$0xff]
          %v4839 = vld [vmem:[#allocation5 + $0x100] sm:$0xff]
          %v4840 = vld [vmem:[#allocation5 + $0x108] sm:$0xff]
          %v4841 = vld [vmem:[#allocation5 + $0x110] sm:$0xff]
          %v4842 = vld [vmem:[#allocation5 + $0x118] sm:$0xff]
          %v4843 = vld [vmem:[%s242] sm:$0x1]
          %v4844 = vlaneseq
          %v4845 = vshrl.u32 %v4844, 7
          %v4846 = vsub.s32 0, %v4845
          %v4847 = vrot.slane %v4843, %v4846
          %v4848 = vmul.f32 %v4807, %v4847
          %v4849 = vmul.f32 %v4808, %v4847
          %v4850 = vmul.f32 %v4809, %v4847
          %v4851 = vmul.f32 %v4810, %v4847
          %v4852 = vmul.f32 %v4811, %v4847
          %v4853 = vmul.f32 %v4812, %v4847
          %v4854 = vmul.f32 %v4813, %v4847
          %v4855 = vmul.f32 %v4814, %v4847
          %v4856 = vmul.f32 %v4815, %v4847
          %v4857 = vmul.f32 %v4816, %v4847
          %v4858 = vmul.f32 %v4817, %v4847
          %v4859 = vmul.f32 %v4818, %v4847
          %v4860 = vmul.f32 %v4819, %v4847
          %v4861 = vmul.f32 %v4820, %v4847
          %v4862 = vmul.f32 %v4821, %v4847
          %v4863 = vmul.f32 %v4822, %v4847
          %v4864 = vmul.f32 %v4823, %v4847
          %v4865 = vmul.f32 %v4824, %v4847
          %v4866 = vmul.f32 %v4825, %v4847
          %v4867 = vmul.f32 %v4826, %v4847
          %v4868 = vmul.f32 %v4827, %v4847
          %v4869 = vmul.f32 %v4828, %v4847
          %v4870 = vmul.f32 %v4829, %v4847
          %v4871 = vmul.f32 %v4830, %v4847
          %v4872 = vmul.f32 %v4831, %v4847
          %v4873 = vmul.f32 %v4832, %v4847
          %v4874 = vmul.f32 %v4833, %v4847
          %v4875 = vmul.f32 %v4834, %v4847
          %v4876 = vmul.f32 %v4835, %v4847
          %v4877 = vmul.f32 %v4836, %v4847
          %v4878 = vmul.f32 %v4837, %v4847
          %v4879 = vmul.f32 %v4838, %v4847
          %v4880 = vmul.f32 %v4839, %v4847
          %v4881 = vmul.f32 %v4840, %v4847
          %v4882 = vmul.f32 %v4841, %v4847
          %v4883 = vmul.f32 %v4842, %v4847
          %v4884 = vld [vmem:[%s242 + $0x1] sm:$0x1]
          %v4885 = vlaneseq
          %v4886 = vshrl.u32 %v4885, 7
          %v4887 = vsub.s32 0, %v4886
          %v4888 = vrot.slane %v4884, %v4887
          %v4889 = vadd.f32 %v4848, %v4888
          %v4890 = vadd.f32 %v4849, %v4888
          %v4891 = vadd.f32 %v4850, %v4888
          %v4892 = vadd.f32 %v4851, %v4888
          %v4893 = vadd.f32 %v4852, %v4888
          %v4894 = vadd.f32 %v4853, %v4888
          %v4895 = vadd.f32 %v4854, %v4888
          %v4896 = vadd.f32 %v4855, %v4888
          %v4897 = vadd.f32 %v4856, %v4888
          %v4898 = vadd.f32 %v4857, %v4888
          %v4899 = vadd.f32 %v4858, %v4888
          %v4900 = vadd.f32 %v4859, %v4888
          %v4901 = vadd.f32 %v4860, %v4888
          %v4902 = vadd.f32 %v4861, %v4888
          %v4903 = vadd.f32 %v4862, %v4888
          %v4904 = vadd.f32 %v4863, %v4888
          %v4905 = vadd.f32 %v4864, %v4888
          %v4906 = vadd.f32 %v4865, %v4888
          %v4907 = vadd.f32 %v4866, %v4888
          %v4908 = vadd.f32 %v4867, %v4888
          %v4909 = vadd.f32 %v4868, %v4888
          %v4910 = vadd.f32 %v4869, %v4888
          %v4911 = vadd.f32 %v4870, %v4888
          %v4912 = vadd.f32 %v4871, %v4888
          %v4913 = vadd.f32 %v4872, %v4888
          %v4914 = vadd.f32 %v4873, %v4888
          %v4915 = vadd.f32 %v4874, %v4888
          %v4916 = vadd.f32 %v4875, %v4888
          %v4917 = vadd.f32 %v4876, %v4888
          %v4918 = vadd.f32 %v4877, %v4888
          %v4919 = vadd.f32 %v4878, %v4888
          %v4920 = vadd.f32 %v4879, %v4888
          %v4921 = vadd.f32 %v4880, %v4888
          %v4922 = vadd.f32 %v4881, %v4888
          %v4923 = vadd.f32 %v4882, %v4888
          %v4924 = vadd.f32 %v4883, %v4888
          %v4925 = vld [vmem:[%s3] sm:$0xff]
          %v4926 = vld [vmem:[%s3 + $0x8] sm:$0xff]
          %v4927 = vld [vmem:[%s3 + $0x10] sm:$0xff]
          %v4928 = vld [vmem:[%s3 + $0x18] sm:$0xff]
          %v4929 = vld [vmem:[%s3 + $0x20] sm:$0xff]
          %v4930 = vld [vmem:[%s3 + $0x28] sm:$0xff]
          %v4931 = vld [vmem:[%s3 + $0x30] sm:$0xff]
          %v4932 = vld [vmem:[%s3 + $0x38] sm:$0xff]
          %v4933 = vld [vmem:[%s3 + $0x40] sm:$0xff]
          %v4934 = vld [vmem:[%s3 + $0x48] sm:$0xff]
          %v4935 = vld [vmem:[%s3 + $0x50] sm:$0xff]
          %v4936 = vld [vmem:[%s3 + $0x58] sm:$0xff]
          %v4937 = vld [vmem:[%s3 + $0x60] sm:$0xff]
          %v4938 = vld [vmem:[%s3 + $0x68] sm:$0xff]
          %v4939 = vld [vmem:[%s3 + $0x70] sm:$0xff]
          %v4940 = vld [vmem:[%s3 + $0x78] sm:$0xff]
          %v4941 = vld [vmem:[%s3 + $0x80] sm:$0xff]
          %v4942 = vld [vmem:[%s3 + $0x88] sm:$0xff]
          %v4943 = vld [vmem:[%s3 + $0x90] sm:$0xff]
          %v4944 = vld [vmem:[%s3 + $0x98] sm:$0xff]
          %v4945 = vld [vmem:[%s3 + $0xa0] sm:$0xff]
          %v4946 = vld [vmem:[%s3 + $0xa8] sm:$0xff]
          %v4947 = vld [vmem:[%s3 + $0xb0] sm:$0xff]
          %v4948 = vld [vmem:[%s3 + $0xb8] sm:$0xff]
          %v4949 = vld [vmem:[%s3 + $0xc0] sm:$0xff]
          %v4950 = vld [vmem:[%s3 + $0xc8] sm:$0xff]
          %v4951 = vld [vmem:[%s3 + $0xd0] sm:$0xff]
          %v4952 = vld [vmem:[%s3 + $0xd8] sm:$0xff]
          %v4953 = vld [vmem:[%s3 + $0xe0] sm:$0xff]
          %v4954 = vld [vmem:[%s3 + $0xe8] sm:$0xff]
          %v4955 = vld [vmem:[%s3 + $0xf0] sm:$0xff]
          %v4956 = vld [vmem:[%s3 + $0xf8] sm:$0xff]
          %v4957 = vld [vmem:[%s3 + $0x100] sm:$0xff]
          %v4958 = vld [vmem:[%s3 + $0x108] sm:$0xff]
          %v4959 = vld [vmem:[%s3 + $0x110] sm:$0xff]
          %v4960 = vld [vmem:[%s3 + $0x118] sm:$0xff]
          %p4961 = scmp.lt.s32.totalorder %s26, 49
          // Predicated region
          $region53: #{dncnn_forward.1} parent=51 // pred_check
            %p4962 = pneg %p4961
          $region54: #{dncnn_forward.1} parent=51 // pred_check_branch
            %4964 = sbr.rel (%p4962) target = $region56
          $region55: #{dncnn_forward.1} parent=51 // pred_region
            %v4965 = vmax.f32 %v4889, 0.0
            %v4966 = vmax.f32 %v4890, 0.0
            %v4967 = vmax.f32 %v4891, 0.0
            %v4968 = vmax.f32 %v4892, 0.0
            %v4969 = vmax.f32 %v4893, 0.0
            %v4970 = vmax.f32 %v4894, 0.0
            %v4971 = vmax.f32 %v4895, 0.0
            %v4972 = vmax.f32 %v4896, 0.0
            %v4973 = vmax.f32 %v4897, 0.0
            %v4974 = vmax.f32 %v4898, 0.0
            %v4975 = vmax.f32 %v4899, 0.0
            %v4976 = vmax.f32 %v4900, 0.0
            %v4977 = vmax.f32 %v4901, 0.0
            %v4978 = vmax.f32 %v4902, 0.0
            %v4979 = vmax.f32 %v4903, 0.0
            %v4980 = vmax.f32 %v4904, 0.0
            %v4981 = vmax.f32 %v4905, 0.0
            %v4982 = vmax.f32 %v4906, 0.0
            %v4983 = vmax.f32 %v4907, 0.0
            %v4984 = vmax.f32 %v4908, 0.0
            %v4985 = vmax.f32 %v4909, 0.0
            %v4986 = vmax.f32 %v4910, 0.0
            %v4987 = vmax.f32 %v4911, 0.0
            %v4988 = vmax.f32 %v4912, 0.0
            %v4989 = vmax.f32 %v4913, 0.0
            %v4990 = vmax.f32 %v4914, 0.0
            %v4991 = vmax.f32 %v4915, 0.0
            %v4992 = vmax.f32 %v4916, 0.0
            %v4993 = vmax.f32 %v4917, 0.0
            %v4994 = vmax.f32 %v4918, 0.0
            %v4995 = vmax.f32 %v4919, 0.0
            %v4996 = vmax.f32 %v4920, 0.0
            %v4997 = vmax.f32 %v4921, 0.0
            %v4998 = vmax.f32 %v4922, 0.0
            %v4999 = vmax.f32 %v4923, 0.0
            %v5000 = vmax.f32 %v4924, 0.0
            %p5001 = scmp.lt.s32.totalorder %s26, 0
            %s5002 = ssub.s32 0, %s26
            %s5003 = scalar_select %p5001, %s5002, %s26
            %s5004 = sdiv.u32.pop %s5003, 3
            %s5005 = srem.u32.pop %s5003, 3
            %s5006 = ssub.s32 0, %s5005
            %s5007 = scalar_select %p5001, %s5006, %s5005
            %p5008 = scmp.ne.s32.totalorder %s5007, 0
            %p5009 = scmp.lt.s32.totalorder %s5007, 0
            %p5010 = pnand %p5009, %p5008
            %p5011 = pneg %p5010
            %s5012 = sadd.s32 %s5007, 3
            %s5013 = scalar_select %p5011, %s5012, %s5007
            %p5014 = scmp.eq.s32.totalorder %s5013, 0
            %p5015 = scmp.gt.s32.totalorder %s26, 0
            %p5016 = pnand %p5014, %p5015
            %p5017 = pneg %p5016
            %s5018 = scalar_select %p5017, 1, 0
            %s5019 = scvt.s32.f32 %s5018
            %v5020 = vld [vmem:[#allocation4] sm:$0xff]
            %v5021 = vld [vmem:[#allocation4 + $0x8] sm:$0xff]
            %v5022 = vld [vmem:[#allocation4 + $0x10] sm:$0xff]
            %v5023 = vld [vmem:[#allocation4 + $0x18] sm:$0xff]
            %v5024 = vld [vmem:[#allocation4 + $0x20] sm:$0xff]
            %v5025 = vld [vmem:[#allocation4 + $0x28] sm:$0xff]
            %v5026 = vld [vmem:[#allocation4 + $0x30] sm:$0xff]
            %v5027 = vld [vmem:[#allocation4 + $0x38] sm:$0xff]
            %v5028 = vld [vmem:[#allocation4 + $0x40] sm:$0xff]
            %v5029 = vld [vmem:[#allocation4 + $0x48] sm:$0xff]
            %v5030 = vld [vmem:[#allocation4 + $0x50] sm:$0xff]
            %v5031 = vld [vmem:[#allocation4 + $0x58] sm:$0xff]
            %v5032 = vld [vmem:[#allocation4 + $0x60] sm:$0xff]
            %v5033 = vld [vmem:[#allocation4 + $0x68] sm:$0xff]
            %v5034 = vld [vmem:[#allocation4 + $0x70] sm:$0xff]
            %v5035 = vld [vmem:[#allocation4 + $0x78] sm:$0xff]
            %v5036 = vld [vmem:[#allocation4 + $0x80] sm:$0xff]
            %v5037 = vld [vmem:[#allocation4 + $0x88] sm:$0xff]
            %v5038 = vld [vmem:[#allocation4 + $0x90] sm:$0xff]
            %v5039 = vld [vmem:[#allocation4 + $0x98] sm:$0xff]
            %v5040 = vld [vmem:[#allocation4 + $0xa0] sm:$0xff]
            %v5041 = vld [vmem:[#allocation4 + $0xa8] sm:$0xff]
            %v5042 = vld [vmem:[#allocation4 + $0xb0] sm:$0xff]
            %v5043 = vld [vmem:[#allocation4 + $0xb8] sm:$0xff]
            %v5044 = vld [vmem:[#allocation4 + $0xc0] sm:$0xff]
            %v5045 = vld [vmem:[#allocation4 + $0xc8] sm:$0xff]
            %v5046 = vld [vmem:[#allocation4 + $0xd0] sm:$0xff]
            %v5047 = vld [vmem:[#allocation4 + $0xd8] sm:$0xff]
            %v5048 = vld [vmem:[#allocation4 + $0xe0] sm:$0xff]
            %v5049 = vld [vmem:[#allocation4 + $0xe8] sm:$0xff]
            %v5050 = vld [vmem:[#allocation4 + $0xf0] sm:$0xff]
            %v5051 = vld [vmem:[#allocation4 + $0xf8] sm:$0xff]
            %v5052 = vld [vmem:[#allocation4 + $0x100] sm:$0xff]
            %v5053 = vld [vmem:[#allocation4 + $0x108] sm:$0xff]
            %v5054 = vld [vmem:[#allocation4 + $0x110] sm:$0xff]
            %v5055 = vld [vmem:[#allocation4 + $0x118] sm:$0xff]
            %v5056 = vstv %s5019
            %v5057 = vmul.f32 %v5056, %v5020
            %v5058 = vmul.f32 %v5056, %v5021
            %v5059 = vmul.f32 %v5056, %v5022
            %v5060 = vmul.f32 %v5056, %v5023
            %v5061 = vmul.f32 %v5056, %v5024
            %v5062 = vmul.f32 %v5056, %v5025
            %v5063 = vmul.f32 %v5056, %v5026
            %v5064 = vmul.f32 %v5056, %v5027
            %v5065 = vmul.f32 %v5056, %v5028
            %v5066 = vmul.f32 %v5056, %v5029
            %v5067 = vmul.f32 %v5056, %v5030
            %v5068 = vmul.f32 %v5056, %v5031
            %v5069 = vmul.f32 %v5056, %v5032
            %v5070 = vmul.f32 %v5056, %v5033
            %v5071 = vmul.f32 %v5056, %v5034
            %v5072 = vmul.f32 %v5056, %v5035
            %v5073 = vmul.f32 %v5056, %v5036
            %v5074 = vmul.f32 %v5056, %v5037
            %v5075 = vmul.f32 %v5056, %v5038
            %v5076 = vmul.f32 %v5056, %v5039
            %v5077 = vmul.f32 %v5056, %v5040
            %v5078 = vmul.f32 %v5056, %v5041
            %v5079 = vmul.f32 %v5056, %v5042
            %v5080 = vmul.f32 %v5056, %v5043
            %v5081 = vmul.f32 %v5056, %v5044
            %v5082 = vmul.f32 %v5056, %v5045
            %v5083 = vmul.f32 %v5056, %v5046
            %v5084 = vmul.f32 %v5056, %v5047
            %v5085 = vmul.f32 %v5056, %v5048
            %v5086 = vmul.f32 %v5056, %v5049
            %v5087 = vmul.f32 %v5056, %v5050
            %v5088 = vmul.f32 %v5056, %v5051
            %v5089 = vmul.f32 %v5056, %v5052
            %v5090 = vmul.f32 %v5056, %v5053
            %v5091 = vmul.f32 %v5056, %v5054
            %v5092 = vmul.f32 %v5056, %v5055
            %v5093 = vadd.f32 %v4965, %v5057
            %v5094 = vadd.f32 %v4966, %v5058
            %v5095 = vadd.f32 %v4967, %v5059
            %v5096 = vadd.f32 %v4968, %v5060
            %v5097 = vadd.f32 %v4969, %v5061
            %v5098 = vadd.f32 %v4970, %v5062
            %v5099 = vadd.f32 %v4971, %v5063
            %v5100 = vadd.f32 %v4972, %v5064
            %v5101 = vadd.f32 %v4973, %v5065
            %v5102 = vadd.f32 %v4974, %v5066
            %v5103 = vadd.f32 %v4975, %v5067
            %v5104 = vadd.f32 %v4976, %v5068
            %v5105 = vadd.f32 %v4977, %v5069
            %v5106 = vadd.f32 %v4978, %v5070
            %v5107 = vadd.f32 %v4979, %v5071
            %v5108 = vadd.f32 %v4980, %v5072
            %v5109 = vadd.f32 %v4981, %v5073
            %v5110 = vadd.f32 %v4982, %v5074
            %v5111 = vadd.f32 %v4983, %v5075
            %v5112 = vadd.f32 %v4984, %v5076
            %v5113 = vadd.f32 %v4985, %v5077
            %v5114 = vadd.f32 %v4986, %v5078
            %v5115 = vadd.f32 %v4987, %v5079
            %v5116 = vadd.f32 %v4988, %v5080
            %v5117 = vadd.f32 %v4989, %v5081
            %v5118 = vadd.f32 %v4990, %v5082
            %v5119 = vadd.f32 %v4991, %v5083
            %v5120 = vadd.f32 %v4992, %v5084
            %v5121 = vadd.f32 %v4993, %v5085
            %v5122 = vadd.f32 %v4994, %v5086
            %v5123 = vadd.f32 %v4995, %v5087
            %v5124 = vadd.f32 %v4996, %v5088
            %v5125 = vadd.f32 %v4997, %v5089
            %v5126 = vadd.f32 %v4998, %v5090
            %v5127 = vadd.f32 %v4999, %v5091
            %v5128 = vadd.f32 %v5000, %v5092
            %5130 = vset.pattern.permute.xlu0 0
            %5131 = vperm.xlu0 %5130, %v4925
            %v5132 = vpop.permute.xlu0 %5131
            %5135 = vset.pattern.permute.xlu0 0
            %5136 = vperm.xlu0 %5135, %v4926
            %v5137 = vpop.permute.xlu0 %5136
            %5140 = vset.pattern.permute.xlu0 0
            %5141 = vperm.xlu0 %5140, %v4927
            %v5142 = vpop.permute.xlu0 %5141
            %5145 = vset.pattern.permute.xlu0 0
            %5146 = vperm.xlu0 %5145, %v4928
            %v5147 = vpop.permute.xlu0 %5146
            %5150 = vset.pattern.permute.xlu0 0
            %5151 = vperm.xlu0 %5150, %v4929
            %v5152 = vpop.permute.xlu0 %5151
            %5155 = vset.pattern.permute.xlu0 0
            %5156 = vperm.xlu0 %5155, %v4930
            %v5157 = vpop.permute.xlu0 %5156
            %5160 = vset.pattern.permute.xlu0 0
            %5161 = vperm.xlu0 %5160, %v4931
            %v5162 = vpop.permute.xlu0 %5161
            %5165 = vset.pattern.permute.xlu0 0
            %5166 = vperm.xlu0 %5165, %v4932
            %v5167 = vpop.permute.xlu0 %5166
            %5170 = vset.pattern.permute.xlu0 0
            %5171 = vperm.xlu0 %5170, %v4933
            %v5172 = vpop.permute.xlu0 %5171
            %5175 = vset.pattern.permute.xlu0 0
            %5176 = vperm.xlu0 %5175, %v4934
            %v5177 = vpop.permute.xlu0 %5176
            %5180 = vset.pattern.permute.xlu0 0
            %5181 = vperm.xlu0 %5180, %v4935
            %v5182 = vpop.permute.xlu0 %5181
            %5185 = vset.pattern.permute.xlu0 0
            %5186 = vperm.xlu0 %5185, %v4936
            %v5187 = vpop.permute.xlu0 %5186
            %5190 = vset.pattern.permute.xlu0 0
            %5191 = vperm.xlu0 %5190, %v4937
            %v5192 = vpop.permute.xlu0 %5191
            %5195 = vset.pattern.permute.xlu0 0
            %5196 = vperm.xlu0 %5195, %v4938
            %v5197 = vpop.permute.xlu0 %5196
            %5200 = vset.pattern.permute.xlu0 0
            %5201 = vperm.xlu0 %5200, %v4939
            %v5202 = vpop.permute.xlu0 %5201
            %5205 = vset.pattern.permute.xlu0 0
            %5206 = vperm.xlu0 %5205, %v4940
            %v5207 = vpop.permute.xlu0 %5206
            %5210 = vset.pattern.permute.xlu0 0
            %5211 = vperm.xlu0 %5210, %v4941
            %v5212 = vpop.permute.xlu0 %5211
            %5215 = vset.pattern.permute.xlu0 0
            %5216 = vperm.xlu0 %5215, %v4942
            %v5217 = vpop.permute.xlu0 %5216
            %5220 = vset.pattern.permute.xlu0 0
            %5221 = vperm.xlu0 %5220, %v4943
            %v5222 = vpop.permute.xlu0 %5221
            %5225 = vset.pattern.permute.xlu0 0
            %5226 = vperm.xlu0 %5225, %v4944
            %v5227 = vpop.permute.xlu0 %5226
            %5230 = vset.pattern.permute.xlu0 0
            %5231 = vperm.xlu0 %5230, %v4945
            %v5232 = vpop.permute.xlu0 %5231
            %5235 = vset.pattern.permute.xlu0 0
            %5236 = vperm.xlu0 %5235, %v4946
            %v5237 = vpop.permute.xlu0 %5236
            %5240 = vset.pattern.permute.xlu0 0
            %5241 = vperm.xlu0 %5240, %v4947
            %v5242 = vpop.permute.xlu0 %5241
            %5245 = vset.pattern.permute.xlu0 0
            %5246 = vperm.xlu0 %5245, %v4948
            %v5247 = vpop.permute.xlu0 %5246
            %5250 = vset.pattern.permute.xlu0 0
            %5251 = vperm.xlu0 %5250, %v4949
            %v5252 = vpop.permute.xlu0 %5251
            %5255 = vset.pattern.permute.xlu0 0
            %5256 = vperm.xlu0 %5255, %v4950
            %v5257 = vpop.permute.xlu0 %5256
            %5260 = vset.pattern.permute.xlu0 0
            %5261 = vperm.xlu0 %5260, %v4951
            %v5262 = vpop.permute.xlu0 %5261
            %5265 = vset.pattern.permute.xlu0 0
            %5266 = vperm.xlu0 %5265, %v4952
            %v5267 = vpop.permute.xlu0 %5266
            %5270 = vset.pattern.permute.xlu0 0
            %5271 = vperm.xlu0 %5270, %v4953
            %v5272 = vpop.permute.xlu0 %5271
            %5275 = vset.pattern.permute.xlu0 0
            %5276 = vperm.xlu0 %5275, %v4954
            %v5277 = vpop.permute.xlu0 %5276
            %5280 = vset.pattern.permute.xlu0 0
            %5281 = vperm.xlu0 %5280, %v4955
            %v5282 = vpop.permute.xlu0 %5281
            %5285 = vset.pattern.permute.xlu0 0
            %5286 = vperm.xlu0 %5285, %v4956
            %v5287 = vpop.permute.xlu0 %5286
            %5290 = vset.pattern.permute.xlu0 0
            %5291 = vperm.xlu0 %5290, %v4957
            %v5292 = vpop.permute.xlu0 %5291
            %5295 = vset.pattern.permute.xlu0 0
            %5296 = vperm.xlu0 %5295, %v4958
            %v5297 = vpop.permute.xlu0 %5296
            %5300 = vset.pattern.permute.xlu0 0
            %5301 = vperm.xlu0 %5300, %v4959
            %v5302 = vpop.permute.xlu0 %5301
            %5305 = vset.pattern.permute.xlu0 0
            %5306 = vperm.xlu0 %5305, %v4960
            %v5307 = vpop.permute.xlu0 %5306
            %v5309 = vmul.f32 %v5093, %v5132
            %v5310 = vmul.f32 %v5094, %v5137
            %v5311 = vmul.f32 %v5095, %v5142
            %v5312 = vmul.f32 %v5096, %v5147
            %v5313 = vmul.f32 %v5097, %v5152
            %v5314 = vmul.f32 %v5098, %v5157
            %v5315 = vmul.f32 %v5099, %v5162
            %v5316 = vmul.f32 %v5100, %v5167
            %v5317 = vmul.f32 %v5101, %v5172
            %v5318 = vmul.f32 %v5102, %v5177
            %v5319 = vmul.f32 %v5103, %v5182
            %v5320 = vmul.f32 %v5104, %v5187
            %v5321 = vmul.f32 %v5105, %v5192
            %v5322 = vmul.f32 %v5106, %v5197
            %v5323 = vmul.f32 %v5107, %v5202
            %v5324 = vmul.f32 %v5108, %v5207
            %v5325 = vmul.f32 %v5109, %v5212
            %v5326 = vmul.f32 %v5110, %v5217
            %v5327 = vmul.f32 %v5111, %v5222
            %v5328 = vmul.f32 %v5112, %v5227
            %v5329 = vmul.f32 %v5113, %v5232
            %v5330 = vmul.f32 %v5114, %v5237
            %v5331 = vmul.f32 %v5115, %v5242
            %v5332 = vmul.f32 %v5116, %v5247
            %v5333 = vmul.f32 %v5117, %v5252
            %v5334 = vmul.f32 %v5118, %v5257
            %v5335 = vmul.f32 %v5119, %v5262
            %v5336 = vmul.f32 %v5120, %v5267
            %v5337 = vmul.f32 %v5121, %v5272
            %v5338 = vmul.f32 %v5122, %v5277
            %v5339 = vmul.f32 %v5123, %v5282
            %v5340 = vmul.f32 %v5124, %v5287
            %v5341 = vmul.f32 %v5125, %v5292
            %v5342 = vmul.f32 %v5126, %v5297
            %v5343 = vmul.f32 %v5127, %v5302
            %v5344 = vmul.f32 %v5128, %v5307
            // Predicated region
            $region57: #{dncnn_forward.1} parent=55 // pred_check
              %p5345 = pneg %p5014
            $region58: #{dncnn_forward.1} parent=55 // pred_check_branch
              %5347 = sbr.rel (%p5345) target = $region60
            $region59: #{dncnn_forward.1} parent=55 // pred_region
              %5348 = vst [vmem:[#allocation4] sm:$0xff] %v5309
              %5349 = vst [vmem:[#allocation4 + $0x8] sm:$0xff] %v5310
              %5350 = vst [vmem:[#allocation4 + $0x10] sm:$0xff] %v5311
              %5351 = vst [vmem:[#allocation4 + $0x18] sm:$0xff] %v5312
              %5352 = vst [vmem:[#allocation4 + $0x20] sm:$0xff] %v5313
              %5353 = vst [vmem:[#allocation4 + $0x28] sm:$0xff] %v5314
              %5354 = vst [vmem:[#allocation4 + $0x30] sm:$0xff] %v5315
              %5355 = vst [vmem:[#allocation4 + $0x38] sm:$0xff] %v5316
              %5356 = vst [vmem:[#allocation4 + $0x40] sm:$0xff] %v5317
              %5357 = vst [vmem:[#allocation4 + $0x48] sm:$0xff] %v5318
              %5358 = vst [vmem:[#allocation4 + $0x50] sm:$0xff] %v5319
              %5359 = vst [vmem:[#allocation4 + $0x58] sm:$0xff] %v5320
              %5360 = vst [vmem:[#allocation4 + $0x60] sm:$0xff] %v5321
              %5361 = vst [vmem:[#allocation4 + $0x68] sm:$0xff] %v5322
              %5362 = vst [vmem:[#allocation4 + $0x70] sm:$0xff] %v5323
              %5363 = vst [vmem:[#allocation4 + $0x78] sm:$0xff] %v5324
              %5364 = vst [vmem:[#allocation4 + $0x80] sm:$0xff] %v5325
              %5365 = vst [vmem:[#allocation4 + $0x88] sm:$0xff] %v5326
              %5366 = vst [vmem:[#allocation4 + $0x90] sm:$0xff] %v5327
              %5367 = vst [vmem:[#allocation4 + $0x98] sm:$0xff] %v5328
              %5368 = vst [vmem:[#allocation4 + $0xa0] sm:$0xff] %v5329
              %5369 = vst [vmem:[#allocation4 + $0xa8] sm:$0xff] %v5330
              %5370 = vst [vmem:[#allocation4 + $0xb0] sm:$0xff] %v5331
              %5371 = vst [vmem:[#allocation4 + $0xb8] sm:$0xff] %v5332
              %5372 = vst [vmem:[#allocation4 + $0xc0] sm:$0xff] %v5333
              %5373 = vst [vmem:[#allocation4 + $0xc8] sm:$0xff] %v5334
              %5374 = vst [vmem:[#allocation4 + $0xd0] sm:$0xff] %v5335
              %5375 = vst [vmem:[#allocation4 + $0xd8] sm:$0xff] %v5336
              %5376 = vst [vmem:[#allocation4 + $0xe0] sm:$0xff] %v5337
              %5377 = vst [vmem:[#allocation4 + $0xe8] sm:$0xff] %v5338
              %5378 = vst [vmem:[#allocation4 + $0xf0] sm:$0xff] %v5339
              %5379 = vst [vmem:[#allocation4 + $0xf8] sm:$0xff] %v5340
              %5380 = vst [vmem:[#allocation4 + $0x100] sm:$0xff] %v5341
              %5381 = vst [vmem:[#allocation4 + $0x108] sm:$0xff] %v5342
              %5382 = vst [vmem:[#allocation4 + $0x110] sm:$0xff] %v5343
              %5383 = vst [vmem:[#allocation4 + $0x118] sm:$0xff] %v5344
            $region60: #{dncnn_forward.1} parent=55 // pred_fallthru
              _
            %v5384 = vpack.c.bf16 %v5310, %v5309
            %v5385 = vpack.c.bf16 %v5312, %v5311
            %v5386 = vpack.c.bf16 %v5314, %v5313
            %v5387 = vpack.c.bf16 %v5316, %v5315
            %v5388 = vpack.c.bf16 %v5318, %v5317
            %v5389 = vpack.c.bf16 %v5320, %v5319
            %v5390 = vpack.c.bf16 %v5322, %v5321
            %v5391 = vpack.c.bf16 %v5324, %v5323
            %v5392 = vpack.c.bf16 %v5326, %v5325
            %v5393 = vpack.c.bf16 %v5328, %v5327
            %v5394 = vpack.c.bf16 %v5330, %v5329
            %v5395 = vpack.c.bf16 %v5332, %v5331
            %v5396 = vpack.c.bf16 %v5334, %v5333
            %v5397 = vpack.c.bf16 %v5336, %v5335
            %v5398 = vpack.c.bf16 %v5338, %v5337
            %v5399 = vpack.c.bf16 %v5340, %v5339
            %v5400 = vpack.c.bf16 %v5342, %v5341
            %v5401 = vpack.c.bf16 %v5344, %v5343
            %v5420 = vunpack.c.l.b16 %v5384
            %v5421 = vunpack.c.h.b16 %v5384
            %v5422 = vunpack.c.l.b16 %v5385
            %v5423 = vunpack.c.h.b16 %v5385
            %v5424 = vunpack.c.l.b16 %v5386
            %v5425 = vunpack.c.h.b16 %v5386
            %v5426 = vunpack.c.l.b16 %v5387
            %v5427 = vunpack.c.h.b16 %v5387
            %v5428 = vunpack.c.l.b16 %v5388
            %v5429 = vunpack.c.h.b16 %v5388
            %v5430 = vunpack.c.l.b16 %v5389
            %v5431 = vunpack.c.h.b16 %v5389
            %v5432 = vunpack.c.l.b16 %v5390
            %v5433 = vunpack.c.h.b16 %v5390
            %v5434 = vunpack.c.l.b16 %v5391
            %v5435 = vunpack.c.h.b16 %v5391
            %v5436 = vunpack.c.l.b16 %v5392
            %v5437 = vunpack.c.h.b16 %v5392
            %v5438 = vunpack.c.l.b16 %v5393
            %v5439 = vunpack.c.h.b16 %v5393
            %v5440 = vunpack.c.l.b16 %v5394
            %v5441 = vunpack.c.h.b16 %v5394
            %v5442 = vunpack.c.l.b16 %v5395
            %v5443 = vunpack.c.h.b16 %v5395
            %v5444 = vunpack.c.l.b16 %v5396
            %v5445 = vunpack.c.h.b16 %v5396
            %v5446 = vunpack.c.l.b16 %v5397
            %v5447 = vunpack.c.h.b16 %v5397
            %v5448 = vunpack.c.l.b16 %v5398
            %v5449 = vunpack.c.h.b16 %v5398
            %v5450 = vunpack.c.l.b16 %v5399
            %v5451 = vunpack.c.h.b16 %v5399
            %v5452 = vunpack.c.l.b16 %v5400
            %v5453 = vunpack.c.h.b16 %v5400
            %v5454 = vunpack.c.l.b16 %v5401
            %v5455 = vunpack.c.h.b16 %v5401
            %v5456 = vpack.c.b16 %v5420, %v5420
            %v5457 = vpack.c.b16 %v5421, %v5421
            %v5458 = vpack.c.b16 %v5422, %v5422
            %v5459 = vpack.c.b16 %v5423, %v5423
            %v5460 = vpack.c.b16 %v5424, %v5424
            %v5461 = vpack.c.b16 %v5425, %v5425
            %v5462 = vpack.c.b16 %v5426, %v5426
            %v5463 = vpack.c.b16 %v5427, %v5427
            %v5464 = vpack.c.b16 %v5428, %v5428
            %v5465 = vpack.c.b16 %v5429, %v5429
            %v5466 = vpack.c.b16 %v5430, %v5430
            %v5467 = vpack.c.b16 %v5431, %v5431
            %v5468 = vpack.c.b16 %v5432, %v5432
            %v5469 = vpack.c.b16 %v5433, %v5433
            %v5470 = vpack.c.b16 %v5434, %v5434
            %v5471 = vpack.c.b16 %v5435, %v5435
            %v5472 = vpack.c.b16 %v5436, %v5436
            %v5473 = vpack.c.b16 %v5437, %v5437
            %v5474 = vpack.c.b16 %v5438, %v5438
            %v5475 = vpack.c.b16 %v5439, %v5439
            %v5476 = vpack.c.b16 %v5440, %v5440
            %v5477 = vpack.c.b16 %v5441, %v5441
            %v5478 = vpack.c.b16 %v5442, %v5442
            %v5479 = vpack.c.b16 %v5443, %v5443
            %v5480 = vpack.c.b16 %v5444, %v5444
            %v5481 = vpack.c.b16 %v5445, %v5445
            %v5482 = vpack.c.b16 %v5446, %v5446
            %v5483 = vpack.c.b16 %v5447, %v5447
            %v5484 = vpack.c.b16 %v5448, %v5448
            %v5485 = vpack.c.b16 %v5449, %v5449
            %v5486 = vpack.c.b16 %v5450, %v5450
            %v5487 = vpack.c.b16 %v5451, %v5451
            %v5488 = vpack.c.b16 %v5452, %v5452
            %v5489 = vpack.c.b16 %v5453, %v5453
            %v5490 = vpack.c.b16 %v5454, %v5454
            %v5491 = vpack.c.b16 %v5455, %v5455
            %vm5492 = vcmask 1040384
            %vm5493 = vcmask 1044484
            %vm5494 = vmor %vm5492, %vm5493
            %v5495 = vrot.slane %v5456, 7
            %v5496 = vrot.slane %v5495, 4
            %v5497 = vrot.slane %v5457, 7
            %v5498 = vsel %vm5494, %v5496, %v5497
            %v5499 = vrot.slane %v5497, 4
            %v5500 = vrot.slane %v5458, 7
            %v5501 = vsel %vm5494, %v5499, %v5500
            %v5502 = vrot.slane %v5500, 4
            %v5503 = vrot.slane %v5459, 7
            %v5504 = vsel %vm5494, %v5502, %v5503
            %v5505 = vrot.slane %v5503, 4
            %v5506 = vrot.slane %v5460, 7
            %v5507 = vsel %vm5494, %v5505, %v5506
            %v5508 = vrot.slane %v5506, 4
            %v5509 = vrot.slane %v5461, 7
            %v5510 = vsel %vm5494, %v5508, %v5509
            %v5511 = vrot.slane %v5509, 4
            %v5512 = vrot.slane %v5462, 7
            %v5513 = vsel %vm5494, %v5511, %v5512
            %v5514 = vrot.slane %v5512, 4
            %v5515 = vrot.slane %v5463, 7
            %v5516 = vsel %vm5494, %v5514, %v5515
            %v5517 = vrot.slane %v5515, 4
            %v5518 = vrot.slane %v5464, 7
            %v5519 = vsel %vm5494, %v5517, %v5518
            %v5520 = vrot.slane %v5518, 4
            %v5521 = vrot.slane %v5465, 7
            %v5522 = vsel %vm5494, %v5520, %v5521
            %v5523 = vrot.slane %v5521, 4
            %v5524 = vrot.slane %v5466, 7
            %v5525 = vsel %vm5494, %v5523, %v5524
            %v5526 = vrot.slane %v5524, 4
            %v5527 = vrot.slane %v5467, 7
            %v5528 = vsel %vm5494, %v5526, %v5527
            %v5529 = vrot.slane %v5527, 4
            %v5530 = vrot.slane %v5468, 7
            %v5531 = vsel %vm5494, %v5529, %v5530
            %v5532 = vrot.slane %v5530, 4
            %v5533 = vrot.slane %v5469, 7
            %v5534 = vsel %vm5494, %v5532, %v5533
            %v5535 = vrot.slane %v5533, 4
            %v5536 = vrot.slane %v5470, 7
            %v5537 = vsel %vm5494, %v5535, %v5536
            %v5538 = vrot.slane %v5536, 4
            %v5539 = vrot.slane %v5471, 7
            %v5540 = vsel %vm5494, %v5538, %v5539
            %v5541 = vrot.slane %v5539, 4
            %v5542 = vrot.slane %v5472, 7
            %v5543 = vsel %vm5494, %v5541, %v5542
            %v5544 = vrot.slane %v5542, 4
            %v5545 = vrot.slane %v5473, 7
            %v5546 = vsel %vm5494, %v5544, %v5545
            %v5547 = vrot.slane %v5545, 4
            %v5548 = vrot.slane %v5474, 7
            %v5549 = vsel %vm5494, %v5547, %v5548
            %v5550 = vrot.slane %v5548, 4
            %v5551 = vrot.slane %v5475, 7
            %v5552 = vsel %vm5494, %v5550, %v5551
            %v5553 = vrot.slane %v5551, 4
            %v5554 = vrot.slane %v5476, 7
            %v5555 = vsel %vm5494, %v5553, %v5554
            %v5556 = vrot.slane %v5554, 4
            %v5557 = vrot.slane %v5477, 7
            %v5558 = vsel %vm5494, %v5556, %v5557
            %v5559 = vrot.slane %v5557, 4
            %v5560 = vrot.slane %v5478, 7
            %v5561 = vsel %vm5494, %v5559, %v5560
            %v5562 = vrot.slane %v5560, 4
            %v5563 = vrot.slane %v5479, 7
            %v5564 = vsel %vm5494, %v5562, %v5563
            %v5565 = vrot.slane %v5563, 4
            %v5566 = vrot.slane %v5480, 7
            %v5567 = vsel %vm5494, %v5565, %v5566
            %v5568 = vrot.slane %v5566, 4
            %v5569 = vrot.slane %v5481, 7
            %v5570 = vsel %vm5494, %v5568, %v5569
            %v5571 = vrot.slane %v5569, 4
            %v5572 = vrot.slane %v5482, 7
            %v5573 = vsel %vm5494, %v5571, %v5572
            %v5574 = vrot.slane %v5572, 4
            %v5575 = vrot.slane %v5483, 7
            %v5576 = vsel %vm5494, %v5574, %v5575
            %v5577 = vrot.slane %v5575, 4
            %v5578 = vrot.slane %v5484, 7
            %v5579 = vsel %vm5494, %v5577, %v5578
            %v5580 = vrot.slane %v5578, 4
            %v5581 = vrot.slane %v5485, 7
            %v5582 = vsel %vm5494, %v5580, %v5581
            %v5583 = vrot.slane %v5581, 4
            %v5584 = vrot.slane %v5486, 7
            %v5585 = vsel %vm5494, %v5583, %v5584
            %v5586 = vrot.slane %v5584, 4
            %v5587 = vrot.slane %v5487, 7
            %v5588 = vsel %vm5494, %v5586, %v5587
            %v5589 = vrot.slane %v5587, 4
            %v5590 = vrot.slane %v5488, 7
            %v5591 = vsel %vm5494, %v5589, %v5590
            %v5592 = vrot.slane %v5590, 4
            %v5593 = vrot.slane %v5489, 7
            %v5594 = vsel %vm5494, %v5592, %v5593
            %v5595 = vrot.slane %v5593, 4
            %v5596 = vrot.slane %v5490, 7
            %v5597 = vsel %vm5494, %v5595, %v5596
            %v5598 = vrot.slane %v5596, 4
            %v5599 = vrot.slane %v5491, 7
            %v5600 = vsel %vm5494, %v5598, %v5599
            %v5601 = vrot.slane %v5599, 4
            %5639 = vst [vmem:[#allocation3 + $0xc] sm:$0xe] %v5495
            %5640 = vst [vmem:[#allocation3 + $0x10] sm:$0xf] %v5498
            %5641 = vst [vmem:[#allocation3 + $0x14] sm:$0xf] %v5501
            %5642 = vst [vmem:[#allocation3 + $0x18] sm:$0xf] %v5504
            %5643 = vst [vmem:[#allocation3 + $0x1c] sm:$0xf] %v5507
            %5644 = vst [vmem:[#allocation3 + $0x20] sm:$0xf] %v5510
            %5645 = vst [vmem:[#allocation3 + $0x24] sm:$0xf] %v5513
            %5646 = vst [vmem:[#allocation3 + $0x28] sm:$0xf] %v5516
            %5647 = vst [vmem:[#allocation3 + $0x2c] sm:$0xf] %v5519
            %5648 = vst [vmem:[#allocation3 + $0x30] sm:$0xf] %v5522
            %5649 = vst [vmem:[#allocation3 + $0x34] sm:$0xf] %v5525
            %5650 = vst [vmem:[#allocation3 + $0x38] sm:$0xf] %v5528
            %5651 = vst [vmem:[#allocation3 + $0x3c] sm:$0xf] %v5531
            %5652 = vst [vmem:[#allocation3 + $0x40] sm:$0xf] %v5534
            %5653 = vst [vmem:[#allocation3 + $0x44] sm:$0xf] %v5537
            %5654 = vst [vmem:[#allocation3 + $0x48] sm:$0xf] %v5540
            %5655 = vst [vmem:[#allocation3 + $0x4c] sm:$0xf] %v5543
            %5656 = vst [vmem:[#allocation3 + $0x50] sm:$0xf] %v5546
            %5657 = vst [vmem:[#allocation3 + $0x54] sm:$0xf] %v5549
            %5658 = vst [vmem:[#allocation3 + $0x58] sm:$0xf] %v5552
            %5659 = vst [vmem:[#allocation3 + $0x5c] sm:$0xf] %v5555
            %5660 = vst [vmem:[#allocation3 + $0x60] sm:$0xf] %v5558
            %5661 = vst [vmem:[#allocation3 + $0x64] sm:$0xf] %v5561
            %5662 = vst [vmem:[#allocation3 + $0x68] sm:$0xf] %v5564
            %5663 = vst [vmem:[#allocation3 + $0x6c] sm:$0xf] %v5567
            %5664 = vst [vmem:[#allocation3 + $0x70] sm:$0xf] %v5570
            %5665 = vst [vmem:[#allocation3 + $0x74] sm:$0xf] %v5573
            %5666 = vst [vmem:[#allocation3 + $0x78] sm:$0xf] %v5576
            %5667 = vst [vmem:[#allocation3 + $0x7c] sm:$0xf] %v5579
            %5668 = vst [vmem:[#allocation3 + $0x80] sm:$0xf] %v5582
            %5669 = vst [vmem:[#allocation3 + $0x84] sm:$0xf] %v5585
            %5670 = vst [vmem:[#allocation3 + $0x88] sm:$0xf] %v5588
            %5671 = vst [vmem:[#allocation3 + $0x8c] sm:$0xf] %v5591
            %5672 = vst [vmem:[#allocation3 + $0x90] sm:$0xf] %v5594
            %5673 = vst [vmem:[#allocation3 + $0x94] sm:$0xf] %v5597
            %5674 = vst [vmem:[#allocation3 + $0x98] sm:$0xf] %v5600
            %5675 = vst [vmem:[#allocation3 + $0x9c] sm:$0x1] %v5601
          $region56: #{dncnn_forward.1} parent=51 // pred_fallthru
            _
          %p5676 = scmp.eq.s32.totalorder %s26, 49
          // Predicated region
          $region61: #{dncnn_forward.1} parent=51 // pred_check
            %p5677 = pneg %p5676
          $region62: #{dncnn_forward.1} parent=51 // pred_check_branch
            %5679 = sbr.rel (%p5677) target = $region64
          $region63: #{dncnn_forward.1} parent=51 // pred_region
            %v5680 = vtanh.pop %v4889
            %v5681 = vtanh.pop %v4890
            %v5682 = vtanh.pop %v4891
            %v5683 = vtanh.pop %v4892
            %v5684 = vtanh.pop %v4893
            %v5685 = vtanh.pop %v4894
            %v5686 = vtanh.pop %v4895
            %v5687 = vtanh.pop %v4896
            %v5688 = vtanh.pop %v4897
            %v5689 = vtanh.pop %v4898
            %v5690 = vtanh.pop %v4899
            %v5691 = vtanh.pop %v4900
            %v5692 = vtanh.pop %v4901
            %v5693 = vtanh.pop %v4902
            %v5694 = vtanh.pop %v4903
            %v5695 = vtanh.pop %v4904
            %v5696 = vtanh.pop %v4905
            %v5697 = vtanh.pop %v4906
            %v5698 = vtanh.pop %v4907
            %v5699 = vtanh.pop %v4908
            %v5700 = vtanh.pop %v4909
            %v5701 = vtanh.pop %v4910
            %v5702 = vtanh.pop %v4911
            %v5703 = vtanh.pop %v4912
            %v5704 = vtanh.pop %v4913
            %v5705 = vtanh.pop %v4914
            %v5706 = vtanh.pop %v4915
            %v5707 = vtanh.pop %v4916
            %v5708 = vtanh.pop %v4917
            %v5709 = vtanh.pop %v4918
            %v5710 = vtanh.pop %v4919
            %v5711 = vtanh.pop %v4920
            %v5712 = vtanh.pop %v4921
            %v5713 = vtanh.pop %v4922
            %v5714 = vtanh.pop %v4923
            %v5715 = vtanh.pop %v4924
            %5717 = vset.pattern.permute.xlu0 0
            %5718 = vperm.xlu0 %5717, %v4925
            %v5719 = vpop.permute.xlu0 %5718
            %5722 = vset.pattern.permute.xlu0 0
            %5723 = vperm.xlu0 %5722, %v4926
            %v5724 = vpop.permute.xlu0 %5723
            %5727 = vset.pattern.permute.xlu0 0
            %5728 = vperm.xlu0 %5727, %v4927
            %v5729 = vpop.permute.xlu0 %5728
            %5732 = vset.pattern.permute.xlu0 0
            %5733 = vperm.xlu0 %5732, %v4928
            %v5734 = vpop.permute.xlu0 %5733
            %5737 = vset.pattern.permute.xlu0 0
            %5738 = vperm.xlu0 %5737, %v4929
            %v5739 = vpop.permute.xlu0 %5738
            %5742 = vset.pattern.permute.xlu0 0
            %5743 = vperm.xlu0 %5742, %v4930
            %v5744 = vpop.permute.xlu0 %5743
            %5747 = vset.pattern.permute.xlu0 0
            %5748 = vperm.xlu0 %5747, %v4931
            %v5749 = vpop.permute.xlu0 %5748
            %5752 = vset.pattern.permute.xlu0 0
            %5753 = vperm.xlu0 %5752, %v4932
            %v5754 = vpop.permute.xlu0 %5753
            %5757 = vset.pattern.permute.xlu0 0
            %5758 = vperm.xlu0 %5757, %v4933
            %v5759 = vpop.permute.xlu0 %5758
            %5762 = vset.pattern.permute.xlu0 0
            %5763 = vperm.xlu0 %5762, %v4934
            %v5764 = vpop.permute.xlu0 %5763
            %5767 = vset.pattern.permute.xlu0 0
            %5768 = vperm.xlu0 %5767, %v4935
            %v5769 = vpop.permute.xlu0 %5768
            %5772 = vset.pattern.permute.xlu0 0
            %5773 = vperm.xlu0 %5772, %v4936
            %v5774 = vpop.permute.xlu0 %5773
            %5777 = vset.pattern.permute.xlu0 0
            %5778 = vperm.xlu0 %5777, %v4937
            %v5779 = vpop.permute.xlu0 %5778
            %5782 = vset.pattern.permute.xlu0 0
            %5783 = vperm.xlu0 %5782, %v4938
            %v5784 = vpop.permute.xlu0 %5783
            %5787 = vset.pattern.permute.xlu0 0
            %5788 = vperm.xlu0 %5787, %v4939
            %v5789 = vpop.permute.xlu0 %5788
            %5792 = vset.pattern.permute.xlu0 0
            %5793 = vperm.xlu0 %5792, %v4940
            %v5794 = vpop.permute.xlu0 %5793
            %5797 = vset.pattern.permute.xlu0 0
            %5798 = vperm.xlu0 %5797, %v4941
            %v5799 = vpop.permute.xlu0 %5798
            %5802 = vset.pattern.permute.xlu0 0
            %5803 = vperm.xlu0 %5802, %v4942
            %v5804 = vpop.permute.xlu0 %5803
            %5807 = vset.pattern.permute.xlu0 0
            %5808 = vperm.xlu0 %5807, %v4943
            %v5809 = vpop.permute.xlu0 %5808
            %5812 = vset.pattern.permute.xlu0 0
            %5813 = vperm.xlu0 %5812, %v4944
            %v5814 = vpop.permute.xlu0 %5813
            %5817 = vset.pattern.permute.xlu0 0
            %5818 = vperm.xlu0 %5817, %v4945
            %v5819 = vpop.permute.xlu0 %5818
            %5822 = vset.pattern.permute.xlu0 0
            %5823 = vperm.xlu0 %5822, %v4946
            %v5824 = vpop.permute.xlu0 %5823
            %5827 = vset.pattern.permute.xlu0 0
            %5828 = vperm.xlu0 %5827, %v4947
            %v5829 = vpop.permute.xlu0 %5828
            %5832 = vset.pattern.permute.xlu0 0
            %5833 = vperm.xlu0 %5832, %v4948
            %v5834 = vpop.permute.xlu0 %5833
            %5837 = vset.pattern.permute.xlu0 0
            %5838 = vperm.xlu0 %5837, %v4949
            %v5839 = vpop.permute.xlu0 %5838
            %5842 = vset.pattern.permute.xlu0 0
            %5843 = vperm.xlu0 %5842, %v4950
            %v5844 = vpop.permute.xlu0 %5843
            %5847 = vset.pattern.permute.xlu0 0
            %5848 = vperm.xlu0 %5847, %v4951
            %v5849 = vpop.permute.xlu0 %5848
            %5852 = vset.pattern.permute.xlu0 0
            %5853 = vperm.xlu0 %5852, %v4952
            %v5854 = vpop.permute.xlu0 %5853
            %5857 = vset.pattern.permute.xlu0 0
            %5858 = vperm.xlu0 %5857, %v4953
            %v5859 = vpop.permute.xlu0 %5858
            %5862 = vset.pattern.permute.xlu0 0
            %5863 = vperm.xlu0 %5862, %v4954
            %v5864 = vpop.permute.xlu0 %5863
            %5867 = vset.pattern.permute.xlu0 0
            %5868 = vperm.xlu0 %5867, %v4955
            %v5869 = vpop.permute.xlu0 %5868
            %5872 = vset.pattern.permute.xlu0 0
            %5873 = vperm.xlu0 %5872, %v4956
            %v5874 = vpop.permute.xlu0 %5873
            %5877 = vset.pattern.permute.xlu0 0
            %5878 = vperm.xlu0 %5877, %v4957
            %v5879 = vpop.permute.xlu0 %5878
            %5882 = vset.pattern.permute.xlu0 0
            %5883 = vperm.xlu0 %5882, %v4958
            %v5884 = vpop.permute.xlu0 %5883
            %5887 = vset.pattern.permute.xlu0 0
            %5888 = vperm.xlu0 %5887, %v4959
            %v5889 = vpop.permute.xlu0 %5888
            %5892 = vset.pattern.permute.xlu0 0
            %5893 = vperm.xlu0 %5892, %v4960
            %v5894 = vpop.permute.xlu0 %5893
            %v5896 = vmul.f32 %v5680, %v5719
            %v5897 = vmul.f32 %v5681, %v5724
            %v5898 = vmul.f32 %v5682, %v5729
            %v5899 = vmul.f32 %v5683, %v5734
            %v5900 = vmul.f32 %v5684, %v5739
            %v5901 = vmul.f32 %v5685, %v5744
            %v5902 = vmul.f32 %v5686, %v5749
            %v5903 = vmul.f32 %v5687, %v5754
            %v5904 = vmul.f32 %v5688, %v5759
            %v5905 = vmul.f32 %v5689, %v5764
            %v5906 = vmul.f32 %v5690, %v5769
            %v5907 = vmul.f32 %v5691, %v5774
            %v5908 = vmul.f32 %v5692, %v5779
            %v5909 = vmul.f32 %v5693, %v5784
            %v5910 = vmul.f32 %v5694, %v5789
            %v5911 = vmul.f32 %v5695, %v5794
            %v5912 = vmul.f32 %v5696, %v5799
            %v5913 = vmul.f32 %v5697, %v5804
            %v5914 = vmul.f32 %v5698, %v5809
            %v5915 = vmul.f32 %v5699, %v5814
            %v5916 = vmul.f32 %v5700, %v5819
            %v5917 = vmul.f32 %v5701, %v5824
            %v5918 = vmul.f32 %v5702, %v5829
            %v5919 = vmul.f32 %v5703, %v5834
            %v5920 = vmul.f32 %v5704, %v5839
            %v5921 = vmul.f32 %v5705, %v5844
            %v5922 = vmul.f32 %v5706, %v5849
            %v5923 = vmul.f32 %v5707, %v5854
            %v5924 = vmul.f32 %v5708, %v5859
            %v5925 = vmul.f32 %v5709, %v5864
            %v5926 = vmul.f32 %v5710, %v5869
            %v5927 = vmul.f32 %v5711, %v5874
            %v5928 = vmul.f32 %v5712, %v5879
            %v5929 = vmul.f32 %v5713, %v5884
            %v5930 = vmul.f32 %v5714, %v5889
            %v5931 = vmul.f32 %v5715, %v5894
            %5932 = vst [vmem:[%s286] sm:$0xff] %v5896
            %5933 = vst [vmem:[%s286 + $0x8] sm:$0xff] %v5897
            %5934 = vst [vmem:[%s286 + $0x10] sm:$0xff] %v5898
            %5935 = vst [vmem:[%s286 + $0x18] sm:$0xff] %v5899
            %5936 = vst [vmem:[%s286 + $0x20] sm:$0xff] %v5900
            %5937 = vst [vmem:[%s286 + $0x28] sm:$0xff] %v5901
            %5938 = vst [vmem:[%s286 + $0x30] sm:$0xff] %v5902
            %5939 = vst [vmem:[%s286 + $0x38] sm:$0xff] %v5903
            %5940 = vst [vmem:[%s286 + $0x40] sm:$0xff] %v5904
            %5941 = vst [vmem:[%s286 + $0x48] sm:$0xff] %v5905
            %5942 = vst [vmem:[%s286 + $0x50] sm:$0xff] %v5906
            %5943 = vst [vmem:[%s286 + $0x58] sm:$0xff] %v5907
            %5944 = vst [vmem:[%s286 + $0x60] sm:$0xff] %v5908
            %5945 = vst [vmem:[%s286 + $0x68] sm:$0xff] %v5909
            %5946 = vst [vmem:[%s286 + $0x70] sm:$0xff] %v5910
            %5947 = vst [vmem:[%s286 + $0x78] sm:$0xff] %v5911
            %5948 = vst [vmem:[%s286 + $0x80] sm:$0xff] %v5912
            %5949 = vst [vmem:[%s286 + $0x88] sm:$0xff] %v5913
            %5950 = vst [vmem:[%s286 + $0x90] sm:$0xff] %v5914
            %5951 = vst [vmem:[%s286 + $0x98] sm:$0xff] %v5915
            %5952 = vst [vmem:[%s286 + $0xa0] sm:$0xff] %v5916
            %5953 = vst [vmem:[%s286 + $0xa8] sm:$0xff] %v5917
            %5954 = vst [vmem:[%s286 + $0xb0] sm:$0xff] %v5918
            %5955 = vst [vmem:[%s286 + $0xb8] sm:$0xff] %v5919
            %5956 = vst [vmem:[%s286 + $0xc0] sm:$0xff] %v5920
            %5957 = vst [vmem:[%s286 + $0xc8] sm:$0xff] %v5921
            %5958 = vst [vmem:[%s286 + $0xd0] sm:$0xff] %v5922
            %5959 = vst [vmem:[%s286 + $0xd8] sm:$0xff] %v5923
            %5960 = vst [vmem:[%s286 + $0xe0] sm:$0xff] %v5924
            %5961 = vst [vmem:[%s286 + $0xe8] sm:$0xff] %v5925
            %5962 = vst [vmem:[%s286 + $0xf0] sm:$0xff] %v5926
            %5963 = vst [vmem:[%s286 + $0xf8] sm:$0xff] %v5927
            %5964 = vst [vmem:[%s286 + $0x100] sm:$0xff] %v5928
            %5965 = vst [vmem:[%s286 + $0x108] sm:$0xff] %v5929
            %5966 = vst [vmem:[%s286 + $0x110] sm:$0xff] %v5930
            %5967 = vst [vmem:[%s286 + $0x118] sm:$0xff] %v5931
          $region64: #{dncnn_forward.1} parent=51 // pred_fallthru
            _
        $region52: #{dncnn_forward.1} parent=35 // pred_fallthru
          _
        %p5968 = scmp.eq.s32.totalorder %s507, 1
        // Predicated region
        $region65: #{dncnn_forward.1} parent=35 // pred_check
          %p5969 = pneg %p5968
        $region66: #{dncnn_forward.1} parent=35 // pred_check_branch
          %5971 = sbr.rel (%p5969) target = $region68
        $region67: #{dncnn_forward.1} parent=35 // pred_region
          %v5972 = vld [vmem:[#allocation3] sm:$0x8]
          %v5973 = vld [vmem:[#allocation3 + $0x4] sm:$0xf]
          %v5974 = vld [vmem:[#allocation3 + $0x8] sm:$0xf]
          %v5975 = vld [vmem:[#allocation3 + $0xc] sm:$0xf]
          %v5976 = vld [vmem:[#allocation3 + $0x10] sm:$0xf]
          %v5977 = vld [vmem:[#allocation3 + $0x14] sm:$0xf]
          %v5978 = vld [vmem:[#allocation3 + $0x18] sm:$0xf]
          %v5979 = vld [vmem:[#allocation3 + $0x1c] sm:$0xf]
          %v5980 = vld [vmem:[#allocation3 + $0x20] sm:$0xf]
          %v5981 = vld [vmem:[#allocation3 + $0x24] sm:$0xf]
          %v5982 = vld [vmem:[#allocation3 + $0x28] sm:$0xf]
          %v5983 = vld [vmem:[#allocation3 + $0x2c] sm:$0xf]
          %v5984 = vld [vmem:[#allocation3 + $0x30] sm:$0xf]
          %v5985 = vld [vmem:[#allocation3 + $0x34] sm:$0xf]
          %v5986 = vld [vmem:[#allocation3 + $0x38] sm:$0xf]
          %v5987 = vld [vmem:[#allocation3 + $0x3c] sm:$0xf]
          %v5988 = vld [vmem:[#allocation3 + $0x40] sm:$0xf]
          %v5989 = vld [vmem:[#allocation3 + $0x44] sm:$0xf]
          %v5990 = vld [vmem:[#allocation3 + $0x48] sm:$0xf]
          %v5991 = vld [vmem:[#allocation3 + $0x4c] sm:$0xf]
          %v5992 = vld [vmem:[#allocation3 + $0x50] sm:$0xf]
          %v5993 = vld [vmem:[#allocation3 + $0x54] sm:$0xf]
          %v5994 = vld [vmem:[#allocation3 + $0x58] sm:$0xf]
          %v5995 = vld [vmem:[#allocation3 + $0x5c] sm:$0xf]
          %v5996 = vld [vmem:[#allocation3 + $0x60] sm:$0xf]
          %v5997 = vld [vmem:[#allocation3 + $0x64] sm:$0xf]
          %v5998 = vld [vmem:[#allocation3 + $0x68] sm:$0xf]
          %v5999 = vld [vmem:[#allocation3 + $0x6c] sm:$0xf]
          %v6000 = vld [vmem:[#allocation3 + $0x70] sm:$0xf]
          %v6001 = vld [vmem:[#allocation3 + $0x74] sm:$0xf]
          %v6002 = vld [vmem:[#allocation3 + $0x78] sm:$0xf]
          %v6003 = vld [vmem:[#allocation3 + $0x7c] sm:$0xf]
          %v6004 = vld [vmem:[#allocation3 + $0x80] sm:$0xf]
          %v6005 = vld [vmem:[#allocation3 + $0x84] sm:$0xf]
          %v6006 = vld [vmem:[#allocation3 + $0x88] sm:$0xf]
          %v6007 = vld [vmem:[#allocation3 + $0x8c] sm:$0xf]
          %v6008 = vld [vmem:[#allocation3 + $0x90] sm:$0xf]
          %v6009 = vld [vmem:[#allocation3 + $0x94] sm:$0x1]
          %v6047 = vunpack.c.l.b16 %v5972
          %v6048 = vunpack.c.l.b16 %v5973
          %v6049 = vunpack.c.l.b16 %v5974
          %v6050 = vunpack.c.l.b16 %v5975
          %v6051 = vunpack.c.l.b16 %v5976
          %v6052 = vunpack.c.l.b16 %v5977
          %v6053 = vunpack.c.l.b16 %v5978
          %v6054 = vunpack.c.l.b16 %v5979
          %v6055 = vunpack.c.l.b16 %v5980
          %v6056 = vunpack.c.l.b16 %v5981
          %v6057 = vunpack.c.l.b16 %v5982
          %v6058 = vunpack.c.l.b16 %v5983
          %v6059 = vunpack.c.l.b16 %v5984
          %v6060 = vunpack.c.l.b16 %v5985
          %v6061 = vunpack.c.l.b16 %v5986
          %v6062 = vunpack.c.l.b16 %v5987
          %v6063 = vunpack.c.l.b16 %v5988
          %v6064 = vunpack.c.l.b16 %v5989
          %v6065 = vunpack.c.l.b16 %v5990
          %v6066 = vunpack.c.l.b16 %v5991
          %v6067 = vunpack.c.l.b16 %v5992
          %v6068 = vunpack.c.l.b16 %v5993
          %v6069 = vunpack.c.l.b16 %v5994
          %v6070 = vunpack.c.l.b16 %v5995
          %v6071 = vunpack.c.l.b16 %v5996
          %v6072 = vunpack.c.l.b16 %v5997
          %v6073 = vunpack.c.l.b16 %v5998
          %v6074 = vunpack.c.l.b16 %v5999
          %v6075 = vunpack.c.l.b16 %v6000
          %v6076 = vunpack.c.l.b16 %v6001
          %v6077 = vunpack.c.l.b16 %v6002
          %v6078 = vunpack.c.l.b16 %v6003
          %v6079 = vunpack.c.l.b16 %v6004
          %v6080 = vunpack.c.l.b16 %v6005
          %v6081 = vunpack.c.l.b16 %v6006
          %v6082 = vunpack.c.l.b16 %v6007
          %v6083 = vunpack.c.l.b16 %v6008
          %v6084 = vpack.c.b16 %v6048, %v6047
          %v6085 = vpack.c.b16 %v6050, %v6049
          %v6086 = vpack.c.b16 %v6052, %v6051
          %v6087 = vpack.c.b16 %v6054, %v6053
          %v6088 = vpack.c.b16 %v6056, %v6055
          %v6089 = vpack.c.b16 %v6058, %v6057
          %v6090 = vpack.c.b16 %v6060, %v6059
          %v6091 = vpack.c.b16 %v6062, %v6061
          %v6092 = vpack.c.b16 %v6064, %v6063
          %v6093 = vpack.c.b16 %v6066, %v6065
          %v6094 = vpack.c.b16 %v6068, %v6067
          %v6095 = vpack.c.b16 %v6070, %v6069
          %v6096 = vpack.c.b16 %v6072, %v6071
          %v6097 = vpack.c.b16 %v6074, %v6073
          %v6098 = vpack.c.b16 %v6076, %v6075
          %v6099 = vpack.c.b16 %v6078, %v6077
          %v6100 = vpack.c.b16 %v6080, %v6079
          %v6101 = vpack.c.b16 %v6082, %v6081
          %v6102 = vpack.c.b16 %v6083, %v6083
          %v6103 = vpack.c.b16 %v6049, %v6048
          %v6104 = vpack.c.b16 %v6051, %v6050
          %v6105 = vpack.c.b16 %v6053, %v6052
          %v6106 = vpack.c.b16 %v6055, %v6054
          %v6107 = vpack.c.b16 %v6057, %v6056
          %v6108 = vpack.c.b16 %v6059, %v6058
          %v6109 = vpack.c.b16 %v6061, %v6060
          %v6110 = vpack.c.b16 %v6063, %v6062
          %v6111 = vpack.c.b16 %v6065, %v6064
          %v6112 = vpack.c.b16 %v6067, %v6066
          %v6113 = vpack.c.b16 %v6069, %v6068
          %v6114 = vpack.c.b16 %v6071, %v6070
          %v6115 = vpack.c.b16 %v6073, %v6072
          %v6116 = vpack.c.b16 %v6075, %v6074
          %v6117 = vpack.c.b16 %v6077, %v6076
          %v6118 = vpack.c.b16 %v6079, %v6078
          %v6119 = vpack.c.b16 %v6081, %v6080
          %v6120 = vpack.c.b16 %v6083, %v6082
          %vm6121 = vsmask.f32 3328
          %v6123 = vshrl.u32 %v6103, 16
          %v6125 = vrot.slane %v6123, 4
          %v6126 = vshll.u32 %v6103, 16
          %v6128 = vrot.slane %v6126, 5
          %v6129 = vor.u32 %v6125, %v6128
          %v6131 = vshrl.u32 %v6104, 16
          %v6133 = vrot.slane %v6131, 4
          %v6134 = vshll.u32 %v6104, 16
          %v6136 = vrot.slane %v6134, 5
          %v6137 = vor.u32 %v6133, %v6136
          %v6138 = vsel %vm6121, %v6129, %v6137
          %v6140 = vshrl.u32 %v6105, 16
          %v6142 = vrot.slane %v6140, 4
          %v6143 = vshll.u32 %v6105, 16
          %v6145 = vrot.slane %v6143, 5
          %v6146 = vor.u32 %v6142, %v6145
          %v6147 = vsel %vm6121, %v6137, %v6146
          %v6149 = vshrl.u32 %v6106, 16
          %v6151 = vrot.slane %v6149, 4
          %v6152 = vshll.u32 %v6106, 16
          %v6154 = vrot.slane %v6152, 5
          %v6155 = vor.u32 %v6151, %v6154
          %v6156 = vsel %vm6121, %v6146, %v6155
          %v6158 = vshrl.u32 %v6107, 16
          %v6160 = vrot.slane %v6158, 4
          %v6161 = vshll.u32 %v6107, 16
          %v6163 = vrot.slane %v6161, 5
          %v6164 = vor.u32 %v6160, %v6163
          %v6165 = vsel %vm6121, %v6155, %v6164
          %v6167 = vshrl.u32 %v6108, 16
          %v6169 = vrot.slane %v6167, 4
          %v6170 = vshll.u32 %v6108, 16
          %v6172 = vrot.slane %v6170, 5
          %v6173 = vor.u32 %v6169, %v6172
          %v6174 = vsel %vm6121, %v6164, %v6173
          %v6176 = vshrl.u32 %v6109, 16
          %v6178 = vrot.slane %v6176, 4
          %v6179 = vshll.u32 %v6109, 16
          %v6181 = vrot.slane %v6179, 5
          %v6182 = vor.u32 %v6178, %v6181
          %v6183 = vsel %vm6121, %v6173, %v6182
          %v6185 = vshrl.u32 %v6110, 16
          %v6187 = vrot.slane %v6185, 4
          %v6188 = vshll.u32 %v6110, 16
          %v6190 = vrot.slane %v6188, 5
          %v6191 = vor.u32 %v6187, %v6190
          %v6192 = vsel %vm6121, %v6182, %v6191
          %v6194 = vshrl.u32 %v6111, 16
          %v6196 = vrot.slane %v6194, 4
          %v6197 = vshll.u32 %v6111, 16
          %v6199 = vrot.slane %v6197, 5
          %v6200 = vor.u32 %v6196, %v6199
          %v6201 = vsel %vm6121, %v6191, %v6200
          %v6203 = vshrl.u32 %v6112, 16
          %v6205 = vrot.slane %v6203, 4
          %v6206 = vshll.u32 %v6112, 16
          %v6208 = vrot.slane %v6206, 5
          %v6209 = vor.u32 %v6205, %v6208
          %v6210 = vsel %vm6121, %v6200, %v6209
          %v6212 = vshrl.u32 %v6113, 16
          %v6214 = vrot.slane %v6212, 4
          %v6215 = vshll.u32 %v6113, 16
          %v6217 = vrot.slane %v6215, 5
          %v6218 = vor.u32 %v6214, %v6217
          %v6219 = vsel %vm6121, %v6209, %v6218
          %v6221 = vshrl.u32 %v6114, 16
          %v6223 = vrot.slane %v6221, 4
          %v6224 = vshll.u32 %v6114, 16
          %v6226 = vrot.slane %v6224, 5
          %v6227 = vor.u32 %v6223, %v6226
          %v6228 = vsel %vm6121, %v6218, %v6227
          %v6230 = vshrl.u32 %v6115, 16
          %v6232 = vrot.slane %v6230, 4
          %v6233 = vshll.u32 %v6115, 16
          %v6235 = vrot.slane %v6233, 5
          %v6236 = vor.u32 %v6232, %v6235
          %v6237 = vsel %vm6121, %v6227, %v6236
          %v6239 = vshrl.u32 %v6116, 16
          %v6241 = vrot.slane %v6239, 4
          %v6242 = vshll.u32 %v6116, 16
          %v6244 = vrot.slane %v6242, 5
          %v6245 = vor.u32 %v6241, %v6244
          %v6246 = vsel %vm6121, %v6236, %v6245
          %v6248 = vshrl.u32 %v6117, 16
          %v6250 = vrot.slane %v6248, 4
          %v6251 = vshll.u32 %v6117, 16
          %v6253 = vrot.slane %v6251, 5
          %v6254 = vor.u32 %v6250, %v6253
          %v6255 = vsel %vm6121, %v6245, %v6254
          %v6257 = vshrl.u32 %v6118, 16
          %v6259 = vrot.slane %v6257, 4
          %v6260 = vshll.u32 %v6118, 16
          %v6262 = vrot.slane %v6260, 5
          %v6263 = vor.u32 %v6259, %v6262
          %v6264 = vsel %vm6121, %v6254, %v6263
          %v6266 = vshrl.u32 %v6119, 16
          %v6268 = vrot.slane %v6266, 4
          %v6269 = vshll.u32 %v6119, 16
          %v6271 = vrot.slane %v6269, 5
          %v6272 = vor.u32 %v6268, %v6271
          %v6273 = vsel %vm6121, %v6263, %v6272
          %v6275 = vshrl.u32 %v6120, 16
          %v6277 = vrot.slane %v6275, 4
          %v6278 = vshll.u32 %v6120, 16
          %v6280 = vrot.slane %v6278, 5
          %v6281 = vor.u32 %v6277, %v6280
          %v6282 = vsel %vm6121, %v6272, %v6281
          %v6284 = vunpack.c.l.b16 %v6009
          %v6285 = vpack.c.b16 %v6284, %v6284
          %vm6286 = vcmask 1042432
          %v6287 = vrot.slane %v6103, 5
          %v6288 = vrot.slane %v6104, 5
          %v6289 = vsel %vm6286, %v6287, %v6288
          %v6290 = vrot.slane %v6105, 5
          %v6291 = vsel %vm6286, %v6288, %v6290
          %v6292 = vrot.slane %v6106, 5
          %v6293 = vsel %vm6286, %v6290, %v6292
          %v6294 = vrot.slane %v6107, 5
          %v6295 = vsel %vm6286, %v6292, %v6294
          %v6296 = vrot.slane %v6108, 5
          %v6297 = vsel %vm6286, %v6294, %v6296
          %v6298 = vrot.slane %v6109, 5
          %v6299 = vsel %vm6286, %v6296, %v6298
          %v6300 = vrot.slane %v6110, 5
          %v6301 = vsel %vm6286, %v6298, %v6300
          %v6302 = vrot.slane %v6111, 5
          %v6303 = vsel %vm6286, %v6300, %v6302
          %v6304 = vrot.slane %v6112, 5
          %v6305 = vsel %vm6286, %v6302, %v6304
          %v6306 = vrot.slane %v6113, 5
          %v6307 = vsel %vm6286, %v6304, %v6306
          %v6308 = vrot.slane %v6114, 5
          %v6309 = vsel %vm6286, %v6306, %v6308
          %v6310 = vrot.slane %v6115, 5
          %v6311 = vsel %vm6286, %v6308, %v6310
          %v6312 = vrot.slane %v6116, 5
          %v6313 = vsel %vm6286, %v6310, %v6312
          %v6314 = vrot.slane %v6117, 5
          %v6315 = vsel %vm6286, %v6312, %v6314
          %v6316 = vrot.slane %v6118, 5
          %v6317 = vsel %vm6286, %v6314, %v6316
          %v6318 = vrot.slane %v6119, 5
          %v6319 = vsel %vm6286, %v6316, %v6318
          %v6320 = vrot.slane %v6120, 5
          %v6321 = vsel %vm6286, %v6318, %v6320
          %v6322 = vrot.slane %v6285, 5
          %v6323 = vsel %vm6286, %v6320, %v6322
          %v6324 = vld [vmem:[%s233] sm:$0xf]
          %v6325 = vld [vmem:[%s233 + $0x4] sm:$0xf]
          %v6326 = vld [vmem:[%s233 + $0x8] sm:$0xf]
          %v6327 = vld [vmem:[%s233 + $0xc] sm:$0xf]
          %v6328 = vld [vmem:[%s233 + $0x10] sm:$0xf]
          %v6329 = vld [vmem:[%s233 + $0x14] sm:$0xf]
          %v6330 = vld [vmem:[%s233 + $0x18] sm:$0xf]
          %v6331 = vld [vmem:[%s233 + $0x1c] sm:$0xf]
          %v6332 = vld [vmem:[%s233 + $0x20] sm:$0xf]
          %v6333 = vld [vmem:[%s233 + $0x24] sm:$0xf]
          %v6334 = vld [vmem:[%s233 + $0x28] sm:$0xf]
          %v6335 = vld [vmem:[%s233 + $0x2c] sm:$0xf]
          %v6336 = vld [vmem:[%s233 + $0x30] sm:$0xf]
          %v6337 = vld [vmem:[%s233 + $0x34] sm:$0xf]
          %v6338 = vld [vmem:[%s233 + $0x38] sm:$0xf]
          %v6339 = vld [vmem:[%s233 + $0x3c] sm:$0xf]
          %v6340 = vld [vmem:[%s233 + $0x40] sm:$0xf]
          %v6341 = vld [vmem:[%s233 + $0x44] sm:$0xf]
          %v6342 = vld [vmem:[%s233 + $0x48] sm:$0xf]
          %v6343 = vld [vmem:[%s233 + $0x4c] sm:$0xf]
          %v6344 = vld [vmem:[%s233 + $0x50] sm:$0xf]
          %v6345 = vld [vmem:[%s233 + $0x54] sm:$0xf]
          %v6346 = vld [vmem:[%s233 + $0x58] sm:$0xf]
          %v6347 = vld [vmem:[%s233 + $0x5c] sm:$0xf]
          %v6348 = vld [vmem:[%s233 + $0x60] sm:$0xf]
          %v6349 = vld [vmem:[%s233 + $0x64] sm:$0xf]
          %v6350 = vld [vmem:[%s233 + $0x68] sm:$0xf]
          %v6351 = vld [vmem:[%s233 + $0x6c] sm:$0xf]
          %v6352 = vld [vmem:[%s233 + $0x70] sm:$0xf]
          %v6353 = vld [vmem:[%s233 + $0x74] sm:$0xf]
          %v6354 = vld [vmem:[%s233 + $0x78] sm:$0xf]
          %v6355 = vld [vmem:[%s233 + $0x7c] sm:$0xf]
          %v6356 = vld [vmem:[%s233 + $0x80] sm:$0xf]
          %v6357 = vld [vmem:[%s233 + $0x84] sm:$0xf]
          %v6358 = vld [vmem:[%s233 + $0x88] sm:$0xf]
          %v6359 = vld [vmem:[%s233 + $0x8c] sm:$0xf]
          %v6360 = vld [vmem:[%s233 + $0x90] sm:$0xf]
          %v6361 = vld [vmem:[%s233 + $0x94] sm:$0xf]
          %v6362 = vld [vmem:[%s233 + $0x98] sm:$0xf]
          %v6363 = vld [vmem:[%s233 + $0x9c] sm:$0xf]
          %v6364 = vld [vmem:[%s233 + $0xa0] sm:$0xf]
          %v6365 = vld [vmem:[%s233 + $0xa4] sm:$0xf]
          %v6366 = vld [vmem:[%s233 + $0xa8] sm:$0xf]
          %v6367 = vld [vmem:[%s233 + $0xac] sm:$0xf]
          %v6368 = vld [vmem:[%s233 + $0xb0] sm:$0xf]
          %v6369 = vld [vmem:[%s233 + $0xb4] sm:$0xf]
          %v6370 = vld [vmem:[%s233 + $0xb8] sm:$0xf]
          %v6371 = vld [vmem:[%s233 + $0xbc] sm:$0xf]
          %vm6372 = vsmask.f32 4352
          %v6374 = vshrl.u32 %v6084, 16
          %v6376 = vrot.slane %v6374, 3
          %v6377 = vshll.u32 %v6084, 16
          %v6379 = vrot.slane %v6377, 4
          %v6380 = vor.u32 %v6376, %v6379
          %v6382 = vshrl.u32 %v6085, 16
          %v6384 = vrot.slane %v6382, 3
          %v6385 = vshll.u32 %v6085, 16
          %v6387 = vrot.slane %v6385, 4
          %v6388 = vor.u32 %v6384, %v6387
          %v6389 = vsel %vm6372, %v6380, %v6388
          %v6391 = vshrl.u32 %v6129, 16
          %v6393 = vrot.slane %v6391, 3
          %v6394 = vshll.u32 %v6129, 16
          %v6396 = vrot.slane %v6394, 4
          %v6397 = vor.u32 %v6393, %v6396
          %v6399 = vshrl.u32 %v6138, 16
          %v6401 = vrot.slane %v6399, 3
          %v6402 = vshll.u32 %v6138, 16
          %v6404 = vrot.slane %v6402, 4
          %v6405 = vor.u32 %v6401, %v6404
          %v6406 = vsel %vm6372, %v6397, %v6405
          %v6408 = vshrl.u32 %v6287, 16
          %v6410 = vrot.slane %v6408, 3
          %v6411 = vshll.u32 %v6287, 16
          %v6413 = vrot.slane %v6411, 4
          %v6414 = vor.u32 %v6410, %v6413
          %v6416 = vshrl.u32 %v6289, 16
          %v6418 = vrot.slane %v6416, 3
          %v6419 = vshll.u32 %v6289, 16
          %v6421 = vrot.slane %v6419, 4
          %v6422 = vor.u32 %v6418, %v6421
          %v6423 = vsel %vm6372, %v6414, %v6422
          %v6425 = vshrl.u32 %v6086, 16
          %v6427 = vrot.slane %v6425, 3
          %v6428 = vshll.u32 %v6086, 16
          %v6430 = vrot.slane %v6428, 4
          %v6431 = vor.u32 %v6427, %v6430
          %v6432 = vsel %vm6372, %v6388, %v6431
          %v6434 = vshrl.u32 %v6147, 16
          %v6436 = vrot.slane %v6434, 3
          %v6437 = vshll.u32 %v6147, 16
          %v6439 = vrot.slane %v6437, 4
          %v6440 = vor.u32 %v6436, %v6439
          %v6441 = vsel %vm6372, %v6405, %v6440
          %v6443 = vshrl.u32 %v6291, 16
          %v6445 = vrot.slane %v6443, 3
          %v6446 = vshll.u32 %v6291, 16
          %v6448 = vrot.slane %v6446, 4
          %v6449 = vor.u32 %v6445, %v6448
          %v6450 = vsel %vm6372, %v6422, %v6449
          %v6452 = vshrl.u32 %v6087, 16
          %v6454 = vrot.slane %v6452, 3
          %v6455 = vshll.u32 %v6087, 16
          %v6457 = vrot.slane %v6455, 4
          %v6458 = vor.u32 %v6454, %v6457
          %v6459 = vsel %vm6372, %v6431, %v6458
          %v6461 = vshrl.u32 %v6156, 16
          %v6463 = vrot.slane %v6461, 3
          %v6464 = vshll.u32 %v6156, 16
          %v6466 = vrot.slane %v6464, 4
          %v6467 = vor.u32 %v6463, %v6466
          %v6468 = vsel %vm6372, %v6440, %v6467
          %v6470 = vshrl.u32 %v6293, 16
          %v6472 = vrot.slane %v6470, 3
          %v6473 = vshll.u32 %v6293, 16
          %v6475 = vrot.slane %v6473, 4
          %v6476 = vor.u32 %v6472, %v6475
          %v6477 = vsel %vm6372, %v6449, %v6476
          %v6479 = vshrl.u32 %v6088, 16
          %v6481 = vrot.slane %v6479, 3
          %v6482 = vshll.u32 %v6088, 16
          %v6484 = vrot.slane %v6482, 4
          %v6485 = vor.u32 %v6481, %v6484
          %v6486 = vsel %vm6372, %v6458, %v6485
          %v6488 = vshrl.u32 %v6165, 16
          %v6490 = vrot.slane %v6488, 3
          %v6491 = vshll.u32 %v6165, 16
          %v6493 = vrot.slane %v6491, 4
          %v6494 = vor.u32 %v6490, %v6493
          %v6495 = vsel %vm6372, %v6467, %v6494
          %v6497 = vshrl.u32 %v6295, 16
          %v6499 = vrot.slane %v6497, 3
          %v6500 = vshll.u32 %v6295, 16
          %v6502 = vrot.slane %v6500, 4
          %v6503 = vor.u32 %v6499, %v6502
          %v6504 = vsel %vm6372, %v6476, %v6503
          %v6506 = vshrl.u32 %v6089, 16
          %v6508 = vrot.slane %v6506, 3
          %v6509 = vshll.u32 %v6089, 16
          %v6511 = vrot.slane %v6509, 4
          %v6512 = vor.u32 %v6508, %v6511
          %v6513 = vsel %vm6372, %v6485, %v6512
          %v6515 = vshrl.u32 %v6174, 16
          %v6517 = vrot.slane %v6515, 3
          %v6518 = vshll.u32 %v6174, 16
          %v6520 = vrot.slane %v6518, 4
          %v6521 = vor.u32 %v6517, %v6520
          %v6522 = vsel %vm6372, %v6494, %v6521
          %v6524 = vshrl.u32 %v6297, 16
          %v6526 = vrot.slane %v6524, 3
          %v6527 = vshll.u32 %v6297, 16
          %v6529 = vrot.slane %v6527, 4
          %v6530 = vor.u32 %v6526, %v6529
          %v6531 = vsel %vm6372, %v6503, %v6530
          %v6533 = vshrl.u32 %v6090, 16
          %v6535 = vrot.slane %v6533, 3
          %v6536 = vshll.u32 %v6090, 16
          %v6538 = vrot.slane %v6536, 4
          %v6539 = vor.u32 %v6535, %v6538
          %v6540 = vsel %vm6372, %v6512, %v6539
          %v6542 = vshrl.u32 %v6183, 16
          %v6544 = vrot.slane %v6542, 3
          %v6545 = vshll.u32 %v6183, 16
          %v6547 = vrot.slane %v6545, 4
          %v6548 = vor.u32 %v6544, %v6547
          %v6549 = vsel %vm6372, %v6521, %v6548
          %v6551 = vshrl.u32 %v6299, 16
          %v6553 = vrot.slane %v6551, 3
          %v6554 = vshll.u32 %v6299, 16
          %v6556 = vrot.slane %v6554, 4
          %v6557 = vor.u32 %v6553, %v6556
          %v6558 = vsel %vm6372, %v6530, %v6557
          %v6560 = vshrl.u32 %v6091, 16
          %v6562 = vrot.slane %v6560, 3
          %v6563 = vshll.u32 %v6091, 16
          %v6565 = vrot.slane %v6563, 4
          %v6566 = vor.u32 %v6562, %v6565
          %v6567 = vsel %vm6372, %v6539, %v6566
          %v6569 = vshrl.u32 %v6192, 16
          %v6571 = vrot.slane %v6569, 3
          %v6572 = vshll.u32 %v6192, 16
          %v6574 = vrot.slane %v6572, 4
          %v6575 = vor.u32 %v6571, %v6574
          %v6576 = vsel %vm6372, %v6548, %v6575
          %v6578 = vshrl.u32 %v6301, 16
          %v6580 = vrot.slane %v6578, 3
          %v6581 = vshll.u32 %v6301, 16
          %v6583 = vrot.slane %v6581, 4
          %v6584 = vor.u32 %v6580, %v6583
          %v6585 = vsel %vm6372, %v6557, %v6584
          %v6587 = vshrl.u32 %v6092, 16
          %v6589 = vrot.slane %v6587, 3
          %v6590 = vshll.u32 %v6092, 16
          %v6592 = vrot.slane %v6590, 4
          %v6593 = vor.u32 %v6589, %v6592
          %v6594 = vsel %vm6372, %v6566, %v6593
          %v6596 = vshrl.u32 %v6201, 16
          %v6598 = vrot.slane %v6596, 3
          %v6599 = vshll.u32 %v6201, 16
          %v6601 = vrot.slane %v6599, 4
          %v6602 = vor.u32 %v6598, %v6601
          %v6603 = vsel %vm6372, %v6575, %v6602
          %v6605 = vshrl.u32 %v6303, 16
          %v6607 = vrot.slane %v6605, 3
          %v6608 = vshll.u32 %v6303, 16
          %v6610 = vrot.slane %v6608, 4
          %v6611 = vor.u32 %v6607, %v6610
          %v6612 = vsel %vm6372, %v6584, %v6611
          %v6614 = vshrl.u32 %v6093, 16
          %v6616 = vrot.slane %v6614, 3
          %v6617 = vshll.u32 %v6093, 16
          %v6619 = vrot.slane %v6617, 4
          %v6620 = vor.u32 %v6616, %v6619
          %v6621 = vsel %vm6372, %v6593, %v6620
          %v6623 = vshrl.u32 %v6210, 16
          %v6625 = vrot.slane %v6623, 3
          %v6626 = vshll.u32 %v6210, 16
          %v6628 = vrot.slane %v6626, 4
          %v6629 = vor.u32 %v6625, %v6628
          %v6630 = vsel %vm6372, %v6602, %v6629
          %v6632 = vshrl.u32 %v6305, 16
          %v6634 = vrot.slane %v6632, 3
          %v6635 = vshll.u32 %v6305, 16
          %v6637 = vrot.slane %v6635, 4
          %v6638 = vor.u32 %v6634, %v6637
          %v6639 = vsel %vm6372, %v6611, %v6638
          %v6641 = vshrl.u32 %v6094, 16
          %v6643 = vrot.slane %v6641, 3
          %v6644 = vshll.u32 %v6094, 16
          %v6646 = vrot.slane %v6644, 4
          %v6647 = vor.u32 %v6643, %v6646
          %v6648 = vsel %vm6372, %v6620, %v6647
          %v6650 = vshrl.u32 %v6219, 16
          %v6652 = vrot.slane %v6650, 3
          %v6653 = vshll.u32 %v6219, 16
          %v6655 = vrot.slane %v6653, 4
          %v6656 = vor.u32 %v6652, %v6655
          %v6657 = vsel %vm6372, %v6629, %v6656
          %v6659 = vshrl.u32 %v6307, 16
          %v6661 = vrot.slane %v6659, 3
          %v6662 = vshll.u32 %v6307, 16
          %v6664 = vrot.slane %v6662, 4
          %v6665 = vor.u32 %v6661, %v6664
          %v6666 = vsel %vm6372, %v6638, %v6665
          %v6668 = vshrl.u32 %v6095, 16
          %v6670 = vrot.slane %v6668, 3
          %v6671 = vshll.u32 %v6095, 16
          %v6673 = vrot.slane %v6671, 4
          %v6674 = vor.u32 %v6670, %v6673
          %v6675 = vsel %vm6372, %v6647, %v6674
          %v6677 = vshrl.u32 %v6228, 16
          %v6679 = vrot.slane %v6677, 3
          %v6680 = vshll.u32 %v6228, 16
          %v6682 = vrot.slane %v6680, 4
          %v6683 = vor.u32 %v6679, %v6682
          %v6684 = vsel %vm6372, %v6656, %v6683
          %v6686 = vshrl.u32 %v6309, 16
          %v6688 = vrot.slane %v6686, 3
          %v6689 = vshll.u32 %v6309, 16
          %v6691 = vrot.slane %v6689, 4
          %v6692 = vor.u32 %v6688, %v6691
          %v6693 = vsel %vm6372, %v6665, %v6692
          %v6695 = vshrl.u32 %v6096, 16
          %v6697 = vrot.slane %v6695, 3
          %v6698 = vshll.u32 %v6096, 16
          %v6700 = vrot.slane %v6698, 4
          %v6701 = vor.u32 %v6697, %v6700
          %v6702 = vsel %vm6372, %v6674, %v6701
          %v6704 = vshrl.u32 %v6237, 16
          %v6706 = vrot.slane %v6704, 3
          %v6707 = vshll.u32 %v6237, 16
          %v6709 = vrot.slane %v6707, 4
          %v6710 = vor.u32 %v6706, %v6709
          %v6711 = vsel %vm6372, %v6683, %v6710
          %v6713 = vshrl.u32 %v6311, 16
          %v6715 = vrot.slane %v6713, 3
          %v6716 = vshll.u32 %v6311, 16
          %v6718 = vrot.slane %v6716, 4
          %v6719 = vor.u32 %v6715, %v6718
          %v6720 = vsel %vm6372, %v6692, %v6719
          %v6722 = vshrl.u32 %v6097, 16
          %v6724 = vrot.slane %v6722, 3
          %v6725 = vshll.u32 %v6097, 16
          %v6727 = vrot.slane %v6725, 4
          %v6728 = vor.u32 %v6724, %v6727
          %v6729 = vsel %vm6372, %v6701, %v6728
          %v6731 = vshrl.u32 %v6246, 16
          %v6733 = vrot.slane %v6731, 3
          %v6734 = vshll.u32 %v6246, 16
          %v6736 = vrot.slane %v6734, 4
          %v6737 = vor.u32 %v6733, %v6736
          %v6738 = vsel %vm6372, %v6710, %v6737
          %v6740 = vshrl.u32 %v6313, 16
          %v6742 = vrot.slane %v6740, 3
          %v6743 = vshll.u32 %v6313, 16
          %v6745 = vrot.slane %v6743, 4
          %v6746 = vor.u32 %v6742, %v6745
          %v6747 = vsel %vm6372, %v6719, %v6746
          %v6749 = vshrl.u32 %v6098, 16
          %v6751 = vrot.slane %v6749, 3
          %v6752 = vshll.u32 %v6098, 16
          %v6754 = vrot.slane %v6752, 4
          %v6755 = vor.u32 %v6751, %v6754
          %v6756 = vsel %vm6372, %v6728, %v6755
          %v6758 = vshrl.u32 %v6255, 16
          %v6760 = vrot.slane %v6758, 3
          %v6761 = vshll.u32 %v6255, 16
          %v6763 = vrot.slane %v6761, 4
          %v6764 = vor.u32 %v6760, %v6763
          %v6765 = vsel %vm6372, %v6737, %v6764
          %v6767 = vshrl.u32 %v6315, 16
          %v6769 = vrot.slane %v6767, 3
          %v6770 = vshll.u32 %v6315, 16
          %v6772 = vrot.slane %v6770, 4
          %v6773 = vor.u32 %v6769, %v6772
          %v6774 = vsel %vm6372, %v6746, %v6773
          %v6776 = vshrl.u32 %v6099, 16
          %v6778 = vrot.slane %v6776, 3
          %v6779 = vshll.u32 %v6099, 16
          %v6781 = vrot.slane %v6779, 4
          %v6782 = vor.u32 %v6778, %v6781
          %v6783 = vsel %vm6372, %v6755, %v6782
          %v6785 = vshrl.u32 %v6264, 16
          %v6787 = vrot.slane %v6785, 3
          %v6788 = vshll.u32 %v6264, 16
          %v6790 = vrot.slane %v6788, 4
          %v6791 = vor.u32 %v6787, %v6790
          %v6792 = vsel %vm6372, %v6764, %v6791
          %v6794 = vshrl.u32 %v6317, 16
          %v6796 = vrot.slane %v6794, 3
          %v6797 = vshll.u32 %v6317, 16
          %v6799 = vrot.slane %v6797, 4
          %v6800 = vor.u32 %v6796, %v6799
          %v6801 = vsel %vm6372, %v6773, %v6800
          %v6803 = vshrl.u32 %v6100, 16
          %v6805 = vrot.slane %v6803, 3
          %v6806 = vshll.u32 %v6100, 16
          %v6808 = vrot.slane %v6806, 4
          %v6809 = vor.u32 %v6805, %v6808
          %v6810 = vsel %vm6372, %v6782, %v6809
          %v6812 = vshrl.u32 %v6273, 16
          %v6814 = vrot.slane %v6812, 3
          %v6815 = vshll.u32 %v6273, 16
          %v6817 = vrot.slane %v6815, 4
          %v6818 = vor.u32 %v6814, %v6817
          %v6819 = vsel %vm6372, %v6791, %v6818
          %v6821 = vshrl.u32 %v6319, 16
          %v6823 = vrot.slane %v6821, 3
          %v6824 = vshll.u32 %v6319, 16
          %v6826 = vrot.slane %v6824, 4
          %v6827 = vor.u32 %v6823, %v6826
          %v6828 = vsel %vm6372, %v6800, %v6827
          %v6830 = vshrl.u32 %v6101, 16
          %v6832 = vrot.slane %v6830, 3
          %v6833 = vshll.u32 %v6101, 16
          %v6835 = vrot.slane %v6833, 4
          %v6836 = vor.u32 %v6832, %v6835
          %v6837 = vsel %vm6372, %v6809, %v6836
          %v6839 = vshrl.u32 %v6282, 16
          %v6841 = vrot.slane %v6839, 3
          %v6842 = vshll.u32 %v6282, 16
          %v6844 = vrot.slane %v6842, 4
          %v6845 = vor.u32 %v6841, %v6844
          %v6846 = vsel %vm6372, %v6818, %v6845
          %v6848 = vshrl.u32 %v6321, 16
          %v6850 = vrot.slane %v6848, 3
          %v6851 = vshll.u32 %v6321, 16
          %v6853 = vrot.slane %v6851, 4
          %v6854 = vor.u32 %v6850, %v6853
          %v6855 = vsel %vm6372, %v6827, %v6854
          %v6857 = vshrl.u32 %v6102, 16
          %v6859 = vrot.slane %v6857, 3
          %v6860 = vshll.u32 %v6102, 16
          %v6862 = vrot.slane %v6860, 4
          %v6863 = vor.u32 %v6859, %v6862
          %v6864 = vsel %vm6372, %v6836, %v6863
          %v6866 = vshrl.u32 %v6281, 16
          %v6868 = vrot.slane %v6866, 3
          %v6869 = vshll.u32 %v6281, 16
          %v6871 = vrot.slane %v6869, 4
          %v6872 = vor.u32 %v6868, %v6871
          %v6873 = vsel %vm6372, %v6845, %v6872
          %v6875 = vshrl.u32 %v6323, 16
          %v6877 = vrot.slane %v6875, 3
          %v6878 = vshll.u32 %v6323, 16
          %v6880 = vrot.slane %v6878, 4
          %v6881 = vor.u32 %v6877, %v6880
          %v6882 = vsel %vm6372, %v6854, %v6881
          %v6985 = vunpack.c.l.b16 %v6324
          %v6986 = vunpack.c.l.b16 %v6325
          %v6987 = vunpack.c.l.b16 %v6326
          %v6988 = vunpack.c.l.b16 %v6327
          %v6989 = vunpack.c.l.b16 %v6328
          %v6990 = vunpack.c.l.b16 %v6329
          %v6991 = vunpack.c.l.b16 %v6330
          %v6992 = vunpack.c.l.b16 %v6331
          %v6993 = vunpack.c.l.b16 %v6332
          %v6994 = vunpack.c.l.b16 %v6333
          %v6995 = vunpack.c.l.b16 %v6334
          %v6996 = vunpack.c.l.b16 %v6335
          %v6997 = vunpack.c.l.b16 %v6336
          %v6998 = vunpack.c.l.b16 %v6337
          %v6999 = vunpack.c.l.b16 %v6338
          %v7000 = vunpack.c.l.b16 %v6339
          %v7001 = vunpack.c.l.b16 %v6340
          %v7002 = vunpack.c.l.b16 %v6341
          %v7003 = vunpack.c.l.b16 %v6342
          %v7004 = vunpack.c.l.b16 %v6343
          %v7005 = vunpack.c.l.b16 %v6344
          %v7006 = vunpack.c.l.b16 %v6345
          %v7007 = vunpack.c.l.b16 %v6346
          %v7008 = vunpack.c.l.b16 %v6347
          %v7009 = vunpack.c.l.b16 %v6348
          %v7010 = vunpack.c.l.b16 %v6349
          %v7011 = vunpack.c.l.b16 %v6350
          %v7012 = vunpack.c.l.b16 %v6351
          %v7013 = vunpack.c.l.b16 %v6352
          %v7014 = vunpack.c.l.b16 %v6353
          %v7015 = vunpack.c.l.b16 %v6354
          %v7016 = vunpack.c.l.b16 %v6355
          %v7017 = vunpack.c.l.b16 %v6356
          %v7018 = vunpack.c.l.b16 %v6357
          %v7019 = vunpack.c.l.b16 %v6358
          %v7020 = vunpack.c.l.b16 %v6359
          %v7021 = vunpack.c.l.b16 %v6360
          %v7022 = vunpack.c.l.b16 %v6361
          %v7023 = vunpack.c.l.b16 %v6362
          %v7024 = vunpack.c.l.b16 %v6363
          %v7025 = vunpack.c.l.b16 %v6364
          %v7026 = vunpack.c.l.b16 %v6365
          %v7027 = vunpack.c.l.b16 %v6366
          %v7028 = vunpack.c.l.b16 %v6367
          %v7029 = vunpack.c.l.b16 %v6368
          %v7030 = vunpack.c.l.b16 %v6369
          %v7031 = vunpack.c.l.b16 %v6370
          %v7032 = vunpack.c.l.b16 %v6371
          %v7033 = vpack.c.b16 %v6986, %v6985
          %v7034 = vpack.c.b16 %v6988, %v6987
          %v7035 = vpack.c.b16 %v6990, %v6989
          %v7036 = vpack.c.b16 %v6992, %v6991
          %v7037 = vpack.c.b16 %v6994, %v6993
          %v7038 = vpack.c.b16 %v6996, %v6995
          %v7039 = vpack.c.b16 %v6998, %v6997
          %v7040 = vpack.c.b16 %v7000, %v6999
          %v7041 = vpack.c.b16 %v7002, %v7001
          %v7042 = vpack.c.b16 %v7004, %v7003
          %v7043 = vpack.c.b16 %v7006, %v7005
          %v7044 = vpack.c.b16 %v7008, %v7007
          %v7045 = vpack.c.b16 %v7010, %v7009
          %v7046 = vpack.c.b16 %v7012, %v7011
          %v7047 = vpack.c.b16 %v7014, %v7013
          %v7048 = vpack.c.b16 %v7016, %v7015
          %v7049 = vpack.c.b16 %v7018, %v7017
          %v7050 = vpack.c.b16 %v7020, %v7019
          %v7051 = vpack.c.b16 %v7022, %v7021
          %v7052 = vpack.c.b16 %v7024, %v7023
          %v7053 = vpack.c.b16 %v7026, %v7025
          %v7054 = vpack.c.b16 %v7028, %v7027
          %v7055 = vpack.c.b16 %v7030, %v7029
          %v7056 = vpack.c.b16 %v7032, %v7031
          %7081 = vmatprep.subr.bf16.mxu0 0
          %7082 = vmatpush1.bf16.msra.mxu0 %v7033
          %7083 = vmatprep.subr.bf16.mxu0 0
          %7084 = vmatpush1.bf16.msra.mxu0 %v7034
          %7085 = vmatprep.subr.bf16.mxu0 0
          %7086 = vmatpush1.bf16.msra.mxu0 %v7035
          %7087 = vmatprep.subr.bf16.mxu0 0
          %7088 = vmatpush1.bf16.msra.mxu0 %v7036
          %7089 = vmatprep.subr.bf16.mxu0 0
          %7090 = vmatpush1.bf16.msra.mxu0 %v7037
          %7091 = vmatprep.subr.bf16.mxu0 0
          %7092 = vmatpush1.bf16.msra.mxu0 %v7038
          %7093 = vmatprep.subr.bf16.mxu0 0
          %7094 = vmatpush1.bf16.msra.mxu0 %v7039
          %7095 = vmatprep.subr.bf16.mxu0 0
          %7096 = vmatpush1.bf16.msra.mxu0 %v7040
          %7097 = vmatprep.subr.bf16.mxu0 0
          %7098 = vmatpush1.bf16.msra.mxu0 %v7041
          %7099 = vmatprep.subr.bf16.mxu0 0
          %7100 = vmatpush1.bf16.msra.mxu0 %v7042
          %7101 = vmatprep.subr.bf16.mxu0 0
          %7102 = vmatpush1.bf16.msra.mxu0 %v7043
          %7103 = vmatprep.subr.bf16.mxu0 0
          %7104 = vmatpush1.bf16.msra.mxu0 %v7044
          %7105 = vmatprep.subr.bf16.mxu0 0
          %7106 = vmatpush1.bf16.msra.mxu0 %v7045
          %7107 = vmatprep.subr.bf16.mxu0 0
          %7108 = vmatpush1.bf16.msra.mxu0 %v7046
          %7109 = vmatprep.subr.bf16.mxu0 0
          %7110 = vmatpush1.bf16.msra.mxu0 %v7047
          %7111 = vmatprep.subr.bf16.mxu0 0
          %7112 = vmatpush1.bf16.msra.mxu0 %v7048
          %7113 = vmatprep.mubr.bf16.mxu0 %v6406
          %7114 = vmatmul.mubr.bf16.gmra.mrb[0].mxu0 %v6389
          %v7115 = vpop.f32.mrb[0].mxu0
          %v7116 = vadd.f32 0.0, %v7115
          %v7117 = vpop.f32.mrb[0].mxu0
          %v7118 = vpop.f32.mrb[0].mxu0
          %v7119 = vadd.f32 0.0, %v7118
          %v7120 = vpop.f32.mrb[0].mxu0
          %7121 = vmatprep.mubr.bf16.mxu0 %v6441
          %7122 = vmatmul.mubr.bf16.gmra.mrb[0].mxu0 %v6432
          %v7123 = vpop.f32.mrb[0].mxu0
          %v7124 = vadd.f32 0.0, %v7123
          %v7125 = vpop.f32.mrb[0].mxu0
          %v7126 = vpop.f32.mrb[0].mxu0
          %v7127 = vadd.f32 0.0, %v7126
          %v7128 = vpop.f32.mrb[0].mxu0
          %7129 = vmatprep.mubr.bf16.mxu0 %v6468
          %7130 = vmatmul.mubr.bf16.gmra.mrb[0].mxu0 %v6459
          %v7131 = vpop.f32.mrb[0].mxu0
          %v7132 = vadd.f32 0.0, %v7131
          %v7133 = vpop.f32.mrb[0].mxu0
          %v7134 = vpop.f32.mrb[0].mxu0
          %v7135 = vadd.f32 0.0, %v7134
          %v7136 = vpop.f32.mrb[0].mxu0
          %7137 = vmatprep.mubr.bf16.mxu0 %v6495
          %7138 = vmatmul.mubr.bf16.gmra.mrb[0].mxu0 %v6486
          %v7139 = vpop.f32.mrb[0].mxu0
          %v7140 = vadd.f32 0.0, %v7139
          %v7141 = vpop.f32.mrb[0].mxu0
          %v7142 = vpop.f32.mrb[0].mxu0
          %v7143 = vadd.f32 0.0, %v7142
          %v7144 = vpop.f32.mrb[0].mxu0
          %7145 = vmatprep.mubr.bf16.mxu0 %v6522
          %7146 = vmatmul.mubr.bf16.gmra.mrb[0].mxu0 %v6513
          %v7147 = vpop.f32.mrb[0].mxu0
          %v7148 = vadd.f32 0.0, %v7147
          %v7149 = vpop.f32.mrb[0].mxu0
          %v7150 = vpop.f32.mrb[0].mxu0
          %v7151 = vadd.f32 0.0, %v7150
          %v7152 = vpop.f32.mrb[0].mxu0
          %7153 = vmatprep.mubr.bf16.mxu0 %v6549
          %7154 = vmatmul.mubr.bf16.gmra.mrb[0].mxu0 %v6540
          %v7155 = vpop.f32.mrb[0].mxu0
          %v7156 = vadd.f32 0.0, %v7155
          %v7157 = vpop.f32.mrb[0].mxu0
          %v7158 = vpop.f32.mrb[0].mxu0
          %v7159 = vadd.f32 0.0, %v7158
          %v7160 = vpop.f32.mrb[0].mxu0
          %7161 = vmatprep.mubr.bf16.mxu0 %v6576
          %7162 = vmatmul.mubr.bf16.gmra.mrb[0].mxu0 %v6567
          %v7163 = vpop.f32.mrb[0].mxu0
          %v7164 = vadd.f32 0.0, %v7163
          %v7165 = vpop.f32.mrb[0].mxu0
          %v7166 = vpop.f32.mrb[0].mxu0
          %v7167 = vadd.f32 0.0, %v7166
          %v7168 = vpop.f32.mrb[0].mxu0
          %7169 = vmatprep.mubr.bf16.mxu0 %v6603
          %7170 = vmatmul.mubr.bf16.gmra.mrb[0].mxu0 %v6594
          %v7171 = vpop.f32.mrb[0].mxu0
          %v7172 = vadd.f32 0.0, %v7171
          %v7173 = vpop.f32.mrb[0].mxu0
          %v7174 = vpop.f32.mrb[0].mxu0
          %v7175 = vadd.f32 0.0, %v7174
          %v7176 = vpop.f32.mrb[0].mxu0
          %7177 = vmatprep.mubr.bf16.mxu0 %v6630
          %7178 = vmatmul.mubr.bf16.gmra.mrb[0].mxu0 %v6621
          %v7179 = vpop.f32.mrb[0].mxu0
          %v7180 = vadd.f32 0.0, %v7179
          %v7181 = vpop.f32.mrb[0].mxu0
          %v7182 = vpop.f32.mrb[0].mxu0
          %v7183 = vadd.f32 0.0, %v7182
          %v7184 = vpop.f32.mrb[0].mxu0
          %7185 = vmatprep.mubr.bf16.mxu0 %v6657
          %7186 = vmatmul.mubr.bf16.gmra.mrb[0].mxu0 %v6648
          %v7187 = vpop.f32.mrb[0].mxu0
          %v7188 = vadd.f32 0.0, %v7187
          %v7189 = vpop.f32.mrb[0].mxu0
          %v7190 = vpop.f32.mrb[0].mxu0
          %v7191 = vadd.f32 0.0, %v7190
          %v7192 = vpop.f32.mrb[0].mxu0
          %7193 = vmatprep.mubr.bf16.mxu0 %v6684
          %7194 = vmatmul.mubr.bf16.gmra.mrb[0].mxu0 %v6675
          %v7195 = vpop.f32.mrb[0].mxu0
          %v7196 = vadd.f32 0.0, %v7195
          %v7197 = vpop.f32.mrb[0].mxu0
          %v7198 = vpop.f32.mrb[0].mxu0
          %v7199 = vadd.f32 0.0, %v7198
          %v7200 = vpop.f32.mrb[0].mxu0
          %7201 = vmatprep.mubr.bf16.mxu0 %v6711
          %7202 = vmatmul.mubr.bf16.gmra.mrb[0].mxu0 %v6702
          %v7203 = vpop.f32.mrb[0].mxu0
          %v7204 = vadd.f32 0.0, %v7203
          %v7205 = vpop.f32.mrb[0].mxu0
          %v7206 = vpop.f32.mrb[0].mxu0
          %v7207 = vadd.f32 0.0, %v7206
          %v7208 = vpop.f32.mrb[0].mxu0
          %7209 = vmatprep.mubr.bf16.mxu0 %v6738
          %7210 = vmatmul.mubr.bf16.gmra.mrb[0].mxu0 %v6729
          %v7211 = vpop.f32.mrb[0].mxu0
          %v7212 = vadd.f32 0.0, %v7211
          %v7213 = vpop.f32.mrb[0].mxu0
          %v7214 = vpop.f32.mrb[0].mxu0
          %v7215 = vadd.f32 0.0, %v7214
          %v7216 = vpop.f32.mrb[0].mxu0
          %7217 = vmatprep.mubr.bf16.mxu0 %v6765
          %7218 = vmatmul.mubr.bf16.gmra.mrb[0].mxu0 %v6756
          %v7219 = vpop.f32.mrb[0].mxu0
          %v7220 = vadd.f32 0.0, %v7219
          %v7221 = vpop.f32.mrb[0].mxu0
          %v7222 = vpop.f32.mrb[0].mxu0
          %v7223 = vadd.f32 0.0, %v7222
          %v7224 = vpop.f32.mrb[0].mxu0
          %7225 = vmatprep.mubr.bf16.mxu0 %v6792
          %7226 = vmatmul.mubr.bf16.gmra.mrb[0].mxu0 %v6783
          %v7227 = vpop.f32.mrb[0].mxu0
          %v7228 = vadd.f32 0.0, %v7227
          %v7229 = vpop.f32.mrb[0].mxu0
          %v7230 = vpop.f32.mrb[0].mxu0
          %v7231 = vadd.f32 0.0, %v7230
          %v7232 = vpop.f32.mrb[0].mxu0
          %7233 = vmatprep.mubr.bf16.mxu0 %v6819
          %7234 = vmatmul.mubr.bf16.gmra.mrb[0].mxu0 %v6810
          %v7235 = vpop.f32.mrb[0].mxu0
          %v7236 = vadd.f32 0.0, %v7235
          %v7237 = vpop.f32.mrb[0].mxu0
          %v7238 = vpop.f32.mrb[0].mxu0
          %v7239 = vadd.f32 0.0, %v7238
          %v7240 = vpop.f32.mrb[0].mxu0
          %7241 = vmatprep.mubr.bf16.mxu0 %v6846
          %7242 = vmatmul.mubr.bf16.gmra.mrb[0].mxu0 %v6837
          %v7243 = vpop.f32.mrb[0].mxu0
          %v7244 = vadd.f32 0.0, %v7243
          %v7245 = vpop.f32.mrb[0].mxu0
          %v7246 = vpop.f32.mrb[0].mxu0
          %v7247 = vadd.f32 0.0, %v7246
          %v7248 = vpop.f32.mrb[0].mxu0
          %7249 = vmatprep.mubr.bf16.mxu0 %v6873
          %7250 = vmatmul.mubr.bf16.gmra.mrb[0].mxu0 %v6864
          %v7251 = vpop.f32.mrb[0].mxu0
          %v7252 = vadd.f32 0.0, %v7251
          %v7253 = vpop.f32.mrb[0].mxu0
          %v7254 = vpop.f32.mrb[0].mxu0
          %v7255 = vadd.f32 0.0, %v7254
          %v7256 = vpop.f32.mrb[0].mxu0
          %7257 = vdwg.mxu0
          %7258 = vmatprep.subr.bf16.mxu0 0
          %7259 = vmatpush1.bf16.msra.mxu0 %v7049
          %7260 = vmatprep.subr.bf16.mxu0 0
          %7261 = vmatpush1.bf16.msra.mxu0 %v7050
          %7262 = vmatprep.subr.bf16.mxu0 0
          %7263 = vmatpush1.bf16.msra.mxu0 %v7051
          %7264 = vmatprep.subr.bf16.mxu0 0
          %7265 = vmatpush1.bf16.msra.mxu0 %v7052
          %7266 = vmatprep.subr.bf16.mxu0 0
          %7267 = vmatpush1.bf16.msra.mxu0 %v7053
          %7268 = vmatprep.subr.bf16.mxu0 0
          %7269 = vmatpush1.bf16.msra.mxu0 %v7054
          %7270 = vmatprep.subr.bf16.mxu0 0
          %7271 = vmatpush1.bf16.msra.mxu0 %v7055
          %7272 = vmatprep.subr.bf16.mxu0 0
          %7273 = vmatpush1.bf16.msra.mxu0 %v7056
          %7274 = vmatprep.subr.bf16.mxu0 0
          %7275 = vmatpush1.bf16.msra.mxu0 0
          %7276 = vmatprep.subr.bf16.mxu0 0
          %7277 = vmatpush1.bf16.msra.mxu0 0
          %7278 = vmatprep.subr.bf16.mxu0 0
          %7279 = vmatpush1.bf16.msra.mxu0 0
          %7280 = vmatprep.subr.bf16.mxu0 0
          %7281 = vmatpush1.bf16.msra.mxu0 0
          %7282 = vmatprep.subr.bf16.mxu0 0
          %7283 = vmatpush1.bf16.msra.mxu0 0
          %7284 = vmatprep.subr.bf16.mxu0 0
          %7285 = vmatpush1.bf16.msra.mxu0 0
          %7286 = vmatprep.subr.bf16.mxu0 0
          %7287 = vmatpush1.bf16.msra.mxu0 0
          %7288 = vmatprep.subr.bf16.mxu0 0
          %7289 = vmatpush1.bf16.msra.mxu0 0
          %7290 = vmatprep.mubr.bf16.mxu0 0
          %7291 = vmatmul.mubr.bf16.gmra.mrb[0].mxu0 %v6423
          %v7292 = vpop.f32.mrb[0].mxu0
          %v7293 = vadd.f32 %v7116, %v7292
          %v7294 = vpop.f32.mrb[0].mxu0
          %v7295 = vpop.f32.mrb[0].mxu0
          %v7296 = vadd.f32 %v7119, %v7295
          %v7297 = vpop.f32.mrb[0].mxu0
          %7298 = vmatprep.mubr.bf16.mxu0 0
          %7299 = vmatmul.mubr.bf16.gmra.mrb[0].mxu0 %v6450
          %v7300 = vpop.f32.mrb[0].mxu0
          %v7301 = vadd.f32 %v7124, %v7300
          %v7302 = vpop.f32.mrb[0].mxu0
          %v7303 = vpop.f32.mrb[0].mxu0
          %v7304 = vadd.f32 %v7127, %v7303
          %v7305 = vpop.f32.mrb[0].mxu0
          %7306 = vmatprep.mubr.bf16.mxu0 0
          %7307 = vmatmul.mubr.bf16.gmra.mrb[0].mxu0 %v6477
          %v7308 = vpop.f32.mrb[0].mxu0
          %v7309 = vadd.f32 %v7132, %v7308
          %v7310 = vpop.f32.mrb[0].mxu0
          %v7311 = vpop.f32.mrb[0].mxu0
          %v7312 = vadd.f32 %v7135, %v7311
          %v7313 = vpop.f32.mrb[0].mxu0
          %7314 = vmatprep.mubr.bf16.mxu0 0
          %7315 = vmatmul.mubr.bf16.gmra.mrb[0].mxu0 %v6504
          %v7316 = vpop.f32.mrb[0].mxu0
          %v7317 = vadd.f32 %v7140, %v7316
          %v7318 = vpop.f32.mrb[0].mxu0
          %v7319 = vpop.f32.mrb[0].mxu0
          %v7320 = vadd.f32 %v7143, %v7319
          %v7321 = vpop.f32.mrb[0].mxu0
          %7322 = vmatprep.mubr.bf16.mxu0 0
          %7323 = vmatmul.mubr.bf16.gmra.mrb[0].mxu0 %v6531
          %v7324 = vpop.f32.mrb[0].mxu0
          %v7325 = vadd.f32 %v7148, %v7324
          %v7326 = vpop.f32.mrb[0].mxu0
          %v7327 = vpop.f32.mrb[0].mxu0
          %v7328 = vadd.f32 %v7151, %v7327
          %v7329 = vpop.f32.mrb[0].mxu0
          %7330 = vmatprep.mubr.bf16.mxu0 0
          %7331 = vmatmul.mubr.bf16.gmra.mrb[0].mxu0 %v6558
          %v7332 = vpop.f32.mrb[0].mxu0
          %v7333 = vadd.f32 %v7156, %v7332
          %v7334 = vpop.f32.mrb[0].mxu0
          %v7335 = vpop.f32.mrb[0].mxu0
          %v7336 = vadd.f32 %v7159, %v7335
          %v7337 = vpop.f32.mrb[0].mxu0
          %7338 = vmatprep.mubr.bf16.mxu0 0
          %7339 = vmatmul.mubr.bf16.gmra.mrb[0].mxu0 %v6585
          %v7340 = vpop.f32.mrb[0].mxu0
          %v7341 = vadd.f32 %v7164, %v7340
          %v7342 = vpop.f32.mrb[0].mxu0
          %v7343 = vpop.f32.mrb[0].mxu0
          %v7344 = vadd.f32 %v7167, %v7343
          %v7345 = vpop.f32.mrb[0].mxu0
          %7346 = vmatprep.mubr.bf16.mxu0 0
          %7347 = vmatmul.mubr.bf16.gmra.mrb[0].mxu0 %v6612
          %v7348 = vpop.f32.mrb[0].mxu0
          %v7349 = vadd.f32 %v7172, %v7348
          %v7350 = vpop.f32.mrb[0].mxu0
          %v7351 = vpop.f32.mrb[0].mxu0
          %v7352 = vadd.f32 %v7175, %v7351
          %v7353 = vpop.f32.mrb[0].mxu0
          %7354 = vmatprep.mubr.bf16.mxu0 0
          %7355 = vmatmul.mubr.bf16.gmra.mrb[0].mxu0 %v6639
          %v7356 = vpop.f32.mrb[0].mxu0
          %v7357 = vadd.f32 %v7180, %v7356
          %v7358 = vpop.f32.mrb[0].mxu0
          %v7359 = vpop.f32.mrb[0].mxu0
          %v7360 = vadd.f32 %v7183, %v7359
          %v7361 = vpop.f32.mrb[0].mxu0
          %7362 = vmatprep.mubr.bf16.mxu0 0
          %7363 = vmatmul.mubr.bf16.gmra.mrb[0].mxu0 %v6666
          %v7364 = vpop.f32.mrb[0].mxu0
          %v7365 = vadd.f32 %v7188, %v7364
          %v7366 = vpop.f32.mrb[0].mxu0
          %v7367 = vpop.f32.mrb[0].mxu0
          %v7368 = vadd.f32 %v7191, %v7367
          %v7369 = vpop.f32.mrb[0].mxu0
          %7370 = vmatprep.mubr.bf16.mxu0 0
          %7371 = vmatmul.mubr.bf16.gmra.mrb[0].mxu0 %v6693
          %v7372 = vpop.f32.mrb[0].mxu0
          %v7373 = vadd.f32 %v7196, %v7372
          %v7374 = vpop.f32.mrb[0].mxu0
          %v7375 = vpop.f32.mrb[0].mxu0
          %v7376 = vadd.f32 %v7199, %v7375
          %v7377 = vpop.f32.mrb[0].mxu0
          %7378 = vmatprep.mubr.bf16.mxu0 0
          %7379 = vmatmul.mubr.bf16.gmra.mrb[0].mxu0 %v6720
          %v7380 = vpop.f32.mrb[0].mxu0
          %v7381 = vadd.f32 %v7204, %v7380
          %v7382 = vpop.f32.mrb[0].mxu0
          %v7383 = vpop.f32.mrb[0].mxu0
          %v7384 = vadd.f32 %v7207, %v7383
          %v7385 = vpop.f32.mrb[0].mxu0
          %7386 = vmatprep.mubr.bf16.mxu0 0
          %7387 = vmatmul.mubr.bf16.gmra.mrb[0].mxu0 %v6747
          %v7388 = vpop.f32.mrb[0].mxu0
          %v7389 = vadd.f32 %v7212, %v7388
          %v7390 = vpop.f32.mrb[0].mxu0
          %v7391 = vpop.f32.mrb[0].mxu0
          %v7392 = vadd.f32 %v7215, %v7391
          %v7393 = vpop.f32.mrb[0].mxu0
          %7394 = vmatprep.mubr.bf16.mxu0 0
          %7395 = vmatmul.mubr.bf16.gmra.mrb[0].mxu0 %v6774
          %v7396 = vpop.f32.mrb[0].mxu0
          %v7397 = vadd.f32 %v7220, %v7396
          %v7398 = vpop.f32.mrb[0].mxu0
          %v7399 = vpop.f32.mrb[0].mxu0
          %v7400 = vadd.f32 %v7223, %v7399
          %v7401 = vpop.f32.mrb[0].mxu0
          %7402 = vmatprep.mubr.bf16.mxu0 0
          %7403 = vmatmul.mubr.bf16.gmra.mrb[0].mxu0 %v6801
          %v7404 = vpop.f32.mrb[0].mxu0
          %v7405 = vadd.f32 %v7228, %v7404
          %v7406 = vpop.f32.mrb[0].mxu0
          %v7407 = vpop.f32.mrb[0].mxu0
          %v7408 = vadd.f32 %v7231, %v7407
          %v7409 = vpop.f32.mrb[0].mxu0
          %7410 = vmatprep.mubr.bf16.mxu0 0
          %7411 = vmatmul.mubr.bf16.gmra.mrb[0].mxu0 %v6828
          %v7412 = vpop.f32.mrb[0].mxu0
          %v7413 = vadd.f32 %v7236, %v7412
          %v7414 = vpop.f32.mrb[0].mxu0
          %v7415 = vpop.f32.mrb[0].mxu0
          %v7416 = vadd.f32 %v7239, %v7415
          %v7417 = vpop.f32.mrb[0].mxu0
          %7418 = vmatprep.mubr.bf16.mxu0 0
          %7419 = vmatmul.mubr.bf16.gmra.mrb[0].mxu0 %v6855
          %v7420 = vpop.f32.mrb[0].mxu0
          %v7421 = vadd.f32 %v7244, %v7420
          %v7422 = vpop.f32.mrb[0].mxu0
          %v7423 = vpop.f32.mrb[0].mxu0
          %v7424 = vadd.f32 %v7247, %v7423
          %v7425 = vpop.f32.mrb[0].mxu0
          %7426 = vmatprep.mubr.bf16.mxu0 0
          %7427 = vmatmul.mubr.bf16.gmra.mrb[0].mxu0 %v6882
          %v7428 = vpop.f32.mrb[0].mxu0
          %v7429 = vadd.f32 %v7252, %v7428
          %v7430 = vpop.f32.mrb[0].mxu0
          %v7431 = vpop.f32.mrb[0].mxu0
          %v7432 = vadd.f32 %v7255, %v7431
          %v7433 = vpop.f32.mrb[0].mxu0
          %7434 = vdwg.mxu0
          %7435 = vst [vmem:[#allocation5] sm:$0xff] %v7293
          %7436 = vst [vmem:[#allocation5 + $0x8] sm:$0xff] %v7296
          %7437 = vst [vmem:[#allocation5 + $0x10] sm:$0xff] %v7301
          %7438 = vst [vmem:[#allocation5 + $0x18] sm:$0xff] %v7304
          %7439 = vst [vmem:[#allocation5 + $0x20] sm:$0xff] %v7309
          %7440 = vst [vmem:[#allocation5 + $0x28] sm:$0xff] %v7312
          %7441 = vst [vmem:[#allocation5 + $0x30] sm:$0xff] %v7317
          %7442 = vst [vmem:[#allocation5 + $0x38] sm:$0xff] %v7320
          %7443 = vst [vmem:[#allocation5 + $0x40] sm:$0xff] %v7325
          %7444 = vst [vmem:[#allocation5 + $0x48] sm:$0xff] %v7328
          %7445 = vst [vmem:[#allocation5 + $0x50] sm:$0xff] %v7333
          %7446 = vst [vmem:[#allocation5 + $0x58] sm:$0xff] %v7336
          %7447 = vst [vmem:[#allocation5 + $0x60] sm:$0xff] %v7341
          %7448 = vst [vmem:[#allocation5 + $0x68] sm:$0xff] %v7344
          %7449 = vst [vmem:[#allocation5 + $0x70] sm:$0xff] %v7349
          %7450 = vst [vmem:[#allocation5 + $0x78] sm:$0xff] %v7352
          %7451 = vst [vmem:[#allocation5 + $0x80] sm:$0xff] %v7357
          %7452 = vst [vmem:[#allocation5 + $0x88] sm:$0xff] %v7360
          %7453 = vst [vmem:[#allocation5 + $0x90] sm:$0xff] %v7365
          %7454 = vst [vmem:[#allocation5 + $0x98] sm:$0xff] %v7368
          %7455 = vst [vmem:[#allocation5 + $0xa0] sm:$0xff] %v7373
          %7456 = vst [vmem:[#allocation5 + $0xa8] sm:$0xff] %v7376
          %7457 = vst [vmem:[#allocation5 + $0xb0] sm:$0xff] %v7381
          %7458 = vst [vmem:[#allocation5 + $0xb8] sm:$0xff] %v7384
          %7459 = vst [vmem:[#allocation5 + $0xc0] sm:$0xff] %v7389
          %7460 = vst [vmem:[#allocation5 + $0xc8] sm:$0xff] %v7392
          %7461 = vst [vmem:[#allocation5 + $0xd0] sm:$0xff] %v7397
          %7462 = vst [vmem:[#allocation5 + $0xd8] sm:$0xff] %v7400
          %7463 = vst [vmem:[#allocation5 + $0xe0] sm:$0xff] %v7405
          %7464 = vst [vmem:[#allocation5 + $0xe8] sm:$0xff] %v7408
          %7465 = vst [vmem:[#allocation5 + $0xf0] sm:$0xff] %v7413
          %7466 = vst [vmem:[#allocation5 + $0xf8] sm:$0xff] %v7416
          %7467 = vst [vmem:[#allocation5 + $0x100] sm:$0xff] %v7421
          %7468 = vst [vmem:[#allocation5 + $0x108] sm:$0xff] %v7424
          %7469 = vst [vmem:[#allocation5 + $0x110] sm:$0xff] %v7429
          %7470 = vst [vmem:[#allocation5 + $0x118] sm:$0xff] %v7432
          %v7471 = vld [vmem:[#allocation3 + $0xc] sm:$0xf]
          %v7472 = vld [vmem:[#allocation3 + $0x10] sm:$0xf]
          %v7473 = vld [vmem:[#allocation3 + $0x14] sm:$0xf]
          %v7474 = vld [vmem:[#allocation3 + $0x18] sm:$0xf]
          %v7475 = vld [vmem:[#allocation3 + $0x1c] sm:$0xf]
          %v7476 = vld [vmem:[#allocation3 + $0x20] sm:$0xf]
          %v7477 = vld [vmem:[#allocation3 + $0x24] sm:$0xf]
          %v7478 = vld [vmem:[#allocation3 + $0x28] sm:$0xf]
          %v7479 = vld [vmem:[#allocation3 + $0x2c] sm:$0xf]
          %v7480 = vld [vmem:[#allocation3 + $0x30] sm:$0xf]
          %v7481 = vld [vmem:[#allocation3 + $0x34] sm:$0xf]
          %v7482 = vld [vmem:[#allocation3 + $0x38] sm:$0xf]
          %v7483 = vld [vmem:[#allocation3 + $0x3c] sm:$0xf]
          %v7484 = vld [vmem:[#allocation3 + $0x40] sm:$0xf]
          %v7485 = vld [vmem:[#allocation3 + $0x44] sm:$0xf]
          %v7486 = vld [vmem:[#allocation3 + $0x48] sm:$0xf]
          %v7487 = vld [vmem:[#allocation3 + $0x4c] sm:$0xf]
          %v7488 = vld [vmem:[#allocation3 + $0x50] sm:$0xf]
          %v7489 = vld [vmem:[#allocation3 + $0x54] sm:$0xf]
          %v7490 = vld [vmem:[#allocation3 + $0x58] sm:$0xf]
          %v7491 = vld [vmem:[#allocation3 + $0x5c] sm:$0xf]
          %v7492 = vld [vmem:[#allocation3 + $0x60] sm:$0xf]
          %v7493 = vld [vmem:[#allocation3 + $0x64] sm:$0xf]
          %v7494 = vld [vmem:[#allocation3 + $0x68] sm:$0xf]
          %v7495 = vld [vmem:[#allocation3 + $0x6c] sm:$0xf]
          %v7496 = vld [vmem:[#allocation3 + $0x70] sm:$0xf]
          %v7497 = vld [vmem:[#allocation3 + $0x74] sm:$0xf]
          %v7498 = vld [vmem:[#allocation3 + $0x78] sm:$0xf]
          %v7499 = vld [vmem:[#allocation3 + $0x7c] sm:$0xf]
          %v7500 = vld [vmem:[#allocation3 + $0x80] sm:$0xf]
          %v7501 = vld [vmem:[#allocation3 + $0x84] sm:$0xf]
          %v7502 = vld [vmem:[#allocation3 + $0x88] sm:$0xf]
          %v7503 = vld [vmem:[#allocation3 + $0x8c] sm:$0xf]
          %v7504 = vld [vmem:[#allocation3 + $0x90] sm:$0xf]
          %v7505 = vld [vmem:[#allocation3 + $0x94] sm:$0xf]
          %v7506 = vld [vmem:[#allocation3 + $0x98] sm:$0xf]
          %v7507 = vld [vmem:[#allocation3 + $0x9c] sm:$0x1]
          %v7508 = vld [vmem:[#allocation3 + $0xc] sm:$0xe]
          %v7509 = vld [vmem:[#allocation3 + $0x9c] sm:$0x3]
          %v7547 = vunpack.c.l.b16 %v7471
          %v7548 = vunpack.c.l.b16 %v7472
          %v7549 = vunpack.c.l.b16 %v7473
          %v7550 = vunpack.c.l.b16 %v7474
          %v7551 = vunpack.c.l.b16 %v7475
          %v7552 = vunpack.c.l.b16 %v7476
          %v7553 = vunpack.c.l.b16 %v7477
          %v7554 = vunpack.c.l.b16 %v7478
          %v7555 = vunpack.c.l.b16 %v7479
          %v7556 = vunpack.c.l.b16 %v7480
          %v7557 = vunpack.c.l.b16 %v7481
          %v7558 = vunpack.c.l.b16 %v7482
          %v7559 = vunpack.c.l.b16 %v7483
          %v7560 = vunpack.c.l.b16 %v7484
          %v7561 = vunpack.c.l.b16 %v7485
          %v7562 = vunpack.c.l.b16 %v7486
          %v7563 = vunpack.c.l.b16 %v7487
          %v7564 = vunpack.c.l.b16 %v7488
          %v7565 = vunpack.c.l.b16 %v7489
          %v7566 = vunpack.c.l.b16 %v7490
          %v7567 = vunpack.c.l.b16 %v7491
          %v7568 = vunpack.c.l.b16 %v7492
          %v7569 = vunpack.c.l.b16 %v7493
          %v7570 = vunpack.c.l.b16 %v7494
          %v7571 = vunpack.c.l.b16 %v7495
          %v7572 = vunpack.c.l.b16 %v7496
          %v7573 = vunpack.c.l.b16 %v7497
          %v7574 = vunpack.c.l.b16 %v7498
          %v7575 = vunpack.c.l.b16 %v7499
          %v7576 = vunpack.c.l.b16 %v7500
          %v7577 = vunpack.c.l.b16 %v7501
          %v7578 = vunpack.c.l.b16 %v7502
          %v7579 = vunpack.c.l.b16 %v7503
          %v7580 = vunpack.c.l.b16 %v7504
          %v7581 = vunpack.c.l.b16 %v7505
          %v7582 = vunpack.c.l.b16 %v7506
          %v7583 = vunpack.c.l.b16 %v7507
          %v7584 = vpack.c.b16 %v7548, %v7547
          %v7585 = vpack.c.b16 %v7550, %v7549
          %v7586 = vpack.c.b16 %v7552, %v7551
          %v7587 = vpack.c.b16 %v7554, %v7553
          %v7588 = vpack.c.b16 %v7556, %v7555
          %v7589 = vpack.c.b16 %v7558, %v7557
          %v7590 = vpack.c.b16 %v7560, %v7559
          %v7591 = vpack.c.b16 %v7562, %v7561
          %v7592 = vpack.c.b16 %v7564, %v7563
          %v7593 = vpack.c.b16 %v7566, %v7565
          %v7594 = vpack.c.b16 %v7568, %v7567
          %v7595 = vpack.c.b16 %v7570, %v7569
          %v7596 = vpack.c.b16 %v7572, %v7571
          %v7597 = vpack.c.b16 %v7574, %v7573
          %v7598 = vpack.c.b16 %v7576, %v7575
          %v7599 = vpack.c.b16 %v7578, %v7577
          %v7600 = vpack.c.b16 %v7580, %v7579
          %v7601 = vpack.c.b16 %v7582, %v7581
          %v7602 = vpack.c.b16 %v7583, %v7583
          %v7604 = vunpack.c.l.b16 %v7508
          %v7605 = vpack.c.b16 %v7548, %v7604
          %vm7606 = vsmask.f32 7424
          %v7608 = vshrl.u32 %v7605, 16
          %v7610 = vshll.u32 %v7605, 16
          %v7612 = vrot.slane %v7610, 1
          %v7613 = vor.u32 %v7608, %v7612
          %v7615 = vshll.u32 %v7585, 16
          %v7617 = vrot.slane %v7615, 1
          %v7618 = vsel %vm7606, %v7613, %v7617
          %v7619 = vshrl.u32 %v7585, 16
          %v7621 = vor.u32 %v7619, %v7617
          %v7623 = vshll.u32 %v7586, 16
          %v7625 = vrot.slane %v7623, 1
          %v7626 = vsel %vm7606, %v7621, %v7625
          %v7627 = vshrl.u32 %v7586, 16
          %v7629 = vor.u32 %v7627, %v7625
          %v7631 = vshll.u32 %v7587, 16
          %v7633 = vrot.slane %v7631, 1
          %v7634 = vsel %vm7606, %v7629, %v7633
          %v7635 = vshrl.u32 %v7587, 16
          %v7637 = vor.u32 %v7635, %v7633
          %v7639 = vshll.u32 %v7588, 16
          %v7641 = vrot.slane %v7639, 1
          %v7642 = vsel %vm7606, %v7637, %v7641
          %v7643 = vshrl.u32 %v7588, 16
          %v7645 = vor.u32 %v7643, %v7641
          %v7647 = vshll.u32 %v7589, 16
          %v7649 = vrot.slane %v7647, 1
          %v7650 = vsel %vm7606, %v7645, %v7649
          %v7651 = vshrl.u32 %v7589, 16
          %v7653 = vor.u32 %v7651, %v7649
          %v7655 = vshll.u32 %v7590, 16
          %v7657 = vrot.slane %v7655, 1
          %v7658 = vsel %vm7606, %v7653, %v7657
          %v7659 = vshrl.u32 %v7590, 16
          %v7661 = vor.u32 %v7659, %v7657
          %v7663 = vshll.u32 %v7591, 16
          %v7665 = vrot.slane %v7663, 1
          %v7666 = vsel %vm7606, %v7661, %v7665
          %v7667 = vshrl.u32 %v7591, 16
          %v7669 = vor.u32 %v7667, %v7665
          %v7671 = vshll.u32 %v7592, 16
          %v7673 = vrot.slane %v7671, 1
          %v7674 = vsel %vm7606, %v7669, %v7673
          %v7675 = vshrl.u32 %v7592, 16
          %v7677 = vor.u32 %v7675, %v7673
          %v7679 = vshll.u32 %v7593, 16
          %v7681 = vrot.slane %v7679, 1
          %v7682 = vsel %vm7606, %v7677, %v7681
          %v7683 = vshrl.u32 %v7593, 16
          %v7685 = vor.u32 %v7683, %v7681
          %v7687 = vshll.u32 %v7594, 16
          %v7689 = vrot.slane %v7687, 1
          %v7690 = vsel %vm7606, %v7685, %v7689
          %v7691 = vshrl.u32 %v7594, 16
          %v7693 = vor.u32 %v7691, %v7689
          %v7695 = vshll.u32 %v7595, 16
          %v7697 = vrot.slane %v7695, 1
          %v7698 = vsel %vm7606, %v7693, %v7697
          %v7699 = vshrl.u32 %v7595, 16
          %v7701 = vor.u32 %v7699, %v7697
          %v7703 = vshll.u32 %v7596, 16
          %v7705 = vrot.slane %v7703, 1
          %v7706 = vsel %vm7606, %v7701, %v7705
          %v7707 = vshrl.u32 %v7596, 16
          %v7709 = vor.u32 %v7707, %v7705
          %v7711 = vshll.u32 %v7597, 16
          %v7713 = vrot.slane %v7711, 1
          %v7714 = vsel %vm7606, %v7709, %v7713
          %v7715 = vshrl.u32 %v7597, 16
          %v7717 = vor.u32 %v7715, %v7713
          %v7719 = vshll.u32 %v7598, 16
          %v7721 = vrot.slane %v7719, 1
          %v7722 = vsel %vm7606, %v7717, %v7721
          %v7723 = vshrl.u32 %v7598, 16
          %v7725 = vor.u32 %v7723, %v7721
          %v7727 = vshll.u32 %v7599, 16
          %v7729 = vrot.slane %v7727, 1
          %v7730 = vsel %vm7606, %v7725, %v7729
          %v7731 = vshrl.u32 %v7599, 16
          %v7733 = vor.u32 %v7731, %v7729
          %v7735 = vshll.u32 %v7600, 16
          %v7737 = vrot.slane %v7735, 1
          %v7738 = vsel %vm7606, %v7733, %v7737
          %v7739 = vshrl.u32 %v7600, 16
          %v7741 = vor.u32 %v7739, %v7737
          %v7743 = vshll.u32 %v7601, 16
          %v7745 = vrot.slane %v7743, 1
          %v7746 = vsel %vm7606, %v7741, %v7745
          %v7747 = vshrl.u32 %v7601, 16
          %v7749 = vor.u32 %v7747, %v7745
          %v7751 = vshll.u32 %v7602, 16
          %v7753 = vrot.slane %v7751, 1
          %v7754 = vsel %vm7606, %v7749, %v7753
          %v7755 = vshrl.u32 %v7602, 16
          %v7758 = vunpack.c.l.b16 %v7509
          %v7759 = vpack.c.b16 %v7758, %v7758
          %vm7760 = vcmask 1046528
          %v7761 = vrot.slane %v7605, 1
          %v7762 = vrot.slane %v7585, 1
          %v7763 = vsel %vm7760, %v7761, %v7762
          %v7764 = vrot.slane %v7586, 1
          %v7765 = vsel %vm7760, %v7762, %v7764
          %v7766 = vrot.slane %v7587, 1
          %v7767 = vsel %vm7760, %v7764, %v7766
          %v7768 = vrot.slane %v7588, 1
          %v7769 = vsel %vm7760, %v7766, %v7768
          %v7770 = vrot.slane %v7589, 1
          %v7771 = vsel %vm7760, %v7768, %v7770
          %v7772 = vrot.slane %v7590, 1
          %v7773 = vsel %vm7760, %v7770, %v7772
          %v7774 = vrot.slane %v7591, 1
          %v7775 = vsel %vm7760, %v7772, %v7774
          %v7776 = vrot.slane %v7592, 1
          %v7777 = vsel %vm7760, %v7774, %v7776
          %v7778 = vrot.slane %v7593, 1
          %v7779 = vsel %vm7760, %v7776, %v7778
          %v7780 = vrot.slane %v7594, 1
          %v7781 = vsel %vm7760, %v7778, %v7780
          %v7782 = vrot.slane %v7595, 1
          %v7783 = vsel %vm7760, %v7780, %v7782
          %v7784 = vrot.slane %v7596, 1
          %v7785 = vsel %vm7760, %v7782, %v7784
          %v7786 = vrot.slane %v7597, 1
          %v7787 = vsel %vm7760, %v7784, %v7786
          %v7788 = vrot.slane %v7598, 1
          %v7789 = vsel %vm7760, %v7786, %v7788
          %v7790 = vrot.slane %v7599, 1
          %v7791 = vsel %vm7760, %v7788, %v7790
          %v7792 = vrot.slane %v7600, 1
          %v7793 = vsel %vm7760, %v7790, %v7792
          %v7794 = vrot.slane %v7601, 1
          %v7795 = vsel %vm7760, %v7792, %v7794
          %v7796 = vrot.slane %v7759, 1
          %v7797 = vsel %vm7760, %v7794, %v7796
          %s7798 = scalar_lea.vmem %s233, 192 [#allocation6]
          %v7799 = vld [vmem:[%s7798] sm:$0xf]
          %v7800 = vld [vmem:[%s7798 + $0x4] sm:$0xf]
          %v7801 = vld [vmem:[%s7798 + $0x8] sm:$0xf]
          %v7802 = vld [vmem:[%s7798 + $0xc] sm:$0xf]
          %v7803 = vld [vmem:[%s7798 + $0x10] sm:$0xf]
          %v7804 = vld [vmem:[%s7798 + $0x14] sm:$0xf]
          %v7805 = vld [vmem:[%s7798 + $0x18] sm:$0xf]
          %v7806 = vld [vmem:[%s7798 + $0x1c] sm:$0xf]
          %v7807 = vld [vmem:[%s7798 + $0x20] sm:$0xf]
          %v7808 = vld [vmem:[%s7798 + $0x24] sm:$0xf]
          %v7809 = vld [vmem:[%s7798 + $0x28] sm:$0xf]
          %v7810 = vld [vmem:[%s7798 + $0x2c] sm:$0xf]
          %v7811 = vld [vmem:[%s7798 + $0x30] sm:$0xf]
          %v7812 = vld [vmem:[%s7798 + $0x34] sm:$0xf]
          %v7813 = vld [vmem:[%s7798 + $0x38] sm:$0xf]
          %v7814 = vld [vmem:[%s7798 + $0x3c] sm:$0xf]
          %v7815 = vld [vmem:[%s7798 + $0x40] sm:$0xf]
          %v7816 = vld [vmem:[%s7798 + $0x44] sm:$0xf]
          %v7817 = vld [vmem:[%s7798 + $0x48] sm:$0xf]
          %v7818 = vld [vmem:[%s7798 + $0x4c] sm:$0xf]
          %v7819 = vld [vmem:[%s7798 + $0x50] sm:$0xf]
          %v7820 = vld [vmem:[%s7798 + $0x54] sm:$0xf]
          %v7821 = vld [vmem:[%s7798 + $0x58] sm:$0xf]
          %v7822 = vld [vmem:[%s7798 + $0x5c] sm:$0xf]
          %v7823 = vld [vmem:[%s7798 + $0x60] sm:$0xf]
          %v7824 = vld [vmem:[%s7798 + $0x64] sm:$0xf]
          %v7825 = vld [vmem:[%s7798 + $0x68] sm:$0xf]
          %v7826 = vld [vmem:[%s7798 + $0x6c] sm:$0xf]
          %v7827 = vld [vmem:[%s7798 + $0x70] sm:$0xf]
          %v7828 = vld [vmem:[%s7798 + $0x74] sm:$0xf]
          %v7829 = vld [vmem:[%s7798 + $0x78] sm:$0xf]
          %v7830 = vld [vmem:[%s7798 + $0x7c] sm:$0xf]
          %v7831 = vld [vmem:[%s7798 + $0x80] sm:$0xf]
          %v7832 = vld [vmem:[%s7798 + $0x84] sm:$0xf]
          %v7833 = vld [vmem:[%s7798 + $0x88] sm:$0xf]
          %v7834 = vld [vmem:[%s7798 + $0x8c] sm:$0xf]
          %v7835 = vld [vmem:[%s7798 + $0x90] sm:$0xf]
          %v7836 = vld [vmem:[%s7798 + $0x94] sm:$0xf]
          %v7837 = vld [vmem:[%s7798 + $0x98] sm:$0xf]
          %v7838 = vld [vmem:[%s7798 + $0x9c] sm:$0xf]
          %v7839 = vld [vmem:[%s7798 + $0xa0] sm:$0xf]
          %v7840 = vld [vmem:[%s7798 + $0xa4] sm:$0xf]
          %v7841 = vld [vmem:[%s7798 + $0xa8] sm:$0xf]
          %v7842 = vld [vmem:[%s7798 + $0xac] sm:$0xf]
          %v7843 = vld [vmem:[%s7798 + $0xb0] sm:$0xf]
          %v7844 = vld [vmem:[%s7798 + $0xb4] sm:$0xf]
          %v7845 = vld [vmem:[%s7798 + $0xb8] sm:$0xf]
          %v7846 = vld [vmem:[%s7798 + $0xbc] sm:$0xf]
          %v7848 = vshrl.u32 %v7584, 16
          %v7850 = vshll.u32 %v7584, 16
          %v7852 = vrot.slane %v7850, 1
          %v7853 = vor.u32 %v7848, %v7852
          %v7854 = vsel %vm7606, %v7853, %v7617
          %v7856 = vshrl.u32 %v7618, 16
          %v7858 = vshll.u32 %v7618, 16
          %v7860 = vrot.slane %v7858, 1
          %v7861 = vor.u32 %v7856, %v7860
          %v7863 = vshll.u32 %v7626, 16
          %v7865 = vrot.slane %v7863, 1
          %v7866 = vsel %vm7606, %v7861, %v7865
          %v7868 = vshrl.u32 %v7763, 16
          %v7870 = vshll.u32 %v7763, 16
          %v7872 = vrot.slane %v7870, 1
          %v7873 = vor.u32 %v7868, %v7872
          %v7875 = vshll.u32 %v7765, 16
          %v7877 = vrot.slane %v7875, 1
          %v7878 = vsel %vm7606, %v7873, %v7877
          %v7879 = vshrl.u32 %v7626, 16
          %v7881 = vor.u32 %v7879, %v7865
          %v7883 = vshll.u32 %v7634, 16
          %v7885 = vrot.slane %v7883, 1
          %v7886 = vsel %vm7606, %v7881, %v7885
          %v7887 = vshrl.u32 %v7765, 16
          %v7889 = vor.u32 %v7887, %v7877
          %v7891 = vshll.u32 %v7767, 16
          %v7893 = vrot.slane %v7891, 1
          %v7894 = vsel %vm7606, %v7889, %v7893
          %v7895 = vshrl.u32 %v7634, 16
          %v7897 = vor.u32 %v7895, %v7885
          %v7899 = vshll.u32 %v7642, 16
          %v7901 = vrot.slane %v7899, 1
          %v7902 = vsel %vm7606, %v7897, %v7901
          %v7903 = vshrl.u32 %v7767, 16
          %v7905 = vor.u32 %v7903, %v7893
          %v7907 = vshll.u32 %v7769, 16
          %v7909 = vrot.slane %v7907, 1
          %v7910 = vsel %vm7606, %v7905, %v7909
          %v7911 = vshrl.u32 %v7642, 16
          %v7913 = vor.u32 %v7911, %v7901
          %v7915 = vshll.u32 %v7650, 16
          %v7917 = vrot.slane %v7915, 1
          %v7918 = vsel %vm7606, %v7913, %v7917
          %v7919 = vshrl.u32 %v7769, 16
          %v7921 = vor.u32 %v7919, %v7909
          %v7923 = vshll.u32 %v7771, 16
          %v7925 = vrot.slane %v7923, 1
          %v7926 = vsel %vm7606, %v7921, %v7925
          %v7927 = vshrl.u32 %v7650, 16
          %v7929 = vor.u32 %v7927, %v7917
          %v7931 = vshll.u32 %v7658, 16
          %v7933 = vrot.slane %v7931, 1
          %v7934 = vsel %vm7606, %v7929, %v7933
          %v7935 = vshrl.u32 %v7771, 16
          %v7937 = vor.u32 %v7935, %v7925
          %v7939 = vshll.u32 %v7773, 16
          %v7941 = vrot.slane %v7939, 1
          %v7942 = vsel %vm7606, %v7937, %v7941
          %v7943 = vshrl.u32 %v7658, 16
          %v7945 = vor.u32 %v7943, %v7933
          %v7947 = vshll.u32 %v7666, 16
          %v7949 = vrot.slane %v7947, 1
          %v7950 = vsel %vm7606, %v7945, %v7949
          %v7951 = vshrl.u32 %v7773, 16
          %v7953 = vor.u32 %v7951, %v7941
          %v7955 = vshll.u32 %v7775, 16
          %v7957 = vrot.slane %v7955, 1
          %v7958 = vsel %vm7606, %v7953, %v7957
          %v7959 = vshrl.u32 %v7666, 16
          %v7961 = vor.u32 %v7959, %v7949
          %v7963 = vshll.u32 %v7674, 16
          %v7965 = vrot.slane %v7963, 1
          %v7966 = vsel %vm7606, %v7961, %v7965
          %v7967 = vshrl.u32 %v7775, 16
          %v7969 = vor.u32 %v7967, %v7957
          %v7971 = vshll.u32 %v7777, 16
          %v7973 = vrot.slane %v7971, 1
          %v7974 = vsel %vm7606, %v7969, %v7973
          %v7975 = vshrl.u32 %v7674, 16
          %v7977 = vor.u32 %v7975, %v7965
          %v7979 = vshll.u32 %v7682, 16
          %v7981 = vrot.slane %v7979, 1
          %v7982 = vsel %vm7606, %v7977, %v7981
          %v7983 = vshrl.u32 %v7777, 16
          %v7985 = vor.u32 %v7983, %v7973
          %v7987 = vshll.u32 %v7779, 16
          %v7989 = vrot.slane %v7987, 1
          %v7990 = vsel %vm7606, %v7985, %v7989
          %v7991 = vshrl.u32 %v7682, 16
          %v7993 = vor.u32 %v7991, %v7981
          %v7995 = vshll.u32 %v7690, 16
          %v7997 = vrot.slane %v7995, 1
          %v7998 = vsel %vm7606, %v7993, %v7997
          %v7999 = vshrl.u32 %v7779, 16
          %v8001 = vor.u32 %v7999, %v7989
          %v8003 = vshll.u32 %v7781, 16
          %v8005 = vrot.slane %v8003, 1
          %v8006 = vsel %vm7606, %v8001, %v8005
          %v8007 = vshrl.u32 %v7690, 16
          %v8009 = vor.u32 %v8007, %v7997
          %v8011 = vshll.u32 %v7698, 16
          %v8013 = vrot.slane %v8011, 1
          %v8014 = vsel %vm7606, %v8009, %v8013
          %v8015 = vshrl.u32 %v7781, 16
          %v8017 = vor.u32 %v8015, %v8005
          %v8019 = vshll.u32 %v7783, 16
          %v8021 = vrot.slane %v8019, 1
          %v8022 = vsel %vm7606, %v8017, %v8021
          %v8023 = vshrl.u32 %v7698, 16
          %v8025 = vor.u32 %v8023, %v8013
          %v8027 = vshll.u32 %v7706, 16
          %v8029 = vrot.slane %v8027, 1
          %v8030 = vsel %vm7606, %v8025, %v8029
          %v8031 = vshrl.u32 %v7783, 16
          %v8033 = vor.u32 %v8031, %v8021
          %v8035 = vshll.u32 %v7785, 16
          %v8037 = vrot.slane %v8035, 1
          %v8038 = vsel %vm7606, %v8033, %v8037
          %v8039 = vshrl.u32 %v7706, 16
          %v8041 = vor.u32 %v8039, %v8029
          %v8043 = vshll.u32 %v7714, 16
          %v8045 = vrot.slane %v8043, 1
          %v8046 = vsel %vm7606, %v8041, %v8045
          %v8047 = vshrl.u32 %v7785, 16
          %v8049 = vor.u32 %v8047, %v8037
          %v8051 = vshll.u32 %v7787, 16
          %v8053 = vrot.slane %v8051, 1
          %v8054 = vsel %vm7606, %v8049, %v8053
          %v8055 = vshrl.u32 %v7714, 16
          %v8057 = vor.u32 %v8055, %v8045
          %v8059 = vshll.u32 %v7722, 16
          %v8061 = vrot.slane %v8059, 1
          %v8062 = vsel %vm7606, %v8057, %v8061
          %v8063 = vshrl.u32 %v7787, 16
          %v8065 = vor.u32 %v8063, %v8053
          %v8067 = vshll.u32 %v7789, 16
          %v8069 = vrot.slane %v8067, 1
          %v8070 = vsel %vm7606, %v8065, %v8069
          %v8071 = vshrl.u32 %v7722, 16
          %v8073 = vor.u32 %v8071, %v8061
          %v8075 = vshll.u32 %v7730, 16
          %v8077 = vrot.slane %v8075, 1
          %v8078 = vsel %vm7606, %v8073, %v8077
          %v8079 = vshrl.u32 %v7789, 16
          %v8081 = vor.u32 %v8079, %v8069
          %v8083 = vshll.u32 %v7791, 16
          %v8085 = vrot.slane %v8083, 1
          %v8086 = vsel %vm7606, %v8081, %v8085
          %v8087 = vshrl.u32 %v7730, 16
          %v8089 = vor.u32 %v8087, %v8077
          %v8091 = vshll.u32 %v7738, 16
          %v8093 = vrot.slane %v8091, 1
          %v8094 = vsel %vm7606, %v8089, %v8093
          %v8095 = vshrl.u32 %v7791, 16
          %v8097 = vor.u32 %v8095, %v8085
          %v8099 = vshll.u32 %v7793, 16
          %v8101 = vrot.slane %v8099, 1
          %v8102 = vsel %vm7606, %v8097, %v8101
          %v8103 = vshrl.u32 %v7738, 16
          %v8105 = vor.u32 %v8103, %v8093
          %v8107 = vshll.u32 %v7746, 16
          %v8109 = vrot.slane %v8107, 1
          %v8110 = vsel %vm7606, %v8105, %v8109
          %v8111 = vshrl.u32 %v7793, 16
          %v8113 = vor.u32 %v8111, %v8101
          %v8115 = vshll.u32 %v7795, 16
          %v8117 = vrot.slane %v8115, 1
          %v8118 = vsel %vm7606, %v8113, %v8117
          %v8119 = vshrl.u32 %v7746, 16
          %v8121 = vor.u32 %v8119, %v8109
          %v8123 = vshll.u32 %v7754, 16
          %v8125 = vrot.slane %v8123, 1
          %v8126 = vsel %vm7606, %v8121, %v8125
          %v8127 = vshrl.u32 %v7795, 16
          %v8129 = vor.u32 %v8127, %v8117
          %v8131 = vshll.u32 %v7797, 16
          %v8133 = vrot.slane %v8131, 1
          %v8134 = vsel %vm7606, %v8129, %v8133
          %v8135 = vshrl.u32 %v7754, 16
          %v8137 = vor.u32 %v8135, %v8125
          %v8139 = vshll.u32 %v7755, 16
          %v8141 = vrot.slane %v8139, 1
          %v8142 = vsel %vm7606, %v8137, %v8141
          %v8143 = vshrl.u32 %v7797, 16
          %v8145 = vor.u32 %v8143, %v8133
          %v8147 = vshll.u32 %v7796, 16
          %v8149 = vrot.slane %v8147, 1
          %v8150 = vsel %vm7606, %v8145, %v8149
          %v8253 = vunpack.c.l.b16 %v7799
          %v8254 = vunpack.c.l.b16 %v7800
          %v8255 = vunpack.c.l.b16 %v7801
          %v8256 = vunpack.c.l.b16 %v7802
          %v8257 = vunpack.c.l.b16 %v7803
          %v8258 = vunpack.c.l.b16 %v7804
          %v8259 = vunpack.c.l.b16 %v7805
          %v8260 = vunpack.c.l.b16 %v7806
          %v8261 = vunpack.c.l.b16 %v7807
          %v8262 = vunpack.c.l.b16 %v7808
          %v8263 = vunpack.c.l.b16 %v7809
          %v8264 = vunpack.c.l.b16 %v7810
          %v8265 = vunpack.c.l.b16 %v7811
          %v8266 = vunpack.c.l.b16 %v7812
          %v8267 = vunpack.c.l.b16 %v7813
          %v8268 = vunpack.c.l.b16 %v7814
          %v8269 = vunpack.c.l.b16 %v7815
          %v8270 = vunpack.c.l.b16 %v7816
          %v8271 = vunpack.c.l.b16 %v7817
          %v8272 = vunpack.c.l.b16 %v7818
          %v8273 = vunpack.c.l.b16 %v7819
          %v8274 = vunpack.c.l.b16 %v7820
          %v8275 = vunpack.c.l.b16 %v7821
          %v8276 = vunpack.c.l.b16 %v7822
          %v8277 = vunpack.c.l.b16 %v7823
          %v8278 = vunpack.c.l.b16 %v7824
          %v8279 = vunpack.c.l.b16 %v7825
          %v8280 = vunpack.c.l.b16 %v7826
          %v8281 = vunpack.c.l.b16 %v7827
          %v8282 = vunpack.c.l.b16 %v7828
          %v8283 = vunpack.c.l.b16 %v7829
          %v8284 = vunpack.c.l.b16 %v7830
          %v8285 = vunpack.c.l.b16 %v7831
          %v8286 = vunpack.c.l.b16 %v7832
          %v8287 = vunpack.c.l.b16 %v7833
          %v8288 = vunpack.c.l.b16 %v7834
          %v8289 = vunpack.c.l.b16 %v7835
          %v8290 = vunpack.c.l.b16 %v7836
          %v8291 = vunpack.c.l.b16 %v7837
          %v8292 = vunpack.c.l.b16 %v7838
          %v8293 = vunpack.c.l.b16 %v7839
          %v8294 = vunpack.c.l.b16 %v7840
          %v8295 = vunpack.c.l.b16 %v7841
          %v8296 = vunpack.c.l.b16 %v7842
          %v8297 = vunpack.c.l.b16 %v7843
          %v8298 = vunpack.c.l.b16 %v7844
          %v8299 = vunpack.c.l.b16 %v7845
          %v8300 = vunpack.c.l.b16 %v7846
          %v8301 = vpack.c.b16 %v8254, %v8253
          %v8302 = vpack.c.b16 %v8256, %v8255
          %v8303 = vpack.c.b16 %v8258, %v8257
          %v8304 = vpack.c.b16 %v8260, %v8259
          %v8305 = vpack.c.b16 %v8262, %v8261
          %v8306 = vpack.c.b16 %v8264, %v8263
          %v8307 = vpack.c.b16 %v8266, %v8265
          %v8308 = vpack.c.b16 %v8268, %v8267
          %v8309 = vpack.c.b16 %v8270, %v8269
          %v8310 = vpack.c.b16 %v8272, %v8271
          %v8311 = vpack.c.b16 %v8274, %v8273
          %v8312 = vpack.c.b16 %v8276, %v8275
          %v8313 = vpack.c.b16 %v8278, %v8277
          %v8314 = vpack.c.b16 %v8280, %v8279
          %v8315 = vpack.c.b16 %v8282, %v8281
          %v8316 = vpack.c.b16 %v8284, %v8283
          %v8317 = vpack.c.b16 %v8286, %v8285
          %v8318 = vpack.c.b16 %v8288, %v8287
          %v8319 = vpack.c.b16 %v8290, %v8289
          %v8320 = vpack.c.b16 %v8292, %v8291
          %v8321 = vpack.c.b16 %v8294, %v8293
          %v8322 = vpack.c.b16 %v8296, %v8295
          %v8323 = vpack.c.b16 %v8298, %v8297
          %v8324 = vpack.c.b16 %v8300, %v8299
          %8349 = vmatprep.subr.bf16.mxu0 0
          %8350 = vmatpush1.bf16.msra.mxu0 %v8301
          %8351 = vmatprep.subr.bf16.mxu0 0
          %8352 = vmatpush1.bf16.msra.mxu0 %v8302
          %8353 = vmatprep.subr.bf16.mxu0 0
          %8354 = vmatpush1.bf16.msra.mxu0 %v8303
          %8355 = vmatprep.subr.bf16.mxu0 0
          %8356 = vmatpush1.bf16.msra.mxu0 %v8304
          %8357 = vmatprep.subr.bf16.mxu0 0
          %8358 = vmatpush1.bf16.msra.mxu0 %v8305
          %8359 = vmatprep.subr.bf16.mxu0 0
          %8360 = vmatpush1.bf16.msra.mxu0 %v8306
          %8361 = vmatprep.subr.bf16.mxu0 0
          %8362 = vmatpush1.bf16.msra.mxu0 %v8307
          %8363 = vmatprep.subr.bf16.mxu0 0
          %8364 = vmatpush1.bf16.msra.mxu0 %v8308
          %8365 = vmatprep.subr.bf16.mxu0 0
          %8366 = vmatpush1.bf16.msra.mxu0 %v8309
          %8367 = vmatprep.subr.bf16.mxu0 0
          %8368 = vmatpush1.bf16.msra.mxu0 %v8310
          %8369 = vmatprep.subr.bf16.mxu0 0
          %8370 = vmatpush1.bf16.msra.mxu0 %v8311
          %8371 = vmatprep.subr.bf16.mxu0 0
          %8372 = vmatpush1.bf16.msra.mxu0 %v8312
          %8373 = vmatprep.subr.bf16.mxu0 0
          %8374 = vmatpush1.bf16.msra.mxu0 %v8313
          %8375 = vmatprep.subr.bf16.mxu0 0
          %8376 = vmatpush1.bf16.msra.mxu0 %v8314
          %8377 = vmatprep.subr.bf16.mxu0 0
          %8378 = vmatpush1.bf16.msra.mxu0 %v8315
          %8379 = vmatprep.subr.bf16.mxu0 0
          %8380 = vmatpush1.bf16.msra.mxu0 %v8316
          %8381 = vmatprep.mubr.bf16.mxu0 %v7866
          %8382 = vmatmul.mubr.bf16.gmra.mrb[0].mxu0 %v7854
          %v8383 = vpop.f32.mrb[0].mxu0
          %v8384 = vadd.f32 0.0, %v8383
          %v8385 = vpop.f32.mrb[0].mxu0
          %v8386 = vpop.f32.mrb[0].mxu0
          %v8387 = vadd.f32 0.0, %v8386
          %v8388 = vpop.f32.mrb[0].mxu0
          %8389 = vmatprep.mubr.bf16.mxu0 %v7886
          %8390 = vmatmul.mubr.bf16.gmra.mrb[0].mxu0 %v7626
          %v8391 = vpop.f32.mrb[0].mxu0
          %v8392 = vadd.f32 0.0, %v8391
          %v8393 = vpop.f32.mrb[0].mxu0
          %v8394 = vpop.f32.mrb[0].mxu0
          %v8395 = vadd.f32 0.0, %v8394
          %v8396 = vpop.f32.mrb[0].mxu0
          %8397 = vmatprep.mubr.bf16.mxu0 %v7902
          %8398 = vmatmul.mubr.bf16.gmra.mrb[0].mxu0 %v7634
          %v8399 = vpop.f32.mrb[0].mxu0
          %v8400 = vadd.f32 0.0, %v8399
          %v8401 = vpop.f32.mrb[0].mxu0
          %v8402 = vpop.f32.mrb[0].mxu0
          %v8403 = vadd.f32 0.0, %v8402
          %v8404 = vpop.f32.mrb[0].mxu0
          %8405 = vmatprep.mubr.bf16.mxu0 %v7918
          %8406 = vmatmul.mubr.bf16.gmra.mrb[0].mxu0 %v7642
          %v8407 = vpop.f32.mrb[0].mxu0
          %v8408 = vadd.f32 0.0, %v8407
          %v8409 = vpop.f32.mrb[0].mxu0
          %v8410 = vpop.f32.mrb[0].mxu0
          %v8411 = vadd.f32 0.0, %v8410
          %v8412 = vpop.f32.mrb[0].mxu0
          %8413 = vmatprep.mubr.bf16.mxu0 %v7934
          %8414 = vmatmul.mubr.bf16.gmra.mrb[0].mxu0 %v7650
          %v8415 = vpop.f32.mrb[0].mxu0
          %v8416 = vadd.f32 0.0, %v8415
          %v8417 = vpop.f32.mrb[0].mxu0
          %v8418 = vpop.f32.mrb[0].mxu0
          %v8419 = vadd.f32 0.0, %v8418
          %v8420 = vpop.f32.mrb[0].mxu0
          %8421 = vmatprep.mubr.bf16.mxu0 %v7950
          %8422 = vmatmul.mubr.bf16.gmra.mrb[0].mxu0 %v7658
          %v8423 = vpop.f32.mrb[0].mxu0
          %v8424 = vadd.f32 0.0, %v8423
          %v8425 = vpop.f32.mrb[0].mxu0
          %v8426 = vpop.f32.mrb[0].mxu0
          %v8427 = vadd.f32 0.0, %v8426
          %v8428 = vpop.f32.mrb[0].mxu0
          %8429 = vmatprep.mubr.bf16.mxu0 %v7966
          %8430 = vmatmul.mubr.bf16.gmra.mrb[0].mxu0 %v7666
          %v8431 = vpop.f32.mrb[0].mxu0
          %v8432 = vadd.f32 0.0, %v8431
          %v8433 = vpop.f32.mrb[0].mxu0
          %v8434 = vpop.f32.mrb[0].mxu0
          %v8435 = vadd.f32 0.0, %v8434
          %v8436 = vpop.f32.mrb[0].mxu0
          %8437 = vmatprep.mubr.bf16.mxu0 %v7982
          %8438 = vmatmul.mubr.bf16.gmra.mrb[0].mxu0 %v7674
          %v8439 = vpop.f32.mrb[0].mxu0
          %v8440 = vadd.f32 0.0, %v8439
          %v8441 = vpop.f32.mrb[0].mxu0
          %v8442 = vpop.f32.mrb[0].mxu0
          %v8443 = vadd.f32 0.0, %v8442
          %v8444 = vpop.f32.mrb[0].mxu0
          %8445 = vmatprep.mubr.bf16.mxu0 %v7998
          %8446 = vmatmul.mubr.bf16.gmra.mrb[0].mxu0 %v7682
          %v8447 = vpop.f32.mrb[0].mxu0
          %v8448 = vadd.f32 0.0, %v8447
          %v8449 = vpop.f32.mrb[0].mxu0
          %v8450 = vpop.f32.mrb[0].mxu0
          %v8451 = vadd.f32 0.0, %v8450
          %v8452 = vpop.f32.mrb[0].mxu0
          %8453 = vmatprep.mubr.bf16.mxu0 %v8014
          %8454 = vmatmul.mubr.bf16.gmra.mrb[0].mxu0 %v7690
          %v8455 = vpop.f32.mrb[0].mxu0
          %v8456 = vadd.f32 0.0, %v8455
          %v8457 = vpop.f32.mrb[0].mxu0
          %v8458 = vpop.f32.mrb[0].mxu0
          %v8459 = vadd.f32 0.0, %v8458
          %v8460 = vpop.f32.mrb[0].mxu0
          %8461 = vmatprep.mubr.bf16.mxu0 %v8030
          %8462 = vmatmul.mubr.bf16.gmra.mrb[0].mxu0 %v7698
          %v8463 = vpop.f32.mrb[0].mxu0
          %v8464 = vadd.f32 0.0, %v8463
          %v8465 = vpop.f32.mrb[0].mxu0
          %v8466 = vpop.f32.mrb[0].mxu0
          %v8467 = vadd.f32 0.0, %v8466
          %v8468 = vpop.f32.mrb[0].mxu0
          %8469 = vmatprep.mubr.bf16.mxu0 %v8046
          %8470 = vmatmul.mubr.bf16.gmra.mrb[0].mxu0 %v7706
          %v8471 = vpop.f32.mrb[0].mxu0
          %v8472 = vadd.f32 0.0, %v8471
          %v8473 = vpop.f32.mrb[0].mxu0
          %v8474 = vpop.f32.mrb[0].mxu0
          %v8475 = vadd.f32 0.0, %v8474
          %v8476 = vpop.f32.mrb[0].mxu0
          %8477 = vmatprep.mubr.bf16.mxu0 %v8062
          %8478 = vmatmul.mubr.bf16.gmra.mrb[0].mxu0 %v7714
          %v8479 = vpop.f32.mrb[0].mxu0
          %v8480 = vadd.f32 0.0, %v8479
          %v8481 = vpop.f32.mrb[0].mxu0
          %v8482 = vpop.f32.mrb[0].mxu0
          %v8483 = vadd.f32 0.0, %v8482
          %v8484 = vpop.f32.mrb[0].mxu0
          %8485 = vmatprep.mubr.bf16.mxu0 %v8078
          %8486 = vmatmul.mubr.bf16.gmra.mrb[0].mxu0 %v7722
          %v8487 = vpop.f32.mrb[0].mxu0
          %v8488 = vadd.f32 0.0, %v8487
          %v8489 = vpop.f32.mrb[0].mxu0
          %v8490 = vpop.f32.mrb[0].mxu0
          %v8491 = vadd.f32 0.0, %v8490
          %v8492 = vpop.f32.mrb[0].mxu0
          %8493 = vmatprep.mubr.bf16.mxu0 %v8094
          %8494 = vmatmul.mubr.bf16.gmra.mrb[0].mxu0 %v7730
          %v8495 = vpop.f32.mrb[0].mxu0
          %v8496 = vadd.f32 0.0, %v8495
          %v8497 = vpop.f32.mrb[0].mxu0
          %v8498 = vpop.f32.mrb[0].mxu0
          %v8499 = vadd.f32 0.0, %v8498
          %v8500 = vpop.f32.mrb[0].mxu0
          %8501 = vmatprep.mubr.bf16.mxu0 %v8110
          %8502 = vmatmul.mubr.bf16.gmra.mrb[0].mxu0 %v7738
          %v8503 = vpop.f32.mrb[0].mxu0
          %v8504 = vadd.f32 0.0, %v8503
          %v8505 = vpop.f32.mrb[0].mxu0
          %v8506 = vpop.f32.mrb[0].mxu0
          %v8507 = vadd.f32 0.0, %v8506
          %v8508 = vpop.f32.mrb[0].mxu0
          %8509 = vmatprep.mubr.bf16.mxu0 %v8126
          %8510 = vmatmul.mubr.bf16.gmra.mrb[0].mxu0 %v7746
          %v8511 = vpop.f32.mrb[0].mxu0
          %v8512 = vadd.f32 0.0, %v8511
          %v8513 = vpop.f32.mrb[0].mxu0
          %v8514 = vpop.f32.mrb[0].mxu0
          %v8515 = vadd.f32 0.0, %v8514
          %v8516 = vpop.f32.mrb[0].mxu0
          %8517 = vmatprep.mubr.bf16.mxu0 %v8142
          %8518 = vmatmul.mubr.bf16.gmra.mrb[0].mxu0 %v7754
          %v8519 = vpop.f32.mrb[0].mxu0
          %v8520 = vadd.f32 0.0, %v8519
          %v8521 = vpop.f32.mrb[0].mxu0
          %v8522 = vpop.f32.mrb[0].mxu0
          %v8523 = vadd.f32 0.0, %v8522
          %v8524 = vpop.f32.mrb[0].mxu0
          %8525 = vdwg.mxu0
          %8526 = vmatprep.subr.bf16.mxu0 0
          %8527 = vmatpush1.bf16.msra.mxu0 %v8317
          %8528 = vmatprep.subr.bf16.mxu0 0
          %8529 = vmatpush1.bf16.msra.mxu0 %v8318
          %8530 = vmatprep.subr.bf16.mxu0 0
          %8531 = vmatpush1.bf16.msra.mxu0 %v8319
          %8532 = vmatprep.subr.bf16.mxu0 0
          %8533 = vmatpush1.bf16.msra.mxu0 %v8320
          %8534 = vmatprep.subr.bf16.mxu0 0
          %8535 = vmatpush1.bf16.msra.mxu0 %v8321
          %8536 = vmatprep.subr.bf16.mxu0 0
          %8537 = vmatpush1.bf16.msra.mxu0 %v8322
          %8538 = vmatprep.subr.bf16.mxu0 0
          %8539 = vmatpush1.bf16.msra.mxu0 %v8323
          %8540 = vmatprep.subr.bf16.mxu0 0
          %8541 = vmatpush1.bf16.msra.mxu0 %v8324
          %8542 = vmatprep.subr.bf16.mxu0 0
          %8543 = vmatpush1.bf16.msra.mxu0 0
          %8544 = vmatprep.subr.bf16.mxu0 0
          %8545 = vmatpush1.bf16.msra.mxu0 0
          %8546 = vmatprep.subr.bf16.mxu0 0
          %8547 = vmatpush1.bf16.msra.mxu0 0
          %8548 = vmatprep.subr.bf16.mxu0 0
          %8549 = vmatpush1.bf16.msra.mxu0 0
          %8550 = vmatprep.subr.bf16.mxu0 0
          %8551 = vmatpush1.bf16.msra.mxu0 0
          %8552 = vmatprep.subr.bf16.mxu0 0
          %8553 = vmatpush1.bf16.msra.mxu0 0
          %8554 = vmatprep.subr.bf16.mxu0 0
          %8555 = vmatpush1.bf16.msra.mxu0 0
          %8556 = vmatprep.subr.bf16.mxu0 0
          %8557 = vmatpush1.bf16.msra.mxu0 0
          %8558 = vmatprep.mubr.bf16.mxu0 0
          %8559 = vmatmul.mubr.bf16.gmra.mrb[0].mxu0 %v7878
          %v8560 = vpop.f32.mrb[0].mxu0
          %v8561 = vadd.f32 %v8384, %v8560
          %v8562 = vpop.f32.mrb[0].mxu0
          %v8563 = vpop.f32.mrb[0].mxu0
          %v8564 = vadd.f32 %v8387, %v8563
          %v8565 = vpop.f32.mrb[0].mxu0
          %8566 = vmatprep.mubr.bf16.mxu0 0
          %8567 = vmatmul.mubr.bf16.gmra.mrb[0].mxu0 %v7894
          %v8568 = vpop.f32.mrb[0].mxu0
          %v8569 = vadd.f32 %v8392, %v8568
          %v8570 = vpop.f32.mrb[0].mxu0
          %v8571 = vpop.f32.mrb[0].mxu0
          %v8572 = vadd.f32 %v8395, %v8571
          %v8573 = vpop.f32.mrb[0].mxu0
          %8574 = vmatprep.mubr.bf16.mxu0 0
          %8575 = vmatmul.mubr.bf16.gmra.mrb[0].mxu0 %v7910
          %v8576 = vpop.f32.mrb[0].mxu0
          %v8577 = vadd.f32 %v8400, %v8576
          %v8578 = vpop.f32.mrb[0].mxu0
          %v8579 = vpop.f32.mrb[0].mxu0
          %v8580 = vadd.f32 %v8403, %v8579
          %v8581 = vpop.f32.mrb[0].mxu0
          %8582 = vmatprep.mubr.bf16.mxu0 0
          %8583 = vmatmul.mubr.bf16.gmra.mrb[0].mxu0 %v7926
          %v8584 = vpop.f32.mrb[0].mxu0
          %v8585 = vadd.f32 %v8408, %v8584
          %v8586 = vpop.f32.mrb[0].mxu0
          %v8587 = vpop.f32.mrb[0].mxu0
          %v8588 = vadd.f32 %v8411, %v8587
          %v8589 = vpop.f32.mrb[0].mxu0
          %8590 = vmatprep.mubr.bf16.mxu0 0
          %8591 = vmatmul.mubr.bf16.gmra.mrb[0].mxu0 %v7942
          %v8592 = vpop.f32.mrb[0].mxu0
          %v8593 = vadd.f32 %v8416, %v8592
          %v8594 = vpop.f32.mrb[0].mxu0
          %v8595 = vpop.f32.mrb[0].mxu0
          %v8596 = vadd.f32 %v8419, %v8595
          %v8597 = vpop.f32.mrb[0].mxu0
          %8598 = vmatprep.mubr.bf16.mxu0 0
          %8599 = vmatmul.mubr.bf16.gmra.mrb[0].mxu0 %v7958
          %v8600 = vpop.f32.mrb[0].mxu0
          %v8601 = vadd.f32 %v8424, %v8600
          %v8602 = vpop.f32.mrb[0].mxu0
          %v8603 = vpop.f32.mrb[0].mxu0
          %v8604 = vadd.f32 %v8427, %v8603
          %v8605 = vpop.f32.mrb[0].mxu0
          %8606 = vmatprep.mubr.bf16.mxu0 0
          %8607 = vmatmul.mubr.bf16.gmra.mrb[0].mxu0 %v7974
          %v8608 = vpop.f32.mrb[0].mxu0
          %v8609 = vadd.f32 %v8432, %v8608
          %v8610 = vpop.f32.mrb[0].mxu0
          %v8611 = vpop.f32.mrb[0].mxu0
          %v8612 = vadd.f32 %v8435, %v8611
          %v8613 = vpop.f32.mrb[0].mxu0
          %8614 = vmatprep.mubr.bf16.mxu0 0
          %8615 = vmatmul.mubr.bf16.gmra.mrb[0].mxu0 %v7990
          %v8616 = vpop.f32.mrb[0].mxu0
          %v8617 = vadd.f32 %v8440, %v8616
          %v8618 = vpop.f32.mrb[0].mxu0
          %v8619 = vpop.f32.mrb[0].mxu0
          %v8620 = vadd.f32 %v8443, %v8619
          %v8621 = vpop.f32.mrb[0].mxu0
          %8622 = vmatprep.mubr.bf16.mxu0 0
          %8623 = vmatmul.mubr.bf16.gmra.mrb[0].mxu0 %v8006
          %v8624 = vpop.f32.mrb[0].mxu0
          %v8625 = vadd.f32 %v8448, %v8624
          %v8626 = vpop.f32.mrb[0].mxu0
          %v8627 = vpop.f32.mrb[0].mxu0
          %v8628 = vadd.f32 %v8451, %v8627
          %v8629 = vpop.f32.mrb[0].mxu0
          %8630 = vmatprep.mubr.bf16.mxu0 0
          %8631 = vmatmul.mubr.bf16.gmra.mrb[0].mxu0 %v8022
          %v8632 = vpop.f32.mrb[0].mxu0
          %v8633 = vadd.f32 %v8456, %v8632
          %v8634 = vpop.f32.mrb[0].mxu0
          %v8635 = vpop.f32.mrb[0].mxu0
          %v8636 = vadd.f32 %v8459, %v8635
          %v8637 = vpop.f32.mrb[0].mxu0
          %8638 = vmatprep.mubr.bf16.mxu0 0
          %8639 = vmatmul.mubr.bf16.gmra.mrb[0].mxu0 %v8038
          %v8640 = vpop.f32.mrb[0].mxu0
          %v8641 = vadd.f32 %v8464, %v8640
          %v8642 = vpop.f32.mrb[0].mxu0
          %v8643 = vpop.f32.mrb[0].mxu0
          %v8644 = vadd.f32 %v8467, %v8643
          %v8645 = vpop.f32.mrb[0].mxu0
          %8646 = vmatprep.mubr.bf16.mxu0 0
          %8647 = vmatmul.mubr.bf16.gmra.mrb[0].mxu0 %v8054
          %v8648 = vpop.f32.mrb[0].mxu0
          %v8649 = vadd.f32 %v8472, %v8648
          %v8650 = vpop.f32.mrb[0].mxu0
          %v8651 = vpop.f32.mrb[0].mxu0
          %v8652 = vadd.f32 %v8475, %v8651
          %v8653 = vpop.f32.mrb[0].mxu0
          %8654 = vmatprep.mubr.bf16.mxu0 0
          %8655 = vmatmul.mubr.bf16.gmra.mrb[0].mxu0 %v8070
          %v8656 = vpop.f32.mrb[0].mxu0
          %v8657 = vadd.f32 %v8480, %v8656
          %v8658 = vpop.f32.mrb[0].mxu0
          %v8659 = vpop.f32.mrb[0].mxu0
          %v8660 = vadd.f32 %v8483, %v8659
          %v8661 = vpop.f32.mrb[0].mxu0
          %8662 = vmatprep.mubr.bf16.mxu0 0
          %8663 = vmatmul.mubr.bf16.gmra.mrb[0].mxu0 %v8086
          %v8664 = vpop.f32.mrb[0].mxu0
          %v8665 = vadd.f32 %v8488, %v8664
          %v8666 = vpop.f32.mrb[0].mxu0
          %v8667 = vpop.f32.mrb[0].mxu0
          %v8668 = vadd.f32 %v8491, %v8667
          %v8669 = vpop.f32.mrb[0].mxu0
          %8670 = vmatprep.mubr.bf16.mxu0 0
          %8671 = vmatmul.mubr.bf16.gmra.mrb[0].mxu0 %v8102
          %v8672 = vpop.f32.mrb[0].mxu0
          %v8673 = vadd.f32 %v8496, %v8672
          %v8674 = vpop.f32.mrb[0].mxu0
          %v8675 = vpop.f32.mrb[0].mxu0
          %v8676 = vadd.f32 %v8499, %v8675
          %v8677 = vpop.f32.mrb[0].mxu0
          %8678 = vmatprep.mubr.bf16.mxu0 0
          %8679 = vmatmul.mubr.bf16.gmra.mrb[0].mxu0 %v8118
          %v8680 = vpop.f32.mrb[0].mxu0
          %v8681 = vadd.f32 %v8504, %v8680
          %v8682 = vpop.f32.mrb[0].mxu0
          %v8683 = vpop.f32.mrb[0].mxu0
          %v8684 = vadd.f32 %v8507, %v8683
          %v8685 = vpop.f32.mrb[0].mxu0
          %8686 = vmatprep.mubr.bf16.mxu0 0
          %8687 = vmatmul.mubr.bf16.gmra.mrb[0].mxu0 %v8134
          %v8688 = vpop.f32.mrb[0].mxu0
          %v8689 = vadd.f32 %v8512, %v8688
          %v8690 = vpop.f32.mrb[0].mxu0
          %v8691 = vpop.f32.mrb[0].mxu0
          %v8692 = vadd.f32 %v8515, %v8691
          %v8693 = vpop.f32.mrb[0].mxu0
          %8694 = vmatprep.mubr.bf16.mxu0 0
          %8695 = vmatmul.mubr.bf16.gmra.mrb[0].mxu0 %v8150
          %v8696 = vpop.f32.mrb[0].mxu0
          %v8697 = vadd.f32 %v8520, %v8696
          %v8698 = vpop.f32.mrb[0].mxu0
          %v8699 = vpop.f32.mrb[0].mxu0
          %v8700 = vadd.f32 %v8523, %v8699
          %v8701 = vpop.f32.mrb[0].mxu0
          %8702 = vdwg.mxu0
          %v8703 = vld [vmem:[#allocation5] sm:$0xff]
          %v8704 = vld [vmem:[#allocation5 + $0x8] sm:$0xff]
          %v8705 = vld [vmem:[#allocation5 + $0x10] sm:$0xff]
          %v8706 = vld [vmem:[#allocation5 + $0x18] sm:$0xff]
          %v8707 = vld [vmem:[#allocation5 + $0x20] sm:$0xff]
          %v8708 = vld [vmem:[#allocation5 + $0x28] sm:$0xff]
          %v8709 = vld [vmem:[#allocation5 + $0x30] sm:$0xff]
          %v8710 = vld [vmem:[#allocation5 + $0x38] sm:$0xff]
          %v8711 = vld [vmem:[#allocation5 + $0x40] sm:$0xff]
          %v8712 = vld [vmem:[#allocation5 + $0x48] sm:$0xff]
          %v8713 = vld [vmem:[#allocation5 + $0x50] sm:$0xff]
          %v8714 = vld [vmem:[#allocation5 + $0x58] sm:$0xff]
          %v8715 = vld [vmem:[#allocation5 + $0x60] sm:$0xff]
          %v8716 = vld [vmem:[#allocation5 + $0x68] sm:$0xff]
          %v8717 = vld [vmem:[#allocation5 + $0x70] sm:$0xff]
          %v8718 = vld [vmem:[#allocation5 + $0x78] sm:$0xff]
          %v8719 = vld [vmem:[#allocation5 + $0x80] sm:$0xff]
          %v8720 = vld [vmem:[#allocation5 + $0x88] sm:$0xff]
          %v8721 = vld [vmem:[#allocation5 + $0x90] sm:$0xff]
          %v8722 = vld [vmem:[#allocation5 + $0x98] sm:$0xff]
          %v8723 = vld [vmem:[#allocation5 + $0xa0] sm:$0xff]
          %v8724 = vld [vmem:[#allocation5 + $0xa8] sm:$0xff]
          %v8725 = vld [vmem:[#allocation5 + $0xb0] sm:$0xff]
          %v8726 = vld [vmem:[#allocation5 + $0xb8] sm:$0xff]
          %v8727 = vld [vmem:[#allocation5 + $0xc0] sm:$0xff]
          %v8728 = vld [vmem:[#allocation5 + $0xc8] sm:$0xff]
          %v8729 = vld [vmem:[#allocation5 + $0xd0] sm:$0xff]
          %v8730 = vld [vmem:[#allocation5 + $0xd8] sm:$0xff]
          %v8731 = vld [vmem:[#allocation5 + $0xe0] sm:$0xff]
          %v8732 = vld [vmem:[#allocation5 + $0xe8] sm:$0xff]
          %v8733 = vld [vmem:[#allocation5 + $0xf0] sm:$0xff]
          %v8734 = vld [vmem:[#allocation5 + $0xf8] sm:$0xff]
          %v8735 = vld [vmem:[#allocation5 + $0x100] sm:$0xff]
          %v8736 = vld [vmem:[#allocation5 + $0x108] sm:$0xff]
          %v8737 = vld [vmem:[#allocation5 + $0x110] sm:$0xff]
          %v8738 = vld [vmem:[#allocation5 + $0x118] sm:$0xff]
          %v8739 = vadd.f32 %v8703, %v8561
          %v8740 = vadd.f32 %v8704, %v8564
          %v8741 = vadd.f32 %v8705, %v8569
          %v8742 = vadd.f32 %v8706, %v8572
          %v8743 = vadd.f32 %v8707, %v8577
          %v8744 = vadd.f32 %v8708, %v8580
          %v8745 = vadd.f32 %v8709, %v8585
          %v8746 = vadd.f32 %v8710, %v8588
          %v8747 = vadd.f32 %v8711, %v8593
          %v8748 = vadd.f32 %v8712, %v8596
          %v8749 = vadd.f32 %v8713, %v8601
          %v8750 = vadd.f32 %v8714, %v8604
          %v8751 = vadd.f32 %v8715, %v8609
          %v8752 = vadd.f32 %v8716, %v8612
          %v8753 = vadd.f32 %v8717, %v8617
          %v8754 = vadd.f32 %v8718, %v8620
          %v8755 = vadd.f32 %v8719, %v8625
          %v8756 = vadd.f32 %v8720, %v8628
          %v8757 = vadd.f32 %v8721, %v8633
          %v8758 = vadd.f32 %v8722, %v8636
          %v8759 = vadd.f32 %v8723, %v8641
          %v8760 = vadd.f32 %v8724, %v8644
          %v8761 = vadd.f32 %v8725, %v8649
          %v8762 = vadd.f32 %v8726, %v8652
          %v8763 = vadd.f32 %v8727, %v8657
          %v8764 = vadd.f32 %v8728, %v8660
          %v8765 = vadd.f32 %v8729, %v8665
          %v8766 = vadd.f32 %v8730, %v8668
          %v8767 = vadd.f32 %v8731, %v8673
          %v8768 = vadd.f32 %v8732, %v8676
          %v8769 = vadd.f32 %v8733, %v8681
          %v8770 = vadd.f32 %v8734, %v8684
          %v8771 = vadd.f32 %v8735, %v8689
          %v8772 = vadd.f32 %v8736, %v8692
          %v8773 = vadd.f32 %v8737, %v8697
          %v8774 = vadd.f32 %v8738, %v8700
          %8775 = vst [vmem:[#allocation5] sm:$0xff] %v8739
          %8776 = vst [vmem:[#allocation5 + $0x8] sm:$0xff] %v8740
          %8777 = vst [vmem:[#allocation5 + $0x10] sm:$0xff] %v8741
          %8778 = vst [vmem:[#allocation5 + $0x18] sm:$0xff] %v8742
          %8779 = vst [vmem:[#allocation5 + $0x20] sm:$0xff] %v8743
          %8780 = vst [vmem:[#allocation5 + $0x28] sm:$0xff] %v8744
          %8781 = vst [vmem:[#allocation5 + $0x30] sm:$0xff] %v8745
          %8782 = vst [vmem:[#allocation5 + $0x38] sm:$0xff] %v8746
          %8783 = vst [vmem:[#allocation5 + $0x40] sm:$0xff] %v8747
          %8784 = vst [vmem:[#allocation5 + $0x48] sm:$0xff] %v8748
          %8785 = vst [vmem:[#allocation5 + $0x50] sm:$0xff] %v8749
          %8786 = vst [vmem:[#allocation5 + $0x58] sm:$0xff] %v8750
          %8787 = vst [vmem:[#allocation5 + $0x60] sm:$0xff] %v8751
          %8788 = vst [vmem:[#allocation5 + $0x68] sm:$0xff] %v8752
          %8789 = vst [vmem:[#allocation5 + $0x70] sm:$0xff] %v8753
          %8790 = vst [vmem:[#allocation5 + $0x78] sm:$0xff] %v8754
          %8791 = vst [vmem:[#allocation5 + $0x80] sm:$0xff] %v8755
          %8792 = vst [vmem:[#allocation5 + $0x88] sm:$0xff] %v8756
          %8793 = vst [vmem:[#allocation5 + $0x90] sm:$0xff] %v8757
          %8794 = vst [vmem:[#allocation5 + $0x98] sm:$0xff] %v8758
          %8795 = vst [vmem:[#allocation5 + $0xa0] sm:$0xff] %v8759
          %8796 = vst [vmem:[#allocation5 + $0xa8] sm:$0xff] %v8760
          %8797 = vst [vmem:[#allocation5 + $0xb0] sm:$0xff] %v8761
          %8798 = vst [vmem:[#allocation5 + $0xb8] sm:$0xff] %v8762
          %8799 = vst [vmem:[#allocation5 + $0xc0] sm:$0xff] %v8763
          %8800 = vst [vmem:[#allocation5 + $0xc8] sm:$0xff] %v8764
          %8801 = vst [vmem:[#allocation5 + $0xd0] sm:$0xff] %v8765
          %8802 = vst [vmem:[#allocation5 + $0xd8] sm:$0xff] %v8766
          %8803 = vst [vmem:[#allocation5 + $0xe0] sm:$0xff] %v8767
          %8804 = vst [vmem:[#allocation5 + $0xe8] sm:$0xff] %v8768
          %8805 = vst [vmem:[#allocation5 + $0xf0] sm:$0xff] %v8769
          %8806 = vst [vmem:[#allocation5 + $0xf8] sm:$0xff] %v8770
          %8807 = vst [vmem:[#allocation5 + $0x100] sm:$0xff] %v8771
          %8808 = vst [vmem:[#allocation5 + $0x108] sm:$0xff] %v8772
          %8809 = vst [vmem:[#allocation5 + $0x110] sm:$0xff] %v8773
          %8810 = vst [vmem:[#allocation5 + $0x118] sm:$0xff] %v8774
          %v8811 = vld [vmem:[#allocation3 + $0x14] sm:$0xe]
          %v8812 = vld [vmem:[#allocation3 + $0x18] sm:$0xf]
          %v8813 = vld [vmem:[#allocation3 + $0x1c] sm:$0xf]
          %v8814 = vld [vmem:[#allocation3 + $0x20] sm:$0xf]
          %v8815 = vld [vmem:[#allocation3 + $0x24] sm:$0xf]
          %v8816 = vld [vmem:[#allocation3 + $0x28] sm:$0xf]
          %v8817 = vld [vmem:[#allocation3 + $0x2c] sm:$0xf]
          %v8818 = vld [vmem:[#allocation3 + $0x30] sm:$0xf]
          %v8819 = vld [vmem:[#allocation3 + $0x34] sm:$0xf]
          %v8820 = vld [vmem:[#allocation3 + $0x38] sm:$0xf]
          %v8821 = vld [vmem:[#allocation3 + $0x3c] sm:$0xf]
          %v8822 = vld [vmem:[#allocation3 + $0x40] sm:$0xf]
          %v8823 = vld [vmem:[#allocation3 + $0x44] sm:$0xf]
          %v8824 = vld [vmem:[#allocation3 + $0x48] sm:$0xf]
          %v8825 = vld [vmem:[#allocation3 + $0x4c] sm:$0xf]
          %v8826 = vld [vmem:[#allocation3 + $0x50] sm:$0xf]
          %v8827 = vld [vmem:[#allocation3 + $0x54] sm:$0xf]
          %v8828 = vld [vmem:[#allocation3 + $0x58] sm:$0xf]
          %v8829 = vld [vmem:[#allocation3 + $0x5c] sm:$0xf]
          %v8830 = vld [vmem:[#allocation3 + $0x60] sm:$0xf]
          %v8831 = vld [vmem:[#allocation3 + $0x64] sm:$0xf]
          %v8832 = vld [vmem:[#allocation3 + $0x68] sm:$0xf]
          %v8833 = vld [vmem:[#allocation3 + $0x6c] sm:$0xf]
          %v8834 = vld [vmem:[#allocation3 + $0x70] sm:$0xf]
          %v8835 = vld [vmem:[#allocation3 + $0x74] sm:$0xf]
          %v8836 = vld [vmem:[#allocation3 + $0x78] sm:$0xf]
          %v8837 = vld [vmem:[#allocation3 + $0x7c] sm:$0xf]
          %v8838 = vld [vmem:[#allocation3 + $0x80] sm:$0xf]
          %v8839 = vld [vmem:[#allocation3 + $0x84] sm:$0xf]
          %v8840 = vld [vmem:[#allocation3 + $0x88] sm:$0xf]
          %v8841 = vld [vmem:[#allocation3 + $0x8c] sm:$0xf]
          %v8842 = vld [vmem:[#allocation3 + $0x90] sm:$0xf]
          %v8843 = vld [vmem:[#allocation3 + $0x94] sm:$0xf]
          %v8844 = vld [vmem:[#allocation3 + $0x98] sm:$0xf]
          %v8845 = vld [vmem:[#allocation3 + $0x9c] sm:$0xf]
          %v8846 = vld [vmem:[#allocation3 + $0xa0] sm:$0xf]
          %v8847 = vld [vmem:[#allocation3 + $0xa4] sm:$0x3]
          %v8848 = vld [vmem:[#allocation3 + $0x14] sm:$0xc]
          %v8849 = vld [vmem:[#allocation3 + $0xa4] sm:$0x7]
          %v8887 = vunpack.c.l.b16 %v8811
          %v8888 = vunpack.c.l.b16 %v8812
          %v8889 = vunpack.c.l.b16 %v8813
          %v8890 = vunpack.c.l.b16 %v8814
          %v8891 = vunpack.c.l.b16 %v8815
          %v8892 = vunpack.c.l.b16 %v8816
          %v8893 = vunpack.c.l.b16 %v8817
          %v8894 = vunpack.c.l.b16 %v8818
          %v8895 = vunpack.c.l.b16 %v8819
          %v8896 = vunpack.c.l.b16 %v8820
          %v8897 = vunpack.c.l.b16 %v8821
          %v8898 = vunpack.c.l.b16 %v8822
          %v8899 = vunpack.c.l.b16 %v8823
          %v8900 = vunpack.c.l.b16 %v8824
          %v8901 = vunpack.c.l.b16 %v8825
          %v8902 = vunpack.c.l.b16 %v8826
          %v8903 = vunpack.c.l.b16 %v8827
          %v8904 = vunpack.c.l.b16 %v8828
          %v8905 = vunpack.c.l.b16 %v8829
          %v8906 = vunpack.c.l.b16 %v8830
          %v8907 = vunpack.c.l.b16 %v8831
          %v8908 = vunpack.c.l.b16 %v8832
          %v8909 = vunpack.c.l.b16 %v8833
          %v8910 = vunpack.c.l.b16 %v8834
          %v8911 = vunpack.c.l.b16 %v8835
          %v8912 = vunpack.c.l.b16 %v8836
          %v8913 = vunpack.c.l.b16 %v8837
          %v8914 = vunpack.c.l.b16 %v8838
          %v8915 = vunpack.c.l.b16 %v8839
          %v8916 = vunpack.c.l.b16 %v8840
          %v8917 = vunpack.c.l.b16 %v8841
          %v8918 = vunpack.c.l.b16 %v8842
          %v8919 = vunpack.c.l.b16 %v8843
          %v8920 = vunpack.c.l.b16 %v8844
          %v8921 = vunpack.c.l.b16 %v8845
          %v8922 = vunpack.c.l.b16 %v8846
          %v8923 = vunpack.c.l.b16 %v8847
          %v8924 = vpack.c.b16 %v8888, %v8887
          %v8925 = vpack.c.b16 %v8890, %v8889
          %v8926 = vpack.c.b16 %v8892, %v8891
          %v8927 = vpack.c.b16 %v8894, %v8893
          %v8928 = vpack.c.b16 %v8896, %v8895
          %v8929 = vpack.c.b16 %v8898, %v8897
          %v8930 = vpack.c.b16 %v8900, %v8899
          %v8931 = vpack.c.b16 %v8902, %v8901
          %v8932 = vpack.c.b16 %v8904, %v8903
          %v8933 = vpack.c.b16 %v8906, %v8905
          %v8934 = vpack.c.b16 %v8908, %v8907
          %v8935 = vpack.c.b16 %v8910, %v8909
          %v8936 = vpack.c.b16 %v8912, %v8911
          %v8937 = vpack.c.b16 %v8914, %v8913
          %v8938 = vpack.c.b16 %v8916, %v8915
          %v8939 = vpack.c.b16 %v8918, %v8917
          %v8940 = vpack.c.b16 %v8920, %v8919
          %v8941 = vpack.c.b16 %v8922, %v8921
          %v8942 = vpack.c.b16 %v8923, %v8923
          %v8944 = vunpack.c.l.b16 %v8848
          %v8945 = vpack.c.b16 %v8888, %v8944
          %v8947 = vshrl.u32 %v8945, 16
          %v8949 = vshll.u32 %v8945, 16
          %v8951 = vrot.slane %v8949, 1
          %v8952 = vor.u32 %v8947, %v8951
          %v8954 = vshll.u32 %v8925, 16
          %v8956 = vrot.slane %v8954, 1
          %v8957 = vsel %vm7606, %v8952, %v8956
          %v8958 = vshrl.u32 %v8925, 16
          %v8960 = vor.u32 %v8958, %v8956
          %v8962 = vshll.u32 %v8926, 16
          %v8964 = vrot.slane %v8962, 1
          %v8965 = vsel %vm7606, %v8960, %v8964
          %v8966 = vshrl.u32 %v8926, 16
          %v8968 = vor.u32 %v8966, %v8964
          %v8970 = vshll.u32 %v8927, 16
          %v8972 = vrot.slane %v8970, 1
          %v8973 = vsel %vm7606, %v8968, %v8972
          %v8974 = vshrl.u32 %v8927, 16
          %v8976 = vor.u32 %v8974, %v8972
          %v8978 = vshll.u32 %v8928, 16
          %v8980 = vrot.slane %v8978, 1
          %v8981 = vsel %vm7606, %v8976, %v8980
          %v8982 = vshrl.u32 %v8928, 16
          %v8984 = vor.u32 %v8982, %v8980
          %v8986 = vshll.u32 %v8929, 16
          %v8988 = vrot.slane %v8986, 1
          %v8989 = vsel %vm7606, %v8984, %v8988
          %v8990 = vshrl.u32 %v8929, 16
          %v8992 = vor.u32 %v8990, %v8988
          %v8994 = vshll.u32 %v8930, 16
          %v8996 = vrot.slane %v8994, 1
          %v8997 = vsel %vm7606, %v8992, %v8996
          %v8998 = vshrl.u32 %v8930, 16
          %v9000 = vor.u32 %v8998, %v8996
          %v9002 = vshll.u32 %v8931, 16
          %v9004 = vrot.slane %v9002, 1
          %v9005 = vsel %vm7606, %v9000, %v9004
          %v9006 = vshrl.u32 %v8931, 16
          %v9008 = vor.u32 %v9006, %v9004
          %v9010 = vshll.u32 %v8932, 16
          %v9012 = vrot.slane %v9010, 1
          %v9013 = vsel %vm7606, %v9008, %v9012
          %v9014 = vshrl.u32 %v8932, 16
          %v9016 = vor.u32 %v9014, %v9012
          %v9018 = vshll.u32 %v8933, 16
          %v9020 = vrot.slane %v9018, 1
          %v9021 = vsel %vm7606, %v9016, %v9020
          %v9022 = vshrl.u32 %v8933, 16
          %v9024 = vor.u32 %v9022, %v9020
          %v9026 = vshll.u32 %v8934, 16
          %v9028 = vrot.slane %v9026, 1
          %v9029 = vsel %vm7606, %v9024, %v9028
          %v9030 = vshrl.u32 %v8934, 16
          %v9032 = vor.u32 %v9030, %v9028
          %v9034 = vshll.u32 %v8935, 16
          %v9036 = vrot.slane %v9034, 1
          %v9037 = vsel %vm7606, %v9032, %v9036
          %v9038 = vshrl.u32 %v8935, 16
          %v9040 = vor.u32 %v9038, %v9036
          %v9042 = vshll.u32 %v8936, 16
          %v9044 = vrot.slane %v9042, 1
          %v9045 = vsel %vm7606, %v9040, %v9044
          %v9046 = vshrl.u32 %v8936, 16
          %v9048 = vor.u32 %v9046, %v9044
          %v9050 = vshll.u32 %v8937, 16
          %v9052 = vrot.slane %v9050, 1
          %v9053 = vsel %vm7606, %v9048, %v9052
          %v9054 = vshrl.u32 %v8937, 16
          %v9056 = vor.u32 %v9054, %v9052
          %v9058 = vshll.u32 %v8938, 16
          %v9060 = vrot.slane %v9058, 1
          %v9061 = vsel %vm7606, %v9056, %v9060
          %v9062 = vshrl.u32 %v8938, 16
          %v9064 = vor.u32 %v9062, %v9060
          %v9066 = vshll.u32 %v8939, 16
          %v9068 = vrot.slane %v9066, 1
          %v9069 = vsel %vm7606, %v9064, %v9068
          %v9070 = vshrl.u32 %v8939, 16
          %v9072 = vor.u32 %v9070, %v9068
          %v9074 = vshll.u32 %v8940, 16
          %v9076 = vrot.slane %v9074, 1
          %v9077 = vsel %vm7606, %v9072, %v9076
          %v9078 = vshrl.u32 %v8940, 16
          %v9080 = vor.u32 %v9078, %v9076
          %v9082 = vshll.u32 %v8941, 16
          %v9084 = vrot.slane %v9082, 1
          %v9085 = vsel %vm7606, %v9080, %v9084
          %v9086 = vshrl.u32 %v8941, 16
          %v9088 = vor.u32 %v9086, %v9084
          %v9090 = vshll.u32 %v8942, 16
          %v9092 = vrot.slane %v9090, 1
          %v9093 = vsel %vm7606, %v9088, %v9092
          %v9094 = vshrl.u32 %v8942, 16
          %v9096 = vor.u32 %v9094, %v9092
          %v9098 = vunpack.c.l.b16 %v8849
          %v9099 = vpack.c.b16 %v9098, %v9098
          %v9100 = vrot.slane %v8945, 1
          %v9101 = vrot.slane %v8925, 1
          %v9102 = vsel %vm7760, %v9100, %v9101
          %v9103 = vrot.slane %v8926, 1
          %v9104 = vsel %vm7760, %v9101, %v9103
          %v9105 = vrot.slane %v8927, 1
          %v9106 = vsel %vm7760, %v9103, %v9105
          %v9107 = vrot.slane %v8928, 1
          %v9108 = vsel %vm7760, %v9105, %v9107
          %v9109 = vrot.slane %v8929, 1
          %v9110 = vsel %vm7760, %v9107, %v9109
          %v9111 = vrot.slane %v8930, 1
          %v9112 = vsel %vm7760, %v9109, %v9111
          %v9113 = vrot.slane %v8931, 1
          %v9114 = vsel %vm7760, %v9111, %v9113
          %v9115 = vrot.slane %v8932, 1
          %v9116 = vsel %vm7760, %v9113, %v9115
          %v9117 = vrot.slane %v8933, 1
          %v9118 = vsel %vm7760, %v9115, %v9117
          %v9119 = vrot.slane %v8934, 1
          %v9120 = vsel %vm7760, %v9117, %v9119
          %v9121 = vrot.slane %v8935, 1
          %v9122 = vsel %vm7760, %v9119, %v9121
          %v9123 = vrot.slane %v8936, 1
          %v9124 = vsel %vm7760, %v9121, %v9123
          %v9125 = vrot.slane %v8937, 1
          %v9126 = vsel %vm7760, %v9123, %v9125
          %v9127 = vrot.slane %v8938, 1
          %v9128 = vsel %vm7760, %v9125, %v9127
          %v9129 = vrot.slane %v8939, 1
          %v9130 = vsel %vm7760, %v9127, %v9129
          %v9131 = vrot.slane %v8940, 1
          %v9132 = vsel %vm7760, %v9129, %v9131
          %v9133 = vrot.slane %v8941, 1
          %v9134 = vsel %vm7760, %v9131, %v9133
          %v9135 = vrot.slane %v9099, 1
          %v9136 = vsel %vm7760, %v9133, %v9135
          %s9137 = scalar_lea.vmem %s233, 384 [#allocation6]
          %v9138 = vld [vmem:[%s9137] sm:$0xf]
          %v9139 = vld [vmem:[%s9137 + $0x4] sm:$0xf]
          %v9140 = vld [vmem:[%s9137 + $0x8] sm:$0xf]
          %v9141 = vld [vmem:[%s9137 + $0xc] sm:$0xf]
          %v9142 = vld [vmem:[%s9137 + $0x10] sm:$0xf]
          %v9143 = vld [vmem:[%s9137 + $0x14] sm:$0xf]
          %v9144 = vld [vmem:[%s9137 + $0x18] sm:$0xf]
          %v9145 = vld [vmem:[%s9137 + $0x1c] sm:$0xf]
          %v9146 = vld [vmem:[%s9137 + $0x20] sm:$0xf]
          %v9147 = vld [vmem:[%s9137 + $0x24] sm:$0xf]
          %v9148 = vld [vmem:[%s9137 + $0x28] sm:$0xf]
          %v9149 = vld [vmem:[%s9137 + $0x2c] sm:$0xf]
          %v9150 = vld [vmem:[%s9137 + $0x30] sm:$0xf]
          %v9151 = vld [vmem:[%s9137 + $0x34] sm:$0xf]
          %v9152 = vld [vmem:[%s9137 + $0x38] sm:$0xf]
          %v9153 = vld [vmem:[%s9137 + $0x3c] sm:$0xf]
          %v9154 = vld [vmem:[%s9137 + $0x40] sm:$0xf]
          %v9155 = vld [vmem:[%s9137 + $0x44] sm:$0xf]
          %v9156 = vld [vmem:[%s9137 + $0x48] sm:$0xf]
          %v9157 = vld [vmem:[%s9137 + $0x4c] sm:$0xf]
          %v9158 = vld [vmem:[%s9137 + $0x50] sm:$0xf]
          %v9159 = vld [vmem:[%s9137 + $0x54] sm:$0xf]
          %v9160 = vld [vmem:[%s9137 + $0x58] sm:$0xf]
          %v9161 = vld [vmem:[%s9137 + $0x5c] sm:$0xf]
          %v9162 = vld [vmem:[%s9137 + $0x60] sm:$0xf]
          %v9163 = vld [vmem:[%s9137 + $0x64] sm:$0xf]
          %v9164 = vld [vmem:[%s9137 + $0x68] sm:$0xf]
          %v9165 = vld [vmem:[%s9137 + $0x6c] sm:$0xf]
          %v9166 = vld [vmem:[%s9137 + $0x70] sm:$0xf]
          %v9167 = vld [vmem:[%s9137 + $0x74] sm:$0xf]
          %v9168 = vld [vmem:[%s9137 + $0x78] sm:$0xf]
          %v9169 = vld [vmem:[%s9137 + $0x7c] sm:$0xf]
          %v9170 = vld [vmem:[%s9137 + $0x80] sm:$0xf]
          %v9171 = vld [vmem:[%s9137 + $0x84] sm:$0xf]
          %v9172 = vld [vmem:[%s9137 + $0x88] sm:$0xf]
          %v9173 = vld [vmem:[%s9137 + $0x8c] sm:$0xf]
          %v9174 = vld [vmem:[%s9137 + $0x90] sm:$0xf]
          %v9175 = vld [vmem:[%s9137 + $0x94] sm:$0xf]
          %v9176 = vld [vmem:[%s9137 + $0x98] sm:$0xf]
          %v9177 = vld [vmem:[%s9137 + $0x9c] sm:$0xf]
          %v9178 = vld [vmem:[%s9137 + $0xa0] sm:$0xf]
          %v9179 = vld [vmem:[%s9137 + $0xa4] sm:$0xf]
          %v9180 = vld [vmem:[%s9137 + $0xa8] sm:$0xf]
          %v9181 = vld [vmem:[%s9137 + $0xac] sm:$0xf]
          %v9182 = vld [vmem:[%s9137 + $0xb0] sm:$0xf]
          %v9183 = vld [vmem:[%s9137 + $0xb4] sm:$0xf]
          %v9184 = vld [vmem:[%s9137 + $0xb8] sm:$0xf]
          %v9185 = vld [vmem:[%s9137 + $0xbc] sm:$0xf]
          %vm9186 = vsmask.f32 6400
          %v9188 = vshrl.u32 %v8924, 16
          %v9190 = vrot.slane %v9188, 1
          %v9191 = vshll.u32 %v8924, 16
          %v9193 = vrot.slane %v9191, 2
          %v9194 = vor.u32 %v9190, %v9193
          %v9195 = vrot.slane %v8958, 1
          %v9196 = vrot.slane %v8954, 2
          %v9197 = vor.u32 %v9195, %v9196
          %v9198 = vsel %vm9186, %v9194, %v9197
          %v9200 = vshrl.u32 %v8957, 16
          %v9202 = vrot.slane %v9200, 1
          %v9203 = vshll.u32 %v8957, 16
          %v9205 = vrot.slane %v9203, 2
          %v9206 = vor.u32 %v9202, %v9205
          %v9208 = vshrl.u32 %v8965, 16
          %v9210 = vrot.slane %v9208, 1
          %v9211 = vshll.u32 %v8965, 16
          %v9213 = vrot.slane %v9211, 2
          %v9214 = vor.u32 %v9210, %v9213
          %v9215 = vsel %vm9186, %v9206, %v9214
          %v9217 = vshrl.u32 %v9102, 16
          %v9219 = vrot.slane %v9217, 1
          %v9220 = vshll.u32 %v9102, 16
          %v9222 = vrot.slane %v9220, 2
          %v9223 = vor.u32 %v9219, %v9222
          %v9225 = vshrl.u32 %v9104, 16
          %v9227 = vrot.slane %v9225, 1
          %v9228 = vshll.u32 %v9104, 16
          %v9230 = vrot.slane %v9228, 2
          %v9231 = vor.u32 %v9227, %v9230
          %v9232 = vsel %vm9186, %v9223, %v9231
          %v9233 = vrot.slane %v8966, 1
          %v9234 = vrot.slane %v8962, 2
          %v9235 = vor.u32 %v9233, %v9234
          %v9236 = vsel %vm9186, %v9197, %v9235
          %v9238 = vshrl.u32 %v8973, 16
          %v9240 = vrot.slane %v9238, 1
          %v9241 = vshll.u32 %v8973, 16
          %v9243 = vrot.slane %v9241, 2
          %v9244 = vor.u32 %v9240, %v9243
          %v9245 = vsel %vm9186, %v9214, %v9244
          %v9247 = vshrl.u32 %v9106, 16
          %v9249 = vrot.slane %v9247, 1
          %v9250 = vshll.u32 %v9106, 16
          %v9252 = vrot.slane %v9250, 2
          %v9253 = vor.u32 %v9249, %v9252
          %v9254 = vsel %vm9186, %v9231, %v9253
          %v9255 = vrot.slane %v8974, 1
          %v9256 = vrot.slane %v8970, 2
          %v9257 = vor.u32 %v9255, %v9256
          %v9258 = vsel %vm9186, %v9235, %v9257
          %v9260 = vshrl.u32 %v8981, 16
          %v9262 = vrot.slane %v9260, 1
          %v9263 = vshll.u32 %v8981, 16
          %v9265 = vrot.slane %v9263, 2
          %v9266 = vor.u32 %v9262, %v9265
          %v9267 = vsel %vm9186, %v9244, %v9266
          %v9269 = vshrl.u32 %v9108, 16
          %v9271 = vrot.slane %v9269, 1
          %v9272 = vshll.u32 %v9108, 16
          %v9274 = vrot.slane %v9272, 2
          %v9275 = vor.u32 %v9271, %v9274
          %v9276 = vsel %vm9186, %v9253, %v9275
          %v9277 = vrot.slane %v8982, 1
          %v9278 = vrot.slane %v8978, 2
          %v9279 = vor.u32 %v9277, %v9278
          %v9280 = vsel %vm9186, %v9257, %v9279
          %v9282 = vshrl.u32 %v8989, 16
          %v9284 = vrot.slane %v9282, 1
          %v9285 = vshll.u32 %v8989, 16
          %v9287 = vrot.slane %v9285, 2
          %v9288 = vor.u32 %v9284, %v9287
          %v9289 = vsel %vm9186, %v9266, %v9288
          %v9291 = vshrl.u32 %v9110, 16
          %v9293 = vrot.slane %v9291, 1
          %v9294 = vshll.u32 %v9110, 16
          %v9296 = vrot.slane %v9294, 2
          %v9297 = vor.u32 %v9293, %v9296
          %v9298 = vsel %vm9186, %v9275, %v9297
          %v9299 = vrot.slane %v8990, 1
          %v9300 = vrot.slane %v8986, 2
          %v9301 = vor.u32 %v9299, %v9300
          %v9302 = vsel %vm9186, %v9279, %v9301
          %v9304 = vshrl.u32 %v8997, 16
          %v9306 = vrot.slane %v9304, 1
          %v9307 = vshll.u32 %v8997, 16
          %v9309 = vrot.slane %v9307, 2
          %v9310 = vor.u32 %v9306, %v9309
          %v9311 = vsel %vm9186, %v9288, %v9310
          %v9313 = vshrl.u32 %v9112, 16
          %v9315 = vrot.slane %v9313, 1
          %v9316 = vshll.u32 %v9112, 16
          %v9318 = vrot.slane %v9316, 2
          %v9319 = vor.u32 %v9315, %v9318
          %v9320 = vsel %vm9186, %v9297, %v9319
          %v9321 = vrot.slane %v8998, 1
          %v9322 = vrot.slane %v8994, 2
          %v9323 = vor.u32 %v9321, %v9322
          %v9324 = vsel %vm9186, %v9301, %v9323
          %v9326 = vshrl.u32 %v9005, 16
          %v9328 = vrot.slane %v9326, 1
          %v9329 = vshll.u32 %v9005, 16
          %v9331 = vrot.slane %v9329, 2
          %v9332 = vor.u32 %v9328, %v9331
          %v9333 = vsel %vm9186, %v9310, %v9332
          %v9335 = vshrl.u32 %v9114, 16
          %v9337 = vrot.slane %v9335, 1
          %v9338 = vshll.u32 %v9114, 16
          %v9340 = vrot.slane %v9338, 2
          %v9341 = vor.u32 %v9337, %v9340
          %v9342 = vsel %vm9186, %v9319, %v9341
          %v9343 = vrot.slane %v9006, 1
          %v9344 = vrot.slane %v9002, 2
          %v9345 = vor.u32 %v9343, %v9344
          %v9346 = vsel %vm9186, %v9323, %v9345
          %v9348 = vshrl.u32 %v9013, 16
          %v9350 = vrot.slane %v9348, 1
          %v9351 = vshll.u32 %v9013, 16
          %v9353 = vrot.slane %v9351, 2
          %v9354 = vor.u32 %v9350, %v9353
          %v9355 = vsel %vm9186, %v9332, %v9354
          %v9357 = vshrl.u32 %v9116, 16
          %v9359 = vrot.slane %v9357, 1
          %v9360 = vshll.u32 %v9116, 16
          %v9362 = vrot.slane %v9360, 2
          %v9363 = vor.u32 %v9359, %v9362
          %v9364 = vsel %vm9186, %v9341, %v9363
          %v9365 = vrot.slane %v9014, 1
          %v9366 = vrot.slane %v9010, 2
          %v9367 = vor.u32 %v9365, %v9366
          %v9368 = vsel %vm9186, %v9345, %v9367
          %v9370 = vshrl.u32 %v9021, 16
          %v9372 = vrot.slane %v9370, 1
          %v9373 = vshll.u32 %v9021, 16
          %v9375 = vrot.slane %v9373, 2
          %v9376 = vor.u32 %v9372, %v9375
          %v9377 = vsel %vm9186, %v9354, %v9376
          %v9379 = vshrl.u32 %v9118, 16
          %v9381 = vrot.slane %v9379, 1
          %v9382 = vshll.u32 %v9118, 16
          %v9384 = vrot.slane %v9382, 2
          %v9385 = vor.u32 %v9381, %v9384
          %v9386 = vsel %vm9186, %v9363, %v9385
          %v9387 = vrot.slane %v9022, 1
          %v9388 = vrot.slane %v9018, 2
          %v9389 = vor.u32 %v9387, %v9388
          %v9390 = vsel %vm9186, %v9367, %v9389
          %v9392 = vshrl.u32 %v9029, 16
          %v9394 = vrot.slane %v9392, 1
          %v9395 = vshll.u32 %v9029, 16
          %v9397 = vrot.slane %v9395, 2
          %v9398 = vor.u32 %v9394, %v9397
          %v9399 = vsel %vm9186, %v9376, %v9398
          %v9401 = vshrl.u32 %v9120, 16
          %v9403 = vrot.slane %v9401, 1
          %v9404 = vshll.u32 %v9120, 16
          %v9406 = vrot.slane %v9404, 2
          %v9407 = vor.u32 %v9403, %v9406
          %v9408 = vsel %vm9186, %v9385, %v9407
          %v9409 = vrot.slane %v9030, 1
          %v9410 = vrot.slane %v9026, 2
          %v9411 = vor.u32 %v9409, %v9410
          %v9412 = vsel %vm9186, %v9389, %v9411
          %v9414 = vshrl.u32 %v9037, 16
          %v9416 = vrot.slane %v9414, 1
          %v9417 = vshll.u32 %v9037, 16
          %v9419 = vrot.slane %v9417, 2
          %v9420 = vor.u32 %v9416, %v9419
          %v9421 = vsel %vm9186, %v9398, %v9420
          %v9423 = vshrl.u32 %v9122, 16
          %v9425 = vrot.slane %v9423, 1
          %v9426 = vshll.u32 %v9122, 16
          %v9428 = vrot.slane %v9426, 2
          %v9429 = vor.u32 %v9425, %v9428
          %v9430 = vsel %vm9186, %v9407, %v9429
          %v9431 = vrot.slane %v9038, 1
          %v9432 = vrot.slane %v9034, 2
          %v9433 = vor.u32 %v9431, %v9432
          %v9434 = vsel %vm9186, %v9411, %v9433
          %v9436 = vshrl.u32 %v9045, 16
          %v9438 = vrot.slane %v9436, 1
          %v9439 = vshll.u32 %v9045, 16
          %v9441 = vrot.slane %v9439, 2
          %v9442 = vor.u32 %v9438, %v9441
          %v9443 = vsel %vm9186, %v9420, %v9442
          %v9445 = vshrl.u32 %v9124, 16
          %v9447 = vrot.slane %v9445, 1
          %v9448 = vshll.u32 %v9124, 16
          %v9450 = vrot.slane %v9448, 2
          %v9451 = vor.u32 %v9447, %v9450
          %v9452 = vsel %vm9186, %v9429, %v9451
          %v9453 = vrot.slane %v9046, 1
          %v9454 = vrot.slane %v9042, 2
          %v9455 = vor.u32 %v9453, %v9454
          %v9456 = vsel %vm9186, %v9433, %v9455
          %v9458 = vshrl.u32 %v9053, 16
          %v9460 = vrot.slane %v9458, 1
          %v9461 = vshll.u32 %v9053, 16
          %v9463 = vrot.slane %v9461, 2
          %v9464 = vor.u32 %v9460, %v9463
          %v9465 = vsel %vm9186, %v9442, %v9464
          %v9467 = vshrl.u32 %v9126, 16
          %v9469 = vrot.slane %v9467, 1
          %v9470 = vshll.u32 %v9126, 16
          %v9472 = vrot.slane %v9470, 2
          %v9473 = vor.u32 %v9469, %v9472
          %v9474 = vsel %vm9186, %v9451, %v9473
          %v9475 = vrot.slane %v9054, 1
          %v9476 = vrot.slane %v9050, 2
          %v9477 = vor.u32 %v9475, %v9476
          %v9478 = vsel %vm9186, %v9455, %v9477
          %v9480 = vshrl.u32 %v9061, 16
          %v9482 = vrot.slane %v9480, 1
          %v9483 = vshll.u32 %v9061, 16
          %v9485 = vrot.slane %v9483, 2
          %v9486 = vor.u32 %v9482, %v9485
          %v9487 = vsel %vm9186, %v9464, %v9486
          %v9489 = vshrl.u32 %v9128, 16
          %v9491 = vrot.slane %v9489, 1
          %v9492 = vshll.u32 %v9128, 16
          %v9494 = vrot.slane %v9492, 2
          %v9495 = vor.u32 %v9491, %v9494
          %v9496 = vsel %vm9186, %v9473, %v9495
          %v9497 = vrot.slane %v9062, 1
          %v9498 = vrot.slane %v9058, 2
          %v9499 = vor.u32 %v9497, %v9498
          %v9500 = vsel %vm9186, %v9477, %v9499
          %v9502 = vshrl.u32 %v9069, 16
          %v9504 = vrot.slane %v9502, 1
          %v9505 = vshll.u32 %v9069, 16
          %v9507 = vrot.slane %v9505, 2
          %v9508 = vor.u32 %v9504, %v9507
          %v9509 = vsel %vm9186, %v9486, %v9508
          %v9511 = vshrl.u32 %v9130, 16
          %v9513 = vrot.slane %v9511, 1
          %v9514 = vshll.u32 %v9130, 16
          %v9516 = vrot.slane %v9514, 2
          %v9517 = vor.u32 %v9513, %v9516
          %v9518 = vsel %vm9186, %v9495, %v9517
          %v9519 = vrot.slane %v9070, 1
          %v9520 = vrot.slane %v9066, 2
          %v9521 = vor.u32 %v9519, %v9520
          %v9522 = vsel %vm9186, %v9499, %v9521
          %v9524 = vshrl.u32 %v9077, 16
          %v9526 = vrot.slane %v9524, 1
          %v9527 = vshll.u32 %v9077, 16
          %v9529 = vrot.slane %v9527, 2
          %v9530 = vor.u32 %v9526, %v9529
          %v9531 = vsel %vm9186, %v9508, %v9530
          %v9533 = vshrl.u32 %v9132, 16
          %v9535 = vrot.slane %v9533, 1
          %v9536 = vshll.u32 %v9132, 16
          %v9538 = vrot.slane %v9536, 2
          %v9539 = vor.u32 %v9535, %v9538
          %v9540 = vsel %vm9186, %v9517, %v9539
          %v9541 = vrot.slane %v9078, 1
          %v9542 = vrot.slane %v9074, 2
          %v9543 = vor.u32 %v9541, %v9542
          %v9544 = vsel %vm9186, %v9521, %v9543
          %v9546 = vshrl.u32 %v9085, 16
          %v9548 = vrot.slane %v9546, 1
          %v9549 = vshll.u32 %v9085, 16
          %v9551 = vrot.slane %v9549, 2
          %v9552 = vor.u32 %v9548, %v9551
          %v9553 = vsel %vm9186, %v9530, %v9552
          %v9555 = vshrl.u32 %v9134, 16
          %v9557 = vrot.slane %v9555, 1
          %v9558 = vshll.u32 %v9134, 16
          %v9560 = vrot.slane %v9558, 2
          %v9561 = vor.u32 %v9557, %v9560
          %v9562 = vsel %vm9186, %v9539, %v9561
          %v9563 = vrot.slane %v9086, 1
          %v9564 = vrot.slane %v9082, 2
          %v9565 = vor.u32 %v9563, %v9564
          %v9566 = vsel %vm9186, %v9543, %v9565
          %v9568 = vshrl.u32 %v9093, 16
          %v9570 = vrot.slane %v9568, 1
          %v9571 = vshll.u32 %v9093, 16
          %v9573 = vrot.slane %v9571, 2
          %v9574 = vor.u32 %v9570, %v9573
          %v9575 = vsel %vm9186, %v9552, %v9574
          %v9577 = vshrl.u32 %v9136, 16
          %v9579 = vrot.slane %v9577, 1
          %v9580 = vshll.u32 %v9136, 16
          %v9582 = vrot.slane %v9580, 2
          %v9583 = vor.u32 %v9579, %v9582
          %v9584 = vsel %vm9186, %v9561, %v9583
          %v9585 = vrot.slane %v9094, 1
          %v9586 = vrot.slane %v9090, 2
          %v9587 = vor.u32 %v9585, %v9586
          %v9588 = vsel %vm9186, %v9565, %v9587
          %v9590 = vshrl.u32 %v9096, 16
          %v9592 = vrot.slane %v9590, 1
          %v9593 = vshll.u32 %v9096, 16
          %v9595 = vrot.slane %v9593, 2
          %v9596 = vor.u32 %v9592, %v9595
          %v9597 = vsel %vm9186, %v9574, %v9596
          %v9599 = vshrl.u32 %v9135, 16
          %v9601 = vrot.slane %v9599, 1
          %v9602 = vshll.u32 %v9135, 16
          %v9604 = vrot.slane %v9602, 2
          %v9605 = vor.u32 %v9601, %v9604
          %v9606 = vsel %vm9186, %v9583, %v9605
          %v9709 = vunpack.c.l.b16 %v9138
          %v9710 = vunpack.c.l.b16 %v9139
          %v9711 = vunpack.c.l.b16 %v9140
          %v9712 = vunpack.c.l.b16 %v9141
          %v9713 = vunpack.c.l.b16 %v9142
          %v9714 = vunpack.c.l.b16 %v9143
          %v9715 = vunpack.c.l.b16 %v9144
          %v9716 = vunpack.c.l.b16 %v9145
          %v9717 = vunpack.c.l.b16 %v9146
          %v9718 = vunpack.c.l.b16 %v9147
          %v9719 = vunpack.c.l.b16 %v9148
          %v9720 = vunpack.c.l.b16 %v9149
          %v9721 = vunpack.c.l.b16 %v9150
          %v9722 = vunpack.c.l.b16 %v9151
          %v9723 = vunpack.c.l.b16 %v9152
          %v9724 = vunpack.c.l.b16 %v9153
          %v9725 = vunpack.c.l.b16 %v9154
          %v9726 = vunpack.c.l.b16 %v9155
          %v9727 = vunpack.c.l.b16 %v9156
          %v9728 = vunpack.c.l.b16 %v9157
          %v9729 = vunpack.c.l.b16 %v9158
          %v9730 = vunpack.c.l.b16 %v9159
          %v9731 = vunpack.c.l.b16 %v9160
          %v9732 = vunpack.c.l.b16 %v9161
          %v9733 = vunpack.c.l.b16 %v9162
          %v9734 = vunpack.c.l.b16 %v9163
          %v9735 = vunpack.c.l.b16 %v9164
          %v9736 = vunpack.c.l.b16 %v9165
          %v9737 = vunpack.c.l.b16 %v9166
          %v9738 = vunpack.c.l.b16 %v9167
          %v9739 = vunpack.c.l.b16 %v9168
          %v9740 = vunpack.c.l.b16 %v9169
          %v9741 = vunpack.c.l.b16 %v9170
          %v9742 = vunpack.c.l.b16 %v9171
          %v9743 = vunpack.c.l.b16 %v9172
          %v9744 = vunpack.c.l.b16 %v9173
          %v9745 = vunpack.c.l.b16 %v9174
          %v9746 = vunpack.c.l.b16 %v9175
          %v9747 = vunpack.c.l.b16 %v9176
          %v9748 = vunpack.c.l.b16 %v9177
          %v9749 = vunpack.c.l.b16 %v9178
          %v9750 = vunpack.c.l.b16 %v9179
          %v9751 = vunpack.c.l.b16 %v9180
          %v9752 = vunpack.c.l.b16 %v9181
          %v9753 = vunpack.c.l.b16 %v9182
          %v9754 = vunpack.c.l.b16 %v9183
          %v9755 = vunpack.c.l.b16 %v9184
          %v9756 = vunpack.c.l.b16 %v9185
          %v9757 = vpack.c.b16 %v9710, %v9709
          %v9758 = vpack.c.b16 %v9712, %v9711
          %v9759 = vpack.c.b16 %v9714, %v9713
          %v9760 = vpack.c.b16 %v9716, %v9715
          %v9761 = vpack.c.b16 %v9718, %v9717
          %v9762 = vpack.c.b16 %v9720, %v9719
          %v9763 = vpack.c.b16 %v9722, %v9721
          %v9764 = vpack.c.b16 %v9724, %v9723
          %v9765 = vpack.c.b16 %v9726, %v9725
          %v9766 = vpack.c.b16 %v9728, %v9727
          %v9767 = vpack.c.b16 %v9730, %v9729
          %v9768 = vpack.c.b16 %v9732, %v9731
          %v9769 = vpack.c.b16 %v9734, %v9733
          %v9770 = vpack.c.b16 %v9736, %v9735
          %v9771 = vpack.c.b16 %v9738, %v9737
          %v9772 = vpack.c.b16 %v9740, %v9739
          %v9773 = vpack.c.b16 %v9742, %v9741
          %v9774 = vpack.c.b16 %v9744, %v9743
          %v9775 = vpack.c.b16 %v9746, %v9745
          %v9776 = vpack.c.b16 %v9748, %v9747
          %v9777 = vpack.c.b16 %v9750, %v9749
          %v9778 = vpack.c.b16 %v9752, %v9751
          %v9779 = vpack.c.b16 %v9754, %v9753
          %v9780 = vpack.c.b16 %v9756, %v9755
          %9805 = vmatprep.subr.bf16.mxu0 0
          %9806 = vmatpush1.bf16.msra.mxu0 %v9757
          %9807 = vmatprep.subr.bf16.mxu0 0
          %9808 = vmatpush1.bf16.msra.mxu0 %v9758
          %9809 = vmatprep.subr.bf16.mxu0 0
          %9810 = vmatpush1.bf16.msra.mxu0 %v9759
          %9811 = vmatprep.subr.bf16.mxu0 0
          %9812 = vmatpush1.bf16.msra.mxu0 %v9760
          %9813 = vmatprep.subr.bf16.mxu0 0
          %9814 = vmatpush1.bf16.msra.mxu0 %v9761
          %9815 = vmatprep.subr.bf16.mxu0 0
          %9816 = vmatpush1.bf16.msra.mxu0 %v9762
          %9817 = vmatprep.subr.bf16.mxu0 0
          %9818 = vmatpush1.bf16.msra.mxu0 %v9763
          %9819 = vmatprep.subr.bf16.mxu0 0
          %9820 = vmatpush1.bf16.msra.mxu0 %v9764
          %9821 = vmatprep.subr.bf16.mxu0 0
          %9822 = vmatpush1.bf16.msra.mxu0 %v9765
          %9823 = vmatprep.subr.bf16.mxu0 0
          %9824 = vmatpush1.bf16.msra.mxu0 %v9766
          %9825 = vmatprep.subr.bf16.mxu0 0
          %9826 = vmatpush1.bf16.msra.mxu0 %v9767
          %9827 = vmatprep.subr.bf16.mxu0 0
          %9828 = vmatpush1.bf16.msra.mxu0 %v9768
          %9829 = vmatprep.subr.bf16.mxu0 0
          %9830 = vmatpush1.bf16.msra.mxu0 %v9769
          %9831 = vmatprep.subr.bf16.mxu0 0
          %9832 = vmatpush1.bf16.msra.mxu0 %v9770
          %9833 = vmatprep.subr.bf16.mxu0 0
          %9834 = vmatpush1.bf16.msra.mxu0 %v9771
          %9835 = vmatprep.subr.bf16.mxu0 0
          %9836 = vmatpush1.bf16.msra.mxu0 %v9772
          %9837 = vmatprep.mubr.bf16.mxu0 %v9215
          %9838 = vmatmul.mubr.bf16.gmra.mrb[0].mxu0 %v9198
          %v9839 = vpop.f32.mrb[0].mxu0
          %v9840 = vadd.f32 0.0, %v9839
          %v9841 = vpop.f32.mrb[0].mxu0
          %v9842 = vpop.f32.mrb[0].mxu0
          %v9843 = vadd.f32 0.0, %v9842
          %v9844 = vpop.f32.mrb[0].mxu0
          %9845 = vmatprep.mubr.bf16.mxu0 %v9245
          %9846 = vmatmul.mubr.bf16.gmra.mrb[0].mxu0 %v9236
          %v9847 = vpop.f32.mrb[0].mxu0
          %v9848 = vadd.f32 0.0, %v9847
          %v9849 = vpop.f32.mrb[0].mxu0
          %v9850 = vpop.f32.mrb[0].mxu0
          %v9851 = vadd.f32 0.0, %v9850
          %v9852 = vpop.f32.mrb[0].mxu0
          %9853 = vmatprep.mubr.bf16.mxu0 %v9267
          %9854 = vmatmul.mubr.bf16.gmra.mrb[0].mxu0 %v9258
          %v9855 = vpop.f32.mrb[0].mxu0
          %v9856 = vadd.f32 0.0, %v9855
          %v9857 = vpop.f32.mrb[0].mxu0
          %v9858 = vpop.f32.mrb[0].mxu0
          %v9859 = vadd.f32 0.0, %v9858
          %v9860 = vpop.f32.mrb[0].mxu0
          %9861 = vmatprep.mubr.bf16.mxu0 %v9289
          %9862 = vmatmul.mubr.bf16.gmra.mrb[0].mxu0 %v9280
          %v9863 = vpop.f32.mrb[0].mxu0
          %v9864 = vadd.f32 0.0, %v9863
          %v9865 = vpop.f32.mrb[0].mxu0
          %v9866 = vpop.f32.mrb[0].mxu0
          %v9867 = vadd.f32 0.0, %v9866
          %v9868 = vpop.f32.mrb[0].mxu0
          %9869 = vmatprep.mubr.bf16.mxu0 %v9311
          %9870 = vmatmul.mubr.bf16.gmra.mrb[0].mxu0 %v9302
          %v9871 = vpop.f32.mrb[0].mxu0
          %v9872 = vadd.f32 0.0, %v9871
          %v9873 = vpop.f32.mrb[0].mxu0
          %v9874 = vpop.f32.mrb[0].mxu0
          %v9875 = vadd.f32 0.0, %v9874
          %v9876 = vpop.f32.mrb[0].mxu0
          %9877 = vmatprep.mubr.bf16.mxu0 %v9333
          %9878 = vmatmul.mubr.bf16.gmra.mrb[0].mxu0 %v9324
          %v9879 = vpop.f32.mrb[0].mxu0
          %v9880 = vadd.f32 0.0, %v9879
          %v9881 = vpop.f32.mrb[0].mxu0
          %v9882 = vpop.f32.mrb[0].mxu0
          %v9883 = vadd.f32 0.0, %v9882
          %v9884 = vpop.f32.mrb[0].mxu0
          %9885 = vmatprep.mubr.bf16.mxu0 %v9355
          %9886 = vmatmul.mubr.bf16.gmra.mrb[0].mxu0 %v9346
          %v9887 = vpop.f32.mrb[0].mxu0
          %v9888 = vadd.f32 0.0, %v9887
          %v9889 = vpop.f32.mrb[0].mxu0
          %v9890 = vpop.f32.mrb[0].mxu0
          %v9891 = vadd.f32 0.0, %v9890
          %v9892 = vpop.f32.mrb[0].mxu0
          %9893 = vmatprep.mubr.bf16.mxu0 %v9377
          %9894 = vmatmul.mubr.bf16.gmra.mrb[0].mxu0 %v9368
          %v9895 = vpop.f32.mrb[0].mxu0
          %v9896 = vadd.f32 0.0, %v9895
          %v9897 = vpop.f32.mrb[0].mxu0
          %v9898 = vpop.f32.mrb[0].mxu0
          %v9899 = vadd.f32 0.0, %v9898
          %v9900 = vpop.f32.mrb[0].mxu0
          %9901 = vmatprep.mubr.bf16.mxu0 %v9399
          %9902 = vmatmul.mubr.bf16.gmra.mrb[0].mxu0 %v9390
          %v9903 = vpop.f32.mrb[0].mxu0
          %v9904 = vadd.f32 0.0, %v9903
          %v9905 = vpop.f32.mrb[0].mxu0
          %v9906 = vpop.f32.mrb[0].mxu0
          %v9907 = vadd.f32 0.0, %v9906
          %v9908 = vpop.f32.mrb[0].mxu0
          %9909 = vmatprep.mubr.bf16.mxu0 %v9421
          %9910 = vmatmul.mubr.bf16.gmra.mrb[0].mxu0 %v9412
          %v9911 = vpop.f32.mrb[0].mxu0
          %v9912 = vadd.f32 0.0, %v9911
          %v9913 = vpop.f32.mrb[0].mxu0
          %v9914 = vpop.f32.mrb[0].mxu0
          %v9915 = vadd.f32 0.0, %v9914
          %v9916 = vpop.f32.mrb[0].mxu0
          %9917 = vmatprep.mubr.bf16.mxu0 %v9443
          %9918 = vmatmul.mubr.bf16.gmra.mrb[0].mxu0 %v9434
          %v9919 = vpop.f32.mrb[0].mxu0
          %v9920 = vadd.f32 0.0, %v9919
          %v9921 = vpop.f32.mrb[0].mxu0
          %v9922 = vpop.f32.mrb[0].mxu0
          %v9923 = vadd.f32 0.0, %v9922
          %v9924 = vpop.f32.mrb[0].mxu0
          %9925 = vmatprep.mubr.bf16.mxu0 %v9465
          %9926 = vmatmul.mubr.bf16.gmra.mrb[0].mxu0 %v9456
          %v9927 = vpop.f32.mrb[0].mxu0
          %v9928 = vadd.f32 0.0, %v9927
          %v9929 = vpop.f32.mrb[0].mxu0
          %v9930 = vpop.f32.mrb[0].mxu0
          %v9931 = vadd.f32 0.0, %v9930
          %v9932 = vpop.f32.mrb[0].mxu0
          %9933 = vmatprep.mubr.bf16.mxu0 %v9487
          %9934 = vmatmul.mubr.bf16.gmra.mrb[0].mxu0 %v9478
          %v9935 = vpop.f32.mrb[0].mxu0
          %v9936 = vadd.f32 0.0, %v9935
          %v9937 = vpop.f32.mrb[0].mxu0
          %v9938 = vpop.f32.mrb[0].mxu0
          %v9939 = vadd.f32 0.0, %v9938
          %v9940 = vpop.f32.mrb[0].mxu0
          %9941 = vmatprep.mubr.bf16.mxu0 %v9509
          %9942 = vmatmul.mubr.bf16.gmra.mrb[0].mxu0 %v9500
          %v9943 = vpop.f32.mrb[0].mxu0
          %v9944 = vadd.f32 0.0, %v9943
          %v9945 = vpop.f32.mrb[0].mxu0
          %v9946 = vpop.f32.mrb[0].mxu0
          %v9947 = vadd.f32 0.0, %v9946
          %v9948 = vpop.f32.mrb[0].mxu0
          %9949 = vmatprep.mubr.bf16.mxu0 %v9531
          %9950 = vmatmul.mubr.bf16.gmra.mrb[0].mxu0 %v9522
          %v9951 = vpop.f32.mrb[0].mxu0
          %v9952 = vadd.f32 0.0, %v9951
          %v9953 = vpop.f32.mrb[0].mxu0
          %v9954 = vpop.f32.mrb[0].mxu0
          %v9955 = vadd.f32 0.0, %v9954
          %v9956 = vpop.f32.mrb[0].mxu0
          %9957 = vmatprep.mubr.bf16.mxu0 %v9553
          %9958 = vmatmul.mubr.bf16.gmra.mrb[0].mxu0 %v9544
          %v9959 = vpop.f32.mrb[0].mxu0
          %v9960 = vadd.f32 0.0, %v9959
          %v9961 = vpop.f32.mrb[0].mxu0
          %v9962 = vpop.f32.mrb[0].mxu0
          %v9963 = vadd.f32 0.0, %v9962
          %v9964 = vpop.f32.mrb[0].mxu0
          %9965 = vmatprep.mubr.bf16.mxu0 %v9575
          %9966 = vmatmul.mubr.bf16.gmra.mrb[0].mxu0 %v9566
          %v9967 = vpop.f32.mrb[0].mxu0
          %v9968 = vadd.f32 0.0, %v9967
          %v9969 = vpop.f32.mrb[0].mxu0
          %v9970 = vpop.f32.mrb[0].mxu0
          %v9971 = vadd.f32 0.0, %v9970
          %v9972 = vpop.f32.mrb[0].mxu0
          %9973 = vmatprep.mubr.bf16.mxu0 %v9597
          %9974 = vmatmul.mubr.bf16.gmra.mrb[0].mxu0 %v9588
          %v9975 = vpop.f32.mrb[0].mxu0
          %v9976 = vadd.f32 0.0, %v9975
          %v9977 = vpop.f32.mrb[0].mxu0
          %v9978 = vpop.f32.mrb[0].mxu0
          %v9979 = vadd.f32 0.0, %v9978
          %v9980 = vpop.f32.mrb[0].mxu0
          %9981 = vdwg.mxu0
          %9982 = vmatprep.subr.bf16.mxu0 0
          %9983 = vmatpush1.bf16.msra.mxu0 %v9773
          %9984 = vmatprep.subr.bf16.mxu0 0
          %9985 = vmatpush1.bf16.msra.mxu0 %v9774
          %9986 = vmatprep.subr.bf16.mxu0 0
          %9987 = vmatpush1.bf16.msra.mxu0 %v9775
          %9988 = vmatprep.subr.bf16.mxu0 0
          %9989 = vmatpush1.bf16.msra.mxu0 %v9776
          %9990 = vmatprep.subr.bf16.mxu0 0
          %9991 = vmatpush1.bf16.msra.mxu0 %v9777
          %9992 = vmatprep.subr.bf16.mxu0 0
          %9993 = vmatpush1.bf16.msra.mxu0 %v9778
          %9994 = vmatprep.subr.bf16.mxu0 0
          %9995 = vmatpush1.bf16.msra.mxu0 %v9779
          %9996 = vmatprep.subr.bf16.mxu0 0
          %9997 = vmatpush1.bf16.msra.mxu0 %v9780
          %9998 = vmatprep.subr.bf16.mxu0 0
          %9999 = vmatpush1.bf16.msra.mxu0 0
          %10000 = vmatprep.subr.bf16.mxu0 0
          %10001 = vmatpush1.bf16.msra.mxu0 0
          %10002 = vmatprep.subr.bf16.mxu0 0
          %10003 = vmatpush1.bf16.msra.mxu0 0
          %10004 = vmatprep.subr.bf16.mxu0 0
          %10005 = vmatpush1.bf16.msra.mxu0 0
          %10006 = vmatprep.subr.bf16.mxu0 0
          %10007 = vmatpush1.bf16.msra.mxu0 0
          %10008 = vmatprep.subr.bf16.mxu0 0
          %10009 = vmatpush1.bf16.msra.mxu0 0
          %10010 = vmatprep.subr.bf16.mxu0 0
          %10011 = vmatpush1.bf16.msra.mxu0 0
          %10012 = vmatprep.subr.bf16.mxu0 0
          %10013 = vmatpush1.bf16.msra.mxu0 0
          %10014 = vmatprep.mubr.bf16.mxu0 0
          %10015 = vmatmul.mubr.bf16.gmra.mrb[0].mxu0 %v9232
          %v10016 = vpop.f32.mrb[0].mxu0
          %v10017 = vadd.f32 %v9840, %v10016
          %v10018 = vpop.f32.mrb[0].mxu0
          %v10019 = vpop.f32.mrb[0].mxu0
          %v10020 = vadd.f32 %v9843, %v10019
          %v10021 = vpop.f32.mrb[0].mxu0
          %10022 = vmatprep.mubr.bf16.mxu0 0
          %10023 = vmatmul.mubr.bf16.gmra.mrb[0].mxu0 %v9254
          %v10024 = vpop.f32.mrb[0].mxu0
          %v10025 = vadd.f32 %v9848, %v10024
          %v10026 = vpop.f32.mrb[0].mxu0
          %v10027 = vpop.f32.mrb[0].mxu0
          %v10028 = vadd.f32 %v9851, %v10027
          %v10029 = vpop.f32.mrb[0].mxu0
          %10030 = vmatprep.mubr.bf16.mxu0 0
          %10031 = vmatmul.mubr.bf16.gmra.mrb[0].mxu0 %v9276
          %v10032 = vpop.f32.mrb[0].mxu0
          %v10033 = vadd.f32 %v9856, %v10032
          %v10034 = vpop.f32.mrb[0].mxu0
          %v10035 = vpop.f32.mrb[0].mxu0
          %v10036 = vadd.f32 %v9859, %v10035
          %v10037 = vpop.f32.mrb[0].mxu0
          %10038 = vmatprep.mubr.bf16.mxu0 0
          %10039 = vmatmul.mubr.bf16.gmra.mrb[0].mxu0 %v9298
          %v10040 = vpop.f32.mrb[0].mxu0
          %v10041 = vadd.f32 %v9864, %v10040
          %v10042 = vpop.f32.mrb[0].mxu0
          %v10043 = vpop.f32.mrb[0].mxu0
          %v10044 = vadd.f32 %v9867, %v10043
          %v10045 = vpop.f32.mrb[0].mxu0
          %10046 = vmatprep.mubr.bf16.mxu0 0
          %10047 = vmatmul.mubr.bf16.gmra.mrb[0].mxu0 %v9320
          %v10048 = vpop.f32.mrb[0].mxu0
          %v10049 = vadd.f32 %v9872, %v10048
          %v10050 = vpop.f32.mrb[0].mxu0
          %v10051 = vpop.f32.mrb[0].mxu0
          %v10052 = vadd.f32 %v9875, %v10051
          %v10053 = vpop.f32.mrb[0].mxu0
          %10054 = vmatprep.mubr.bf16.mxu0 0
          %10055 = vmatmul.mubr.bf16.gmra.mrb[0].mxu0 %v9342
          %v10056 = vpop.f32.mrb[0].mxu0
          %v10057 = vadd.f32 %v9880, %v10056
          %v10058 = vpop.f32.mrb[0].mxu0
          %v10059 = vpop.f32.mrb[0].mxu0
          %v10060 = vadd.f32 %v9883, %v10059
          %v10061 = vpop.f32.mrb[0].mxu0
          %10062 = vmatprep.mubr.bf16.mxu0 0
          %10063 = vmatmul.mubr.bf16.gmra.mrb[0].mxu0 %v9364
          %v10064 = vpop.f32.mrb[0].mxu0
          %v10065 = vadd.f32 %v9888, %v10064
          %v10066 = vpop.f32.mrb[0].mxu0
          %v10067 = vpop.f32.mrb[0].mxu0
          %v10068 = vadd.f32 %v9891, %v10067
          %v10069 = vpop.f32.mrb[0].mxu0
          %10070 = vmatprep.mubr.bf16.mxu0 0
          %10071 = vmatmul.mubr.bf16.gmra.mrb[0].mxu0 %v9386
          %v10072 = vpop.f32.mrb[0].mxu0
          %v10073 = vadd.f32 %v9896, %v10072
          %v10074 = vpop.f32.mrb[0].mxu0
          %v10075 = vpop.f32.mrb[0].mxu0
          %v10076 = vadd.f32 %v9899, %v10075
          %v10077 = vpop.f32.mrb[0].mxu0
          %10078 = vmatprep.mubr.bf16.mxu0 0
          %10079 = vmatmul.mubr.bf16.gmra.mrb[0].mxu0 %v9408
          %v10080 = vpop.f32.mrb[0].mxu0
          %v10081 = vadd.f32 %v9904, %v10080
          %v10082 = vpop.f32.mrb[0].mxu0
          %v10083 = vpop.f32.mrb[0].mxu0
          %v10084 = vadd.f32 %v9907, %v10083
          %v10085 = vpop.f32.mrb[0].mxu0
          %10086 = vmatprep.mubr.bf16.mxu0 0
          %10087 = vmatmul.mubr.bf16.gmra.mrb[0].mxu0 %v9430
          %v10088 = vpop.f32.mrb[0].mxu0
          %v10089 = vadd.f32 %v9912, %v10088
          %v10090 = vpop.f32.mrb[0].mxu0
          %v10091 = vpop.f32.mrb[0].mxu0
          %v10092 = vadd.f32 %v9915, %v10091
          %v10093 = vpop.f32.mrb[0].mxu0
          %10094 = vmatprep.mubr.bf16.mxu0 0
          %10095 = vmatmul.mubr.bf16.gmra.mrb[0].mxu0 %v9452
          %v10096 = vpop.f32.mrb[0].mxu0
          %v10097 = vadd.f32 %v9920, %v10096
          %v10098 = vpop.f32.mrb[0].mxu0
          %v10099 = vpop.f32.mrb[0].mxu0
          %v10100 = vadd.f32 %v9923, %v10099
          %v10101 = vpop.f32.mrb[0].mxu0
          %10102 = vmatprep.mubr.bf16.mxu0 0
          %10103 = vmatmul.mubr.bf16.gmra.mrb[0].mxu0 %v9474
          %v10104 = vpop.f32.mrb[0].mxu0
          %v10105 = vadd.f32 %v9928, %v10104
          %v10106 = vpop.f32.mrb[0].mxu0
          %v10107 = vpop.f32.mrb[0].mxu0
          %v10108 = vadd.f32 %v9931, %v10107
          %v10109 = vpop.f32.mrb[0].mxu0
          %10110 = vmatprep.mubr.bf16.mxu0 0
          %10111 = vmatmul.mubr.bf16.gmra.mrb[0].mxu0 %v9496
          %v10112 = vpop.f32.mrb[0].mxu0
          %v10113 = vadd.f32 %v9936, %v10112
          %v10114 = vpop.f32.mrb[0].mxu0
          %v10115 = vpop.f32.mrb[0].mxu0
          %v10116 = vadd.f32 %v9939, %v10115
          %v10117 = vpop.f32.mrb[0].mxu0
          %10118 = vmatprep.mubr.bf16.mxu0 0
          %10119 = vmatmul.mubr.bf16.gmra.mrb[0].mxu0 %v9518
          %v10120 = vpop.f32.mrb[0].mxu0
          %v10121 = vadd.f32 %v9944, %v10120
          %v10122 = vpop.f32.mrb[0].mxu0
          %v10123 = vpop.f32.mrb[0].mxu0
          %v10124 = vadd.f32 %v9947, %v10123
          %v10125 = vpop.f32.mrb[0].mxu0
          %10126 = vmatprep.mubr.bf16.mxu0 0
          %10127 = vmatmul.mubr.bf16.gmra.mrb[0].mxu0 %v9540
          %v10128 = vpop.f32.mrb[0].mxu0
          %v10129 = vadd.f32 %v9952, %v10128
          %v10130 = vpop.f32.mrb[0].mxu0
          %v10131 = vpop.f32.mrb[0].mxu0
          %v10132 = vadd.f32 %v9955, %v10131
          %v10133 = vpop.f32.mrb[0].mxu0
          %10134 = vmatprep.mubr.bf16.mxu0 0
          %10135 = vmatmul.mubr.bf16.gmra.mrb[0].mxu0 %v9562
          %v10136 = vpop.f32.mrb[0].mxu0
          %v10137 = vadd.f32 %v9960, %v10136
          %v10138 = vpop.f32.mrb[0].mxu0
          %v10139 = vpop.f32.mrb[0].mxu0
          %v10140 = vadd.f32 %v9963, %v10139
          %v10141 = vpop.f32.mrb[0].mxu0
          %10142 = vmatprep.mubr.bf16.mxu0 0
          %10143 = vmatmul.mubr.bf16.gmra.mrb[0].mxu0 %v9584
          %v10144 = vpop.f32.mrb[0].mxu0
          %v10145 = vadd.f32 %v9968, %v10144
          %v10146 = vpop.f32.mrb[0].mxu0
          %v10147 = vpop.f32.mrb[0].mxu0
          %v10148 = vadd.f32 %v9971, %v10147
          %v10149 = vpop.f32.mrb[0].mxu0
          %10150 = vmatprep.mubr.bf16.mxu0 0
          %10151 = vmatmul.mubr.bf16.gmra.mrb[0].mxu0 %v9606
          %v10152 = vpop.f32.mrb[0].mxu0
          %v10153 = vadd.f32 %v9976, %v10152
          %v10154 = vpop.f32.mrb[0].mxu0
          %v10155 = vpop.f32.mrb[0].mxu0
          %v10156 = vadd.f32 %v9979, %v10155
          %v10157 = vpop.f32.mrb[0].mxu0
          %10158 = vdwg.mxu0
          %v10159 = vld [vmem:[#allocation5] sm:$0xff]
          %v10160 = vld [vmem:[#allocation5 + $0x8] sm:$0xff]
          %v10161 = vld [vmem:[#allocation5 + $0x10] sm:$0xff]
          %v10162 = vld [vmem:[#allocation5 + $0x18] sm:$0xff]
          %v10163 = vld [vmem:[#allocation5 + $0x20] sm:$0xff]
          %v10164 = vld [vmem:[#allocation5 + $0x28] sm:$0xff]
          %v10165 = vld [vmem:[#allocation5 + $0x30] sm:$0xff]
          %v10166 = vld [vmem:[#allocation5 + $0x38] sm:$0xff]
          %v10167 = vld [vmem:[#allocation5 + $0x40] sm:$0xff]
          %v10168 = vld [vmem:[#allocation5 + $0x48] sm:$0xff]
          %v10169 = vld [vmem:[#allocation5 + $0x50] sm:$0xff]
          %v10170 = vld [vmem:[#allocation5 + $0x58] sm:$0xff]
          %v10171 = vld [vmem:[#allocation5 + $0x60] sm:$0xff]
          %v10172 = vld [vmem:[#allocation5 + $0x68] sm:$0xff]
          %v10173 = vld [vmem:[#allocation5 + $0x70] sm:$0xff]
          %v10174 = vld [vmem:[#allocation5 + $0x78] sm:$0xff]
          %v10175 = vld [vmem:[#allocation5 + $0x80] sm:$0xff]
          %v10176 = vld [vmem:[#allocation5 + $0x88] sm:$0xff]
          %v10177 = vld [vmem:[#allocation5 + $0x90] sm:$0xff]
          %v10178 = vld [vmem:[#allocation5 + $0x98] sm:$0xff]
          %v10179 = vld [vmem:[#allocation5 + $0xa0] sm:$0xff]
          %v10180 = vld [vmem:[#allocation5 + $0xa8] sm:$0xff]
          %v10181 = vld [vmem:[#allocation5 + $0xb0] sm:$0xff]
          %v10182 = vld [vmem:[#allocation5 + $0xb8] sm:$0xff]
          %v10183 = vld [vmem:[#allocation5 + $0xc0] sm:$0xff]
          %v10184 = vld [vmem:[#allocation5 + $0xc8] sm:$0xff]
          %v10185 = vld [vmem:[#allocation5 + $0xd0] sm:$0xff]
          %v10186 = vld [vmem:[#allocation5 + $0xd8] sm:$0xff]
          %v10187 = vld [vmem:[#allocation5 + $0xe0] sm:$0xff]
          %v10188 = vld [vmem:[#allocation5 + $0xe8] sm:$0xff]
          %v10189 = vld [vmem:[#allocation5 + $0xf0] sm:$0xff]
          %v10190 = vld [vmem:[#allocation5 + $0xf8] sm:$0xff]
          %v10191 = vld [vmem:[#allocation5 + $0x100] sm:$0xff]
          %v10192 = vld [vmem:[#allocation5 + $0x108] sm:$0xff]
          %v10193 = vld [vmem:[#allocation5 + $0x110] sm:$0xff]
          %v10194 = vld [vmem:[#allocation5 + $0x118] sm:$0xff]
          %v10195 = vadd.f32 %v10159, %v10017
          %v10196 = vadd.f32 %v10160, %v10020
          %v10197 = vadd.f32 %v10161, %v10025
          %v10198 = vadd.f32 %v10162, %v10028
          %v10199 = vadd.f32 %v10163, %v10033
          %v10200 = vadd.f32 %v10164, %v10036
          %v10201 = vadd.f32 %v10165, %v10041
          %v10202 = vadd.f32 %v10166, %v10044
          %v10203 = vadd.f32 %v10167, %v10049
          %v10204 = vadd.f32 %v10168, %v10052
          %v10205 = vadd.f32 %v10169, %v10057
          %v10206 = vadd.f32 %v10170, %v10060
          %v10207 = vadd.f32 %v10171, %v10065
          %v10208 = vadd.f32 %v10172, %v10068
          %v10209 = vadd.f32 %v10173, %v10073
          %v10210 = vadd.f32 %v10174, %v10076
          %v10211 = vadd.f32 %v10175, %v10081
          %v10212 = vadd.f32 %v10176, %v10084
          %v10213 = vadd.f32 %v10177, %v10089
          %v10214 = vadd.f32 %v10178, %v10092
          %v10215 = vadd.f32 %v10179, %v10097
          %v10216 = vadd.f32 %v10180, %v10100
          %v10217 = vadd.f32 %v10181, %v10105
          %v10218 = vadd.f32 %v10182, %v10108
          %v10219 = vadd.f32 %v10183, %v10113
          %v10220 = vadd.f32 %v10184, %v10116
          %v10221 = vadd.f32 %v10185, %v10121
          %v10222 = vadd.f32 %v10186, %v10124
          %v10223 = vadd.f32 %v10187, %v10129
          %v10224 = vadd.f32 %v10188, %v10132
          %v10225 = vadd.f32 %v10189, %v10137
          %v10226 = vadd.f32 %v10190, %v10140
          %v10227 = vadd.f32 %v10191, %v10145
          %v10228 = vadd.f32 %v10192, %v10148
          %v10229 = vadd.f32 %v10193, %v10153
          %v10230 = vadd.f32 %v10194, %v10156
          %10231 = vst [vmem:[#allocation5] sm:$0xff] %v10195
          %10232 = vst [vmem:[#allocation5 + $0x8] sm:$0xff] %v10196
          %10233 = vst [vmem:[#allocation5 + $0x10] sm:$0xff] %v10197
          %10234 = vst [vmem:[#allocation5 + $0x18] sm:$0xff] %v10198
          %10235 = vst [vmem:[#allocation5 + $0x20] sm:$0xff] %v10199
          %10236 = vst [vmem:[#allocation5 + $0x28] sm:$0xff] %v10200
          %10237 = vst [vmem:[#allocation5 + $0x30] sm:$0xff] %v10201
          %10238 = vst [vmem:[#allocation5 + $0x38] sm:$0xff] %v10202
          %10239 = vst [vmem:[#allocation5 + $0x40] sm:$0xff] %v10203
          %10240 = vst [vmem:[#allocation5 + $0x48] sm:$0xff] %v10204
          %10241 = vst [vmem:[#allocation5 + $0x50] sm:$0xff] %v10205
          %10242 = vst [vmem:[#allocation5 + $0x58] sm:$0xff] %v10206
          %10243 = vst [vmem:[#allocation5 + $0x60] sm:$0xff] %v10207
          %10244 = vst [vmem:[#allocation5 + $0x68] sm:$0xff] %v10208
          %10245 = vst [vmem:[#allocation5 + $0x70] sm:$0xff] %v10209
          %10246 = vst [vmem:[#allocation5 + $0x78] sm:$0xff] %v10210
          %10247 = vst [vmem:[#allocation5 + $0x80] sm:$0xff] %v10211
          %10248 = vst [vmem:[#allocation5 + $0x88] sm:$0xff] %v10212
          %10249 = vst [vmem:[#allocation5 + $0x90] sm:$0xff] %v10213
          %10250 = vst [vmem:[#allocation5 + $0x98] sm:$0xff] %v10214
          %10251 = vst [vmem:[#allocation5 + $0xa0] sm:$0xff] %v10215
          %10252 = vst [vmem:[#allocation5 + $0xa8] sm:$0xff] %v10216
          %10253 = vst [vmem:[#allocation5 + $0xb0] sm:$0xff] %v10217
          %10254 = vst [vmem:[#allocation5 + $0xb8] sm:$0xff] %v10218
          %10255 = vst [vmem:[#allocation5 + $0xc0] sm:$0xff] %v10219
          %10256 = vst [vmem:[#allocation5 + $0xc8] sm:$0xff] %v10220
          %10257 = vst [vmem:[#allocation5 + $0xd0] sm:$0xff] %v10221
          %10258 = vst [vmem:[#allocation5 + $0xd8] sm:$0xff] %v10222
          %10259 = vst [vmem:[#allocation5 + $0xe0] sm:$0xff] %v10223
          %10260 = vst [vmem:[#allocation5 + $0xe8] sm:$0xff] %v10224
          %10261 = vst [vmem:[#allocation5 + $0xf0] sm:$0xff] %v10225
          %10262 = vst [vmem:[#allocation5 + $0xf8] sm:$0xff] %v10226
          %10263 = vst [vmem:[#allocation5 + $0x100] sm:$0xff] %v10227
          %10264 = vst [vmem:[#allocation5 + $0x108] sm:$0xff] %v10228
          %10265 = vst [vmem:[#allocation5 + $0x110] sm:$0xff] %v10229
          %10266 = vst [vmem:[#allocation5 + $0x118] sm:$0xff] %v10230
          %v10267 = vld [vmem:[#allocation5] sm:$0xff]
          %v10268 = vld [vmem:[#allocation5 + $0x8] sm:$0xff]
          %v10269 = vld [vmem:[#allocation5 + $0x10] sm:$0xff]
          %v10270 = vld [vmem:[#allocation5 + $0x18] sm:$0xff]
          %v10271 = vld [vmem:[#allocation5 + $0x20] sm:$0xff]
          %v10272 = vld [vmem:[#allocation5 + $0x28] sm:$0xff]
          %v10273 = vld [vmem:[#allocation5 + $0x30] sm:$0xff]
          %v10274 = vld [vmem:[#allocation5 + $0x38] sm:$0xff]
          %v10275 = vld [vmem:[#allocation5 + $0x40] sm:$0xff]
          %v10276 = vld [vmem:[#allocation5 + $0x48] sm:$0xff]
          %v10277 = vld [vmem:[#allocation5 + $0x50] sm:$0xff]
          %v10278 = vld [vmem:[#allocation5 + $0x58] sm:$0xff]
          %v10279 = vld [vmem:[#allocation5 + $0x60] sm:$0xff]
          %v10280 = vld [vmem:[#allocation5 + $0x68] sm:$0xff]
          %v10281 = vld [vmem:[#allocation5 + $0x70] sm:$0xff]
          %v10282 = vld [vmem:[#allocation5 + $0x78] sm:$0xff]
          %v10283 = vld [vmem:[#allocation5 + $0x80] sm:$0xff]
          %v10284 = vld [vmem:[#allocation5 + $0x88] sm:$0xff]
          %v10285 = vld [vmem:[#allocation5 + $0x90] sm:$0xff]
          %v10286 = vld [vmem:[#allocation5 + $0x98] sm:$0xff]
          %v10287 = vld [vmem:[#allocation5 + $0xa0] sm:$0xff]
          %v10288 = vld [vmem:[#allocation5 + $0xa8] sm:$0xff]
          %v10289 = vld [vmem:[#allocation5 + $0xb0] sm:$0xff]
          %v10290 = vld [vmem:[#allocation5 + $0xb8] sm:$0xff]
          %v10291 = vld [vmem:[#allocation5 + $0xc0] sm:$0xff]
          %v10292 = vld [vmem:[#allocation5 + $0xc8] sm:$0xff]
          %v10293 = vld [vmem:[#allocation5 + $0xd0] sm:$0xff]
          %v10294 = vld [vmem:[#allocation5 + $0xd8] sm:$0xff]
          %v10295 = vld [vmem:[#allocation5 + $0xe0] sm:$0xff]
          %v10296 = vld [vmem:[#allocation5 + $0xe8] sm:$0xff]
          %v10297 = vld [vmem:[#allocation5 + $0xf0] sm:$0xff]
          %v10298 = vld [vmem:[#allocation5 + $0xf8] sm:$0xff]
          %v10299 = vld [vmem:[#allocation5 + $0x100] sm:$0xff]
          %v10300 = vld [vmem:[#allocation5 + $0x108] sm:$0xff]
          %v10301 = vld [vmem:[#allocation5 + $0x110] sm:$0xff]
          %v10302 = vld [vmem:[#allocation5 + $0x118] sm:$0xff]
          %v10303 = vld [vmem:[%s242] sm:$0x1]
          %v10304 = vlaneseq
          %v10305 = vshrl.u32 %v10304, 7
          %v10306 = vsub.s32 0, %v10305
          %v10307 = vrot.slane %v10303, %v10306
          %v10308 = vmul.f32 %v10267, %v10307
          %v10309 = vmul.f32 %v10268, %v10307
          %v10310 = vmul.f32 %v10269, %v10307
          %v10311 = vmul.f32 %v10270, %v10307
          %v10312 = vmul.f32 %v10271, %v10307
          %v10313 = vmul.f32 %v10272, %v10307
          %v10314 = vmul.f32 %v10273, %v10307
          %v10315 = vmul.f32 %v10274, %v10307
          %v10316 = vmul.f32 %v10275, %v10307
          %v10317 = vmul.f32 %v10276, %v10307
          %v10318 = vmul.f32 %v10277, %v10307
          %v10319 = vmul.f32 %v10278, %v10307
          %v10320 = vmul.f32 %v10279, %v10307
          %v10321 = vmul.f32 %v10280, %v10307
          %v10322 = vmul.f32 %v10281, %v10307
          %v10323 = vmul.f32 %v10282, %v10307
          %v10324 = vmul.f32 %v10283, %v10307
          %v10325 = vmul.f32 %v10284, %v10307
          %v10326 = vmul.f32 %v10285, %v10307
          %v10327 = vmul.f32 %v10286, %v10307
          %v10328 = vmul.f32 %v10287, %v10307
          %v10329 = vmul.f32 %v10288, %v10307
          %v10330 = vmul.f32 %v10289, %v10307
          %v10331 = vmul.f32 %v10290, %v10307
          %v10332 = vmul.f32 %v10291, %v10307
          %v10333 = vmul.f32 %v10292, %v10307
          %v10334 = vmul.f32 %v10293, %v10307
          %v10335 = vmul.f32 %v10294, %v10307
          %v10336 = vmul.f32 %v10295, %v10307
          %v10337 = vmul.f32 %v10296, %v10307
          %v10338 = vmul.f32 %v10297, %v10307
          %v10339 = vmul.f32 %v10298, %v10307
          %v10340 = vmul.f32 %v10299, %v10307
          %v10341 = vmul.f32 %v10300, %v10307
          %v10342 = vmul.f32 %v10301, %v10307
          %v10343 = vmul.f32 %v10302, %v10307
          %v10344 = vld [vmem:[%s242 + $0x1] sm:$0x1]
          %v10345 = vlaneseq
          %v10346 = vshrl.u32 %v10345, 7
          %v10347 = vsub.s32 0, %v10346
          %v10348 = vrot.slane %v10344, %v10347
          %v10349 = vadd.f32 %v10308, %v10348
          %v10350 = vadd.f32 %v10309, %v10348
          %v10351 = vadd.f32 %v10310, %v10348
          %v10352 = vadd.f32 %v10311, %v10348
          %v10353 = vadd.f32 %v10312, %v10348
          %v10354 = vadd.f32 %v10313, %v10348
          %v10355 = vadd.f32 %v10314, %v10348
          %v10356 = vadd.f32 %v10315, %v10348
          %v10357 = vadd.f32 %v10316, %v10348
          %v10358 = vadd.f32 %v10317, %v10348
          %v10359 = vadd.f32 %v10318, %v10348
          %v10360 = vadd.f32 %v10319, %v10348
          %v10361 = vadd.f32 %v10320, %v10348
          %v10362 = vadd.f32 %v10321, %v10348
          %v10363 = vadd.f32 %v10322, %v10348
          %v10364 = vadd.f32 %v10323, %v10348
          %v10365 = vadd.f32 %v10324, %v10348
          %v10366 = vadd.f32 %v10325, %v10348
          %v10367 = vadd.f32 %v10326, %v10348
          %v10368 = vadd.f32 %v10327, %v10348
          %v10369 = vadd.f32 %v10328, %v10348
          %v10370 = vadd.f32 %v10329, %v10348
          %v10371 = vadd.f32 %v10330, %v10348
          %v10372 = vadd.f32 %v10331, %v10348
          %v10373 = vadd.f32 %v10332, %v10348
          %v10374 = vadd.f32 %v10333, %v10348
          %v10375 = vadd.f32 %v10334, %v10348
          %v10376 = vadd.f32 %v10335, %v10348
          %v10377 = vadd.f32 %v10336, %v10348
          %v10378 = vadd.f32 %v10337, %v10348
          %v10379 = vadd.f32 %v10338, %v10348
          %v10380 = vadd.f32 %v10339, %v10348
          %v10381 = vadd.f32 %v10340, %v10348
          %v10382 = vadd.f32 %v10341, %v10348
          %v10383 = vadd.f32 %v10342, %v10348
          %v10384 = vadd.f32 %v10343, %v10348
          %v10385 = vld [vmem:[%s3] sm:$0xff]
          %v10386 = vld [vmem:[%s3 + $0x8] sm:$0xff]
          %v10387 = vld [vmem:[%s3 + $0x10] sm:$0xff]
          %v10388 = vld [vmem:[%s3 + $0x18] sm:$0xff]
          %v10389 = vld [vmem:[%s3 + $0x20] sm:$0xff]
          %v10390 = vld [vmem:[%s3 + $0x28] sm:$0xff]
          %v10391 = vld [vmem:[%s3 + $0x30] sm:$0xff]
          %v10392 = vld [vmem:[%s3 + $0x38] sm:$0xff]
          %v10393 = vld [vmem:[%s3 + $0x40] sm:$0xff]
          %v10394 = vld [vmem:[%s3 + $0x48] sm:$0xff]
          %v10395 = vld [vmem:[%s3 + $0x50] sm:$0xff]
          %v10396 = vld [vmem:[%s3 + $0x58] sm:$0xff]
          %v10397 = vld [vmem:[%s3 + $0x60] sm:$0xff]
          %v10398 = vld [vmem:[%s3 + $0x68] sm:$0xff]
          %v10399 = vld [vmem:[%s3 + $0x70] sm:$0xff]
          %v10400 = vld [vmem:[%s3 + $0x78] sm:$0xff]
          %v10401 = vld [vmem:[%s3 + $0x80] sm:$0xff]
          %v10402 = vld [vmem:[%s3 + $0x88] sm:$0xff]
          %v10403 = vld [vmem:[%s3 + $0x90] sm:$0xff]
          %v10404 = vld [vmem:[%s3 + $0x98] sm:$0xff]
          %v10405 = vld [vmem:[%s3 + $0xa0] sm:$0xff]
          %v10406 = vld [vmem:[%s3 + $0xa8] sm:$0xff]
          %v10407 = vld [vmem:[%s3 + $0xb0] sm:$0xff]
          %v10408 = vld [vmem:[%s3 + $0xb8] sm:$0xff]
          %v10409 = vld [vmem:[%s3 + $0xc0] sm:$0xff]
          %v10410 = vld [vmem:[%s3 + $0xc8] sm:$0xff]
          %v10411 = vld [vmem:[%s3 + $0xd0] sm:$0xff]
          %v10412 = vld [vmem:[%s3 + $0xd8] sm:$0xff]
          %v10413 = vld [vmem:[%s3 + $0xe0] sm:$0xff]
          %v10414 = vld [vmem:[%s3 + $0xe8] sm:$0xff]
          %v10415 = vld [vmem:[%s3 + $0xf0] sm:$0xff]
          %v10416 = vld [vmem:[%s3 + $0xf8] sm:$0xff]
          %v10417 = vld [vmem:[%s3 + $0x100] sm:$0xff]
          %v10418 = vld [vmem:[%s3 + $0x108] sm:$0xff]
          %v10419 = vld [vmem:[%s3 + $0x110] sm:$0xff]
          %v10420 = vld [vmem:[%s3 + $0x118] sm:$0xff]
          %p10421 = scmp.lt.s32.totalorder %s26, 49
          // Predicated region
          $region69: #{dncnn_forward.1} parent=67 // pred_check
            %p10422 = pneg %p10421
          $region70: #{dncnn_forward.1} parent=67 // pred_check_branch
            %10424 = sbr.rel (%p10422) target = $region72
          $region71: #{dncnn_forward.1} parent=67 // pred_region
            %v10425 = vmax.f32 %v10349, 0.0
            %v10426 = vmax.f32 %v10350, 0.0
            %v10427 = vmax.f32 %v10351, 0.0
            %v10428 = vmax.f32 %v10352, 0.0
            %v10429 = vmax.f32 %v10353, 0.0
            %v10430 = vmax.f32 %v10354, 0.0
            %v10431 = vmax.f32 %v10355, 0.0
            %v10432 = vmax.f32 %v10356, 0.0
            %v10433 = vmax.f32 %v10357, 0.0
            %v10434 = vmax.f32 %v10358, 0.0
            %v10435 = vmax.f32 %v10359, 0.0
            %v10436 = vmax.f32 %v10360, 0.0
            %v10437 = vmax.f32 %v10361, 0.0
            %v10438 = vmax.f32 %v10362, 0.0
            %v10439 = vmax.f32 %v10363, 0.0
            %v10440 = vmax.f32 %v10364, 0.0
            %v10441 = vmax.f32 %v10365, 0.0
            %v10442 = vmax.f32 %v10366, 0.0
            %v10443 = vmax.f32 %v10367, 0.0
            %v10444 = vmax.f32 %v10368, 0.0
            %v10445 = vmax.f32 %v10369, 0.0
            %v10446 = vmax.f32 %v10370, 0.0
            %v10447 = vmax.f32 %v10371, 0.0
            %v10448 = vmax.f32 %v10372, 0.0
            %v10449 = vmax.f32 %v10373, 0.0
            %v10450 = vmax.f32 %v10374, 0.0
            %v10451 = vmax.f32 %v10375, 0.0
            %v10452 = vmax.f32 %v10376, 0.0
            %v10453 = vmax.f32 %v10377, 0.0
            %v10454 = vmax.f32 %v10378, 0.0
            %v10455 = vmax.f32 %v10379, 0.0
            %v10456 = vmax.f32 %v10380, 0.0
            %v10457 = vmax.f32 %v10381, 0.0
            %v10458 = vmax.f32 %v10382, 0.0
            %v10459 = vmax.f32 %v10383, 0.0
            %v10460 = vmax.f32 %v10384, 0.0
            %p10461 = scmp.lt.s32.totalorder %s26, 0
            %s10462 = ssub.s32 0, %s26
            %s10463 = scalar_select %p10461, %s10462, %s26
            %s10464 = sdiv.u32.pop %s10463, 3
            %s10465 = srem.u32.pop %s10463, 3
            %s10466 = ssub.s32 0, %s10465
            %s10467 = scalar_select %p10461, %s10466, %s10465
            %p10468 = scmp.ne.s32.totalorder %s10467, 0
            %p10469 = scmp.lt.s32.totalorder %s10467, 0
            %p10470 = pnand %p10469, %p10468
            %p10471 = pneg %p10470
            %s10472 = sadd.s32 %s10467, 3
            %s10473 = scalar_select %p10471, %s10472, %s10467
            %p10474 = scmp.eq.s32.totalorder %s10473, 0
            %p10475 = scmp.gt.s32.totalorder %s26, 0
            %p10476 = pnand %p10474, %p10475
            %p10477 = pneg %p10476
            %s10478 = scalar_select %p10477, 1, 0
            %s10479 = scvt.s32.f32 %s10478
            %v10480 = vld [vmem:[#allocation4] sm:$0xff]
            %v10481 = vld [vmem:[#allocation4 + $0x8] sm:$0xff]
            %v10482 = vld [vmem:[#allocation4 + $0x10] sm:$0xff]
            %v10483 = vld [vmem:[#allocation4 + $0x18] sm:$0xff]
            %v10484 = vld [vmem:[#allocation4 + $0x20] sm:$0xff]
            %v10485 = vld [vmem:[#allocation4 + $0x28] sm:$0xff]
            %v10486 = vld [vmem:[#allocation4 + $0x30] sm:$0xff]
            %v10487 = vld [vmem:[#allocation4 + $0x38] sm:$0xff]
            %v10488 = vld [vmem:[#allocation4 + $0x40] sm:$0xff]
            %v10489 = vld [vmem:[#allocation4 + $0x48] sm:$0xff]
            %v10490 = vld [vmem:[#allocation4 + $0x50] sm:$0xff]
            %v10491 = vld [vmem:[#allocation4 + $0x58] sm:$0xff]
            %v10492 = vld [vmem:[#allocation4 + $0x60] sm:$0xff]
            %v10493 = vld [vmem:[#allocation4 + $0x68] sm:$0xff]
            %v10494 = vld [vmem:[#allocation4 + $0x70] sm:$0xff]
            %v10495 = vld [vmem:[#allocation4 + $0x78] sm:$0xff]
            %v10496 = vld [vmem:[#allocation4 + $0x80] sm:$0xff]
            %v10497 = vld [vmem:[#allocation4 + $0x88] sm:$0xff]
            %v10498 = vld [vmem:[#allocation4 + $0x90] sm:$0xff]
            %v10499 = vld [vmem:[#allocation4 + $0x98] sm:$0xff]
            %v10500 = vld [vmem:[#allocation4 + $0xa0] sm:$0xff]
            %v10501 = vld [vmem:[#allocation4 + $0xa8] sm:$0xff]
            %v10502 = vld [vmem:[#allocation4 + $0xb0] sm:$0xff]
            %v10503 = vld [vmem:[#allocation4 + $0xb8] sm:$0xff]
            %v10504 = vld [vmem:[#allocation4 + $0xc0] sm:$0xff]
            %v10505 = vld [vmem:[#allocation4 + $0xc8] sm:$0xff]
            %v10506 = vld [vmem:[#allocation4 + $0xd0] sm:$0xff]
            %v10507 = vld [vmem:[#allocation4 + $0xd8] sm:$0xff]
            %v10508 = vld [vmem:[#allocation4 + $0xe0] sm:$0xff]
            %v10509 = vld [vmem:[#allocation4 + $0xe8] sm:$0xff]
            %v10510 = vld [vmem:[#allocation4 + $0xf0] sm:$0xff]
            %v10511 = vld [vmem:[#allocation4 + $0xf8] sm:$0xff]
            %v10512 = vld [vmem:[#allocation4 + $0x100] sm:$0xff]
            %v10513 = vld [vmem:[#allocation4 + $0x108] sm:$0xff]
            %v10514 = vld [vmem:[#allocation4 + $0x110] sm:$0xff]
            %v10515 = vld [vmem:[#allocation4 + $0x118] sm:$0xff]
            %v10516 = vstv %s10479
            %v10517 = vmul.f32 %v10516, %v10480
            %v10518 = vmul.f32 %v10516, %v10481
            %v10519 = vmul.f32 %v10516, %v10482
            %v10520 = vmul.f32 %v10516, %v10483
            %v10521 = vmul.f32 %v10516, %v10484
            %v10522 = vmul.f32 %v10516, %v10485
            %v10523 = vmul.f32 %v10516, %v10486
            %v10524 = vmul.f32 %v10516, %v10487
            %v10525 = vmul.f32 %v10516, %v10488
            %v10526 = vmul.f32 %v10516, %v10489
            %v10527 = vmul.f32 %v10516, %v10490
            %v10528 = vmul.f32 %v10516, %v10491
            %v10529 = vmul.f32 %v10516, %v10492
            %v10530 = vmul.f32 %v10516, %v10493
            %v10531 = vmul.f32 %v10516, %v10494
            %v10532 = vmul.f32 %v10516, %v10495
            %v10533 = vmul.f32 %v10516, %v10496
            %v10534 = vmul.f32 %v10516, %v10497
            %v10535 = vmul.f32 %v10516, %v10498
            %v10536 = vmul.f32 %v10516, %v10499
            %v10537 = vmul.f32 %v10516, %v10500
            %v10538 = vmul.f32 %v10516, %v10501
            %v10539 = vmul.f32 %v10516, %v10502
            %v10540 = vmul.f32 %v10516, %v10503
            %v10541 = vmul.f32 %v10516, %v10504
            %v10542 = vmul.f32 %v10516, %v10505
            %v10543 = vmul.f32 %v10516, %v10506
            %v10544 = vmul.f32 %v10516, %v10507
            %v10545 = vmul.f32 %v10516, %v10508
            %v10546 = vmul.f32 %v10516, %v10509
            %v10547 = vmul.f32 %v10516, %v10510
            %v10548 = vmul.f32 %v10516, %v10511
            %v10549 = vmul.f32 %v10516, %v10512
            %v10550 = vmul.f32 %v10516, %v10513
            %v10551 = vmul.f32 %v10516, %v10514
            %v10552 = vmul.f32 %v10516, %v10515
            %v10553 = vadd.f32 %v10425, %v10517
            %v10554 = vadd.f32 %v10426, %v10518
            %v10555 = vadd.f32 %v10427, %v10519
            %v10556 = vadd.f32 %v10428, %v10520
            %v10557 = vadd.f32 %v10429, %v10521
            %v10558 = vadd.f32 %v10430, %v10522
            %v10559 = vadd.f32 %v10431, %v10523
            %v10560 = vadd.f32 %v10432, %v10524
            %v10561 = vadd.f32 %v10433, %v10525
            %v10562 = vadd.f32 %v10434, %v10526
            %v10563 = vadd.f32 %v10435, %v10527
            %v10564 = vadd.f32 %v10436, %v10528
            %v10565 = vadd.f32 %v10437, %v10529
            %v10566 = vadd.f32 %v10438, %v10530
            %v10567 = vadd.f32 %v10439, %v10531
            %v10568 = vadd.f32 %v10440, %v10532
            %v10569 = vadd.f32 %v10441, %v10533
            %v10570 = vadd.f32 %v10442, %v10534
            %v10571 = vadd.f32 %v10443, %v10535
            %v10572 = vadd.f32 %v10444, %v10536
            %v10573 = vadd.f32 %v10445, %v10537
            %v10574 = vadd.f32 %v10446, %v10538
            %v10575 = vadd.f32 %v10447, %v10539
            %v10576 = vadd.f32 %v10448, %v10540
            %v10577 = vadd.f32 %v10449, %v10541
            %v10578 = vadd.f32 %v10450, %v10542
            %v10579 = vadd.f32 %v10451, %v10543
            %v10580 = vadd.f32 %v10452, %v10544
            %v10581 = vadd.f32 %v10453, %v10545
            %v10582 = vadd.f32 %v10454, %v10546
            %v10583 = vadd.f32 %v10455, %v10547
            %v10584 = vadd.f32 %v10456, %v10548
            %v10585 = vadd.f32 %v10457, %v10549
            %v10586 = vadd.f32 %v10458, %v10550
            %v10587 = vadd.f32 %v10459, %v10551
            %v10588 = vadd.f32 %v10460, %v10552
            %10590 = vset.pattern.permute.xlu0 0
            %10591 = vperm.xlu0 %10590, %v10385
            %v10592 = vpop.permute.xlu0 %10591
            %10595 = vset.pattern.permute.xlu0 0
            %10596 = vperm.xlu0 %10595, %v10386
            %v10597 = vpop.permute.xlu0 %10596
            %10600 = vset.pattern.permute.xlu0 0
            %10601 = vperm.xlu0 %10600, %v10387
            %v10602 = vpop.permute.xlu0 %10601
            %10605 = vset.pattern.permute.xlu0 0
            %10606 = vperm.xlu0 %10605, %v10388
            %v10607 = vpop.permute.xlu0 %10606
            %10610 = vset.pattern.permute.xlu0 0
            %10611 = vperm.xlu0 %10610, %v10389
            %v10612 = vpop.permute.xlu0 %10611
            %10615 = vset.pattern.permute.xlu0 0
            %10616 = vperm.xlu0 %10615, %v10390
            %v10617 = vpop.permute.xlu0 %10616
            %10620 = vset.pattern.permute.xlu0 0
            %10621 = vperm.xlu0 %10620, %v10391
            %v10622 = vpop.permute.xlu0 %10621
            %10625 = vset.pattern.permute.xlu0 0
            %10626 = vperm.xlu0 %10625, %v10392
            %v10627 = vpop.permute.xlu0 %10626
            %10630 = vset.pattern.permute.xlu0 0
            %10631 = vperm.xlu0 %10630, %v10393
            %v10632 = vpop.permute.xlu0 %10631
            %10635 = vset.pattern.permute.xlu0 0
            %10636 = vperm.xlu0 %10635, %v10394
            %v10637 = vpop.permute.xlu0 %10636
            %10640 = vset.pattern.permute.xlu0 0
            %10641 = vperm.xlu0 %10640, %v10395
            %v10642 = vpop.permute.xlu0 %10641
            %10645 = vset.pattern.permute.xlu0 0
            %10646 = vperm.xlu0 %10645, %v10396
            %v10647 = vpop.permute.xlu0 %10646
            %10650 = vset.pattern.permute.xlu0 0
            %10651 = vperm.xlu0 %10650, %v10397
            %v10652 = vpop.permute.xlu0 %10651
            %10655 = vset.pattern.permute.xlu0 0
            %10656 = vperm.xlu0 %10655, %v10398
            %v10657 = vpop.permute.xlu0 %10656
            %10660 = vset.pattern.permute.xlu0 0
            %10661 = vperm.xlu0 %10660, %v10399
            %v10662 = vpop.permute.xlu0 %10661
            %10665 = vset.pattern.permute.xlu0 0
            %10666 = vperm.xlu0 %10665, %v10400
            %v10667 = vpop.permute.xlu0 %10666
            %10670 = vset.pattern.permute.xlu0 0
            %10671 = vperm.xlu0 %10670, %v10401
            %v10672 = vpop.permute.xlu0 %10671
            %10675 = vset.pattern.permute.xlu0 0
            %10676 = vperm.xlu0 %10675, %v10402
            %v10677 = vpop.permute.xlu0 %10676
            %10680 = vset.pattern.permute.xlu0 0
            %10681 = vperm.xlu0 %10680, %v10403
            %v10682 = vpop.permute.xlu0 %10681
            %10685 = vset.pattern.permute.xlu0 0
            %10686 = vperm.xlu0 %10685, %v10404
            %v10687 = vpop.permute.xlu0 %10686
            %10690 = vset.pattern.permute.xlu0 0
            %10691 = vperm.xlu0 %10690, %v10405
            %v10692 = vpop.permute.xlu0 %10691
            %10695 = vset.pattern.permute.xlu0 0
            %10696 = vperm.xlu0 %10695, %v10406
            %v10697 = vpop.permute.xlu0 %10696
            %10700 = vset.pattern.permute.xlu0 0
            %10701 = vperm.xlu0 %10700, %v10407
            %v10702 = vpop.permute.xlu0 %10701
            %10705 = vset.pattern.permute.xlu0 0
            %10706 = vperm.xlu0 %10705, %v10408
            %v10707 = vpop.permute.xlu0 %10706
            %10710 = vset.pattern.permute.xlu0 0
            %10711 = vperm.xlu0 %10710, %v10409
            %v10712 = vpop.permute.xlu0 %10711
            %10715 = vset.pattern.permute.xlu0 0
            %10716 = vperm.xlu0 %10715, %v10410
            %v10717 = vpop.permute.xlu0 %10716
            %10720 = vset.pattern.permute.xlu0 0
            %10721 = vperm.xlu0 %10720, %v10411
            %v10722 = vpop.permute.xlu0 %10721
            %10725 = vset.pattern.permute.xlu0 0
            %10726 = vperm.xlu0 %10725, %v10412
            %v10727 = vpop.permute.xlu0 %10726
            %10730 = vset.pattern.permute.xlu0 0
            %10731 = vperm.xlu0 %10730, %v10413
            %v10732 = vpop.permute.xlu0 %10731
            %10735 = vset.pattern.permute.xlu0 0
            %10736 = vperm.xlu0 %10735, %v10414
            %v10737 = vpop.permute.xlu0 %10736
            %10740 = vset.pattern.permute.xlu0 0
            %10741 = vperm.xlu0 %10740, %v10415
            %v10742 = vpop.permute.xlu0 %10741
            %10745 = vset.pattern.permute.xlu0 0
            %10746 = vperm.xlu0 %10745, %v10416
            %v10747 = vpop.permute.xlu0 %10746
            %10750 = vset.pattern.permute.xlu0 0
            %10751 = vperm.xlu0 %10750, %v10417
            %v10752 = vpop.permute.xlu0 %10751
            %10755 = vset.pattern.permute.xlu0 0
            %10756 = vperm.xlu0 %10755, %v10418
            %v10757 = vpop.permute.xlu0 %10756
            %10760 = vset.pattern.permute.xlu0 0
            %10761 = vperm.xlu0 %10760, %v10419
            %v10762 = vpop.permute.xlu0 %10761
            %10765 = vset.pattern.permute.xlu0 0
            %10766 = vperm.xlu0 %10765, %v10420
            %v10767 = vpop.permute.xlu0 %10766
            %v10769 = vmul.f32 %v10553, %v10592
            %v10770 = vmul.f32 %v10554, %v10597
            %v10771 = vmul.f32 %v10555, %v10602
            %v10772 = vmul.f32 %v10556, %v10607
            %v10773 = vmul.f32 %v10557, %v10612
            %v10774 = vmul.f32 %v10558, %v10617
            %v10775 = vmul.f32 %v10559, %v10622
            %v10776 = vmul.f32 %v10560, %v10627
            %v10777 = vmul.f32 %v10561, %v10632
            %v10778 = vmul.f32 %v10562, %v10637
            %v10779 = vmul.f32 %v10563, %v10642
            %v10780 = vmul.f32 %v10564, %v10647
            %v10781 = vmul.f32 %v10565, %v10652
            %v10782 = vmul.f32 %v10566, %v10657
            %v10783 = vmul.f32 %v10567, %v10662
            %v10784 = vmul.f32 %v10568, %v10667
            %v10785 = vmul.f32 %v10569, %v10672
            %v10786 = vmul.f32 %v10570, %v10677
            %v10787 = vmul.f32 %v10571, %v10682
            %v10788 = vmul.f32 %v10572, %v10687
            %v10789 = vmul.f32 %v10573, %v10692
            %v10790 = vmul.f32 %v10574, %v10697
            %v10791 = vmul.f32 %v10575, %v10702
            %v10792 = vmul.f32 %v10576, %v10707
            %v10793 = vmul.f32 %v10577, %v10712
            %v10794 = vmul.f32 %v10578, %v10717
            %v10795 = vmul.f32 %v10579, %v10722
            %v10796 = vmul.f32 %v10580, %v10727
            %v10797 = vmul.f32 %v10581, %v10732
            %v10798 = vmul.f32 %v10582, %v10737
            %v10799 = vmul.f32 %v10583, %v10742
            %v10800 = vmul.f32 %v10584, %v10747
            %v10801 = vmul.f32 %v10585, %v10752
            %v10802 = vmul.f32 %v10586, %v10757
            %v10803 = vmul.f32 %v10587, %v10762
            %v10804 = vmul.f32 %v10588, %v10767
            // Predicated region
            $region73: #{dncnn_forward.1} parent=71 // pred_check
              %p10805 = pneg %p10474
            $region74: #{dncnn_forward.1} parent=71 // pred_check_branch
              %10807 = sbr.rel (%p10805) target = $region76
            $region75: #{dncnn_forward.1} parent=71 // pred_region
              %10808 = vst [vmem:[#allocation4] sm:$0xff] %v10769
              %10809 = vst [vmem:[#allocation4 + $0x8] sm:$0xff] %v10770
              %10810 = vst [vmem:[#allocation4 + $0x10] sm:$0xff] %v10771
              %10811 = vst [vmem:[#allocation4 + $0x18] sm:$0xff] %v10772
              %10812 = vst [vmem:[#allocation4 + $0x20] sm:$0xff] %v10773
              %10813 = vst [vmem:[#allocation4 + $0x28] sm:$0xff] %v10774
              %10814 = vst [vmem:[#allocation4 + $0x30] sm:$0xff] %v10775
              %10815 = vst [vmem:[#allocation4 + $0x38] sm:$0xff] %v10776
              %10816 = vst [vmem:[#allocation4 + $0x40] sm:$0xff] %v10777
              %10817 = vst [vmem:[#allocation4 + $0x48] sm:$0xff] %v10778
              %10818 = vst [vmem:[#allocation4 + $0x50] sm:$0xff] %v10779
              %10819 = vst [vmem:[#allocation4 + $0x58] sm:$0xff] %v10780
              %10820 = vst [vmem:[#allocation4 + $0x60] sm:$0xff] %v10781
              %10821 = vst [vmem:[#allocation4 + $0x68] sm:$0xff] %v10782
              %10822 = vst [vmem:[#allocation4 + $0x70] sm:$0xff] %v10783
              %10823 = vst [vmem:[#allocation4 + $0x78] sm:$0xff] %v10784
              %10824 = vst [vmem:[#allocation4 + $0x80] sm:$0xff] %v10785
              %10825 = vst [vmem:[#allocation4 + $0x88] sm:$0xff] %v10786
              %10826 = vst [vmem:[#allocation4 + $0x90] sm:$0xff] %v10787
              %10827 = vst [vmem:[#allocation4 + $0x98] sm:$0xff] %v10788
              %10828 = vst [vmem:[#allocation4 + $0xa0] sm:$0xff] %v10789
              %10829 = vst [vmem:[#allocation4 + $0xa8] sm:$0xff] %v10790
              %10830 = vst [vmem:[#allocation4 + $0xb0] sm:$0xff] %v10791
              %10831 = vst [vmem:[#allocation4 + $0xb8] sm:$0xff] %v10792
              %10832 = vst [vmem:[#allocation4 + $0xc0] sm:$0xff] %v10793
              %10833 = vst [vmem:[#allocation4 + $0xc8] sm:$0xff] %v10794
              %10834 = vst [vmem:[#allocation4 + $0xd0] sm:$0xff] %v10795
              %10835 = vst [vmem:[#allocation4 + $0xd8] sm:$0xff] %v10796
              %10836 = vst [vmem:[#allocation4 + $0xe0] sm:$0xff] %v10797
              %10837 = vst [vmem:[#allocation4 + $0xe8] sm:$0xff] %v10798
              %10838 = vst [vmem:[#allocation4 + $0xf0] sm:$0xff] %v10799
              %10839 = vst [vmem:[#allocation4 + $0xf8] sm:$0xff] %v10800
              %10840 = vst [vmem:[#allocation4 + $0x100] sm:$0xff] %v10801
              %10841 = vst [vmem:[#allocation4 + $0x108] sm:$0xff] %v10802
              %10842 = vst [vmem:[#allocation4 + $0x110] sm:$0xff] %v10803
              %10843 = vst [vmem:[#allocation4 + $0x118] sm:$0xff] %v10804
            $region76: #{dncnn_forward.1} parent=71 // pred_fallthru
              _
            %v10844 = vpack.c.bf16 %v10770, %v10769
            %v10845 = vpack.c.bf16 %v10772, %v10771
            %v10846 = vpack.c.bf16 %v10774, %v10773
            %v10847 = vpack.c.bf16 %v10776, %v10775
            %v10848 = vpack.c.bf16 %v10778, %v10777
            %v10849 = vpack.c.bf16 %v10780, %v10779
            %v10850 = vpack.c.bf16 %v10782, %v10781
            %v10851 = vpack.c.bf16 %v10784, %v10783
            %v10852 = vpack.c.bf16 %v10786, %v10785
            %v10853 = vpack.c.bf16 %v10788, %v10787
            %v10854 = vpack.c.bf16 %v10790, %v10789
            %v10855 = vpack.c.bf16 %v10792, %v10791
            %v10856 = vpack.c.bf16 %v10794, %v10793
            %v10857 = vpack.c.bf16 %v10796, %v10795
            %v10858 = vpack.c.bf16 %v10798, %v10797
            %v10859 = vpack.c.bf16 %v10800, %v10799
            %v10860 = vpack.c.bf16 %v10802, %v10801
            %v10861 = vpack.c.bf16 %v10804, %v10803
            %v10880 = vunpack.c.l.b16 %v10844
            %v10881 = vunpack.c.h.b16 %v10844
            %v10882 = vunpack.c.l.b16 %v10845
            %v10883 = vunpack.c.h.b16 %v10845
            %v10884 = vunpack.c.l.b16 %v10846
            %v10885 = vunpack.c.h.b16 %v10846
            %v10886 = vunpack.c.l.b16 %v10847
            %v10887 = vunpack.c.h.b16 %v10847
            %v10888 = vunpack.c.l.b16 %v10848
            %v10889 = vunpack.c.h.b16 %v10848
            %v10890 = vunpack.c.l.b16 %v10849
            %v10891 = vunpack.c.h.b16 %v10849
            %v10892 = vunpack.c.l.b16 %v10850
            %v10893 = vunpack.c.h.b16 %v10850
            %v10894 = vunpack.c.l.b16 %v10851
            %v10895 = vunpack.c.h.b16 %v10851
            %v10896 = vunpack.c.l.b16 %v10852
            %v10897 = vunpack.c.h.b16 %v10852
            %v10898 = vunpack.c.l.b16 %v10853
            %v10899 = vunpack.c.h.b16 %v10853
            %v10900 = vunpack.c.l.b16 %v10854
            %v10901 = vunpack.c.h.b16 %v10854
            %v10902 = vunpack.c.l.b16 %v10855
            %v10903 = vunpack.c.h.b16 %v10855
            %v10904 = vunpack.c.l.b16 %v10856
            %v10905 = vunpack.c.h.b16 %v10856
            %v10906 = vunpack.c.l.b16 %v10857
            %v10907 = vunpack.c.h.b16 %v10857
            %v10908 = vunpack.c.l.b16 %v10858
            %v10909 = vunpack.c.h.b16 %v10858
            %v10910 = vunpack.c.l.b16 %v10859
            %v10911 = vunpack.c.h.b16 %v10859
            %v10912 = vunpack.c.l.b16 %v10860
            %v10913 = vunpack.c.h.b16 %v10860
            %v10914 = vunpack.c.l.b16 %v10861
            %v10915 = vunpack.c.h.b16 %v10861
            %v10916 = vpack.c.b16 %v10880, %v10880
            %v10917 = vpack.c.b16 %v10881, %v10881
            %v10918 = vpack.c.b16 %v10882, %v10882
            %v10919 = vpack.c.b16 %v10883, %v10883
            %v10920 = vpack.c.b16 %v10884, %v10884
            %v10921 = vpack.c.b16 %v10885, %v10885
            %v10922 = vpack.c.b16 %v10886, %v10886
            %v10923 = vpack.c.b16 %v10887, %v10887
            %v10924 = vpack.c.b16 %v10888, %v10888
            %v10925 = vpack.c.b16 %v10889, %v10889
            %v10926 = vpack.c.b16 %v10890, %v10890
            %v10927 = vpack.c.b16 %v10891, %v10891
            %v10928 = vpack.c.b16 %v10892, %v10892
            %v10929 = vpack.c.b16 %v10893, %v10893
            %v10930 = vpack.c.b16 %v10894, %v10894
            %v10931 = vpack.c.b16 %v10895, %v10895
            %v10932 = vpack.c.b16 %v10896, %v10896
            %v10933 = vpack.c.b16 %v10897, %v10897
            %v10934 = vpack.c.b16 %v10898, %v10898
            %v10935 = vpack.c.b16 %v10899, %v10899
            %v10936 = vpack.c.b16 %v10900, %v10900
            %v10937 = vpack.c.b16 %v10901, %v10901
            %v10938 = vpack.c.b16 %v10902, %v10902
            %v10939 = vpack.c.b16 %v10903, %v10903
            %v10940 = vpack.c.b16 %v10904, %v10904
            %v10941 = vpack.c.b16 %v10905, %v10905
            %v10942 = vpack.c.b16 %v10906, %v10906
            %v10943 = vpack.c.b16 %v10907, %v10907
            %v10944 = vpack.c.b16 %v10908, %v10908
            %v10945 = vpack.c.b16 %v10909, %v10909
            %v10946 = vpack.c.b16 %v10910, %v10910
            %v10947 = vpack.c.b16 %v10911, %v10911
            %v10948 = vpack.c.b16 %v10912, %v10912
            %v10949 = vpack.c.b16 %v10913, %v10913
            %v10950 = vpack.c.b16 %v10914, %v10914
            %v10951 = vpack.c.b16 %v10915, %v10915
            %vm10952 = vcmask 1040384
            %vm10953 = vcmask 1044484
            %vm10954 = vmor %vm10952, %vm10953
            %v10955 = vrot.slane %v10916, 7
            %v10956 = vrot.slane %v10955, 4
            %v10957 = vrot.slane %v10917, 7
            %v10958 = vsel %vm10954, %v10956, %v10957
            %v10959 = vrot.slane %v10957, 4
            %v10960 = vrot.slane %v10918, 7
            %v10961 = vsel %vm10954, %v10959, %v10960
            %v10962 = vrot.slane %v10960, 4
            %v10963 = vrot.slane %v10919, 7
            %v10964 = vsel %vm10954, %v10962, %v10963
            %v10965 = vrot.slane %v10963, 4
            %v10966 = vrot.slane %v10920, 7
            %v10967 = vsel %vm10954, %v10965, %v10966
            %v10968 = vrot.slane %v10966, 4
            %v10969 = vrot.slane %v10921, 7
            %v10970 = vsel %vm10954, %v10968, %v10969
            %v10971 = vrot.slane %v10969, 4
            %v10972 = vrot.slane %v10922, 7
            %v10973 = vsel %vm10954, %v10971, %v10972
            %v10974 = vrot.slane %v10972, 4
            %v10975 = vrot.slane %v10923, 7
            %v10976 = vsel %vm10954, %v10974, %v10975
            %v10977 = vrot.slane %v10975, 4
            %v10978 = vrot.slane %v10924, 7
            %v10979 = vsel %vm10954, %v10977, %v10978
            %v10980 = vrot.slane %v10978, 4
            %v10981 = vrot.slane %v10925, 7
            %v10982 = vsel %vm10954, %v10980, %v10981
            %v10983 = vrot.slane %v10981, 4
            %v10984 = vrot.slane %v10926, 7
            %v10985 = vsel %vm10954, %v10983, %v10984
            %v10986 = vrot.slane %v10984, 4
            %v10987 = vrot.slane %v10927, 7
            %v10988 = vsel %vm10954, %v10986, %v10987
            %v10989 = vrot.slane %v10987, 4
            %v10990 = vrot.slane %v10928, 7
            %v10991 = vsel %vm10954, %v10989, %v10990
            %v10992 = vrot.slane %v10990, 4
            %v10993 = vrot.slane %v10929, 7
            %v10994 = vsel %vm10954, %v10992, %v10993
            %v10995 = vrot.slane %v10993, 4
            %v10996 = vrot.slane %v10930, 7
            %v10997 = vsel %vm10954, %v10995, %v10996
            %v10998 = vrot.slane %v10996, 4
            %v10999 = vrot.slane %v10931, 7
            %v11000 = vsel %vm10954, %v10998, %v10999
            %v11001 = vrot.slane %v10999, 4
            %v11002 = vrot.slane %v10932, 7
            %v11003 = vsel %vm10954, %v11001, %v11002
            %v11004 = vrot.slane %v11002, 4
            %v11005 = vrot.slane %v10933, 7
            %v11006 = vsel %vm10954, %v11004, %v11005
            %v11007 = vrot.slane %v11005, 4
            %v11008 = vrot.slane %v10934, 7
            %v11009 = vsel %vm10954, %v11007, %v11008
            %v11010 = vrot.slane %v11008, 4
            %v11011 = vrot.slane %v10935, 7
            %v11012 = vsel %vm10954, %v11010, %v11011
            %v11013 = vrot.slane %v11011, 4
            %v11014 = vrot.slane %v10936, 7
            %v11015 = vsel %vm10954, %v11013, %v11014
            %v11016 = vrot.slane %v11014, 4
            %v11017 = vrot.slane %v10937, 7
            %v11018 = vsel %vm10954, %v11016, %v11017
            %v11019 = vrot.slane %v11017, 4
            %v11020 = vrot.slane %v10938, 7
            %v11021 = vsel %vm10954, %v11019, %v11020
            %v11022 = vrot.slane %v11020, 4
            %v11023 = vrot.slane %v10939, 7
            %v11024 = vsel %vm10954, %v11022, %v11023
            %v11025 = vrot.slane %v11023, 4
            %v11026 = vrot.slane %v10940, 7
            %v11027 = vsel %vm10954, %v11025, %v11026
            %v11028 = vrot.slane %v11026, 4
            %v11029 = vrot.slane %v10941, 7
            %v11030 = vsel %vm10954, %v11028, %v11029
            %v11031 = vrot.slane %v11029, 4
            %v11032 = vrot.slane %v10942, 7
            %v11033 = vsel %vm10954, %v11031, %v11032
            %v11034 = vrot.slane %v11032, 4
            %v11035 = vrot.slane %v10943, 7
            %v11036 = vsel %vm10954, %v11034, %v11035
            %v11037 = vrot.slane %v11035, 4
            %v11038 = vrot.slane %v10944, 7
            %v11039 = vsel %vm10954, %v11037, %v11038
            %v11040 = vrot.slane %v11038, 4
            %v11041 = vrot.slane %v10945, 7
            %v11042 = vsel %vm10954, %v11040, %v11041
            %v11043 = vrot.slane %v11041, 4
            %v11044 = vrot.slane %v10946, 7
            %v11045 = vsel %vm10954, %v11043, %v11044
            %v11046 = vrot.slane %v11044, 4
            %v11047 = vrot.slane %v10947, 7
            %v11048 = vsel %vm10954, %v11046, %v11047
            %v11049 = vrot.slane %v11047, 4
            %v11050 = vrot.slane %v10948, 7
            %v11051 = vsel %vm10954, %v11049, %v11050
            %v11052 = vrot.slane %v11050, 4
            %v11053 = vrot.slane %v10949, 7
            %v11054 = vsel %vm10954, %v11052, %v11053
            %v11055 = vrot.slane %v11053, 4
            %v11056 = vrot.slane %v10950, 7
            %v11057 = vsel %vm10954, %v11055, %v11056
            %v11058 = vrot.slane %v11056, 4
            %v11059 = vrot.slane %v10951, 7
            %v11060 = vsel %vm10954, %v11058, %v11059
            %v11061 = vrot.slane %v11059, 4
            %11099 = vst [vmem:[#allocation2 + $0xc] sm:$0xe] %v10955
            %11100 = vst [vmem:[#allocation2 + $0x10] sm:$0xf] %v10958
            %11101 = vst [vmem:[#allocation2 + $0x14] sm:$0xf] %v10961
            %11102 = vst [vmem:[#allocation2 + $0x18] sm:$0xf] %v10964
            %11103 = vst [vmem:[#allocation2 + $0x1c] sm:$0xf] %v10967
            %11104 = vst [vmem:[#allocation2 + $0x20] sm:$0xf] %v10970
            %11105 = vst [vmem:[#allocation2 + $0x24] sm:$0xf] %v10973
            %11106 = vst [vmem:[#allocation2 + $0x28] sm:$0xf] %v10976
            %11107 = vst [vmem:[#allocation2 + $0x2c] sm:$0xf] %v10979
            %11108 = vst [vmem:[#allocation2 + $0x30] sm:$0xf] %v10982
            %11109 = vst [vmem:[#allocation2 + $0x34] sm:$0xf] %v10985
            %11110 = vst [vmem:[#allocation2 + $0x38] sm:$0xf] %v10988
            %11111 = vst [vmem:[#allocation2 + $0x3c] sm:$0xf] %v10991
            %11112 = vst [vmem:[#allocation2 + $0x40] sm:$0xf] %v10994
            %11113 = vst [vmem:[#allocation2 + $0x44] sm:$0xf] %v10997
            %11114 = vst [vmem:[#allocation2 + $0x48] sm:$0xf] %v11000
            %11115 = vst [vmem:[#allocation2 + $0x4c] sm:$0xf] %v11003
            %11116 = vst [vmem:[#allocation2 + $0x50] sm:$0xf] %v11006
            %11117 = vst [vmem:[#allocation2 + $0x54] sm:$0xf] %v11009
            %11118 = vst [vmem:[#allocation2 + $0x58] sm:$0xf] %v11012
            %11119 = vst [vmem:[#allocation2 + $0x5c] sm:$0xf] %v11015
            %11120 = vst [vmem:[#allocation2 + $0x60] sm:$0xf] %v11018
            %11121 = vst [vmem:[#allocation2 + $0x64] sm:$0xf] %v11021
            %11122 = vst [vmem:[#allocation2 + $0x68] sm:$0xf] %v11024
            %11123 = vst [vmem:[#allocation2 + $0x6c] sm:$0xf] %v11027
            %11124 = vst [vmem:[#allocation2 + $0x70] sm:$0xf] %v11030
            %11125 = vst [vmem:[#allocation2 + $0x74] sm:$0xf] %v11033
            %11126 = vst [vmem:[#allocation2 + $0x78] sm:$0xf] %v11036
            %11127 = vst [vmem:[#allocation2 + $0x7c] sm:$0xf] %v11039
            %11128 = vst [vmem:[#allocation2 + $0x80] sm:$0xf] %v11042
            %11129 = vst [vmem:[#allocation2 + $0x84] sm:$0xf] %v11045
            %11130 = vst [vmem:[#allocation2 + $0x88] sm:$0xf] %v11048
            %11131 = vst [vmem:[#allocation2 + $0x8c] sm:$0xf] %v11051
            %11132 = vst [vmem:[#allocation2 + $0x90] sm:$0xf] %v11054
            %11133 = vst [vmem:[#allocation2 + $0x94] sm:$0xf] %v11057
            %11134 = vst [vmem:[#allocation2 + $0x98] sm:$0xf] %v11060
            %11135 = vst [vmem:[#allocation2 + $0x9c] sm:$0x1] %v11061
          $region72: #{dncnn_forward.1} parent=67 // pred_fallthru
            _
          %p11136 = scmp.eq.s32.totalorder %s26, 49
          // Predicated region
          $region77: #{dncnn_forward.1} parent=67 // pred_check
            %p11137 = pneg %p11136
          $region78: #{dncnn_forward.1} parent=67 // pred_check_branch
            %11139 = sbr.rel (%p11137) target = $region80
          $region79: #{dncnn_forward.1} parent=67 // pred_region
            %v11140 = vtanh.pop %v10349
            %v11141 = vtanh.pop %v10350
            %v11142 = vtanh.pop %v10351
            %v11143 = vtanh.pop %v10352
            %v11144 = vtanh.pop %v10353
            %v11145 = vtanh.pop %v10354
            %v11146 = vtanh.pop %v10355
            %v11147 = vtanh.pop %v10356
            %v11148 = vtanh.pop %v10357
            %v11149 = vtanh.pop %v10358
            %v11150 = vtanh.pop %v10359
            %v11151 = vtanh.pop %v10360
            %v11152 = vtanh.pop %v10361
            %v11153 = vtanh.pop %v10362
            %v11154 = vtanh.pop %v10363
            %v11155 = vtanh.pop %v10364
            %v11156 = vtanh.pop %v10365
            %v11157 = vtanh.pop %v10366
            %v11158 = vtanh.pop %v10367
            %v11159 = vtanh.pop %v10368
            %v11160 = vtanh.pop %v10369
            %v11161 = vtanh.pop %v10370
            %v11162 = vtanh.pop %v10371
            %v11163 = vtanh.pop %v10372
            %v11164 = vtanh.pop %v10373
            %v11165 = vtanh.pop %v10374
            %v11166 = vtanh.pop %v10375
            %v11167 = vtanh.pop %v10376
            %v11168 = vtanh.pop %v10377
            %v11169 = vtanh.pop %v10378
            %v11170 = vtanh.pop %v10379
            %v11171 = vtanh.pop %v10380
            %v11172 = vtanh.pop %v10381
            %v11173 = vtanh.pop %v10382
            %v11174 = vtanh.pop %v10383
            %v11175 = vtanh.pop %v10384
            %11177 = vset.pattern.permute.xlu0 0
            %11178 = vperm.xlu0 %11177, %v10385
            %v11179 = vpop.permute.xlu0 %11178
            %11182 = vset.pattern.permute.xlu0 0
            %11183 = vperm.xlu0 %11182, %v10386
            %v11184 = vpop.permute.xlu0 %11183
            %11187 = vset.pattern.permute.xlu0 0
            %11188 = vperm.xlu0 %11187, %v10387
            %v11189 = vpop.permute.xlu0 %11188
            %11192 = vset.pattern.permute.xlu0 0
            %11193 = vperm.xlu0 %11192, %v10388
            %v11194 = vpop.permute.xlu0 %11193
            %11197 = vset.pattern.permute.xlu0 0
            %11198 = vperm.xlu0 %11197, %v10389
            %v11199 = vpop.permute.xlu0 %11198
            %11202 = vset.pattern.permute.xlu0 0
            %11203 = vperm.xlu0 %11202, %v10390
            %v11204 = vpop.permute.xlu0 %11203
            %11207 = vset.pattern.permute.xlu0 0
            %11208 = vperm.xlu0 %11207, %v10391
            %v11209 = vpop.permute.xlu0 %11208
            %11212 = vset.pattern.permute.xlu0 0
            %11213 = vperm.xlu0 %11212, %v10392
            %v11214 = vpop.permute.xlu0 %11213
            %11217 = vset.pattern.permute.xlu0 0
            %11218 = vperm.xlu0 %11217, %v10393
            %v11219 = vpop.permute.xlu0 %11218
            %11222 = vset.pattern.permute.xlu0 0
            %11223 = vperm.xlu0 %11222, %v10394
            %v11224 = vpop.permute.xlu0 %11223
            %11227 = vset.pattern.permute.xlu0 0
            %11228 = vperm.xlu0 %11227, %v10395
            %v11229 = vpop.permute.xlu0 %11228
            %11232 = vset.pattern.permute.xlu0 0
            %11233 = vperm.xlu0 %11232, %v10396
            %v11234 = vpop.permute.xlu0 %11233
            %11237 = vset.pattern.permute.xlu0 0
            %11238 = vperm.xlu0 %11237, %v10397
            %v11239 = vpop.permute.xlu0 %11238
            %11242 = vset.pattern.permute.xlu0 0
            %11243 = vperm.xlu0 %11242, %v10398
            %v11244 = vpop.permute.xlu0 %11243
            %11247 = vset.pattern.permute.xlu0 0
            %11248 = vperm.xlu0 %11247, %v10399
            %v11249 = vpop.permute.xlu0 %11248
            %11252 = vset.pattern.permute.xlu0 0
            %11253 = vperm.xlu0 %11252, %v10400
            %v11254 = vpop.permute.xlu0 %11253
            %11257 = vset.pattern.permute.xlu0 0
            %11258 = vperm.xlu0 %11257, %v10401
            %v11259 = vpop.permute.xlu0 %11258
            %11262 = vset.pattern.permute.xlu0 0
            %11263 = vperm.xlu0 %11262, %v10402
            %v11264 = vpop.permute.xlu0 %11263
            %11267 = vset.pattern.permute.xlu0 0
            %11268 = vperm.xlu0 %11267, %v10403
            %v11269 = vpop.permute.xlu0 %11268
            %11272 = vset.pattern.permute.xlu0 0
            %11273 = vperm.xlu0 %11272, %v10404
            %v11274 = vpop.permute.xlu0 %11273
            %11277 = vset.pattern.permute.xlu0 0
            %11278 = vperm.xlu0 %11277, %v10405
            %v11279 = vpop.permute.xlu0 %11278
            %11282 = vset.pattern.permute.xlu0 0
            %11283 = vperm.xlu0 %11282, %v10406
            %v11284 = vpop.permute.xlu0 %11283
            %11287 = vset.pattern.permute.xlu0 0
            %11288 = vperm.xlu0 %11287, %v10407
            %v11289 = vpop.permute.xlu0 %11288
            %11292 = vset.pattern.permute.xlu0 0
            %11293 = vperm.xlu0 %11292, %v10408
            %v11294 = vpop.permute.xlu0 %11293
            %11297 = vset.pattern.permute.xlu0 0
            %11298 = vperm.xlu0 %11297, %v10409
            %v11299 = vpop.permute.xlu0 %11298
            %11302 = vset.pattern.permute.xlu0 0
            %11303 = vperm.xlu0 %11302, %v10410
            %v11304 = vpop.permute.xlu0 %11303
            %11307 = vset.pattern.permute.xlu0 0
            %11308 = vperm.xlu0 %11307, %v10411
            %v11309 = vpop.permute.xlu0 %11308
            %11312 = vset.pattern.permute.xlu0 0
            %11313 = vperm.xlu0 %11312, %v10412
            %v11314 = vpop.permute.xlu0 %11313
            %11317 = vset.pattern.permute.xlu0 0
            %11318 = vperm.xlu0 %11317, %v10413
            %v11319 = vpop.permute.xlu0 %11318
            %11322 = vset.pattern.permute.xlu0 0
            %11323 = vperm.xlu0 %11322, %v10414
            %v11324 = vpop.permute.xlu0 %11323
            %11327 = vset.pattern.permute.xlu0 0
            %11328 = vperm.xlu0 %11327, %v10415
            %v11329 = vpop.permute.xlu0 %11328
            %11332 = vset.pattern.permute.xlu0 0
            %11333 = vperm.xlu0 %11332, %v10416
            %v11334 = vpop.permute.xlu0 %11333
            %11337 = vset.pattern.permute.xlu0 0
            %11338 = vperm.xlu0 %11337, %v10417
            %v11339 = vpop.permute.xlu0 %11338
            %11342 = vset.pattern.permute.xlu0 0
            %11343 = vperm.xlu0 %11342, %v10418
            %v11344 = vpop.permute.xlu0 %11343
            %11347 = vset.pattern.permute.xlu0 0
            %11348 = vperm.xlu0 %11347, %v10419
            %v11349 = vpop.permute.xlu0 %11348
            %11352 = vset.pattern.permute.xlu0 0
            %11353 = vperm.xlu0 %11352, %v10420
            %v11354 = vpop.permute.xlu0 %11353
            %v11356 = vmul.f32 %v11140, %v11179
            %v11357 = vmul.f32 %v11141, %v11184
            %v11358 = vmul.f32 %v11142, %v11189
            %v11359 = vmul.f32 %v11143, %v11194
            %v11360 = vmul.f32 %v11144, %v11199
            %v11361 = vmul.f32 %v11145, %v11204
            %v11362 = vmul.f32 %v11146, %v11209
            %v11363 = vmul.f32 %v11147, %v11214
            %v11364 = vmul.f32 %v11148, %v11219
            %v11365 = vmul.f32 %v11149, %v11224
            %v11366 = vmul.f32 %v11150, %v11229
            %v11367 = vmul.f32 %v11151, %v11234
            %v11368 = vmul.f32 %v11152, %v11239
            %v11369 = vmul.f32 %v11153, %v11244
            %v11370 = vmul.f32 %v11154, %v11249
            %v11371 = vmul.f32 %v11155, %v11254
            %v11372 = vmul.f32 %v11156, %v11259
            %v11373 = vmul.f32 %v11157, %v11264
            %v11374 = vmul.f32 %v11158, %v11269
            %v11375 = vmul.f32 %v11159, %v11274
            %v11376 = vmul.f32 %v11160, %v11279
            %v11377 = vmul.f32 %v11161, %v11284
            %v11378 = vmul.f32 %v11162, %v11289
            %v11379 = vmul.f32 %v11163, %v11294
            %v11380 = vmul.f32 %v11164, %v11299
            %v11381 = vmul.f32 %v11165, %v11304
            %v11382 = vmul.f32 %v11166, %v11309
            %v11383 = vmul.f32 %v11167, %v11314
            %v11384 = vmul.f32 %v11168, %v11319
            %v11385 = vmul.f32 %v11169, %v11324
            %v11386 = vmul.f32 %v11170, %v11329
            %v11387 = vmul.f32 %v11171, %v11334
            %v11388 = vmul.f32 %v11172, %v11339
            %v11389 = vmul.f32 %v11173, %v11344
            %v11390 = vmul.f32 %v11174, %v11349
            %v11391 = vmul.f32 %v11175, %v11354
            %11392 = vst [vmem:[%s286] sm:$0xff] %v11356
            %11393 = vst [vmem:[%s286 + $0x8] sm:$0xff] %v11357
            %11394 = vst [vmem:[%s286 + $0x10] sm:$0xff] %v11358
            %11395 = vst [vmem:[%s286 + $0x18] sm:$0xff] %v11359
            %11396 = vst [vmem:[%s286 + $0x20] sm:$0xff] %v11360
            %11397 = vst [vmem:[%s286 + $0x28] sm:$0xff] %v11361
            %11398 = vst [vmem:[%s286 + $0x30] sm:$0xff] %v11362
            %11399 = vst [vmem:[%s286 + $0x38] sm:$0xff] %v11363
            %11400 = vst [vmem:[%s286 + $0x40] sm:$0xff] %v11364
            %11401 = vst [vmem:[%s286 + $0x48] sm:$0xff] %v11365
            %11402 = vst [vmem:[%s286 + $0x50] sm:$0xff] %v11366
            %11403 = vst [vmem:[%s286 + $0x58] sm:$0xff] %v11367
            %11404 = vst [vmem:[%s286 + $0x60] sm:$0xff] %v11368
            %11405 = vst [vmem:[%s286 + $0x68] sm:$0xff] %v11369
            %11406 = vst [vmem:[%s286 + $0x70] sm:$0xff] %v11370
            %11407 = vst [vmem:[%s286 + $0x78] sm:$0xff] %v11371
            %11408 = vst [vmem:[%s286 + $0x80] sm:$0xff] %v11372
            %11409 = vst [vmem:[%s286 + $0x88] sm:$0xff] %v11373
            %11410 = vst [vmem:[%s286 + $0x90] sm:$0xff] %v11374
            %11411 = vst [vmem:[%s286 + $0x98] sm:$0xff] %v11375
            %11412 = vst [vmem:[%s286 + $0xa0] sm:$0xff] %v11376
            %11413 = vst [vmem:[%s286 + $0xa8] sm:$0xff] %v11377
            %11414 = vst [vmem:[%s286 + $0xb0] sm:$0xff] %v11378
            %11415 = vst [vmem:[%s286 + $0xb8] sm:$0xff] %v11379
            %11416 = vst [vmem:[%s286 + $0xc0] sm:$0xff] %v11380
            %11417 = vst [vmem:[%s286 + $0xc8] sm:$0xff] %v11381
            %11418 = vst [vmem:[%s286 + $0xd0] sm:$0xff] %v11382
            %11419 = vst [vmem:[%s286 + $0xd8] sm:$0xff] %v11383
            %11420 = vst [vmem:[%s286 + $0xe0] sm:$0xff] %v11384
            %11421 = vst [vmem:[%s286 + $0xe8] sm:$0xff] %v11385
            %11422 = vst [vmem:[%s286 + $0xf0] sm:$0xff] %v11386
            %11423 = vst [vmem:[%s286 + $0xf8] sm:$0xff] %v11387
            %11424 = vst [vmem:[%s286 + $0x100] sm:$0xff] %v11388
            %11425 = vst [vmem:[%s286 + $0x108] sm:$0xff] %v11389
            %11426 = vst [vmem:[%s286 + $0x110] sm:$0xff] %v11390
            %11427 = vst [vmem:[%s286 + $0x118] sm:$0xff] %v11391
          $region80: #{dncnn_forward.1} parent=67 // pred_fallthru
            _
        $region68: #{dncnn_forward.1} parent=35 // pred_fallthru
          _
        %p11428 = scmp.lt.s32.totalorder %s25, 1
        %s11429 = scalar_select %p11428, %s25, 1
        %s11430 = smul.addr %s11429, 36
        %s11431 = smul.addr %s11430, 8
        %s11432 = scalar_lea.vmem %s4, %s11431
        // Predicated region
        $region81: #{dncnn_forward.1} parent=35 // pred_check
          %p11433 = pneg %p150
        $region82: #{dncnn_forward.1} parent=35 // pred_check_branch
          %11435 = sbr.rel (%p11433) target = $region84
        $region83: #{dncnn_forward.1} parent=35 // pred_region
          _
        $region84: #{dncnn_forward.1} parent=35 // pred_fallthru
          _
      $region36: #{dncnn_forward.1} parent=5 // pred_fallthru
        _
      %p11436 = scmp.le.s32.totalorder 2, %s16
      // Predicated region
      $region85: #{dncnn_forward.1} parent=5 // pred_check
        %p11437 = pneg %p11436
      $region86: #{dncnn_forward.1} parent=5 // pred_check_branch
        %11439 = sbr.rel (%p11437) target = $region88
      $region87: #{dncnn_forward.1} parent=5 // pred_region
        %s11440 = ssub.s32 %s16, 2
        // Predicated region
        $region89: #{dncnn_forward.1} parent=87 // pred_check
          %p11441 = pneg %p156
        $region90: #{dncnn_forward.1} parent=87 // pred_check_branch
          %11443 = sbr.rel (%p11441) target = $region92
        $region91: #{dncnn_forward.1} parent=87 // pred_region
          %p11444 = scmp.lt.s32.totalorder %s27, 1
          %s11445 = scalar_select %p11444, %s27, 1
          %s11446 = smul.addr %s11445, 36
          %s11447 = smul.addr %s11446, 8
          %s11448 = scalar_lea.vmem %s4, %s11447
        $region92: #{dncnn_forward.1} parent=87 // pred_fallthru
          _
      $region88: #{dncnn_forward.1} parent=5 // pred_fallthru
        _
    $region6: #{dncnn_forward.1} parent=1 // loop_footer
      %s20 = sadd.s32 1, %s16
    $region7: #{dncnn_forward.1} parent=1 // loop_footer_branch
      %15 = sbr.rel target = $region3
    $region8: #{dncnn_forward.1} parent=1 // loop_exit
      _
    %11449 = vsyncpa [#allocation7], 1
    %s11450 = scalar_lea.sflag [#allocation7], 1
    %11451 = vsyncpa %s11450, 1
    %11452 = vsyncpa [#allocation9], 1
    %s11453 = scalar_lea.sflag [#allocation9], 1
    %11454 = vsyncpa %s11453, 1

</llo_original>
